<compile_context>
chip_gen: v6e
topology: v6e:2x2x1
jax: 0.10.0
libtpu: 0.0.40
codegen_flags: <defaults>
</compile_context>

<pallas_src>
import functools

import jax
import jax.numpy as jnp
from jax.experimental import pallas as pl
from jax.experimental.pallas import tpu as pltpu


# ---------------------------------------------------------------------------
# Pallas kernels
# ---------------------------------------------------------------------------
def _matmul_fused_kernel(*refs, has_bias, relu0, has_affine, relu1):
    """refs = (x, w, [bias], [scale, shift], out).

    out = [relu]( [affine]( [relu]( x @ w [+ bias] ) ) )
    bf16 operands, f32 accumulate, f32 epilogue, cast to out dtype.
    """
    o_ref = refs[-1]
    x_ref, w_ref = refs[0], refs[1]
    idx = 2
    acc = jnp.dot(x_ref[...], w_ref[...], preferred_element_type=jnp.float32)
    if has_bias:
        acc = acc + refs[idx][...]
        idx += 1
    if relu0:
        acc = jnp.maximum(acc, 0.0)
    if has_affine:
        acc = acc * refs[idx][...] + refs[idx + 1][...]
        idx += 2
    if relu1:
        acc = jnp.maximum(acc, 0.0)
    o_ref[...] = acc.astype(o_ref.dtype)


def conv_matmul_fused(cols, w, *, bias=None, relu0=False, scale=None, shift=None,
                      relu1=False, out_dtype=jnp.bfloat16, tile_m=1024):
    """act(cols @ w) with the bias/BN/ReLU epilogue fused; M-gridded & pipelined."""
    M, K = cols.shape
    Kw, N = w.shape
    assert K == Kw, (K, Kw)

    if M <= tile_m:
        tm, m_pad = M, M
    else:
        tm = tile_m
        m_pad = ((M + tm - 1) // tm) * tm
        if m_pad != M:
            cols = jnp.pad(cols, ((0, m_pad - M), (0, 0)))
    grid = (m_pad // tm,)

    operands = [cols, w]
    in_specs = [pl.BlockSpec((tm, K), lambda i: (i, 0)),
                pl.BlockSpec((K, N), lambda i: (0, 0))]     # weights stay VMEM-resident
    has_bias = bias is not None
    has_affine = scale is not None
    if has_bias:
        operands.append(jnp.reshape(bias, (1, N)))
        in_specs.append(pl.BlockSpec((1, N), lambda i: (0, 0)))
    if has_affine:
        operands.append(jnp.reshape(scale, (1, N)))
        operands.append(jnp.reshape(shift, (1, N)))
        in_specs += [pl.BlockSpec((1, N), lambda i: (0, 0)),
                     pl.BlockSpec((1, N), lambda i: (0, 0))]

    out = pl.pallas_call(
        functools.partial(_matmul_fused_kernel, has_bias=has_bias, relu0=relu0,
                          has_affine=has_affine, relu1=relu1),
        out_shape=jax.ShapeDtypeStruct((m_pad, N), out_dtype),
        grid=grid,
        in_specs=in_specs,
        out_specs=pl.BlockSpec((tm, N), lambda i: (i, 0)),
        compiler_params=pltpu.CompilerParams(
            dimension_semantics=("parallel",),
            vmem_limit_bytes=32 * 1024 * 1024),
    )(*operands)
    return out[:M] if m_pad != M else out


def _head_kernel(cols_ref, w3_ref, w1_ref, b1_ref, w2_ref, b2_ref, o_ref, *, n_spatial):
    """Fused conv3 (no bias) -> NCHW flatten -> fc1 + ReLU -> (dropout=id) -> fc2.

    cols_ref: [TB, 16, 576] bf16 im2col'd conv3 input (spatial index s = h*4+w).
    w1_ref rows are pre-permuted to (s*64 + c) order so the per-spatial-slice
    accumulation reproduces torch's NCHW flatten exactly.
    """
    tb = cols_ref.shape[0]
    c_per_s = w3_ref.shape[1]          # 64 conv3 output channels
    h = jnp.zeros((tb, w1_ref.shape[1]), jnp.float32)
    for s in range(n_spatial):         # 16 spatial positions, unrolled
        a_s = jnp.dot(cols_ref[:, s, :], w3_ref[...],
                      preferred_element_type=jnp.float32)            # [TB, 64]
        h = h + jnp.dot(a_s.astype(jnp.bfloat16),
                        w1_ref[s * c_per_s:(s + 1) * c_per_s, :],
                        preferred_element_type=jnp.float32)          # [TB, 512]
    h = jnp.maximum(h + b1_ref[...], 0.0)                            # fc1 bias + ReLU
    out = jnp.dot(h.astype(jnp.bfloat16), w2_ref[...],
                  preferred_element_type=jnp.float32) + b2_ref[...]  # [TB, 128]
    o_ref[...] = out.astype(o_ref.dtype)


def head_fused(cols3, w3, w1r, b1, w2p, b2p, *, tile_b=256):
    B, S, K = cols3.shape              # [B, 16, 576]
    if B <= tile_b:
        tb, b_pad = B, B
    else:
        tb = tile_b
        b_pad = ((B + tb - 1) // tb) * tb
        if b_pad != B:
            cols3 = jnp.pad(cols3, ((0, b_pad - B), (0, 0), (0, 0)))
    N1 = w1r.shape[1]                  # 512
    N2 = w2p.shape[1]                  # 128 (lane-dense padded fc2 output)
    grid = (b_pad // tb,)

    out = pl.pallas_call(
        functools.partial(_head_kernel, n_spatial=S),
        out_shape=jax.ShapeDtypeStruct((b_pad, N2), jnp.float32),
        grid=grid,
        in_specs=[
            pl.BlockSpec((tb, S, K), lambda i: (i, 0, 0)),
            pl.BlockSpec(w3.shape, lambda i: (0, 0)),
            pl.BlockSpec(w1r.shape, lambda i: (0, 0)),
            pl.BlockSpec((1, N1), lambda i: (0, 0)),
            pl.BlockSpec(w2p.shape, lambda i: (0, 0)),
            pl.BlockSpec((1, N2), lambda i: (0, 0)),
        ],
        out_specs=pl.BlockSpec((tb, N2), lambda i: (i, 0)),
        compiler_params=pltpu.CompilerParams(
            dimension_semantics=("parallel",),
            vmem_limit_bytes=32 * 1024 * 1024),
    )(cols3, w3, w1r, b1, w2p, b2p)
    return out[:B] if b_pad != B else out


# ---------------------------------------------------------------------------
# Glue: im2col (data movement only, XLA), parameter setup
# ---------------------------------------------------------------------------
def im2col_nhwc(x, *, stride, pad, ksize=3, flatten=True):
    """x: [B,H,W,C] NHWC -> cols with K ordered (kh,kw,c). Padding is applied to the
    post-activation tensor, matching torch conv padding semantics."""
    B, H, W, C = x.shape
    xp = jnp.pad(x, ((0, 0), (pad, pad), (pad, pad), (0, 0)))
    Ho = (H + 2 * pad - ksize) // stride + 1
    Wo = (W + 2 * pad - ksize) // stride + 1
    patches = []
    for kh in range(ksize):
        for kw in range(ksize):
            patches.append(
                xp[:, kh:kh + stride * (Ho - 1) + 1:stride,
                      kw:kw + stride * (Wo - 1) + 1:stride, :])
    cols = jnp.concatenate(patches, axis=-1)                    # [B,Ho,Wo,9*C]
    K = ksize * ksize * C
    if flatten:
        return cols.reshape(B * Ho * Wo, K), (B, Ho, Wo)
    return cols.reshape(B, Ho * Wo, K), (B, Ho, Wo)


def torch_conv_w_to_matmul(w_oihw):
    """[O,I,KH,KW] -> [KH*KW*I, O], matching im2col column order (kh,kw,c)."""
    O, I, KH, KW = w_oihw.shape
    return jnp.transpose(w_oihw, (2, 3, 1, 0)).reshape(KH * KW * I, O)


def fold_bn(gamma, beta, running_mean, running_var, eps=1e-5):
    scale = gamma / jnp.sqrt(running_var + eps)
    shift = beta - running_mean * scale
    return scale, shift


def init_params(key):
    ks = jax.random.split(key, 16)
    p = {}
    # conv1: Conv2d(1, 32, 3, stride=2, pad=1) with bias
    p["conv1_w"] = torch_conv_w_to_matmul(
        0.1 * jax.random.normal(ks[0], (32, 1, 3, 3), jnp.float32)).astype(jnp.bfloat16)
    p["conv1_b"] = (0.1 * jax.random.normal(ks[1], (32,), jnp.float32)).reshape(1, 32)
    # layer2: BatchNorm2d(32) + Conv2d(32, 64, 3, stride=2, pad=1, bias=False)
    g2 = 1.0 + 0.1 * jax.random.normal(ks[2], (32,), jnp.float32)
    b2 = 0.1 * jax.random.normal(ks[3], (32,), jnp.float32)
    m2 = 0.1 * jax.random.normal(ks[4], (32,), jnp.float32)
    v2 = 1.0 + 0.1 * jax.random.uniform(ks[5], (32,), jnp.float32)
    s2, t2 = fold_bn(g2, b2, m2, v2)
    p["bn2_scale"], p["bn2_shift"] = s2.reshape(1, 32), t2.reshape(1, 32)
    p["conv2_w"] = torch_conv_w_to_matmul(
        0.05 * jax.random.normal(ks[6], (64, 32, 3, 3), jnp.float32)).astype(jnp.bfloat16)
    # layer3: BatchNorm2d(64) + Conv2d(64, 64, 3, stride=2, pad=1, bias=False)
    g3 = 1.0 + 0.1 * jax.random.normal(ks[7], (64,), jnp.float32)
    b3 = 0.1 * jax.random.normal(ks[8], (64,), jnp.float32)
    m3 = 0.1 * jax.random.normal(ks[9], (64,), jnp.float32)
    v3 = 1.0 + 0.1 * jax.random.uniform(ks[10], (64,), jnp.float32)
    s3, t3 = fold_bn(g3, b3, m3, v3)
    p["bn3_scale"], p["bn3_shift"] = s3.reshape(1, 64), t3.reshape(1, 64)
    p["conv3_w"] = torch_conv_w_to_matmul(
        0.05 * jax.random.normal(ks[11], (64, 64, 3, 3), jnp.float32)).astype(jnp.bfloat16)
    # linear6: Linear(64*4*4, 512). Torch flatten index = c*16 + s (s = h*4 + w).
    # Permute rows offline to (s*64 + c) so the fused head kernel needs no transpose.
    fc1_w = 0.03 * jax.random.normal(ks[12], (64 * 4 * 4, 512), jnp.float32)
    p["fc1_w_perm"] = (fc1_w.reshape(64, 16, 512).transpose(1, 0, 2)
                       .reshape(16 * 64, 512).astype(jnp.bfloat16))
    p["fc1_b"] = (0.03 * jax.random.normal(ks[13], (512,), jnp.float32)).reshape(1, 512)
    # linear9: Linear(512, 10), output padded to lane-dense 128 (sliced back to 10).
    fc2_w = 0.03 * jax.random.normal(ks[14], (512, 10), jnp.float32)
    p["fc2_w_pad"] = jnp.pad(fc2_w, ((0, 0), (0, 118))).astype(jnp.bfloat16)
    fc2_b = 0.03 * jax.random.normal(ks[15], (10,), jnp.float32)
    p["fc2_b_pad"] = jnp.pad(fc2_b, (0, 118)).reshape(1, 128)
    return p


# ---------------------------------------------------------------------------
# Forward pass (mirrors NetC_MNIST.forward, eval mode)
# ---------------------------------------------------------------------------
def netc_mnist_forward(x_nchw, p):
    x = jnp.transpose(x_nchw, (0, 2, 3, 1)).astype(jnp.bfloat16)   # NHWC, bf16

    # K1: conv1 + bias + relu1 + bn2 affine + relu (layer2 prologue), fused epilogue
    cols, (B, Ho, Wo) = im2col_nhwc(x, stride=2, pad=1)            # [B*196, 9]
    a = conv_matmul_fused(cols, p["conv1_w"], bias=p["conv1_b"], relu0=True,
                          scale=p["bn2_scale"], shift=p["bn2_shift"], relu1=True)
    a = a.reshape(B, Ho, Wo, 32)                                   # [B,14,14,32]

    # K2: conv2 (no bias) + bn3 affine + relu (layer3 prologue), fused epilogue
    cols, (B, Ho, Wo) = im2col_nhwc(a, stride=2, pad=1)            # [B*49, 288]
    a = conv_matmul_fused(cols, p["conv2_w"],
                          scale=p["bn3_scale"], shift=p["bn3_shift"], relu1=True)
    a = a.reshape(B, Ho, Wo, 64)                                   # [B,7,7,64]

    # K3: conv3 + NCHW flatten + fc1 + relu7 + (dropout8 = id) + fc2, fully fused
    cols3, _ = im2col_nhwc(a, stride=2, pad=1, flatten=False)      # [B,16,576]
    logits = head_fused(cols3, p["conv3_w"], p["fc1_w_perm"], p["fc1_b"],
                        p["fc2_w_pad"], p["fc2_b_pad"])            # [B,128]
    return logits[:, :10]


if __name__ == "__main__":
    key = jax.random.PRNGKey(0)
    k_x, k_p = jax.random.split(key)
    # MNIST-shaped input (the 64*4*4 flatten in linear6 requires 1x28x28 inputs).
    x = jax.random.normal(k_x, (2, 1, 28, 28), jnp.float32)        # NCHW, like torch
    params = init_params(k_p)

    fwd = jax.jit(netc_mnist_forward)
    logits = fwd(x, params)
    jax.block_until_ready(logits)
    assert logits.shape == (2, 10), logits.shape
    print("KERNEL_OK")
</pallas_src>

<mosaic_0001>
module attributes {stable_mosaic.version = 11 : i64} {
  func.func @_matmul_fused_kernel(%arg0: i32, %arg1: memref<392x9xbf16, #tpu.memory_space<vmem>>, %arg2: memref<9x32xbf16, #tpu.memory_space<vmem>>, %arg3: memref<1x32xf32, #tpu.memory_space<vmem>>, %arg4: memref<1x32xf32, #tpu.memory_space<vmem>>, %arg5: memref<1x32xf32, #tpu.memory_space<vmem>>, %arg6: memref<392x32xbf16, #tpu.memory_space<vmem>>) attributes {dimension_semantics = [#tpu.dimension_semantics<parallel>], iteration_bounds = array<i64: 1>, scalar_prefetch = 0 : i64, scratch_operands = 0 : i64, tpu.core_type = #tpu.core_type<tc>, window_params = [{transform_indices = @transform_0, window_bounds = array<i64: 392, 9>}, {pipeline_mode = #tpu.pipeline_mode<synchronous>, transform_indices = @transform_1, window_bounds = array<i64: 9, 32>}, {pipeline_mode = #tpu.pipeline_mode<synchronous>, transform_indices = @transform_2, window_bounds = array<i64: 1, 32>}, {pipeline_mode = #tpu.pipeline_mode<synchronous>, transform_indices = @transform_3, window_bounds = array<i64: 1, 32>}, {pipeline_mode = #tpu.pipeline_mode<synchronous>, transform_indices = @transform_4, window_bounds = array<i64: 1, 32>}, {transform_indices = @transform_5, window_bounds = array<i64: 392, 32>}]} {
    %c0 = arith.constant 0 : index
    %c0_0 = arith.constant 0 : index
    %0 = vector.load %arg1[%c0, %c0_0] : memref<392x9xbf16, #tpu.memory_space<vmem>>, vector<392x9xbf16>
    %c0_1 = arith.constant 0 : index
    %c0_2 = arith.constant 0 : index
    %1 = vector.load %arg2[%c0_1, %c0_2] : memref<9x32xbf16, #tpu.memory_space<vmem>>, vector<9x32xbf16>
    %cst = arith.constant dense<0.000000e+00> : vector<392x32xf32>
    %2 = tpu.matmul %0, %1, %cst {dimension_numbers = #tpu.dot_dimension_numbers<[1], [0], [0], [1], [0, 0, 1, 1], [], []>} : vector<392x9xbf16>, vector<9x32xbf16>, vector<392x32xf32> -> vector<392x32xf32>
    %c0_3 = arith.constant 0 : index
    %c0_4 = arith.constant 0 : index
    %3 = vector.load %arg3[%c0_3, %c0_4] : memref<1x32xf32, #tpu.memory_space<vmem>>, vector<1x32xf32>
    %4 = vector.broadcast %3 : vector<1x32xf32> to vector<392x32xf32>
    %5 = arith.addf %2, %4 : vector<392x32xf32>
    %cst_5 = arith.constant 0.000000e+00 : f32
    %6 = vector.broadcast %cst_5 : f32 to vector<392x32xf32>
    %7 = arith.maximumf %5, %6 : vector<392x32xf32>
    %c0_6 = arith.constant 0 : index
    %c0_7 = arith.constant 0 : index
    %8 = vector.load %arg4[%c0_6, %c0_7] : memref<1x32xf32, #tpu.memory_space<vmem>>, vector<1x32xf32>
    %9 = vector.broadcast %8 : vector<1x32xf32> to vector<392x32xf32>
    %10 = arith.mulf %7, %9 : vector<392x32xf32>
    %c0_8 = arith.constant 0 : index
    %c0_9 = arith.constant 0 : index
    %11 = vector.load %arg5[%c0_8, %c0_9] : memref<1x32xf32, #tpu.memory_space<vmem>>, vector<1x32xf32>
    %12 = vector.broadcast %11 : vector<1x32xf32> to vector<392x32xf32>
    %13 = arith.addf %10, %12 : vector<392x32xf32>
    %cst_10 = arith.constant 0.000000e+00 : f32
    %14 = vector.broadcast %cst_10 : f32 to vector<392x32xf32>
    %15 = arith.maximumf %13, %14 : vector<392x32xf32>
    %16 = arith.truncf %15 : vector<392x32xf32> to vector<392x32xbf16>
    %c0_11 = arith.constant 0 : index
    %c0_12 = arith.constant 0 : index
    %17 = vector.load %arg6[%c0_11, %c0_12] : memref<392x32xbf16, #tpu.memory_space<vmem>>, vector<392x32xbf16>
    tpu.vector_store %arg6[%c0_11, %c0_12], %16 {strides = array<i32>} : memref<392x32xbf16, #tpu.memory_space<vmem>>, vector<392x32xbf16>,
    return
  }
  func.func @transform_0(%arg0: i32) -> (i32, i32) {
    %c0_i32 = arith.constant 0 : i32
    %c0_i32_0 = arith.constant 0 : i32
    return %arg0, %c0_i32 : i32, i32
  }
  func.func @transform_1(%arg0: i32) -> (i32, i32) {
    %c0_i32 = arith.constant 0 : i32
    %c0_i32_0 = arith.constant 0 : i32
    %c0_i32_1 = arith.constant 0 : i32
    return %c0_i32, %c0_i32_0 : i32, i32
  }
  func.func @transform_2(%arg0: i32) -> (i32, i32) {
    %c0_i32 = arith.constant 0 : i32
    %c0_i32_0 = arith.constant 0 : i32
    %c0_i32_1 = arith.constant 0 : i32
    return %c0_i32, %c0_i32_0 : i32, i32
  }
  func.func @transform_3(%arg0: i32) -> (i32, i32) {
    %c0_i32 = arith.constant 0 : i32
    %c0_i32_0 = arith.constant 0 : i32
    %c0_i32_1 = arith.constant 0 : i32
    return %c0_i32, %c0_i32_0 : i32, i32
  }
  func.func @transform_4(%arg0: i32) -> (i32, i32) {
    %c0_i32 = arith.constant 0 : i32
    %c0_i32_0 = arith.constant 0 : i32
    %c0_i32_1 = arith.constant 0 : i32
    return %c0_i32, %c0_i32_0 : i32, i32
  }
  func.func @transform_5(%arg0: i32) -> (i32, i32) {
    %c0_i32 = arith.constant 0 : i32
    %c0_i32_0 = arith.constant 0 : i32
    return %arg0, %c0_i32 : i32, i32
  }
}

module attributes {stable_mosaic.version = 11 : i64} {
  func.func @_matmul_fused_kernel(%arg0: i32, %arg1: memref<98x288xbf16, #tpu.memory_space<vmem>>, %arg2: memref<288x64xbf16, #tpu.memory_space<vmem>>, %arg3: memref<1x64xf32, #tpu.memory_space<vmem>>, %arg4: memref<1x64xf32, #tpu.memory_space<vmem>>, %arg5: memref<98x64xbf16, #tpu.memory_space<vmem>>) attributes {dimension_semantics = [#tpu.dimension_semantics<parallel>], iteration_bounds = array<i64: 1>, scalar_prefetch = 0 : i64, scratch_operands = 0 : i64, tpu.core_type = #tpu.core_type<tc>, window_params = [{transform_indices = @transform_0, window_bounds = array<i64: 98, 288>}, {pipeline_mode = #tpu.pipeline_mode<synchronous>, transform_indices = @transform_1, window_bounds = array<i64: 288, 64>}, {pipeline_mode = #tpu.pipeline_mode<synchronous>, transform_indices = @transform_2, window_bounds = array<i64: 1, 64>}, {pipeline_mode = #tpu.pipeline_mode<synchronous>, transform_indices = @transform_3, window_bounds = array<i64: 1, 64>}, {transform_indices = @transform_4, window_bounds = array<i64: 98, 64>}]} {
    %c0 = arith.constant 0 : index
    %c0_0 = arith.constant 0 : index
    %0 = vector.load %arg1[%c0, %c0_0] : memref<98x288xbf16, #tpu.memory_space<vmem>>, vector<98x288xbf16>
    %c0_1 = arith.constant 0 : index
    %c0_2 = arith.constant 0 : index
    %1 = vector.load %arg2[%c0_1, %c0_2] : memref<288x64xbf16, #tpu.memory_space<vmem>>, vector<288x64xbf16>
    %cst = arith.constant dense<0.000000e+00> : vector<98x64xf32>
    %2 = tpu.matmul %0, %1, %cst {dimension_numbers = #tpu.dot_dimension_numbers<[1], [0], [0], [1], [0, 0, 1, 1], [], []>} : vector<98x288xbf16>, vector<288x64xbf16>, vector<98x64xf32> -> vector<98x64xf32>
    %c0_3 = arith.constant 0 : index
    %c0_4 = arith.constant 0 : index
    %3 = vector.load %arg3[%c0_3, %c0_4] : memref<1x64xf32, #tpu.memory_space<vmem>>, vector<1x64xf32>
    %4 = vector.broadcast %3 : vector<1x64xf32> to vector<98x64xf32>
    %5 = arith.mulf %2, %4 : vector<98x64xf32>
    %c0_5 = arith.constant 0 : index
    %c0_6 = arith.constant 0 : index
    %6 = vector.load %arg4[%c0_5, %c0_6] : memref<1x64xf32, #tpu.memory_space<vmem>>, vector<1x64xf32>
    %7 = vector.broadcast %6 : vector<1x64xf32> to vector<98x64xf32>
    %8 = arith.addf %5, %7 : vector<98x64xf32>
    %cst_7 = arith.constant 0.000000e+00 : f32
    %9 = vector.broadcast %cst_7 : f32 to vector<98x64xf32>
    %10 = arith.maximumf %8, %9 : vector<98x64xf32>
    %11 = arith.truncf %10 : vector<98x64xf32> to vector<98x64xbf16>
    %c0_8 = arith.constant 0 : index
    %c0_9 = arith.constant 0 : index
    %12 = vector.load %arg5[%c0_8, %c0_9] : memref<98x64xbf16, #tpu.memory_space<vmem>>, vector<98x64xbf16>
    tpu.vector_store %arg5[%c0_8, %c0_9], %11 {strides = array<i32>} : memref<98x64xbf16, #tpu.memory_space<vmem>>, vector<98x64xbf16>,
    return
  }
  func.func @transform_0(%arg0: i32) -> (i32, i32) {
    %c0_i32 = arith.constant 0 : i32
    %c0_i32_0 = arith.constant 0 : i32
    return %arg0, %c0_i32 : i32, i32
  }
  func.func @transform_1(%arg0: i32) -> (i32, i32) {
    %c0_i32 = arith.constant 0 : i32
    %c0_i32_0 = arith.constant 0 : i32
    %c0_i32_1 = arith.constant 0 : i32
    return %c0_i32, %c0_i32_0 : i32, i32
  }
  func.func @transform_2(%arg0: i32) -> (i32, i32) {
    %c0_i32 = arith.constant 0 : i32
    %c0_i32_0 = arith.constant 0 : i32
    %c0_i32_1 = arith.constant 0 : i32
    return %c0_i32, %c0_i32_0 : i32, i32
  }
  func.func @transform_3(%arg0: i32) -> (i32, i32) {
    %c0_i32 = arith.constant 0 : i32
    %c0_i32_0 = arith.constant 0 : i32
    %c0_i32_1 = arith.constant 0 : i32
    return %c0_i32, %c0_i32_0 : i32, i32
  }
  func.func @transform_4(%arg0: i32) -> (i32, i32) {
    %c0_i32 = arith.constant 0 : i32
    %c0_i32_0 = arith.constant 0 : i32
    return %arg0, %c0_i32 : i32, i32
  }
}

module attributes {stable_mosaic.version = 11 : i64} {
  func.func @_head_kernel(%arg0: i32, %arg1: memref<2x16x576xbf16, #tpu.memory_space<vmem>>, %arg2: memref<576x64xbf16, #tpu.memory_space<vmem>>, %arg3: memref<1024x512xbf16, #tpu.memory_space<vmem>>, %arg4: memref<1x512xf32, #tpu.memory_space<vmem>>, %arg5: memref<512x128xbf16, #tpu.memory_space<vmem>>, %arg6: memref<1x128xf32, #tpu.memory_space<vmem>>, %arg7: memref<2x128xf32, #tpu.memory_space<vmem>>) attributes {dimension_semantics = [#tpu.dimension_semantics<parallel>], iteration_bounds = array<i64: 1>, scalar_prefetch = 0 : i64, scratch_operands = 0 : i64, tpu.core_type = #tpu.core_type<tc>, window_params = [{transform_indices = @transform_0, window_bounds = array<i64: 2, 16, 576>}, {pipeline_mode = #tpu.pipeline_mode<synchronous>, transform_indices = @transform_1, window_bounds = array<i64: 576, 64>}, {pipeline_mode = #tpu.pipeline_mode<synchronous>, transform_indices = @transform_2, window_bounds = array<i64: 1024, 512>}, {pipeline_mode = #tpu.pipeline_mode<synchronous>, transform_indices = @transform_3, window_bounds = array<i64: 1, 512>}, {pipeline_mode = #tpu.pipeline_mode<synchronous>, transform_indices = @transform_4, window_bounds = array<i64: 512, 128>}, {pipeline_mode = #tpu.pipeline_mode<synchronous>, transform_indices = @transform_5, window_bounds = array<i64: 1, 128>}, {transform_indices = @transform_6, window_bounds = array<i64: 2, 128>}]} {
    %cst = arith.constant 0.000000e+00 : f32
    %0 = vector.broadcast %cst : f32 to vector<2x512xf32>
    %c0 = arith.constant 0 : index
    %c0_0 = arith.constant 0 : index
    %c0_1 = arith.constant 0 : index
    %1 = vector.load %arg1[%c0, %c0_0, %c0_1] : memref<2x16x576xbf16, #tpu.memory_space<vmem>>, vector<2x1x576xbf16>
    %2 = vector.shape_cast %1 : vector<2x1x576xbf16> to vector<2x576xbf16>
    %c0_2 = arith.constant 0 : index
    %c0_3 = arith.constant 0 : index
    %3 = vector.load %arg2[%c0_2, %c0_3] : memref<576x64xbf16, #tpu.memory_space<vmem>>, vector<576x64xbf16>
    %cst_4 = arith.constant dense<0.000000e+00> : vector<2x64xf32>
    %4 = tpu.matmul %2, %3, %cst_4 {dimension_numbers = #tpu.dot_dimension_numbers<[1], [0], [0], [1], [0, 0, 1, 1], [], []>} : vector<2x576xbf16>, vector<576x64xbf16>, vector<2x64xf32> -> vector<2x64xf32>
    %5 = arith.truncf %4 : vector<2x64xf32> to vector<2x64xbf16>
    %c0_5 = arith.constant 0 : index
    %c0_6 = arith.constant 0 : index
    %6 = vector.load %arg3[%c0_5, %c0_6] : memref<1024x512xbf16, #tpu.memory_space<vmem>>, vector<64x512xbf16>
    %cst_7 = arith.constant dense<0.000000e+00> : vector<2x512xf32>
    %7 = tpu.matmul %5, %6, %cst_7 {dimension_numbers = #tpu.dot_dimension_numbers<[1], [0], [0], [1], [0, 0, 1, 1], [], []>} : vector<2x64xbf16>, vector<64x512xbf16>, vector<2x512xf32> -> vector<2x512xf32>
    %8 = arith.addf %0, %7 : vector<2x512xf32>
    %c0_8 = arith.constant 0 : index
    %c1 = arith.constant 1 : index
    %c0_9 = arith.constant 0 : index
    %9 = vector.load %arg1[%c0_8, %c1, %c0_9] : memref<2x16x576xbf16, #tpu.memory_space<vmem>>, vector<2x1x576xbf16>
    %10 = vector.shape_cast %9 : vector<2x1x576xbf16> to vector<2x576xbf16>
    %c0_10 = arith.constant 0 : index
    %c0_11 = arith.constant 0 : index
    %11 = vector.load %arg2[%c0_10, %c0_11] : memref<576x64xbf16, #tpu.memory_space<vmem>>, vector<576x64xbf16>
    %cst_12 = arith.constant dense<0.000000e+00> : vector<2x64xf32>
    %12 = tpu.matmul %10, %11, %cst_12 {dimension_numbers = #tpu.dot_dimension_numbers<[1], [0], [0], [1], [0, 0, 1, 1], [], []>} : vector<2x576xbf16>, vector<576x64xbf16>, vector<2x64xf32> -> vector<2x64xf32>
    %13 = arith.truncf %12 : vector<2x64xf32> to vector<2x64xbf16>
    %c64 = arith.constant 64 : index
    %c0_13 = arith.constant 0 : index
    %14 = vector.load %arg3[%c64, %c0_13] : memref<1024x512xbf16, #tpu.memory_space<vmem>>, vector<64x512xbf16>
    %cst_14 = arith.constant dense<0.000000e+00> : vector<2x512xf32>
    %15 = tpu.matmul %13, %14, %cst_14 {dimension_numbers = #tpu.dot_dimension_numbers<[1], [0], [0], [1], [0, 0, 1, 1], [], []>} : vector<2x64xbf16>, vector<64x512xbf16>, vector<2x512xf32> -> vector<2x512xf32>
    %16 = arith.addf %8, %15 : vector<2x512xf32>
    %c0_15 = arith.constant 0 : index
    %c2 = arith.constant 2 : index
    %c0_16 = arith.constant 0 : index
    %17 = vector.load %arg1[%c0_15, %c2, %c0_16] : memref<2x16x576xbf16, #tpu.memory_space<vmem>>, vector<2x1x576xbf16>
    %18 = vector.shape_cast %17 : vector<2x1x576xbf16> to vector<2x576xbf16>
    %c0_17 = arith.constant 0 : index
    %c0_18 = arith.constant 0 : index
    %19 = vector.load %arg2[%c0_17, %c0_18] : memref<576x64xbf16, #tpu.memory_space<vmem>>, vector<576x64xbf16>
    %cst_19 = arith.constant dense<0.000000e+00> : vector<2x64xf32>
    %20 = tpu.matmul %18, %19, %cst_19 {dimension_numbers = #tpu.dot_dimension_numbers<[1], [0], [0], [1], [0, 0, 1, 1], [], []>} : vector<2x576xbf16>, vector<576x64xbf16>, vector<2x64xf32> -> vector<2x64xf32>
    %21 = arith.truncf %20 : vector<2x64xf32> to vector<2x64xbf16>
    %c128 = arith.constant 128 : index
    %c0_20 = arith.constant 0 : index
    %22 = vector.load %arg3[%c128, %c0_20] : memref<1024x512xbf16, #tpu.memory_space<vmem>>, vector<64x512xbf16>
    %cst_21 = arith.constant dense<0.000000e+00> : vector<2x512xf32>
    %23 = tpu.matmul %21, %22, %cst_21 {dimension_numbers = #tpu.dot_dimension_numbers<[1], [0], [0], [1], [0, 0, 1, 1], [], []>} : vector<2x64xbf16>, vector<64x512xbf16>, vector<2x512xf32> -> vector<2x512xf32>
    %24 = arith.addf %16, %23 : vector<2x512xf32>
    %c0_22 = arith.constant 0 : index
    %c3 = arith.constant 3 : index
    %c0_23 = arith.constant 0 : index
    %25 = vector.load %arg1[%c0_22, %c3, %c0_23] : memref<2x16x576xbf16, #tpu.memory_space<vmem>>, vector<2x1x576xbf16>
    %26 = vector.shape_cast %25 : vector<2x1x576xbf16> to vector<2x576xbf16>
    %c0_24 = arith.constant 0 : index
    %c0_25 = arith.constant 0 : index
    %27 = vector.load %arg2[%c0_24, %c0_25] : memref<576x64xbf16, #tpu.memory_space<vmem>>, vector<576x64xbf16>
    %cst_26 = arith.constant dense<0.000000e+00> : vector<2x64xf32>
    %28 = tpu.matmul %26, %27, %cst_26 {dimension_numbers = #tpu.dot_dimension_numbers<[1], [0], [0], [1], [0, 0, 1, 1], [], []>} : vector<2x576xbf16>, vector<576x64xbf16>, vector<2x64xf32> -> vector<2x64xf32>
    %29 = arith.truncf %28 : vector<2x64xf32> to vector<2x64xbf16>
    %c192 = arith.constant 192 : index
    %c0_27 = arith.constant 0 : index
    %30 = vector.load %arg3[%c192, %c0_27] : memref<1024x512xbf16, #tpu.memory_space<vmem>>, vector<64x512xbf16>
    %cst_28 = arith.constant dense<0.000000e+00> : vector<2x512xf32>
    %31 = tpu.matmul %29, %30, %cst_28 {dimension_numbers = #tpu.dot_dimension_numbers<[1], [0], [0], [1], [0, 0, 1, 1], [], []>} : vector<2x64xbf16>, vector<64x512xbf16>, vector<2x512xf32> -> vector<2x512xf32>
    %32 = arith.addf %24, %31 : vector<2x512xf32>
    %c0_29 = arith.constant 0 : index
    %c4 = arith.constant 4 : index
    %c0_30 = arith.constant 0 : index
    %33 = vector.load %arg1[%c0_29, %c4, %c0_30] : memref<2x16x576xbf16, #tpu.memory_space<vmem>>, vector<2x1x576xbf16>
    %34 = vector.shape_cast %33 : vector<2x1x576xbf16> to vector<2x576xbf16>
    %c0_31 = arith.constant 0 : index
    %c0_32 = arith.constant 0 : index
    %35 = vector.load %arg2[%c0_31, %c0_32] : memref<576x64xbf16, #tpu.memory_space<vmem>>, vector<576x64xbf16>
    %cst_33 = arith.constant dense<0.000000e+00> : vector<2x64xf32>
    %36 = tpu.matmul %34, %35, %cst_33 {dimension_numbers = #tpu.dot_dimension_numbers<[1], [0], [0], [1], [0, 0, 1, 1], [], []>} : vector<2x576xbf16>, vector<576x64xbf16>, vector<2x64xf32> -> vector<2x64xf32>
    %37 = arith.truncf %36 : vector<2x64xf32> to vector<2x64xbf16>
    %c256 = arith.constant 256 : index
    %c0_34 = arith.constant 0 : index
    %38 = vector.load %arg3[%c256, %c0_34] : memref<1024x512xbf16, #tpu.memory_space<vmem>>, vector<64x512xbf16>
    %cst_35 = arith.constant dense<0.000000e+00> : vector<2x512xf32>
    %39 = tpu.matmul %37, %38, %cst_35 {dimension_numbers = #tpu.dot_dimension_numbers<[1], [0], [0], [1], [0, 0, 1, 1], [], []>} : vector<2x64xbf16>, vector<64x512xbf16>, vector<2x512xf32> -> vector<2x512xf32>
    %40 = arith.addf %32, %39 : vector<2x512xf32>
    %c0_36 = arith.constant 0 : index
    %c5 = arith.constant 5 : index
    %c0_37 = arith.constant 0 : index
    %41 = vector.load %arg1[%c0_36, %c5, %c0_37] : memref<2x16x576xbf16, #tpu.memory_space<vmem>>, vector<2x1x576xbf16>
    %42 = vector.shape_cast %41 : vector<2x1x576xbf16> to vector<2x576xbf16>
    %c0_38 = arith.constant 0 : index
    %c0_39 = arith.constant 0 : index
    %43 = vector.load %arg2[%c0_38, %c0_39] : memref<576x64xbf16, #tpu.memory_space<vmem>>, vector<576x64xbf16>
    %cst_40 = arith.constant dense<0.000000e+00> : vector<2x64xf32>
    %44 = tpu.matmul %42, %43, %cst_40 {dimension_numbers = #tpu.dot_dimension_numbers<[1], [0], [0], [1], [0, 0, 1, 1], [], []>} : vector<2x576xbf16>, vector<576x64xbf16>, vector<2x64xf32> -> vector<2x64xf32>
    %45 = arith.truncf %44 : vector<2x64xf32> to vector<2x64xbf16>
    %c320 = arith.constant 320 : index
    %c0_41 = arith.constant 0 : index
    %46 = vector.load %arg3[%c320, %c0_41] : memref<1024x512xbf16, #tpu.memory_space<vmem>>, vector<64x512xbf16>
    %cst_42 = arith.constant dense<0.000000e+00> : vector<2x512xf32>
    %47 = tpu.matmul %45, %46, %cst_42 {dimension_numbers = #tpu.dot_dimension_numbers<[1], [0], [0], [1], [0, 0, 1, 1], [], []>} : vector<2x64xbf16>, vector<64x512xbf16>, vector<2x512xf32> -> vector<2x512xf32>
    %48 = arith.addf %40, %47 : vector<2x512xf32>
    %c0_43 = arith.constant 0 : index
    %c6 = arith.constant 6 : index
    %c0_44 = arith.constant 0 : index
    %49 = vector.load %arg1[%c0_43, %c6, %c0_44] : memref<2x16x576xbf16, #tpu.memory_space<vmem>>, vector<2x1x576xbf16>
    %50 = vector.shape_cast %49 : vector<2x1x576xbf16> to vector<2x576xbf16>
    %c0_45 = arith.constant 0 : index
    %c0_46 = arith.constant 0 : index
    %51 = vector.load %arg2[%c0_45, %c0_46] : memref<576x64xbf16, #tpu.memory_space<vmem>>, vector<576x64xbf16>
    %cst_47 = arith.constant dense<0.000000e+00> : vector<2x64xf32>
    %52 = tpu.matmul %50, %51, %cst_47 {dimension_numbers = #tpu.dot_dimension_numbers<[1], [0], [0], [1], [0, 0, 1, 1], [], []>} : vector<2x576xbf16>, vector<576x64xbf16>, vector<2x64xf32> -> vector<2x64xf32>
    %53 = arith.truncf %52 : vector<2x64xf32> to vector<2x64xbf16>
    %c384 = arith.constant 384 : index
    %c0_48 = arith.constant 0 : index
    %54 = vector.load %arg3[%c384, %c0_48] : memref<1024x512xbf16, #tpu.memory_space<vmem>>, vector<64x512xbf16>
    %cst_49 = arith.constant dense<0.000000e+00> : vector<2x512xf32>
    %55 = tpu.matmul %53, %54, %cst_49 {dimension_numbers = #tpu.dot_dimension_numbers<[1], [0], [0], [1], [0, 0, 1, 1], [], []>} : vector<2x64xbf16>, vector<64x512xbf16>, vector<2x512xf32> -> vector<2x512xf32>
    %56 = arith.addf %48, %55 : vector<2x512xf32>
    %c0_50 = arith.constant 0 : index
    %c7 = arith.constant 7 : index
    %c0_51 = arith.constant 0 : index
    %57 = vector.load %arg1[%c0_50, %c7, %c0_51] : memref<2x16x576xbf16, #tpu.memory_space<vmem>>, vector<2x1x576xbf16>
    %58 = vector.shape_cast %57 : vector<2x1x576xbf16> to vector<2x576xbf16>
    %c0_52 = arith.constant 0 : index
    %c0_53 = arith.constant 0 : index
    %59 = vector.load %arg2[%c0_52, %c0_53] : memref<576x64xbf16, #tpu.memory_space<vmem>>, vector<576x64xbf16>
    %cst_54 = arith.constant dense<0.000000e+00> : vector<2x64xf32>
    %60 = tpu.matmul %58, %59, %cst_54 {dimension_numbers = #tpu.dot_dimension_numbers<[1], [0], [0], [1], [0, 0, 1, 1], [], []>} : vector<2x576xbf16>, vector<576x64xbf16>, vector<2x64xf32> -> vector<2x64xf32>
    %61 = arith.truncf %60 : vector<2x64xf32> to vector<2x64xbf16>
    %c448 = arith.constant 448 : index
    %c0_55 = arith.constant 0 : index
    %62 = vector.load %arg3[%c448, %c0_55] : memref<1024x512xbf16, #tpu.memory_space<vmem>>, vector<64x512xbf16>
    %cst_56 = arith.constant dense<0.000000e+00> : vector<2x512xf32>
    %63 = tpu.matmul %61, %62, %cst_56 {dimension_numbers = #tpu.dot_dimension_numbers<[1], [0], [0], [1], [0, 0, 1, 1], [], []>} : vector<2x64xbf16>, vector<64x512xbf16>, vector<2x512xf32> -> vector<2x512xf32>
    %64 = arith.addf %56, %63 : vector<2x512xf32>
    %c0_57 = arith.constant 0 : index
    %c8 = arith.constant 8 : index
    %c0_58 = arith.constant 0 : index
    %65 = vector.load %arg1[%c0_57, %c8, %c0_58] : memref<2x16x576xbf16, #tpu.memory_space<vmem>>, vector<2x1x576xbf16>
    %66 = vector.shape_cast %65 : vector<2x1x576xbf16> to vector<2x576xbf16>
    %c0_59 = arith.constant 0 : index
    %c0_60 = arith.constant 0 : index
    %67 = vector.load %arg2[%c0_59, %c0_60] : memref<576x64xbf16, #tpu.memory_space<vmem>>, vector<576x64xbf16>
    %cst_61 = arith.constant dense<0.000000e+00> : vector<2x64xf32>
    %68 = tpu.matmul %66, %67, %cst_61 {dimension_numbers = #tpu.dot_dimension_numbers<[1], [0], [0], [1], [0, 0, 1, 1], [], []>} : vector<2x576xbf16>, vector<576x64xbf16>, vector<2x64xf32> -> vector<2x64xf32>
    %69 = arith.truncf %68 : vector<2x64xf32> to vector<2x64xbf16>
    %c512 = arith.constant 512 : index
    %c0_62 = arith.constant 0 : index
    %70 = vector.load %arg3[%c512, %c0_62] : memref<1024x512xbf16, #tpu.memory_space<vmem>>, vector<64x512xbf16>
    %cst_63 = arith.constant dense<0.000000e+00> : vector<2x512xf32>
    %71 = tpu.matmul %69, %70, %cst_63 {dimension_numbers = #tpu.dot_dimension_numbers<[1], [0], [0], [1], [0, 0, 1, 1], [], []>} : vector<2x64xbf16>, vector<64x512xbf16>, vector<2x512xf32> -> vector<2x512xf32>
    %72 = arith.addf %64, %71 : vector<2x512xf32>
    %c0_64 = arith.constant 0 : index
    %c9 = arith.constant 9 : index
    %c0_65 = arith.constant 0 : index
    %73 = vector.load %arg1[%c0_64, %c9, %c0_65] : memref<2x16x576xbf16, #tpu.memory_space<vmem>>, vector<2x1x576xbf16>
    %74 = vector.shape_cast %73 : vector<2x1x576xbf16> to vector<2x576xbf16>
    %c0_66 = arith.constant 0 : index
    %c0_67 = arith.constant 0 : index
    %75 = vector.load %arg2[%c0_66, %c0_67] : memref<576x64xbf16, #tpu.memory_space<vmem>>, vector<576x64xbf16>
    %cst_68 = arith.constant dense<0.000000e+00> : vector<2x64xf32>
    %76 = tpu.matmul %74, %75, %cst_68 {dimension_numbers = #tpu.dot_dimension_numbers<[1], [0], [0], [1], [0, 0, 1, 1], [], []>} : vector<2x576xbf16>, vector<576x64xbf16>, vector<2x64xf32> -> vector<2x64xf32>
    %77 = arith.truncf %76 : vector<2x64xf32> to vector<2x64xbf16>
    %c576 = arith.constant 576 : index
    %c0_69 = arith.constant 0 : index
    %78 = vector.load %arg3[%c576, %c0_69] : memref<1024x512xbf16, #tpu.memory_space<vmem>>, vector<64x512xbf16>
    %cst_70 = arith.constant dense<0.000000e+00> : vector<2x512xf32>
    %79 = tpu.matmul %77, %78, %cst_70 {dimension_numbers = #tpu.dot_dimension_numbers<[1], [0], [0], [1], [0, 0, 1, 1], [], []>} : vector<2x64xbf16>, vector<64x512xbf16>, vector<2x512xf32> -> vector<2x512xf32>
    %80 = arith.addf %72, %79 : vector<2x512xf32>
    %c0_71 = arith.constant 0 : index
    %c10 = arith.constant 10 : index
    %c0_72 = arith.constant 0 : index
    %81 = vector.load %arg1[%c0_71, %c10, %c0_72] : memref<2x16x576xbf16, #tpu.memory_space<vmem>>, vector<2x1x576xbf16>
    %82 = vector.shape_cast %81 : vector<2x1x576xbf16> to vector<2x576xbf16>
    %c0_73 = arith.constant 0 : index
    %c0_74 = arith.constant 0 : index
    %83 = vector.load %arg2[%c0_73, %c0_74] : memref<576x64xbf16, #tpu.memory_space<vmem>>, vector<576x64xbf16>
    %cst_75 = arith.constant dense<0.000000e+00> : vector<2x64xf32>
    %84 = tpu.matmul %82, %83, %cst_75 {dimension_numbers = #tpu.dot_dimension_numbers<[1], [0], [0], [1], [0, 0, 1, 1], [], []>} : vector<2x576xbf16>, vector<576x64xbf16>, vector<2x64xf32> -> vector<2x64xf32>
    %85 = arith.truncf %84 : vector<2x64xf32> to vector<2x64xbf16>
    %c640 = arith.constant 640 : index
    %c0_76 = arith.constant 0 : index
    %86 = vector.load %arg3[%c640, %c0_76] : memref<1024x512xbf16, #tpu.memory_space<vmem>>, vector<64x512xbf16>
    %cst_77 = arith.constant dense<0.000000e+00> : vector<2x512xf32>
    %87 = tpu.matmul %85, %86, %cst_77 {dimension_numbers = #tpu.dot_dimension_numbers<[1], [0], [0], [1], [0, 0, 1, 1], [], []>} : vector<2x64xbf16>, vector<64x512xbf16>, vector<2x512xf32> -> vector<2x512xf32>
    %88 = arith.addf %80, %87 : vector<2x512xf32>
    %c0_78 = arith.constant 0 : index
    %c11 = arith.constant 11 : index
    %c0_79 = arith.constant 0 : index
    %89 = vector.load %arg1[%c0_78, %c11, %c0_79] : memref<2x16x576xbf16, #tpu.memory_space<vmem>>, vector<2x1x576xbf16>
    %90 = vector.shape_cast %89 : vector<2x1x576xbf16> to vector<2x576xbf16>
    %c0_80 = arith.constant 0 : index
    %c0_81 = arith.constant 0 : index
    %91 = vector.load %arg2[%c0_80, %c0_81] : memref<576x64xbf16, #tpu.memory_space<vmem>>, vector<576x64xbf16>
    %cst_82 = arith.constant dense<0.000000e+00> : vector<2x64xf32>
    %92 = tpu.matmul %90, %91, %cst_82 {dimension_numbers = #tpu.dot_dimension_numbers<[1], [0], [0], [1], [0, 0, 1, 1], [], []>} : vector<2x576xbf16>, vector<576x64xbf16>, vector<2x64xf32> -> vector<2x64xf32>
    %93 = arith.truncf %92 : vector<2x64xf32> to vector<2x64xbf16>
    %c704 = arith.constant 704 : index
    %c0_83 = arith.constant 0 : index
    %94 = vector.load %arg3[%c704, %c0_83] : memref<1024x512xbf16, #tpu.memory_space<vmem>>, vector<64x512xbf16>
    %cst_84 = arith.constant dense<0.000000e+00> : vector<2x512xf32>
    %95 = tpu.matmul %93, %94, %cst_84 {dimension_numbers = #tpu.dot_dimension_numbers<[1], [0], [0], [1], [0, 0, 1, 1], [], []>} : vector<2x64xbf16>, vector<64x512xbf16>, vector<2x512xf32> -> vector<2x512xf32>
    %96 = arith.addf %88, %95 : vector<2x512xf32>
    %c0_85 = arith.constant 0 : index
    %c12 = arith.constant 12 : index
    %c0_86 = arith.constant 0 : index
    %97 = vector.load %arg1[%c0_85, %c12, %c0_86] : memref<2x16x576xbf16, #tpu.memory_space<vmem>>, vector<2x1x576xbf16>
    %98 = vector.shape_cast %97 : vector<2x1x576xbf16> to vector<2x576xbf16>
    %c0_87 = arith.constant 0 : index
    %c0_88 = arith.constant 0 : index
    %99 = vector.load %arg2[%c0_87, %c0_88] : memref<576x64xbf16, #tpu.memory_space<vmem>>, vector<576x64xbf16>
    %cst_89 = arith.constant dense<0.000000e+00> : vector<2x64xf32>
    %100 = tpu.matmul %98, %99, %cst_89 {dimension_numbers = #tpu.dot_dimension_numbers<[1], [0], [0], [1], [0, 0, 1, 1], [], []>} : vector<2x576xbf16>, vector<576x64xbf16>, vector<2x64xf32> -> vector<2x64xf32>
    %101 = arith.truncf %100 : vector<2x64xf32> to vector<2x64xbf16>
    %c768 = arith.constant 768 : index
    %c0_90 = arith.constant 0 : index
    %102 = vector.load %arg3[%c768, %c0_90] : memref<1024x512xbf16, #tpu.memory_space<vmem>>, vector<64x512xbf16>
    %cst_91 = arith.constant dense<0.000000e+00> : vector<2x512xf32>
    %103 = tpu.matmul %101, %102, %cst_91 {dimension_numbers = #tpu.dot_dimension_numbers<[1], [0], [0], [1], [0, 0, 1, 1], [], []>} : vector<2x64xbf16>, vector<64x512xbf16>, vector<2x512xf32> -> vector<2x512xf32>
    %104 = arith.addf %96, %103 : vector<2x512xf32>
    %c0_92 = arith.constant 0 : index
    %c13 = arith.constant 13 : index
    %c0_93 = arith.constant 0 : index
    %105 = vector.load %arg1[%c0_92, %c13, %c0_93] : memref<2x16x576xbf16, #tpu.memory_space<vmem>>, vector<2x1x576xbf16>
    %106 = vector.shape_cast %105 : vector<2x1x576xbf16> to vector<2x576xbf16>
    %c0_94 = arith.constant 0 : index
    %c0_95 = arith.constant 0 : index
    %107 = vector.load %arg2[%c0_94, %c0_95] : memref<576x64xbf16, #tpu.memory_space<vmem>>, vector<576x64xbf16>
    %cst_96 = arith.constant dense<0.000000e+00> : vector<2x64xf32>
    %108 = tpu.matmul %106, %107, %cst_96 {dimension_numbers = #tpu.dot_dimension_numbers<[1], [0], [0], [1], [0, 0, 1, 1], [], []>} : vector<2x576xbf16>, vector<576x64xbf16>, vector<2x64xf32> -> vector<2x64xf32>
    %109 = arith.truncf %108 : vector<2x64xf32> to vector<2x64xbf16>
    %c832 = arith.constant 832 : index
    %c0_97 = arith.constant 0 : index
    %110 = vector.load %arg3[%c832, %c0_97] : memref<1024x512xbf16, #tpu.memory_space<vmem>>, vector<64x512xbf16>
    %cst_98 = arith.constant dense<0.000000e+00> : vector<2x512xf32>
    %111 = tpu.matmul %109, %110, %cst_98 {dimension_numbers = #tpu.dot_dimension_numbers<[1], [0], [0], [1], [0, 0, 1, 1], [], []>} : vector<2x64xbf16>, vector<64x512xbf16>, vector<2x512xf32> -> vector<2x512xf32>
    %112 = arith.addf %104, %111 : vector<2x512xf32>
    %c0_99 = arith.constant 0 : index
    %c14 = arith.constant 14 : index
    %c0_100 = arith.constant 0 : index
    %113 = vector.load %arg1[%c0_99, %c14, %c0_100] : memref<2x16x576xbf16, #tpu.memory_space<vmem>>, vector<2x1x576xbf16>
    %114 = vector.shape_cast %113 : vector<2x1x576xbf16> to vector<2x576xbf16>
    %c0_101 = arith.constant 0 : index
    %c0_102 = arith.constant 0 : index
    %115 = vector.load %arg2[%c0_101, %c0_102] : memref<576x64xbf16, #tpu.memory_space<vmem>>, vector<576x64xbf16>
    %cst_103 = arith.constant dense<0.000000e+00> : vector<2x64xf32>
    %116 = tpu.matmul %114, %115, %cst_103 {dimension_numbers = #tpu.dot_dimension_numbers<[1], [0], [0], [1], [0, 0, 1, 1], [], []>} : vector<2x576xbf16>, vector<576x64xbf16>, vector<2x64xf32> -> vector<2x64xf32>
    %117 = arith.truncf %116 : vector<2x64xf32> to vector<2x64xbf16>
    %c896 = arith.constant 896 : index
    %c0_104 = arith.constant 0 : index
    %118 = vector.load %arg3[%c896, %c0_104] : memref<1024x512xbf16, #tpu.memory_space<vmem>>, vector<64x512xbf16>
    %cst_105 = arith.constant dense<0.000000e+00> : vector<2x512xf32>
    %119 = tpu.matmul %117, %118, %cst_105 {dimension_numbers = #tpu.dot_dimension_numbers<[1], [0], [0], [1], [0, 0, 1, 1], [], []>} : vector<2x64xbf16>, vector<64x512xbf16>, vector<2x512xf32> -> vector<2x512xf32>
    %120 = arith.addf %112, %119 : vector<2x512xf32>
    %c0_106 = arith.constant 0 : index
    %c15 = arith.constant 15 : index
    %c0_107 = arith.constant 0 : index
    %121 = vector.load %arg1[%c0_106, %c15, %c0_107] : memref<2x16x576xbf16, #tpu.memory_space<vmem>>, vector<2x1x576xbf16>
    %122 = vector.shape_cast %121 : vector<2x1x576xbf16> to vector<2x576xbf16>
    %c0_108 = arith.constant 0 : index
    %c0_109 = arith.constant 0 : index
    %123 = vector.load %arg2[%c0_108, %c0_109] : memref<576x64xbf16, #tpu.memory_space<vmem>>, vector<576x64xbf16>
    %cst_110 = arith.constant dense<0.000000e+00> : vector<2x64xf32>
    %124 = tpu.matmul %122, %123, %cst_110 {dimension_numbers = #tpu.dot_dimension_numbers<[1], [0], [0], [1], [0, 0, 1, 1], [], []>} : vector<2x576xbf16>, vector<576x64xbf16>, vector<2x64xf32> -> vector<2x64xf32>
    %125 = arith.truncf %124 : vector<2x64xf32> to vector<2x64xbf16>
    %c960 = arith.constant 960 : index
    %c0_111 = arith.constant 0 : index
    %126 = vector.load %arg3[%c960, %c0_111] : memref<1024x512xbf16, #tpu.memory_space<vmem>>, vector<64x512xbf16>
    %cst_112 = arith.constant dense<0.000000e+00> : vector<2x512xf32>
    %127 = tpu.matmul %125, %126, %cst_112 {dimension_numbers = #tpu.dot_dimension_numbers<[1], [0], [0], [1], [0, 0, 1, 1], [], []>} : vector<2x64xbf16>, vector<64x512xbf16>, vector<2x512xf32> -> vector<2x512xf32>
    %128 = arith.addf %120, %127 : vector<2x512xf32>
    %c0_113 = arith.constant 0 : index
    %c0_114 = arith.constant 0 : index
    %129 = vector.load %arg4[%c0_113, %c0_114] : memref<1x512xf32, #tpu.memory_space<vmem>>, vector<1x512xf32>
    %130 = vector.broadcast %129 : vector<1x512xf32> to vector<2x512xf32>
    %131 = arith.addf %128, %130 : vector<2x512xf32>
    %cst_115 = arith.constant 0.000000e+00 : f32
    %132 = vector.broadcast %cst_115 : f32 to vector<2x512xf32>
    %133 = arith.maximumf %131, %132 : vector<2x512xf32>
    %134 = arith.truncf %133 : vector<2x512xf32> to vector<2x512xbf16>
    %c0_116 = arith.constant 0 : index
    %c0_117 = arith.constant 0 : index
    %135 = vector.load %arg5[%c0_116, %c0_117] : memref<512x128xbf16, #tpu.memory_space<vmem>>, vector<512x128xbf16>
    %cst_118 = arith.constant dense<0.000000e+00> : vector<2x128xf32>
    %136 = tpu.matmul %134, %135, %cst_118 {dimension_numbers = #tpu.dot_dimension_numbers<[1], [0], [0], [1], [0, 0, 1, 1], [], []>} : vector<2x512xbf16>, vector<512x128xbf16>, vector<2x128xf32> -> vector<2x128xf32>
    %c0_119 = arith.constant 0 : index
    %c0_120 = arith.constant 0 : index
    %137 = vector.load %arg6[%c0_119, %c0_120] : memref<1x128xf32, #tpu.memory_space<vmem>>, vector<1x128xf32>
    %138 = vector.broadcast %137 : vector<1x128xf32> to vector<2x128xf32>
    %139 = arith.addf %136, %138 : vector<2x128xf32>
    %c0_121 = arith.constant 0 : index
    %c0_122 = arith.constant 0 : index
    %140 = vector.load %arg7[%c0_121, %c0_122] : memref<2x128xf32, #tpu.memory_space<vmem>>, vector<2x128xf32>
    tpu.vector_store %arg7[%c0_121, %c0_122], %139 {strides = array<i32>} : memref<2x128xf32, #tpu.memory_space<vmem>>, vector<2x128xf32>,
    return
  }
  func.func @transform_0(%arg0: i32) -> (i32, i32, i32) {
    %c0_i32 = arith.constant 0 : i32
    %c0_i32_0 = arith.constant 0 : i32
    %c0_i32_1 = arith.constant 0 : i32
    return %arg0, %c0_i32, %c0_i32_0 : i32, i32, i32
  }
  func.func @transform_1(%arg0: i32) -> (i32, i32) {
    %c0_i32 = arith.constant 0 : i32
    %c0_i32_0 = arith.constant 0 : i32
    %c0_i32_1 = arith.constant 0 : i32
    return %c0_i32, %c0_i32_0 : i32, i32
  }
  func.func @transform_2(%arg0: i32) -> (i32, i32) {
    %c0_i32 = arith.constant 0 : i32
    %c0_i32_0 = arith.constant 0 : i32
    %c0_i32_1 = arith.constant 0 : i32
    return %c0_i32, %c0_i32_0 : i32, i32
  }
  func.func @transform_3(%arg0: i32) -> (i32, i32) {
    %c0_i32 = arith.constant 0 : i32
    %c0_i32_0 = arith.constant 0 : i32
    %c0_i32_1 = arith.constant 0 : i32
    return %c0_i32, %c0_i32_0 : i32, i32
  }
  func.func @transform_4(%arg0: i32) -> (i32, i32) {
    %c0_i32 = arith.constant 0 : i32
    %c0_i32_0 = arith.constant 0 : i32
    %c0_i32_1 = arith.constant 0 : i32
    return %c0_i32, %c0_i32_0 : i32, i32
  }
  func.func @transform_5(%arg0: i32) -> (i32, i32) {
    %c0_i32 = arith.constant 0 : i32
    %c0_i32_0 = arith.constant 0 : i32
    %c0_i32_1 = arith.constant 0 : i32
    return %c0_i32, %c0_i32_0 : i32, i32
  }
  func.func @transform_6(%arg0: i32) -> (i32, i32) {
    %c0_i32 = arith.constant 0 : i32
    %c0_i32_0 = arith.constant 0 : i32
    return %arg0, %c0_i32 : i32, i32
  }
}

</mosaic_0001>

<llo_original>
// kernel: netc_mnist_forward.3
$region0: #{netc_mnist_forward.3}
  #allocation0 [shape = 'u32[]', space=smem, size = 0x4, offset = 0x4, fixed_abs, tag = 'smem constant byte address 0x4 - core index']
  #allocation1 [shape = 'u32[144,128]{1,0:T(1,128)}', space=vmem, size = 0x12000, scoped, tag = 'internal scratch']
  %s0 = inlined_call_operand.vmem [shape: bf16[392,9], index: 0, kind: input, shape index: {}]
  %s1 = inlined_call_operand.vmem [shape: bf16[9,32], index: 1, kind: input, shape index: {}]
  %s2 = inlined_call_operand.vmem [shape: f32[1,32], index: 2, kind: input, shape index: {}]
  %s3 = inlined_call_operand.vmem [shape: f32[1,32], index: 3, kind: input, shape index: {}]
  %s4 = inlined_call_operand.vmem [shape: f32[1,32], index: 4, kind: input, shape index: {}]
  %s5 = inlined_call_operand.vmem [shape: bf16[392,32], index: 5, kind: output, shape index: {}]
  %s6 = sld [smem:[#allocation0]]
  $region30: #{netc_mnist_forward.3} parent=0
    _
  %s8 = ssub.s32 1, %s6
  %s9 = scalar_select 0, %s8, %s6
  // Predicated region
  $region2: #{netc_mnist_forward.3} parent=0 // pred_check
    _
  $region3: #{netc_mnist_forward.3} parent=0 // pred_check_branch
    %11 = sbr.rel (0) target = $region5
  $region4: #{netc_mnist_forward.3} parent=0 // pred_region
    _
  $region5: #{netc_mnist_forward.3} parent=0 // pred_fallthru
    _
  // Predicated region
  $region6: #{netc_mnist_forward.3} parent=0 // pred_check
    _
  $region7: #{netc_mnist_forward.3} parent=0 // pred_check_branch
    %13 = sbr.rel (0) target = $region9
  $region8: #{netc_mnist_forward.3} parent=0 // pred_region
    _
  $region9: #{netc_mnist_forward.3} parent=0 // pred_fallthru
    _
  // Predicated region
  $region10: #{netc_mnist_forward.3} parent=0 // pred_check
    _
  $region11: #{netc_mnist_forward.3} parent=0 // pred_check_branch
    %15 = sbr.rel (0) target = $region13
  $region12: #{netc_mnist_forward.3} parent=0 // pred_region
    _
  $region13: #{netc_mnist_forward.3} parent=0 // pred_fallthru
    _
  // Predicated region
  $region14: #{netc_mnist_forward.3} parent=0 // pred_check
    _
  $region15: #{netc_mnist_forward.3} parent=0 // pred_check_branch
    %17 = sbr.rel (0) target = $region17
  $region16: #{netc_mnist_forward.3} parent=0 // pred_region
    _
  $region17: #{netc_mnist_forward.3} parent=0 // pred_fallthru
    _
  // Predicated region
  $region18: #{netc_mnist_forward.3} parent=0 // pred_check
    _
  $region19: #{netc_mnist_forward.3} parent=0 // pred_check_branch
    %19 = sbr.rel (0) target = $region21
  $region20: #{netc_mnist_forward.3} parent=0 // pred_region
    _
  $region21: #{netc_mnist_forward.3} parent=0 // pred_fallthru
    _
  %v21 = vld [vmem:[%s0] sm:$0xf]
  %v22 = vld [vmem:[%s0 + $0x4] sm:$0xf]
  %v23 = vld [vmem:[%s0 + $0x8] sm:$0xf]
  %v24 = vld [vmem:[%s0 + $0xc] sm:$0xf]
  %v25 = vld [vmem:[%s0 + $0x10] sm:$0xf]
  %v26 = vld [vmem:[%s0 + $0x14] sm:$0xf]
  %v27 = vld [vmem:[%s0 + $0x18] sm:$0xf]
  %v28 = vld [vmem:[%s0 + $0x1c] sm:$0xf]
  %v29 = vld [vmem:[%s0 + $0x20] sm:$0xf]
  %v30 = vld [vmem:[%s0 + $0x24] sm:$0xf]
  %v31 = vld [vmem:[%s0 + $0x28] sm:$0xf]
  %v32 = vld [vmem:[%s0 + $0x2c] sm:$0xf]
  %v33 = vld [vmem:[%s0 + $0x30] sm:$0xf]
  %v34 = vld [vmem:[%s0 + $0x34] sm:$0xf]
  %v35 = vld [vmem:[%s0 + $0x38] sm:$0xf]
  %v36 = vld [vmem:[%s0 + $0x3c] sm:$0xf]
  %v37 = vld [vmem:[%s0 + $0x40] sm:$0xf]
  %v38 = vld [vmem:[%s0 + $0x44] sm:$0xf]
  %v39 = vld [vmem:[%s0 + $0x48] sm:$0xf]
  %v40 = vld [vmem:[%s0 + $0x4c] sm:$0xf]
  %v41 = vld [vmem:[%s0 + $0x50] sm:$0xf]
  %v42 = vld [vmem:[%s0 + $0x54] sm:$0xf]
  %v43 = vld [vmem:[%s0 + $0x58] sm:$0xf]
  %v44 = vld [vmem:[%s0 + $0x5c] sm:$0xf]
  %v45 = vld [vmem:[%s0 + $0x60] sm:$0xf]
  %v46 = vld [vmem:[%s0 + $0x64] sm:$0xf]
  %v47 = vld [vmem:[%s0 + $0x68] sm:$0xf]
  %v48 = vld [vmem:[%s0 + $0x6c] sm:$0xf]
  %v49 = vld [vmem:[%s0 + $0x70] sm:$0xf]
  %v50 = vld [vmem:[%s0 + $0x74] sm:$0xf]
  %v51 = vld [vmem:[%s0 + $0x78] sm:$0xf]
  %v52 = vld [vmem:[%s0 + $0x7c] sm:$0xf]
  %v53 = vld [vmem:[%s0 + $0x80] sm:$0xf]
  %v54 = vld [vmem:[%s0 + $0x84] sm:$0xf]
  %v55 = vld [vmem:[%s0 + $0x88] sm:$0xf]
  %v56 = vld [vmem:[%s0 + $0x8c] sm:$0xf]
  %v57 = vld [vmem:[%s0 + $0x90] sm:$0xf]
  %v58 = vld [vmem:[%s0 + $0x94] sm:$0xf]
  %v59 = vld [vmem:[%s0 + $0x98] sm:$0xf]
  %v60 = vld [vmem:[%s0 + $0x9c] sm:$0xf]
  %v61 = vld [vmem:[%s0 + $0xa0] sm:$0xf]
  %v62 = vld [vmem:[%s0 + $0xa4] sm:$0xf]
  %v63 = vld [vmem:[%s0 + $0xa8] sm:$0xf]
  %v64 = vld [vmem:[%s0 + $0xac] sm:$0xf]
  %v65 = vld [vmem:[%s0 + $0xb0] sm:$0xf]
  %v66 = vld [vmem:[%s0 + $0xb4] sm:$0xf]
  %v67 = vld [vmem:[%s0 + $0xb8] sm:$0xf]
  %v68 = vld [vmem:[%s0 + $0xbc] sm:$0xf]
  %v69 = vld [vmem:[%s0 + $0xc0] sm:$0xf]
  %v70 = vld [vmem:[%s1] sm:$0xf]
  %v71 = vld [vmem:[%s1 + $0x4] sm:$0x1]
  %v72 = vld [vmem:[%s2] sm:$0x1]
  %v74 = vlaneseq
  %v75 = vshrl.u32 %v74, 7
  %v76 = vsub.s32 0, %v75
  %v77 = vrot.slane %v72, %v76
  %v128 = vunpack.c.l.b16 %v21
  %v129 = vunpack.c.l.b16 %v22
  %v130 = vunpack.c.l.b16 %v23
  %v131 = vunpack.c.l.b16 %v24
  %v132 = vunpack.c.l.b16 %v25
  %v133 = vunpack.c.l.b16 %v26
  %v134 = vunpack.c.l.b16 %v27
  %v135 = vunpack.c.l.b16 %v28
  %v136 = vunpack.c.l.b16 %v29
  %v137 = vunpack.c.l.b16 %v30
  %v138 = vunpack.c.l.b16 %v31
  %v139 = vunpack.c.l.b16 %v32
  %v140 = vunpack.c.l.b16 %v33
  %v141 = vunpack.c.l.b16 %v34
  %v142 = vunpack.c.l.b16 %v35
  %v143 = vunpack.c.l.b16 %v36
  %v144 = vunpack.c.l.b16 %v37
  %v145 = vunpack.c.l.b16 %v38
  %v146 = vunpack.c.l.b16 %v39
  %v147 = vunpack.c.l.b16 %v40
  %v148 = vunpack.c.l.b16 %v41
  %v149 = vunpack.c.l.b16 %v42
  %v150 = vunpack.c.l.b16 %v43
  %v151 = vunpack.c.l.b16 %v44
  %v152 = vunpack.c.l.b16 %v45
  %v153 = vunpack.c.l.b16 %v46
  %v154 = vunpack.c.l.b16 %v47
  %v155 = vunpack.c.l.b16 %v48
  %v156 = vunpack.c.l.b16 %v49
  %v157 = vunpack.c.l.b16 %v50
  %v158 = vunpack.c.l.b16 %v51
  %v159 = vunpack.c.l.b16 %v52
  %v160 = vunpack.c.l.b16 %v53
  %v161 = vunpack.c.l.b16 %v54
  %v162 = vunpack.c.l.b16 %v55
  %v163 = vunpack.c.l.b16 %v56
  %v164 = vunpack.c.l.b16 %v57
  %v165 = vunpack.c.l.b16 %v58
  %v166 = vunpack.c.l.b16 %v59
  %v167 = vunpack.c.l.b16 %v60
  %v168 = vunpack.c.l.b16 %v61
  %v169 = vunpack.c.l.b16 %v62
  %v170 = vunpack.c.l.b16 %v63
  %v171 = vunpack.c.l.b16 %v64
  %v172 = vunpack.c.l.b16 %v65
  %v173 = vunpack.c.l.b16 %v66
  %v174 = vunpack.c.l.b16 %v67
  %v175 = vunpack.c.l.b16 %v68
  %v176 = vunpack.c.l.b16 %v69
  %v177 = vpack.c.b16 %v129, %v128
  %v178 = vpack.c.b16 %v131, %v130
  %v179 = vpack.c.b16 %v133, %v132
  %v180 = vpack.c.b16 %v135, %v134
  %v181 = vpack.c.b16 %v137, %v136
  %v182 = vpack.c.b16 %v139, %v138
  %v183 = vpack.c.b16 %v141, %v140
  %v184 = vpack.c.b16 %v143, %v142
  %v185 = vpack.c.b16 %v145, %v144
  %v186 = vpack.c.b16 %v147, %v146
  %v187 = vpack.c.b16 %v149, %v148
  %v188 = vpack.c.b16 %v151, %v150
  %v189 = vpack.c.b16 %v153, %v152
  %v190 = vpack.c.b16 %v155, %v154
  %v191 = vpack.c.b16 %v157, %v156
  %v192 = vpack.c.b16 %v159, %v158
  %v193 = vpack.c.b16 %v161, %v160
  %v194 = vpack.c.b16 %v163, %v162
  %v195 = vpack.c.b16 %v165, %v164
  %v196 = vpack.c.b16 %v167, %v166
  %v197 = vpack.c.b16 %v169, %v168
  %v198 = vpack.c.b16 %v171, %v170
  %v199 = vpack.c.b16 %v173, %v172
  %v200 = vpack.c.b16 %v175, %v174
  %v201 = vpack.c.b16 %v176, %v176
  %v204 = vunpack.c.l.b16 %v70
  %v205 = vunpack.c.l.b16 %v71
  %v206 = vpack.c.b16 %v205, %v204
  %vm207 = vcmask 72704
  %v209 = vsel %vm207, %v177, 0
  %v212 = vsel %vm207, %v178, 0
  %v215 = vsel %vm207, %v179, 0
  %v218 = vsel %vm207, %v180, 0
  %v221 = vsel %vm207, %v181, 0
  %v224 = vsel %vm207, %v182, 0
  %v227 = vsel %vm207, %v183, 0
  %v230 = vsel %vm207, %v184, 0
  %v233 = vsel %vm207, %v185, 0
  %v236 = vsel %vm207, %v186, 0
  %v239 = vsel %vm207, %v187, 0
  %v242 = vsel %vm207, %v188, 0
  %v245 = vsel %vm207, %v189, 0
  %v248 = vsel %vm207, %v190, 0
  %v251 = vsel %vm207, %v191, 0
  %v254 = vsel %vm207, %v192, 0
  %v257 = vsel %vm207, %v193, 0
  %v260 = vsel %vm207, %v194, 0
  %v263 = vsel %vm207, %v195, 0
  %v266 = vsel %vm207, %v196, 0
  %v269 = vsel %vm207, %v197, 0
  %v272 = vsel %vm207, %v198, 0
  %v275 = vsel %vm207, %v199, 0
  %v278 = vsel %vm207, %v200, 0
  %v281 = vsel %vm207, %v201, 0
  %vm283 = vcmask 1043456
  %vm284 = vcmask 1044480
  %v285 = vsel %vm283, 4294967295, 65535
  %v286 = vsel %vm284, %v285, 0
  %v288 = vand.u32 %v206, %v286
  %290 = vmatprep.subr.bf16.mxu0 0
  %291 = vmatpush1.bf16.msra.mxu0 0
  %292 = vmatprep.subr.bf16.mxu0 0
  %293 = vmatpush1.bf16.msra.mxu0 0
  %294 = vmatprep.subr.bf16.mxu0 0
  %295 = vmatpush1.bf16.msra.mxu0 0
  %296 = vmatprep.subr.bf16.mxu0 0
  %297 = vmatpush1.bf16.msra.mxu0 0
  %298 = vmatprep.subr.bf16.mxu0 0
  %299 = vmatpush1.bf16.msra.mxu0 0
  %300 = vmatprep.subr.bf16.mxu0 0
  %301 = vmatpush1.bf16.msra.mxu0 0
  %302 = vmatprep.subr.bf16.mxu0 0
  %303 = vmatpush1.bf16.msra.mxu0 0
  %304 = vmatprep.subr.bf16.mxu0 0
  %305 = vmatpush1.bf16.msra.mxu0 %v288
  %306 = vmatprep.subr.bf16.mxu0 0
  %307 = vmatpush2.bf16.msra.mxu0 0
  %308 = vmatprep.subr.bf16.mxu0 0
  %309 = vmatpush2.bf16.msra.mxu0 0
  %310 = vmatprep.subr.bf16.mxu0 0
  %311 = vmatpush2.bf16.msra.mxu0 0
  %312 = vmatprep.subr.bf16.mxu0 0
  %313 = vmatpush2.bf16.msra.mxu0 0
  %314 = vmatprep.subr.bf16.mxu0 0
  %315 = vmatpush2.bf16.msra.mxu0 0
  %316 = vmatprep.subr.bf16.mxu0 0
  %317 = vmatpush2.bf16.msra.mxu0 0
  %318 = vmatprep.subr.bf16.mxu0 0
  %319 = vmatpush2.bf16.msra.mxu0 0
  %320 = vmatprep.subr.bf16.mxu0 0
  %321 = vmatpush2.bf16.msra.mxu0 0
  %322 = vmatprep.mubr.bf16.mxu0 0
  %323 = vmatmul.mubr.bf16.gmra.mxu0 %v209
  %v324 = vpop.f32.mrf.mxu0
  %v325 = vadd.f32 %v77, %v324
  %v326 = vpop.f32.mrf.mxu0
  %v327 = vpop.f32.mrf.mxu0
  %v328 = vadd.f32 %v77, %v327
  %v329 = vpop.f32.mrf.mxu0
  %330 = vmatprep.mubr.bf16.mxu0 0
  %331 = vmatmul.mubr.bf16.gmra.mxu0 %v212
  %v332 = vpop.f32.mrf.mxu0
  %v333 = vadd.f32 %v77, %v332
  %v334 = vpop.f32.mrf.mxu0
  %v335 = vpop.f32.mrf.mxu0
  %v336 = vadd.f32 %v77, %v335
  %v337 = vpop.f32.mrf.mxu0
  %338 = vmatprep.mubr.bf16.mxu0 0
  %339 = vmatmul.mubr.bf16.gmra.mxu0 %v215
  %v340 = vpop.f32.mrf.mxu0
  %v341 = vadd.f32 %v77, %v340
  %v342 = vpop.f32.mrf.mxu0
  %v343 = vpop.f32.mrf.mxu0
  %v344 = vadd.f32 %v77, %v343
  %v345 = vpop.f32.mrf.mxu0
  %346 = vmatprep.mubr.bf16.mxu0 0
  %347 = vmatmul.mubr.bf16.gmra.mxu0 %v218
  %v348 = vpop.f32.mrf.mxu0
  %v349 = vadd.f32 %v77, %v348
  %v350 = vpop.f32.mrf.mxu0
  %v351 = vpop.f32.mrf.mxu0
  %v352 = vadd.f32 %v77, %v351
  %v353 = vpop.f32.mrf.mxu0
  %354 = vmatprep.mubr.bf16.mxu0 0
  %355 = vmatmul.mubr.bf16.gmra.mxu0 %v221
  %v356 = vpop.f32.mrf.mxu0
  %v357 = vadd.f32 %v77, %v356
  %v358 = vpop.f32.mrf.mxu0
  %v359 = vpop.f32.mrf.mxu0
  %v360 = vadd.f32 %v77, %v359
  %v361 = vpop.f32.mrf.mxu0
  %362 = vmatprep.mubr.bf16.mxu0 0
  %363 = vmatmul.mubr.bf16.gmra.mxu0 %v224
  %v364 = vpop.f32.mrf.mxu0
  %v365 = vadd.f32 %v77, %v364
  %v366 = vpop.f32.mrf.mxu0
  %v367 = vpop.f32.mrf.mxu0
  %v368 = vadd.f32 %v77, %v367
  %v369 = vpop.f32.mrf.mxu0
  %370 = vmatprep.mubr.bf16.mxu0 0
  %371 = vmatmul.mubr.bf16.gmra.mxu0 %v227
  %v372 = vpop.f32.mrf.mxu0
  %v373 = vadd.f32 %v77, %v372
  %v374 = vpop.f32.mrf.mxu0
  %v375 = vpop.f32.mrf.mxu0
  %v376 = vadd.f32 %v77, %v375
  %v377 = vpop.f32.mrf.mxu0
  %378 = vmatprep.mubr.bf16.mxu0 0
  %379 = vmatmul.mubr.bf16.gmra.mxu0 %v230
  %v380 = vpop.f32.mrf.mxu0
  %v381 = vadd.f32 %v77, %v380
  %v382 = vpop.f32.mrf.mxu0
  %v383 = vpop.f32.mrf.mxu0
  %v384 = vadd.f32 %v77, %v383
  %v385 = vpop.f32.mrf.mxu0
  %386 = vmatprep.mubr.bf16.mxu0 0
  %387 = vmatmul.mubr.bf16.gmra.mxu0 %v233
  %v388 = vpop.f32.mrf.mxu0
  %v389 = vadd.f32 %v77, %v388
  %v390 = vpop.f32.mrf.mxu0
  %v391 = vpop.f32.mrf.mxu0
  %v392 = vadd.f32 %v77, %v391
  %v393 = vpop.f32.mrf.mxu0
  %394 = vmatprep.mubr.bf16.mxu0 0
  %395 = vmatmul.mubr.bf16.gmra.mxu0 %v236
  %v396 = vpop.f32.mrf.mxu0
  %v397 = vadd.f32 %v77, %v396
  %v398 = vpop.f32.mrf.mxu0
  %v399 = vpop.f32.mrf.mxu0
  %v400 = vadd.f32 %v77, %v399
  %v401 = vpop.f32.mrf.mxu0
  %402 = vmatprep.mubr.bf16.mxu0 0
  %403 = vmatmul.mubr.bf16.gmra.mxu0 %v239
  %v404 = vpop.f32.mrf.mxu0
  %v405 = vadd.f32 %v77, %v404
  %v406 = vpop.f32.mrf.mxu0
  %v407 = vpop.f32.mrf.mxu0
  %v408 = vadd.f32 %v77, %v407
  %v409 = vpop.f32.mrf.mxu0
  %410 = vmatprep.mubr.bf16.mxu0 0
  %411 = vmatmul.mubr.bf16.gmra.mxu0 %v242
  %v412 = vpop.f32.mrf.mxu0
  %v413 = vadd.f32 %v77, %v412
  %v414 = vpop.f32.mrf.mxu0
  %v415 = vpop.f32.mrf.mxu0
  %v416 = vadd.f32 %v77, %v415
  %v417 = vpop.f32.mrf.mxu0
  %418 = vmatprep.mubr.bf16.mxu0 0
  %419 = vmatmul.mubr.bf16.gmra.mxu0 %v245
  %v420 = vpop.f32.mrf.mxu0
  %v421 = vadd.f32 %v77, %v420
  %v422 = vpop.f32.mrf.mxu0
  %v423 = vpop.f32.mrf.mxu0
  %v424 = vadd.f32 %v77, %v423
  %v425 = vpop.f32.mrf.mxu0
  %426 = vmatprep.mubr.bf16.mxu0 0
  %427 = vmatmul.mubr.bf16.gmra.mxu0 %v248
  %v428 = vpop.f32.mrf.mxu0
  %v429 = vadd.f32 %v77, %v428
  %v430 = vpop.f32.mrf.mxu0
  %v431 = vpop.f32.mrf.mxu0
  %v432 = vadd.f32 %v77, %v431
  %v433 = vpop.f32.mrf.mxu0
  %434 = vmatprep.mubr.bf16.mxu0 0
  %435 = vmatmul.mubr.bf16.gmra.mxu0 %v251
  %v436 = vpop.f32.mrf.mxu0
  %v437 = vadd.f32 %v77, %v436
  %v438 = vpop.f32.mrf.mxu0
  %v439 = vpop.f32.mrf.mxu0
  %v440 = vadd.f32 %v77, %v439
  %v441 = vpop.f32.mrf.mxu0
  %442 = vmatprep.mubr.bf16.mxu0 0
  %443 = vmatmul.mubr.bf16.gmra.mxu0 %v254
  %v444 = vpop.f32.mrf.mxu0
  %v445 = vadd.f32 %v77, %v444
  %v446 = vpop.f32.mrf.mxu0
  %v447 = vpop.f32.mrf.mxu0
  %v448 = vadd.f32 %v77, %v447
  %v449 = vpop.f32.mrf.mxu0
  %450 = vmatprep.mubr.bf16.mxu0 0
  %451 = vmatmul.mubr.bf16.gmra.mxu0 %v257
  %v452 = vpop.f32.mrf.mxu0
  %v453 = vadd.f32 %v77, %v452
  %v454 = vpop.f32.mrf.mxu0
  %v455 = vpop.f32.mrf.mxu0
  %v456 = vadd.f32 %v77, %v455
  %v457 = vpop.f32.mrf.mxu0
  %458 = vmatprep.mubr.bf16.mxu0 0
  %459 = vmatmul.mubr.bf16.gmra.mxu0 %v260
  %v460 = vpop.f32.mrf.mxu0
  %v461 = vadd.f32 %v77, %v460
  %v462 = vpop.f32.mrf.mxu0
  %v463 = vpop.f32.mrf.mxu0
  %v464 = vadd.f32 %v77, %v463
  %v465 = vpop.f32.mrf.mxu0
  %466 = vmatprep.mubr.bf16.mxu0 0
  %467 = vmatmul.mubr.bf16.gmra.mxu0 %v263
  %v468 = vpop.f32.mrf.mxu0
  %v469 = vadd.f32 %v77, %v468
  %v470 = vpop.f32.mrf.mxu0
  %v471 = vpop.f32.mrf.mxu0
  %v472 = vadd.f32 %v77, %v471
  %v473 = vpop.f32.mrf.mxu0
  %474 = vmatprep.mubr.bf16.mxu0 0
  %475 = vmatmul.mubr.bf16.gmra.mxu0 %v266
  %v476 = vpop.f32.mrf.mxu0
  %v477 = vadd.f32 %v77, %v476
  %v478 = vpop.f32.mrf.mxu0
  %v479 = vpop.f32.mrf.mxu0
  %v480 = vadd.f32 %v77, %v479
  %v481 = vpop.f32.mrf.mxu0
  %482 = vmatprep.mubr.bf16.mxu0 0
  %483 = vmatmul.mubr.bf16.gmra.mxu0 %v269
  %v484 = vpop.f32.mrf.mxu0
  %v485 = vadd.f32 %v77, %v484
  %v486 = vpop.f32.mrf.mxu0
  %v487 = vpop.f32.mrf.mxu0
  %v488 = vadd.f32 %v77, %v487
  %v489 = vpop.f32.mrf.mxu0
  %490 = vmatprep.mubr.bf16.mxu0 0
  %491 = vmatmul.mubr.bf16.gmra.mxu0 %v272
  %v492 = vpop.f32.mrf.mxu0
  %v493 = vadd.f32 %v77, %v492
  %v494 = vpop.f32.mrf.mxu0
  %v495 = vpop.f32.mrf.mxu0
  %v496 = vadd.f32 %v77, %v495
  %v497 = vpop.f32.mrf.mxu0
  %498 = vmatprep.mubr.bf16.mxu0 0
  %499 = vmatmul.mubr.bf16.gmra.mxu0 %v275
  %v500 = vpop.f32.mrf.mxu0
  %v501 = vadd.f32 %v77, %v500
  %v502 = vpop.f32.mrf.mxu0
  %v503 = vpop.f32.mrf.mxu0
  %v504 = vadd.f32 %v77, %v503
  %v505 = vpop.f32.mrf.mxu0
  %506 = vmatprep.mubr.bf16.mxu0 0
  %507 = vmatmul.mubr.bf16.gmra.mxu0 %v278
  %v508 = vpop.f32.mrf.mxu0
  %v509 = vadd.f32 %v77, %v508
  %v510 = vpop.f32.mrf.mxu0
  %v511 = vpop.f32.mrf.mxu0
  %v512 = vadd.f32 %v77, %v511
  %v513 = vpop.f32.mrf.mxu0
  %514 = vmatprep.mubr.bf16.mxu0 0
  %515 = vmatmul.mubr.bf16.gmra.mxu0 %v281
  %v516 = vpop.f32.mrf.mxu0
  %v517 = vadd.f32 %v77, %v516
  %v518 = vpop.f32.mrf.mxu0
  %v519 = vpop.f32.mrf.mxu0
  %v520 = vpop.f32.mrf.mxu0
  %521 = vdwg.mxu0
  %v522 = vmax.f32 %v325, 0.0
  %v523 = vmax.f32 %v328, 0.0
  %v524 = vmax.f32 %v333, 0.0
  %v525 = vmax.f32 %v336, 0.0
  %v526 = vmax.f32 %v341, 0.0
  %v527 = vmax.f32 %v344, 0.0
  %v528 = vmax.f32 %v349, 0.0
  %v529 = vmax.f32 %v352, 0.0
  %v530 = vmax.f32 %v357, 0.0
  %v531 = vmax.f32 %v360, 0.0
  %v532 = vmax.f32 %v365, 0.0
  %v533 = vmax.f32 %v368, 0.0
  %v534 = vmax.f32 %v373, 0.0
  %v535 = vmax.f32 %v376, 0.0
  %v536 = vmax.f32 %v381, 0.0
  %v537 = vmax.f32 %v384, 0.0
  %v538 = vmax.f32 %v389, 0.0
  %v539 = vmax.f32 %v392, 0.0
  %v540 = vmax.f32 %v397, 0.0
  %v541 = vmax.f32 %v400, 0.0
  %v542 = vmax.f32 %v405, 0.0
  %v543 = vmax.f32 %v408, 0.0
  %v544 = vmax.f32 %v413, 0.0
  %v545 = vmax.f32 %v416, 0.0
  %v546 = vmax.f32 %v421, 0.0
  %v547 = vmax.f32 %v424, 0.0
  %v548 = vmax.f32 %v429, 0.0
  %v549 = vmax.f32 %v432, 0.0
  %v550 = vmax.f32 %v437, 0.0
  %v551 = vmax.f32 %v440, 0.0
  %v552 = vmax.f32 %v445, 0.0
  %v553 = vmax.f32 %v448, 0.0
  %v554 = vmax.f32 %v453, 0.0
  %v555 = vmax.f32 %v456, 0.0
  %v556 = vmax.f32 %v461, 0.0
  %v557 = vmax.f32 %v464, 0.0
  %v558 = vmax.f32 %v469, 0.0
  %v559 = vmax.f32 %v472, 0.0
  %v560 = vmax.f32 %v477, 0.0
  %v561 = vmax.f32 %v480, 0.0
  %v562 = vmax.f32 %v485, 0.0
  %v563 = vmax.f32 %v488, 0.0
  %v564 = vmax.f32 %v493, 0.0
  %v565 = vmax.f32 %v496, 0.0
  %v566 = vmax.f32 %v501, 0.0
  %v567 = vmax.f32 %v504, 0.0
  %v568 = vmax.f32 %v509, 0.0
  %v569 = vmax.f32 %v512, 0.0
  %v570 = vmax.f32 %v517, 0.0
  %v571 = vld [vmem:[%s3] sm:$0x1]
  %v573 = vlaneseq
  %v574 = vshrl.u32 %v573, 7
  %v575 = vsub.s32 0, %v574
  %v576 = vrot.slane %v571, %v575
  %v578 = vmul.f32 %v522, %v576
  %v579 = vmul.f32 %v523, %v576
  %v580 = vmul.f32 %v524, %v576
  %v581 = vmul.f32 %v525, %v576
  %v582 = vmul.f32 %v526, %v576
  %v583 = vmul.f32 %v527, %v576
  %v584 = vmul.f32 %v528, %v576
  %v585 = vmul.f32 %v529, %v576
  %v586 = vmul.f32 %v530, %v576
  %v587 = vmul.f32 %v531, %v576
  %v588 = vmul.f32 %v532, %v576
  %v589 = vmul.f32 %v533, %v576
  %v590 = vmul.f32 %v534, %v576
  %v591 = vmul.f32 %v535, %v576
  %v592 = vmul.f32 %v536, %v576
  %v593 = vmul.f32 %v537, %v576
  %v594 = vmul.f32 %v538, %v576
  %v595 = vmul.f32 %v539, %v576
  %v596 = vmul.f32 %v540, %v576
  %v597 = vmul.f32 %v541, %v576
  %v598 = vmul.f32 %v542, %v576
  %v599 = vmul.f32 %v543, %v576
  %v600 = vmul.f32 %v544, %v576
  %v601 = vmul.f32 %v545, %v576
  %v602 = vmul.f32 %v546, %v576
  %v603 = vmul.f32 %v547, %v576
  %v604 = vmul.f32 %v548, %v576
  %v605 = vmul.f32 %v549, %v576
  %v606 = vmul.f32 %v550, %v576
  %v607 = vmul.f32 %v551, %v576
  %v608 = vmul.f32 %v552, %v576
  %v609 = vmul.f32 %v553, %v576
  %v610 = vmul.f32 %v554, %v576
  %v611 = vmul.f32 %v555, %v576
  %v612 = vmul.f32 %v556, %v576
  %v613 = vmul.f32 %v557, %v576
  %v614 = vmul.f32 %v558, %v576
  %v615 = vmul.f32 %v559, %v576
  %v616 = vmul.f32 %v560, %v576
  %v617 = vmul.f32 %v561, %v576
  %v618 = vmul.f32 %v562, %v576
  %v619 = vmul.f32 %v563, %v576
  %v620 = vmul.f32 %v564, %v576
  %v621 = vmul.f32 %v565, %v576
  %v622 = vmul.f32 %v566, %v576
  %v623 = vmul.f32 %v567, %v576
  %v624 = vmul.f32 %v568, %v576
  %v625 = vmul.f32 %v569, %v576
  %v626 = vmul.f32 %v570, %v576
  %v627 = vld [vmem:[%s4] sm:$0x1]
  %v629 = vlaneseq
  %v630 = vshrl.u32 %v629, 7
  %v631 = vsub.s32 0, %v630
  %v632 = vrot.slane %v627, %v631
  %v634 = vadd.f32 %v578, %v632
  %v635 = vadd.f32 %v579, %v632
  %v636 = vadd.f32 %v580, %v632
  %v637 = vadd.f32 %v581, %v632
  %v638 = vadd.f32 %v582, %v632
  %v639 = vadd.f32 %v583, %v632
  %v640 = vadd.f32 %v584, %v632
  %v641 = vadd.f32 %v585, %v632
  %v642 = vadd.f32 %v586, %v632
  %v643 = vadd.f32 %v587, %v632
  %v644 = vadd.f32 %v588, %v632
  %v645 = vadd.f32 %v589, %v632
  %v646 = vadd.f32 %v590, %v632
  %v647 = vadd.f32 %v591, %v632
  %v648 = vadd.f32 %v592, %v632
  %v649 = vadd.f32 %v593, %v632
  %v650 = vadd.f32 %v594, %v632
  %v651 = vadd.f32 %v595, %v632
  %v652 = vadd.f32 %v596, %v632
  %v653 = vadd.f32 %v597, %v632
  %v654 = vadd.f32 %v598, %v632
  %v655 = vadd.f32 %v599, %v632
  %v656 = vadd.f32 %v600, %v632
  %v657 = vadd.f32 %v601, %v632
  %v658 = vadd.f32 %v602, %v632
  %v659 = vadd.f32 %v603, %v632
  %v660 = vadd.f32 %v604, %v632
  %v661 = vadd.f32 %v605, %v632
  %v662 = vadd.f32 %v606, %v632
  %v663 = vadd.f32 %v607, %v632
  %v664 = vadd.f32 %v608, %v632
  %v665 = vadd.f32 %v609, %v632
  %v666 = vadd.f32 %v610, %v632
  %v667 = vadd.f32 %v611, %v632
  %v668 = vadd.f32 %v612, %v632
  %v669 = vadd.f32 %v613, %v632
  %v670 = vadd.f32 %v614, %v632
  %v671 = vadd.f32 %v615, %v632
  %v672 = vadd.f32 %v616, %v632
  %v673 = vadd.f32 %v617, %v632
  %v674 = vadd.f32 %v618, %v632
  %v675 = vadd.f32 %v619, %v632
  %v676 = vadd.f32 %v620, %v632
  %v677 = vadd.f32 %v621, %v632
  %v678 = vadd.f32 %v622, %v632
  %v679 = vadd.f32 %v623, %v632
  %v680 = vadd.f32 %v624, %v632
  %v681 = vadd.f32 %v625, %v632
  %v682 = vadd.f32 %v626, %v632
  %v683 = vmax.f32 %v634, 0.0
  %v684 = vmax.f32 %v635, 0.0
  %v685 = vmax.f32 %v636, 0.0
  %v686 = vmax.f32 %v637, 0.0
  %v687 = vmax.f32 %v638, 0.0
  %v688 = vmax.f32 %v639, 0.0
  %v689 = vmax.f32 %v640, 0.0
  %v690 = vmax.f32 %v641, 0.0
  %v691 = vmax.f32 %v642, 0.0
  %v692 = vmax.f32 %v643, 0.0
  %v693 = vmax.f32 %v644, 0.0
  %v694 = vmax.f32 %v645, 0.0
  %v695 = vmax.f32 %v646, 0.0
  %v696 = vmax.f32 %v647, 0.0
  %v697 = vmax.f32 %v648, 0.0
  %v698 = vmax.f32 %v649, 0.0
  %v699 = vmax.f32 %v650, 0.0
  %v700 = vmax.f32 %v651, 0.0
  %v701 = vmax.f32 %v652, 0.0
  %v702 = vmax.f32 %v653, 0.0
  %v703 = vmax.f32 %v654, 0.0
  %v704 = vmax.f32 %v655, 0.0
  %v705 = vmax.f32 %v656, 0.0
  %v706 = vmax.f32 %v657, 0.0
  %v707 = vmax.f32 %v658, 0.0
  %v708 = vmax.f32 %v659, 0.0
  %v709 = vmax.f32 %v660, 0.0
  %v710 = vmax.f32 %v661, 0.0
  %v711 = vmax.f32 %v662, 0.0
  %v712 = vmax.f32 %v663, 0.0
  %v713 = vmax.f32 %v664, 0.0
  %v714 = vmax.f32 %v665, 0.0
  %v715 = vmax.f32 %v666, 0.0
  %v716 = vmax.f32 %v667, 0.0
  %v717 = vmax.f32 %v668, 0.0
  %v718 = vmax.f32 %v669, 0.0
  %v719 = vmax.f32 %v670, 0.0
  %v720 = vmax.f32 %v671, 0.0
  %v721 = vmax.f32 %v672, 0.0
  %v722 = vmax.f32 %v673, 0.0
  %v723 = vmax.f32 %v674, 0.0
  %v724 = vmax.f32 %v675, 0.0
  %v725 = vmax.f32 %v676, 0.0
  %v726 = vmax.f32 %v677, 0.0
  %v727 = vmax.f32 %v678, 0.0
  %v728 = vmax.f32 %v679, 0.0
  %v729 = vmax.f32 %v680, 0.0
  %v730 = vmax.f32 %v681, 0.0
  %v731 = vmax.f32 %v682, 0.0
  %v732 = vpack.c.bf16 %v684, %v683
  %v733 = vpack.c.bf16 %v686, %v685
  %v734 = vpack.c.bf16 %v688, %v687
  %v735 = vpack.c.bf16 %v690, %v689
  %v736 = vpack.c.bf16 %v692, %v691
  %v737 = vpack.c.bf16 %v694, %v693
  %v738 = vpack.c.bf16 %v696, %v695
  %v739 = vpack.c.bf16 %v698, %v697
  %v740 = vpack.c.bf16 %v700, %v699
  %v741 = vpack.c.bf16 %v702, %v701
  %v742 = vpack.c.bf16 %v704, %v703
  %v743 = vpack.c.bf16 %v706, %v705
  %v744 = vpack.c.bf16 %v708, %v707
  %v745 = vpack.c.bf16 %v710, %v709
  %v746 = vpack.c.bf16 %v712, %v711
  %v747 = vpack.c.bf16 %v714, %v713
  %v748 = vpack.c.bf16 %v716, %v715
  %v749 = vpack.c.bf16 %v718, %v717
  %v750 = vpack.c.bf16 %v720, %v719
  %v751 = vpack.c.bf16 %v722, %v721
  %v752 = vpack.c.bf16 %v724, %v723
  %v753 = vpack.c.bf16 %v726, %v725
  %v754 = vpack.c.bf16 %v728, %v727
  %v755 = vpack.c.bf16 %v730, %v729
  %v756 = vpack.c.bf16 %v731, %v731
  %v782 = vunpack.c.l.b16 %v732
  %v783 = vunpack.c.h.b16 %v732
  %v784 = vunpack.c.l.b16 %v733
  %v785 = vunpack.c.h.b16 %v733
  %v786 = vunpack.c.l.b16 %v734
  %v787 = vunpack.c.h.b16 %v734
  %v788 = vunpack.c.l.b16 %v735
  %v789 = vunpack.c.h.b16 %v735
  %v790 = vunpack.c.l.b16 %v736
  %v791 = vunpack.c.h.b16 %v736
  %v792 = vunpack.c.l.b16 %v737
  %v793 = vunpack.c.h.b16 %v737
  %v794 = vunpack.c.l.b16 %v738
  %v795 = vunpack.c.h.b16 %v738
  %v796 = vunpack.c.l.b16 %v739
  %v797 = vunpack.c.h.b16 %v739
  %v798 = vunpack.c.l.b16 %v740
  %v799 = vunpack.c.h.b16 %v740
  %v800 = vunpack.c.l.b16 %v741
  %v801 = vunpack.c.h.b16 %v741
  %v802 = vunpack.c.l.b16 %v742
  %v803 = vunpack.c.h.b16 %v742
  %v804 = vunpack.c.l.b16 %v743
  %v805 = vunpack.c.h.b16 %v743
  %v806 = vunpack.c.l.b16 %v744
  %v807 = vunpack.c.h.b16 %v744
  %v808 = vunpack.c.l.b16 %v745
  %v809 = vunpack.c.h.b16 %v745
  %v810 = vunpack.c.l.b16 %v746
  %v811 = vunpack.c.h.b16 %v746
  %v812 = vunpack.c.l.b16 %v747
  %v813 = vunpack.c.h.b16 %v747
  %v814 = vunpack.c.l.b16 %v748
  %v815 = vunpack.c.h.b16 %v748
  %v816 = vunpack.c.l.b16 %v749
  %v817 = vunpack.c.h.b16 %v749
  %v818 = vunpack.c.l.b16 %v750
  %v819 = vunpack.c.h.b16 %v750
  %v820 = vunpack.c.l.b16 %v751
  %v821 = vunpack.c.h.b16 %v751
  %v822 = vunpack.c.l.b16 %v752
  %v823 = vunpack.c.h.b16 %v752
  %v824 = vunpack.c.l.b16 %v753
  %v825 = vunpack.c.h.b16 %v753
  %v826 = vunpack.c.l.b16 %v754
  %v827 = vunpack.c.h.b16 %v754
  %v828 = vunpack.c.l.b16 %v755
  %v829 = vunpack.c.h.b16 %v755
  %v830 = vunpack.c.l.b16 %v756
  %v831 = vpack.c.b16 %v782, %v782
  %v832 = vpack.c.b16 %v783, %v783
  %v833 = vpack.c.b16 %v784, %v784
  %v834 = vpack.c.b16 %v785, %v785
  %v835 = vpack.c.b16 %v786, %v786
  %v836 = vpack.c.b16 %v787, %v787
  %v837 = vpack.c.b16 %v788, %v788
  %v838 = vpack.c.b16 %v789, %v789
  %v839 = vpack.c.b16 %v790, %v790
  %v840 = vpack.c.b16 %v791, %v791
  %v841 = vpack.c.b16 %v792, %v792
  %v842 = vpack.c.b16 %v793, %v793
  %v843 = vpack.c.b16 %v794, %v794
  %v844 = vpack.c.b16 %v795, %v795
  %v845 = vpack.c.b16 %v796, %v796
  %v846 = vpack.c.b16 %v797, %v797
  %v847 = vpack.c.b16 %v798, %v798
  %v848 = vpack.c.b16 %v799, %v799
  %v849 = vpack.c.b16 %v800, %v800
  %v850 = vpack.c.b16 %v801, %v801
  %v851 = vpack.c.b16 %v802, %v802
  %v852 = vpack.c.b16 %v803, %v803
  %v853 = vpack.c.b16 %v804, %v804
  %v854 = vpack.c.b16 %v805, %v805
  %v855 = vpack.c.b16 %v806, %v806
  %v856 = vpack.c.b16 %v807, %v807
  %v857 = vpack.c.b16 %v808, %v808
  %v858 = vpack.c.b16 %v809, %v809
  %v859 = vpack.c.b16 %v810, %v810
  %v860 = vpack.c.b16 %v811, %v811
  %v861 = vpack.c.b16 %v812, %v812
  %v862 = vpack.c.b16 %v813, %v813
  %v863 = vpack.c.b16 %v814, %v814
  %v864 = vpack.c.b16 %v815, %v815
  %v865 = vpack.c.b16 %v816, %v816
  %v866 = vpack.c.b16 %v817, %v817
  %v867 = vpack.c.b16 %v818, %v818
  %v868 = vpack.c.b16 %v819, %v819
  %v869 = vpack.c.b16 %v820, %v820
  %v870 = vpack.c.b16 %v821, %v821
  %v871 = vpack.c.b16 %v822, %v822
  %v872 = vpack.c.b16 %v823, %v823
  %v873 = vpack.c.b16 %v824, %v824
  %v874 = vpack.c.b16 %v825, %v825
  %v875 = vpack.c.b16 %v826, %v826
  %v876 = vpack.c.b16 %v827, %v827
  %v877 = vpack.c.b16 %v828, %v828
  %v878 = vpack.c.b16 %v829, %v829
  %v879 = vpack.c.b16 %v830, %v830
  %vm929 = vcmask 257024
  %930 = vst.msk [vmem:[%s5] sm:$0xf] %vm929, %v831
  %931 = vst.msk [vmem:[%s5 + $0x4] sm:$0xf] %vm929, %v832
  %932 = vst.msk [vmem:[%s5 + $0x8] sm:$0xf] %vm929, %v833
  %933 = vst.msk [vmem:[%s5 + $0xc] sm:$0xf] %vm929, %v834
  %934 = vst.msk [vmem:[%s5 + $0x10] sm:$0xf] %vm929, %v835
  %935 = vst.msk [vmem:[%s5 + $0x14] sm:$0xf] %vm929, %v836
  %936 = vst.msk [vmem:[%s5 + $0x18] sm:$0xf] %vm929, %v837
  %937 = vst.msk [vmem:[%s5 + $0x1c] sm:$0xf] %vm929, %v838
  %938 = vst.msk [vmem:[%s5 + $0x20] sm:$0xf] %vm929, %v839
  %939 = vst.msk [vmem:[%s5 + $0x24] sm:$0xf] %vm929, %v840
  %940 = vst.msk [vmem:[%s5 + $0x28] sm:$0xf] %vm929, %v841
  %941 = vst.msk [vmem:[%s5 + $0x2c] sm:$0xf] %vm929, %v842
  %942 = vst.msk [vmem:[%s5 + $0x30] sm:$0xf] %vm929, %v843
  %943 = vst.msk [vmem:[%s5 + $0x34] sm:$0xf] %vm929, %v844
  %944 = vst.msk [vmem:[%s5 + $0x38] sm:$0xf] %vm929, %v845
  %945 = vst.msk [vmem:[%s5 + $0x3c] sm:$0xf] %vm929, %v846
  %946 = vst.msk [vmem:[%s5 + $0x40] sm:$0xf] %vm929, %v847
  %947 = vst.msk [vmem:[%s5 + $0x44] sm:$0xf] %vm929, %v848
  %948 = vst.msk [vmem:[%s5 + $0x48] sm:$0xf] %vm929, %v849
  %949 = vst.msk [vmem:[%s5 + $0x4c] sm:$0xf] %vm929, %v850
  %950 = vst.msk [vmem:[%s5 + $0x50] sm:$0xf] %vm929, %v851
  %951 = vst.msk [vmem:[%s5 + $0x54] sm:$0xf] %vm929, %v852
  %952 = vst.msk [vmem:[%s5 + $0x58] sm:$0xf] %vm929, %v853
  %953 = vst.msk [vmem:[%s5 + $0x5c] sm:$0xf] %vm929, %v854
  %954 = vst.msk [vmem:[%s5 + $0x60] sm:$0xf] %vm929, %v855
  %955 = vst.msk [vmem:[%s5 + $0x64] sm:$0xf] %vm929, %v856
  %956 = vst.msk [vmem:[%s5 + $0x68] sm:$0xf] %vm929, %v857
  %957 = vst.msk [vmem:[%s5 + $0x6c] sm:$0xf] %vm929, %v858
  %958 = vst.msk [vmem:[%s5 + $0x70] sm:$0xf] %vm929, %v859
  %959 = vst.msk [vmem:[%s5 + $0x74] sm:$0xf] %vm929, %v860
  %960 = vst.msk [vmem:[%s5 + $0x78] sm:$0xf] %vm929, %v861
  %961 = vst.msk [vmem:[%s5 + $0x7c] sm:$0xf] %vm929, %v862
  %962 = vst.msk [vmem:[%s5 + $0x80] sm:$0xf] %vm929, %v863
  %963 = vst.msk [vmem:[%s5 + $0x84] sm:$0xf] %vm929, %v864
  %964 = vst.msk [vmem:[%s5 + $0x88] sm:$0xf] %vm929, %v865
  %965 = vst.msk [vmem:[%s5 + $0x8c] sm:$0xf] %vm929, %v866
  %966 = vst.msk [vmem:[%s5 + $0x90] sm:$0xf] %vm929, %v867
  %967 = vst.msk [vmem:[%s5 + $0x94] sm:$0xf] %vm929, %v868
  %968 = vst.msk [vmem:[%s5 + $0x98] sm:$0xf] %vm929, %v869
  %969 = vst.msk [vmem:[%s5 + $0x9c] sm:$0xf] %vm929, %v870
  %970 = vst.msk [vmem:[%s5 + $0xa0] sm:$0xf] %vm929, %v871
  %971 = vst.msk [vmem:[%s5 + $0xa4] sm:$0xf] %vm929, %v872
  %972 = vst.msk [vmem:[%s5 + $0xa8] sm:$0xf] %vm929, %v873
  %973 = vst.msk [vmem:[%s5 + $0xac] sm:$0xf] %vm929, %v874
  %974 = vst.msk [vmem:[%s5 + $0xb0] sm:$0xf] %vm929, %v875
  %975 = vst.msk [vmem:[%s5 + $0xb4] sm:$0xf] %vm929, %v876
  %976 = vst.msk [vmem:[%s5 + $0xb8] sm:$0xf] %vm929, %v877
  %977 = vst.msk [vmem:[%s5 + $0xbc] sm:$0xf] %vm929, %v878
  %978 = vst.msk [vmem:[%s5 + $0xc0] sm:$0xf] %vm929, %v879
  // Predicated region
  $region22: #{netc_mnist_forward.3} parent=0 // pred_check
    _
  $region23: #{netc_mnist_forward.3} parent=0 // pred_check_branch
    %980 = sbr.rel (0) target = $region25
  $region24: #{netc_mnist_forward.3} parent=0 // pred_region
    _
  $region25: #{netc_mnist_forward.3} parent=0 // pred_fallthru
    _
  // Predicated region
  $region26: #{netc_mnist_forward.3} parent=0 // pred_check
    _
  $region27: #{netc_mnist_forward.3} parent=0 // pred_check_branch
    %982 = sbr.rel (0) target = $region29
  $region28: #{netc_mnist_forward.3} parent=0 // pred_region
    _
  $region29: #{netc_mnist_forward.3} parent=0 // pred_fallthru
    _

// kernel: netc_mnist_forward.4
$region0: #{netc_mnist_forward.4}
  #allocation0 [shape = 'u32[]', space=smem, size = 0x4, offset = 0x4, fixed_abs, tag = 'smem constant byte address 0x4 - core index']
  #allocation1 [shape = 'u32[144,128]{1,0:T(1,128)}', space=vmem, size = 0x12000, scoped, tag = 'internal scratch']
  %s0 = inlined_call_operand.vmem [shape: bf16[98,288], index: 0, kind: input, shape index: {}]
  %s1 = inlined_call_operand.vmem [shape: bf16[288,64], index: 1, kind: input, shape index: {}]
  %s2 = inlined_call_operand.vmem [shape: f32[1,64], index: 2, kind: input, shape index: {}]
  %s3 = inlined_call_operand.vmem [shape: f32[1,64], index: 3, kind: input, shape index: {}]
  %s4 = inlined_call_operand.vmem [shape: bf16[98,64], index: 4, kind: output, shape index: {}]
  %s5 = sld [smem:[#allocation0]]
  $region26: #{netc_mnist_forward.4} parent=0
    _
  %s7 = ssub.s32 1, %s5
  %s8 = scalar_select 0, %s7, %s5
  // Predicated region
  $region2: #{netc_mnist_forward.4} parent=0 // pred_check
    _
  $region3: #{netc_mnist_forward.4} parent=0 // pred_check_branch
    %10 = sbr.rel (0) target = $region5
  $region4: #{netc_mnist_forward.4} parent=0 // pred_region
    _
  $region5: #{netc_mnist_forward.4} parent=0 // pred_fallthru
    _
  // Predicated region
  $region6: #{netc_mnist_forward.4} parent=0 // pred_check
    _
  $region7: #{netc_mnist_forward.4} parent=0 // pred_check_branch
    %12 = sbr.rel (0) target = $region9
  $region8: #{netc_mnist_forward.4} parent=0 // pred_region
    _
  $region9: #{netc_mnist_forward.4} parent=0 // pred_fallthru
    _
  // Predicated region
  $region10: #{netc_mnist_forward.4} parent=0 // pred_check
    _
  $region11: #{netc_mnist_forward.4} parent=0 // pred_check_branch
    %14 = sbr.rel (0) target = $region13
  $region12: #{netc_mnist_forward.4} parent=0 // pred_region
    _
  $region13: #{netc_mnist_forward.4} parent=0 // pred_fallthru
    _
  // Predicated region
  $region14: #{netc_mnist_forward.4} parent=0 // pred_check
    _
  $region15: #{netc_mnist_forward.4} parent=0 // pred_check_branch
    %16 = sbr.rel (0) target = $region17
  $region16: #{netc_mnist_forward.4} parent=0 // pred_region
    _
  $region17: #{netc_mnist_forward.4} parent=0 // pred_fallthru
    _
  %v18 = vld [vmem:[%s0] sm:$0xff]
  %v19 = vld [vmem:[%s0 + $0x8] sm:$0xf]
  %v20 = vld [vmem:[%s0 + $0xc] sm:$0xff]
  %v21 = vld [vmem:[%s0 + $0x14] sm:$0xf]
  %v22 = vld [vmem:[%s0 + $0x18] sm:$0xff]
  %v23 = vld [vmem:[%s0 + $0x20] sm:$0xf]
  %v24 = vld [vmem:[%s0 + $0x24] sm:$0xff]
  %v25 = vld [vmem:[%s0 + $0x2c] sm:$0xf]
  %v26 = vld [vmem:[%s0 + $0x30] sm:$0xff]
  %v27 = vld [vmem:[%s0 + $0x38] sm:$0xf]
  %v28 = vld [vmem:[%s0 + $0x3c] sm:$0xff]
  %v29 = vld [vmem:[%s0 + $0x44] sm:$0xf]
  %v30 = vld [vmem:[%s0 + $0x48] sm:$0xff]
  %v31 = vld [vmem:[%s0 + $0x50] sm:$0xf]
  %v32 = vld [vmem:[%s0 + $0x54] sm:$0xff]
  %v33 = vld [vmem:[%s0 + $0x5c] sm:$0xf]
  %v34 = vld [vmem:[%s0 + $0x60] sm:$0xff]
  %v35 = vld [vmem:[%s0 + $0x68] sm:$0xf]
  %v36 = vld [vmem:[%s0 + $0x6c] sm:$0xff]
  %v37 = vld [vmem:[%s0 + $0x74] sm:$0xf]
  %v38 = vld [vmem:[%s0 + $0x78] sm:$0xff]
  %v39 = vld [vmem:[%s0 + $0x80] sm:$0xf]
  %v40 = vld [vmem:[%s0 + $0x84] sm:$0xff]
  %v41 = vld [vmem:[%s0 + $0x8c] sm:$0xf]
  %v42 = vld [vmem:[%s0 + $0x90] sm:$0x11]
  %v43 = vld [vmem:[%s0 + $0x98] sm:$0x1]
  %v44 = vld [vmem:[%s1] sm:$0xf]
  %v45 = vld [vmem:[%s1 + $0x4] sm:$0xf]
  %v46 = vld [vmem:[%s1 + $0x8] sm:$0xf]
  %v47 = vld [vmem:[%s1 + $0xc] sm:$0xf]
  %v48 = vld [vmem:[%s1 + $0x10] sm:$0xf]
  %v49 = vld [vmem:[%s1 + $0x14] sm:$0xf]
  %v50 = vld [vmem:[%s1 + $0x18] sm:$0xf]
  %v51 = vld [vmem:[%s1 + $0x1c] sm:$0xf]
  %v52 = vld [vmem:[%s1 + $0x20] sm:$0xf]
  %v53 = vld [vmem:[%s1 + $0x24] sm:$0xf]
  %v54 = vld [vmem:[%s1 + $0x28] sm:$0xf]
  %v55 = vld [vmem:[%s1 + $0x2c] sm:$0xf]
  %v56 = vld [vmem:[%s1 + $0x30] sm:$0xf]
  %v57 = vld [vmem:[%s1 + $0x34] sm:$0xf]
  %v58 = vld [vmem:[%s1 + $0x38] sm:$0xf]
  %v59 = vld [vmem:[%s1 + $0x3c] sm:$0xf]
  %v60 = vld [vmem:[%s1 + $0x40] sm:$0xf]
  %v61 = vld [vmem:[%s1 + $0x44] sm:$0xf]
  %v62 = vld [vmem:[%s1 + $0x48] sm:$0xf]
  %v63 = vld [vmem:[%s1 + $0x4c] sm:$0xf]
  %v64 = vld [vmem:[%s1 + $0x50] sm:$0xf]
  %v65 = vld [vmem:[%s1 + $0x54] sm:$0xf]
  %v66 = vld [vmem:[%s1 + $0x58] sm:$0xf]
  %v67 = vld [vmem:[%s1 + $0x5c] sm:$0xf]
  %v68 = vld [vmem:[%s1 + $0x60] sm:$0xf]
  %v69 = vld [vmem:[%s1 + $0x64] sm:$0xf]
  %v70 = vld [vmem:[%s1 + $0x68] sm:$0xf]
  %v71 = vld [vmem:[%s1 + $0x6c] sm:$0xf]
  %v72 = vld [vmem:[%s1 + $0x70] sm:$0xf]
  %v73 = vld [vmem:[%s1 + $0x74] sm:$0xf]
  %v74 = vld [vmem:[%s1 + $0x78] sm:$0xf]
  %v75 = vld [vmem:[%s1 + $0x7c] sm:$0xf]
  %v76 = vld [vmem:[%s1 + $0x80] sm:$0xf]
  %v77 = vld [vmem:[%s1 + $0x84] sm:$0xf]
  %v78 = vld [vmem:[%s1 + $0x88] sm:$0xf]
  %v79 = vld [vmem:[%s1 + $0x8c] sm:$0xf]
  %v106 = vunpack.c.l.b16 %v18
  %v107 = vunpack.c.h.b16 %v18
  %v108 = vunpack.c.l.b16 %v19
  %v109 = vunpack.c.l.b16 %v20
  %v110 = vunpack.c.h.b16 %v20
  %v111 = vunpack.c.l.b16 %v21
  %v112 = vunpack.c.l.b16 %v22
  %v113 = vunpack.c.h.b16 %v22
  %v114 = vunpack.c.l.b16 %v23
  %v115 = vunpack.c.l.b16 %v24
  %v116 = vunpack.c.h.b16 %v24
  %v117 = vunpack.c.l.b16 %v25
  %v118 = vunpack.c.l.b16 %v26
  %v119 = vunpack.c.h.b16 %v26
  %v120 = vunpack.c.l.b16 %v27
  %v121 = vunpack.c.l.b16 %v28
  %v122 = vunpack.c.h.b16 %v28
  %v123 = vunpack.c.l.b16 %v29
  %v124 = vunpack.c.l.b16 %v30
  %v125 = vunpack.c.h.b16 %v30
  %v126 = vunpack.c.l.b16 %v31
  %v127 = vunpack.c.l.b16 %v32
  %v128 = vunpack.c.h.b16 %v32
  %v129 = vunpack.c.l.b16 %v33
  %v130 = vunpack.c.l.b16 %v34
  %v131 = vunpack.c.h.b16 %v34
  %v132 = vunpack.c.l.b16 %v35
  %v133 = vunpack.c.l.b16 %v36
  %v134 = vunpack.c.h.b16 %v36
  %v135 = vunpack.c.l.b16 %v37
  %v136 = vunpack.c.l.b16 %v38
  %v137 = vunpack.c.h.b16 %v38
  %v138 = vunpack.c.l.b16 %v39
  %v139 = vunpack.c.l.b16 %v40
  %v140 = vunpack.c.h.b16 %v40
  %v141 = vunpack.c.l.b16 %v41
  %v142 = vunpack.c.l.b16 %v42
  %v143 = vunpack.c.h.b16 %v42
  %v144 = vunpack.c.l.b16 %v43
  %v145 = vpack.c.b16 %v109, %v106
  %v146 = vpack.c.b16 %v110, %v107
  %v147 = vpack.c.b16 %v111, %v108
  %v148 = vpack.c.b16 %v115, %v112
  %v149 = vpack.c.b16 %v116, %v113
  %v150 = vpack.c.b16 %v117, %v114
  %v151 = vpack.c.b16 %v121, %v118
  %v152 = vpack.c.b16 %v122, %v119
  %v153 = vpack.c.b16 %v123, %v120
  %v154 = vpack.c.b16 %v127, %v124
  %v155 = vpack.c.b16 %v128, %v125
  %v156 = vpack.c.b16 %v129, %v126
  %v157 = vpack.c.b16 %v133, %v130
  %v158 = vpack.c.b16 %v134, %v131
  %v159 = vpack.c.b16 %v135, %v132
  %v160 = vpack.c.b16 %v139, %v136
  %v161 = vpack.c.b16 %v140, %v137
  %v162 = vpack.c.b16 %v141, %v138
  %v163 = vpack.c.b16 %v142, %v142
  %v164 = vpack.c.b16 %v143, %v143
  %v165 = vpack.c.b16 %v144, %v144
  %v216 = vunpack.c.l.b16 %v44
  %v217 = vunpack.c.l.b16 %v45
  %v218 = vunpack.c.l.b16 %v46
  %v219 = vunpack.c.l.b16 %v47
  %v220 = vunpack.c.l.b16 %v48
  %v221 = vunpack.c.l.b16 %v49
  %v222 = vunpack.c.l.b16 %v50
  %v223 = vunpack.c.l.b16 %v51
  %v224 = vunpack.c.l.b16 %v52
  %v225 = vunpack.c.l.b16 %v53
  %v226 = vunpack.c.l.b16 %v54
  %v227 = vunpack.c.l.b16 %v55
  %v228 = vunpack.c.l.b16 %v56
  %v229 = vunpack.c.l.b16 %v57
  %v230 = vunpack.c.l.b16 %v58
  %v231 = vunpack.c.l.b16 %v59
  %v232 = vunpack.c.l.b16 %v60
  %v233 = vunpack.c.l.b16 %v61
  %v234 = vunpack.c.l.b16 %v62
  %v235 = vunpack.c.l.b16 %v63
  %v236 = vunpack.c.l.b16 %v64
  %v237 = vunpack.c.l.b16 %v65
  %v238 = vunpack.c.l.b16 %v66
  %v239 = vunpack.c.l.b16 %v67
  %v240 = vunpack.c.l.b16 %v68
  %v241 = vunpack.c.l.b16 %v69
  %v242 = vunpack.c.l.b16 %v70
  %v243 = vunpack.c.l.b16 %v71
  %v244 = vunpack.c.l.b16 %v72
  %v245 = vunpack.c.l.b16 %v73
  %v246 = vunpack.c.l.b16 %v74
  %v247 = vunpack.c.l.b16 %v75
  %v248 = vunpack.c.l.b16 %v76
  %v249 = vunpack.c.l.b16 %v77
  %v250 = vunpack.c.l.b16 %v78
  %v251 = vunpack.c.l.b16 %v79
  %v252 = vpack.c.b16 %v217, %v216
  %v253 = vpack.c.b16 %v219, %v218
  %v254 = vpack.c.b16 %v221, %v220
  %v255 = vpack.c.b16 %v223, %v222
  %v256 = vpack.c.b16 %v225, %v224
  %v257 = vpack.c.b16 %v227, %v226
  %v258 = vpack.c.b16 %v229, %v228
  %v259 = vpack.c.b16 %v231, %v230
  %v260 = vpack.c.b16 %v233, %v232
  %v261 = vpack.c.b16 %v235, %v234
  %v262 = vpack.c.b16 %v237, %v236
  %v263 = vpack.c.b16 %v239, %v238
  %v264 = vpack.c.b16 %v241, %v240
  %v265 = vpack.c.b16 %v243, %v242
  %v266 = vpack.c.b16 %v245, %v244
  %v267 = vpack.c.b16 %v247, %v246
  %v268 = vpack.c.b16 %v249, %v248
  %v269 = vpack.c.b16 %v251, %v250
  %vm288 = vcmask 261120
  %v290 = vsel %vm288, %v147, 0
  %v293 = vsel %vm288, %v150, 0
  %v296 = vsel %vm288, %v153, 0
  %v299 = vsel %vm288, %v156, 0
  %v302 = vsel %vm288, %v159, 0
  %v305 = vsel %vm288, %v162, 0
  %v308 = vsel %vm288, %v165, 0
  %310 = vmatprep.subr.bf16.mxu0 0
  %311 = vmatpush1.bf16.msra.mxu0 %v259
  %312 = vmatprep.subr.bf16.mxu0 0
  %313 = vmatpush1.bf16.msra.mxu0 %v258
  %314 = vmatprep.subr.bf16.mxu0 0
  %315 = vmatpush1.bf16.msra.mxu0 %v257
  %316 = vmatprep.subr.bf16.mxu0 0
  %317 = vmatpush1.bf16.msra.mxu0 %v256
  %318 = vmatprep.subr.bf16.mxu0 0
  %319 = vmatpush1.bf16.msra.mxu0 %v255
  %320 = vmatprep.subr.bf16.mxu0 0
  %321 = vmatpush1.bf16.msra.mxu0 %v254
  %322 = vmatprep.subr.bf16.mxu0 0
  %323 = vmatpush1.bf16.msra.mxu0 %v253
  %324 = vmatprep.subr.bf16.mxu0 0
  %325 = vmatpush1.bf16.msra.mxu0 %v252
  %326 = vmatprep.subr.bf16.mxu0 0
  %327 = vmatpush2.bf16.msra.mxu0 %v267
  %328 = vmatprep.subr.bf16.mxu0 0
  %329 = vmatpush2.bf16.msra.mxu0 %v266
  %330 = vmatprep.subr.bf16.mxu0 0
  %331 = vmatpush2.bf16.msra.mxu0 %v265
  %332 = vmatprep.subr.bf16.mxu0 0
  %333 = vmatpush2.bf16.msra.mxu0 %v264
  %334 = vmatprep.subr.bf16.mxu0 0
  %335 = vmatpush2.bf16.msra.mxu0 %v263
  %336 = vmatprep.subr.bf16.mxu0 0
  %337 = vmatpush2.bf16.msra.mxu0 %v262
  %338 = vmatprep.subr.bf16.mxu0 0
  %339 = vmatpush2.bf16.msra.mxu0 %v261
  %340 = vmatprep.subr.bf16.mxu0 0
  %341 = vmatpush2.bf16.msra.mxu0 %v260
  %342 = vmatprep.mubr.bf16.mxu0 %v146
  %343 = vmatmul.mubr.bf16.gmra.mxu0 %v145
  %v344 = vpop.f32.mrf.mxu0
  %v345 = vadd.f32 0.0, %v344
  %v346 = vpop.f32.mrf.mxu0
  %v347 = vpop.f32.mrf.mxu0
  %v348 = vadd.f32 0.0, %v347
  %v349 = vpop.f32.mrf.mxu0
  %350 = vmatprep.mubr.bf16.mxu0 %v149
  %351 = vmatmul.mubr.bf16.gmra.mxu0 %v148
  %v352 = vpop.f32.mrf.mxu0
  %v353 = vadd.f32 0.0, %v352
  %v354 = vpop.f32.mrf.mxu0
  %v355 = vpop.f32.mrf.mxu0
  %v356 = vadd.f32 0.0, %v355
  %v357 = vpop.f32.mrf.mxu0
  %358 = vmatprep.mubr.bf16.mxu0 %v152
  %359 = vmatmul.mubr.bf16.gmra.mxu0 %v151
  %v360 = vpop.f32.mrf.mxu0
  %v361 = vadd.f32 0.0, %v360
  %v362 = vpop.f32.mrf.mxu0
  %v363 = vpop.f32.mrf.mxu0
  %v364 = vadd.f32 0.0, %v363
  %v365 = vpop.f32.mrf.mxu0
  %366 = vmatprep.mubr.bf16.mxu0 %v155
  %367 = vmatmul.mubr.bf16.gmra.mxu0 %v154
  %v368 = vpop.f32.mrf.mxu0
  %v369 = vadd.f32 0.0, %v368
  %v370 = vpop.f32.mrf.mxu0
  %v371 = vpop.f32.mrf.mxu0
  %v372 = vadd.f32 0.0, %v371
  %v373 = vpop.f32.mrf.mxu0
  %374 = vmatprep.mubr.bf16.mxu0 %v158
  %375 = vmatmul.mubr.bf16.gmra.mxu0 %v157
  %v376 = vpop.f32.mrf.mxu0
  %v377 = vadd.f32 0.0, %v376
  %v378 = vpop.f32.mrf.mxu0
  %v379 = vpop.f32.mrf.mxu0
  %v380 = vadd.f32 0.0, %v379
  %v381 = vpop.f32.mrf.mxu0
  %382 = vmatprep.mubr.bf16.mxu0 %v161
  %383 = vmatmul.mubr.bf16.gmra.mxu0 %v160
  %v384 = vpop.f32.mrf.mxu0
  %v385 = vadd.f32 0.0, %v384
  %v386 = vpop.f32.mrf.mxu0
  %v387 = vpop.f32.mrf.mxu0
  %v388 = vadd.f32 0.0, %v387
  %v389 = vpop.f32.mrf.mxu0
  %390 = vmatprep.mubr.bf16.mxu0 %v164
  %391 = vmatmul.mubr.bf16.gmra.mxu0 %v163
  %v392 = vpop.f32.mrf.mxu0
  %v393 = vadd.f32 0.0, %v392
  %v394 = vpop.f32.mrf.mxu0
  %v395 = vpop.f32.mrf.mxu0
  %v396 = vpop.f32.mrf.mxu0
  %397 = vdwg.mxu0
  %398 = vmatprep.subr.bf16.mxu0 0
  %399 = vmatpush1.bf16.msra.mxu0 0
  %400 = vmatprep.subr.bf16.mxu0 0
  %401 = vmatpush1.bf16.msra.mxu0 0
  %402 = vmatprep.subr.bf16.mxu0 0
  %403 = vmatpush1.bf16.msra.mxu0 0
  %404 = vmatprep.subr.bf16.mxu0 0
  %405 = vmatpush1.bf16.msra.mxu0 0
  %406 = vmatprep.subr.bf16.mxu0 0
  %407 = vmatpush1.bf16.msra.mxu0 0
  %408 = vmatprep.subr.bf16.mxu0 0
  %409 = vmatpush1.bf16.msra.mxu0 0
  %410 = vmatprep.subr.bf16.mxu0 0
  %411 = vmatpush1.bf16.msra.mxu0 %v269
  %412 = vmatprep.subr.bf16.mxu0 0
  %413 = vmatpush1.bf16.msra.mxu0 %v268
  %414 = vmatprep.subr.bf16.mxu0 0
  %415 = vmatpush2.bf16.msra.mxu0 0
  %416 = vmatprep.subr.bf16.mxu0 0
  %417 = vmatpush2.bf16.msra.mxu0 0
  %418 = vmatprep.subr.bf16.mxu0 0
  %419 = vmatpush2.bf16.msra.mxu0 0
  %420 = vmatprep.subr.bf16.mxu0 0
  %421 = vmatpush2.bf16.msra.mxu0 0
  %422 = vmatprep.subr.bf16.mxu0 0
  %423 = vmatpush2.bf16.msra.mxu0 0
  %424 = vmatprep.subr.bf16.mxu0 0
  %425 = vmatpush2.bf16.msra.mxu0 0
  %426 = vmatprep.subr.bf16.mxu0 0
  %427 = vmatpush2.bf16.msra.mxu0 0
  %428 = vmatprep.subr.bf16.mxu0 0
  %429 = vmatpush2.bf16.msra.mxu0 0
  %430 = vmatprep.mubr.bf16.mxu0 0
  %431 = vmatmul.mubr.bf16.gmra.mxu0 %v290
  %v432 = vpop.f32.mrf.mxu0
  %v433 = vadd.f32 %v345, %v432
  %v434 = vpop.f32.mrf.mxu0
  %v435 = vpop.f32.mrf.mxu0
  %v436 = vadd.f32 %v348, %v435
  %v437 = vpop.f32.mrf.mxu0
  %438 = vmatprep.mubr.bf16.mxu0 0
  %439 = vmatmul.mubr.bf16.gmra.mxu0 %v293
  %v440 = vpop.f32.mrf.mxu0
  %v441 = vadd.f32 %v353, %v440
  %v442 = vpop.f32.mrf.mxu0
  %v443 = vpop.f32.mrf.mxu0
  %v444 = vadd.f32 %v356, %v443
  %v445 = vpop.f32.mrf.mxu0
  %446 = vmatprep.mubr.bf16.mxu0 0
  %447 = vmatmul.mubr.bf16.gmra.mxu0 %v296
  %v448 = vpop.f32.mrf.mxu0
  %v449 = vadd.f32 %v361, %v448
  %v450 = vpop.f32.mrf.mxu0
  %v451 = vpop.f32.mrf.mxu0
  %v452 = vadd.f32 %v364, %v451
  %v453 = vpop.f32.mrf.mxu0
  %454 = vmatprep.mubr.bf16.mxu0 0
  %455 = vmatmul.mubr.bf16.gmra.mxu0 %v299
  %v456 = vpop.f32.mrf.mxu0
  %v457 = vadd.f32 %v369, %v456
  %v458 = vpop.f32.mrf.mxu0
  %v459 = vpop.f32.mrf.mxu0
  %v460 = vadd.f32 %v372, %v459
  %v461 = vpop.f32.mrf.mxu0
  %462 = vmatprep.mubr.bf16.mxu0 0
  %463 = vmatmul.mubr.bf16.gmra.mxu0 %v302
  %v464 = vpop.f32.mrf.mxu0
  %v465 = vadd.f32 %v377, %v464
  %v466 = vpop.f32.mrf.mxu0
  %v467 = vpop.f32.mrf.mxu0
  %v468 = vadd.f32 %v380, %v467
  %v469 = vpop.f32.mrf.mxu0
  %470 = vmatprep.mubr.bf16.mxu0 0
  %471 = vmatmul.mubr.bf16.gmra.mxu0 %v305
  %v472 = vpop.f32.mrf.mxu0
  %v473 = vadd.f32 %v385, %v472
  %v474 = vpop.f32.mrf.mxu0
  %v475 = vpop.f32.mrf.mxu0
  %v476 = vadd.f32 %v388, %v475
  %v477 = vpop.f32.mrf.mxu0
  %478 = vmatprep.mubr.bf16.mxu0 0
  %479 = vmatmul.mubr.bf16.gmra.mxu0 %v308
  %v480 = vpop.f32.mrf.mxu0
  %v481 = vadd.f32 %v393, %v480
  %v482 = vpop.f32.mrf.mxu0
  %v483 = vpop.f32.mrf.mxu0
  %v484 = vpop.f32.mrf.mxu0
  %485 = vdwg.mxu0
  %v486 = vld [vmem:[%s2] sm:$0x1]
  %v488 = vlaneseq
  %v489 = vshrl.u32 %v488, 7
  %v490 = vsub.s32 0, %v489
  %v491 = vrot.slane %v486, %v490
  %v493 = vmul.f32 %v433, %v491
  %v494 = vmul.f32 %v436, %v491
  %v495 = vmul.f32 %v441, %v491
  %v496 = vmul.f32 %v444, %v491
  %v497 = vmul.f32 %v449, %v491
  %v498 = vmul.f32 %v452, %v491
  %v499 = vmul.f32 %v457, %v491
  %v500 = vmul.f32 %v460, %v491
  %v501 = vmul.f32 %v465, %v491
  %v502 = vmul.f32 %v468, %v491
  %v503 = vmul.f32 %v473, %v491
  %v504 = vmul.f32 %v476, %v491
  %v505 = vmul.f32 %v481, %v491
  %v506 = vld [vmem:[%s3] sm:$0x1]
  %v508 = vlaneseq
  %v509 = vshrl.u32 %v508, 7
  %v510 = vsub.s32 0, %v509
  %v511 = vrot.slane %v506, %v510
  %v513 = vadd.f32 %v493, %v511
  %v514 = vadd.f32 %v494, %v511
  %v515 = vadd.f32 %v495, %v511
  %v516 = vadd.f32 %v496, %v511
  %v517 = vadd.f32 %v497, %v511
  %v518 = vadd.f32 %v498, %v511
  %v519 = vadd.f32 %v499, %v511
  %v520 = vadd.f32 %v500, %v511
  %v521 = vadd.f32 %v501, %v511
  %v522 = vadd.f32 %v502, %v511
  %v523 = vadd.f32 %v503, %v511
  %v524 = vadd.f32 %v504, %v511
  %v525 = vadd.f32 %v505, %v511
  %v526 = vmax.f32 %v513, 0.0
  %v527 = vmax.f32 %v514, 0.0
  %v528 = vmax.f32 %v515, 0.0
  %v529 = vmax.f32 %v516, 0.0
  %v530 = vmax.f32 %v517, 0.0
  %v531 = vmax.f32 %v518, 0.0
  %v532 = vmax.f32 %v519, 0.0
  %v533 = vmax.f32 %v520, 0.0
  %v534 = vmax.f32 %v521, 0.0
  %v535 = vmax.f32 %v522, 0.0
  %v536 = vmax.f32 %v523, 0.0
  %v537 = vmax.f32 %v524, 0.0
  %v538 = vmax.f32 %v525, 0.0
  %v539 = vpack.c.bf16 %v527, %v526
  %v540 = vpack.c.bf16 %v529, %v528
  %v541 = vpack.c.bf16 %v531, %v530
  %v542 = vpack.c.bf16 %v533, %v532
  %v543 = vpack.c.bf16 %v535, %v534
  %v544 = vpack.c.bf16 %v537, %v536
  %v545 = vpack.c.bf16 %v538, %v538
  %v553 = vunpack.c.l.b16 %v539
  %v554 = vunpack.c.h.b16 %v539
  %v555 = vunpack.c.l.b16 %v540
  %v556 = vunpack.c.h.b16 %v540
  %v557 = vunpack.c.l.b16 %v541
  %v558 = vunpack.c.h.b16 %v541
  %v559 = vunpack.c.l.b16 %v542
  %v560 = vunpack.c.h.b16 %v542
  %v561 = vunpack.c.l.b16 %v543
  %v562 = vunpack.c.h.b16 %v543
  %v563 = vunpack.c.l.b16 %v544
  %v564 = vunpack.c.h.b16 %v544
  %v565 = vunpack.c.l.b16 %v545
  %v566 = vpack.c.b16 %v553, %v553
  %v567 = vpack.c.b16 %v554, %v554
  %v568 = vpack.c.b16 %v555, %v555
  %v569 = vpack.c.b16 %v556, %v556
  %v570 = vpack.c.b16 %v557, %v557
  %v571 = vpack.c.b16 %v558, %v558
  %v572 = vpack.c.b16 %v559, %v559
  %v573 = vpack.c.b16 %v560, %v560
  %v574 = vpack.c.b16 %v561, %v561
  %v575 = vpack.c.b16 %v562, %v562
  %v576 = vpack.c.b16 %v563, %v563
  %v577 = vpack.c.b16 %v564, %v564
  %v578 = vpack.c.b16 %v565, %v565
  %vm592 = vcmask 519168
  %593 = vst.msk [vmem:[%s4] sm:$0xf] %vm592, %v566
  %594 = vst.msk [vmem:[%s4 + $0x4] sm:$0xf] %vm592, %v567
  %595 = vst.msk [vmem:[%s4 + $0x8] sm:$0xf] %vm592, %v568
  %596 = vst.msk [vmem:[%s4 + $0xc] sm:$0xf] %vm592, %v569
  %597 = vst.msk [vmem:[%s4 + $0x10] sm:$0xf] %vm592, %v570
  %598 = vst.msk [vmem:[%s4 + $0x14] sm:$0xf] %vm592, %v571
  %599 = vst.msk [vmem:[%s4 + $0x18] sm:$0xf] %vm592, %v572
  %600 = vst.msk [vmem:[%s4 + $0x1c] sm:$0xf] %vm592, %v573
  %601 = vst.msk [vmem:[%s4 + $0x20] sm:$0xf] %vm592, %v574
  %602 = vst.msk [vmem:[%s4 + $0x24] sm:$0xf] %vm592, %v575
  %603 = vst.msk [vmem:[%s4 + $0x28] sm:$0xf] %vm592, %v576
  %604 = vst.msk [vmem:[%s4 + $0x2c] sm:$0xf] %vm592, %v577
  %vm605 = vcmask 516096
  %606 = vst.msk [vmem:[%s4 + $0x30] sm:$0x1] %vm605, %v578
  // Predicated region
  $region18: #{netc_mnist_forward.4} parent=0 // pred_check
    _
  $region19: #{netc_mnist_forward.4} parent=0 // pred_check_branch
    %608 = sbr.rel (0) target = $region21
  $region20: #{netc_mnist_forward.4} parent=0 // pred_region
    _
  $region21: #{netc_mnist_forward.4} parent=0 // pred_fallthru
    _
  // Predicated region
  $region22: #{netc_mnist_forward.4} parent=0 // pred_check
    _
  $region23: #{netc_mnist_forward.4} parent=0 // pred_check_branch
    %610 = sbr.rel (0) target = $region25
  $region24: #{netc_mnist_forward.4} parent=0 // pred_region
    _
  $region25: #{netc_mnist_forward.4} parent=0 // pred_fallthru
    _

// kernel: netc_mnist_forward.5
$region0: #{netc_mnist_forward.5}
  #allocation0 [shape = 'u32[]', space=smem, size = 0x4, offset = 0x4, fixed_abs, tag = 'smem constant byte address 0x4 - core index']
  #allocation1 [shape = 'u32[144,128]{1,0:T(1,128)}', space=vmem, size = 0x12000, scoped, tag = 'internal scratch']
  %s0 = inlined_call_operand.vmem [shape: bf16[2,16,576], index: 0, kind: input, shape index: {}]
  %s1 = inlined_call_operand.vmem [shape: bf16[576,64], index: 1, kind: input, shape index: {}]
  %s2 = inlined_call_operand.vmem [shape: bf16[1024,512], index: 2, kind: input, shape index: {}]
  %s3 = inlined_call_operand.vmem [shape: f32[1,512], index: 3, kind: input, shape index: {}]
  %s4 = inlined_call_operand.vmem [shape: bf16[512,128], index: 4, kind: input, shape index: {}]
  %s5 = inlined_call_operand.vmem [shape: f32[1,128], index: 5, kind: input, shape index: {}]
  %s6 = inlined_call_operand.hbm [shape: f32[2,128], index: 6, kind: output, shape index: {}]
  %s7 = sld [smem:[#allocation0]]
  $region34: #{netc_mnist_forward.5} parent=0
    _
  %s9 = ssub.s32 1, %s7
  %s10 = scalar_select 0, %s9, %s7
  $region1: #{netc_mnist_forward.5} parent=0
    #allocation2 [shape = 'u8[1024]{0}', space=vmem, size = 0x400, scoped, tag = 'output window, operand 0, single buffered']
    #allocation3 [shape = 's32[1]{0}', space=sflag, size = 0x4, scoped, tag = 'scoped memory for netc_mnist_forward.5']
    %11 = vsyncpa [#allocation3], 0
    // Predicated region
    $region2: #{netc_mnist_forward.5} parent=1 // pred_check
      _
    $region3: #{netc_mnist_forward.5} parent=1 // pred_check_branch
      %13 = sbr.rel (0) target = $region5
    $region4: #{netc_mnist_forward.5} parent=1 // pred_region
      _
    $region5: #{netc_mnist_forward.5} parent=1 // pred_fallthru
      _
    // Predicated region
    $region6: #{netc_mnist_forward.5} parent=1 // pred_check
      _
    $region7: #{netc_mnist_forward.5} parent=1 // pred_check_branch
      %15 = sbr.rel (0) target = $region9
    $region8: #{netc_mnist_forward.5} parent=1 // pred_region
      _
    $region9: #{netc_mnist_forward.5} parent=1 // pred_fallthru
      _
    // Predicated region
    $region10: #{netc_mnist_forward.5} parent=1 // pred_check
      _
    $region11: #{netc_mnist_forward.5} parent=1 // pred_check_branch
      %17 = sbr.rel (0) target = $region13
    $region12: #{netc_mnist_forward.5} parent=1 // pred_region
      _
    $region13: #{netc_mnist_forward.5} parent=1 // pred_fallthru
      _
    // Predicated region
    $region14: #{netc_mnist_forward.5} parent=1 // pred_check
      _
    $region15: #{netc_mnist_forward.5} parent=1 // pred_check_branch
      %19 = sbr.rel (0) target = $region17
    $region16: #{netc_mnist_forward.5} parent=1 // pred_region
      _
    $region17: #{netc_mnist_forward.5} parent=1 // pred_fallthru
      _
    // Predicated region
    $region18: #{netc_mnist_forward.5} parent=1 // pred_check
      _
    $region19: #{netc_mnist_forward.5} parent=1 // pred_check_branch
      %21 = sbr.rel (0) target = $region21
    $region20: #{netc_mnist_forward.5} parent=1 // pred_region
      _
    $region21: #{netc_mnist_forward.5} parent=1 // pred_fallthru
      _
    // Predicated region
    $region22: #{netc_mnist_forward.5} parent=1 // pred_check
      _
    $region23: #{netc_mnist_forward.5} parent=1 // pred_check_branch
      %23 = sbr.rel (0) target = $region25
    $region24: #{netc_mnist_forward.5} parent=1 // pred_region
      _
    $region25: #{netc_mnist_forward.5} parent=1 // pred_fallthru
      _
    %v25 = vld [vmem:[%s0] sm:$0x11]
    %v26 = vld [vmem:[%s0 + $0x8] sm:$0x11]
    %v27 = vld [vmem:[%s0 + $0x10] sm:$0x1]
    %v28 = vld [vmem:[%s0 + $0x28] sm:$0x11]
    %v29 = vld [vmem:[%s0 + $0x30] sm:$0x11]
    %v30 = vld [vmem:[%s0 + $0x38] sm:$0x1]
    %v31 = vld [vmem:[%s1] sm:$0xf]
    %v32 = vld [vmem:[%s1 + $0x4] sm:$0xf]
    %v33 = vld [vmem:[%s1 + $0x8] sm:$0xf]
    %v34 = vld [vmem:[%s1 + $0xc] sm:$0xf]
    %v35 = vld [vmem:[%s1 + $0x10] sm:$0xf]
    %v36 = vld [vmem:[%s1 + $0x14] sm:$0xf]
    %v37 = vld [vmem:[%s1 + $0x18] sm:$0xf]
    %v38 = vld [vmem:[%s1 + $0x1c] sm:$0xf]
    %v39 = vld [vmem:[%s1 + $0x20] sm:$0xf]
    %v40 = vld [vmem:[%s1 + $0x24] sm:$0xf]
    %v41 = vld [vmem:[%s1 + $0x28] sm:$0xf]
    %v42 = vld [vmem:[%s1 + $0x2c] sm:$0xf]
    %v43 = vld [vmem:[%s1 + $0x30] sm:$0xf]
    %v44 = vld [vmem:[%s1 + $0x34] sm:$0xf]
    %v45 = vld [vmem:[%s1 + $0x38] sm:$0xf]
    %v46 = vld [vmem:[%s1 + $0x3c] sm:$0xf]
    %v47 = vld [vmem:[%s1 + $0x40] sm:$0xf]
    %v48 = vld [vmem:[%s1 + $0x44] sm:$0xf]
    %v49 = vld [vmem:[%s1 + $0x48] sm:$0xf]
    %v50 = vld [vmem:[%s1 + $0x4c] sm:$0xf]
    %v51 = vld [vmem:[%s1 + $0x50] sm:$0xf]
    %v52 = vld [vmem:[%s1 + $0x54] sm:$0xf]
    %v53 = vld [vmem:[%s1 + $0x58] sm:$0xf]
    %v54 = vld [vmem:[%s1 + $0x5c] sm:$0xf]
    %v55 = vld [vmem:[%s1 + $0x60] sm:$0xf]
    %v56 = vld [vmem:[%s1 + $0x64] sm:$0xf]
    %v57 = vld [vmem:[%s1 + $0x68] sm:$0xf]
    %v58 = vld [vmem:[%s1 + $0x6c] sm:$0xf]
    %v59 = vld [vmem:[%s1 + $0x70] sm:$0xf]
    %v60 = vld [vmem:[%s1 + $0x74] sm:$0xf]
    %v61 = vld [vmem:[%s1 + $0x78] sm:$0xf]
    %v62 = vld [vmem:[%s1 + $0x7c] sm:$0xf]
    %v63 = vld [vmem:[%s1 + $0x80] sm:$0xf]
    %v64 = vld [vmem:[%s1 + $0x84] sm:$0xf]
    %v65 = vld [vmem:[%s1 + $0x88] sm:$0xf]
    %v66 = vld [vmem:[%s1 + $0x8c] sm:$0xf]
    %v67 = vld [vmem:[%s1 + $0x90] sm:$0xf]
    %v68 = vld [vmem:[%s1 + $0x94] sm:$0xf]
    %v69 = vld [vmem:[%s1 + $0x98] sm:$0xf]
    %v70 = vld [vmem:[%s1 + $0x9c] sm:$0xf]
    %v71 = vld [vmem:[%s1 + $0xa0] sm:$0xf]
    %v72 = vld [vmem:[%s1 + $0xa4] sm:$0xf]
    %v73 = vld [vmem:[%s1 + $0xa8] sm:$0xf]
    %v74 = vld [vmem:[%s1 + $0xac] sm:$0xf]
    %v75 = vld [vmem:[%s1 + $0xb0] sm:$0xf]
    %v76 = vld [vmem:[%s1 + $0xb4] sm:$0xf]
    %v77 = vld [vmem:[%s1 + $0xb8] sm:$0xf]
    %v78 = vld [vmem:[%s1 + $0xbc] sm:$0xf]
    %v79 = vld [vmem:[%s1 + $0xc0] sm:$0xf]
    %v80 = vld [vmem:[%s1 + $0xc4] sm:$0xf]
    %v81 = vld [vmem:[%s1 + $0xc8] sm:$0xf]
    %v82 = vld [vmem:[%s1 + $0xcc] sm:$0xf]
    %v83 = vld [vmem:[%s1 + $0xd0] sm:$0xf]
    %v84 = vld [vmem:[%s1 + $0xd4] sm:$0xf]
    %v85 = vld [vmem:[%s1 + $0xd8] sm:$0xf]
    %v86 = vld [vmem:[%s1 + $0xdc] sm:$0xf]
    %v87 = vld [vmem:[%s1 + $0xe0] sm:$0xf]
    %v88 = vld [vmem:[%s1 + $0xe4] sm:$0xf]
    %v89 = vld [vmem:[%s1 + $0xe8] sm:$0xf]
    %v90 = vld [vmem:[%s1 + $0xec] sm:$0xf]
    %v91 = vld [vmem:[%s1 + $0xf0] sm:$0xf]
    %v92 = vld [vmem:[%s1 + $0xf4] sm:$0xf]
    %v93 = vld [vmem:[%s1 + $0xf8] sm:$0xf]
    %v94 = vld [vmem:[%s1 + $0xfc] sm:$0xf]
    %v95 = vld [vmem:[%s1 + $0x100] sm:$0xf]
    %v96 = vld [vmem:[%s1 + $0x104] sm:$0xf]
    %v97 = vld [vmem:[%s1 + $0x108] sm:$0xf]
    %v98 = vld [vmem:[%s1 + $0x10c] sm:$0xf]
    %v99 = vld [vmem:[%s1 + $0x110] sm:$0xf]
    %v100 = vld [vmem:[%s1 + $0x114] sm:$0xf]
    %v101 = vld [vmem:[%s1 + $0x118] sm:$0xf]
    %v102 = vld [vmem:[%s1 + $0x11c] sm:$0xf]
    %v109 = vunpack.c.l.b16 %v25
    %v110 = vunpack.c.h.b16 %v25
    %v111 = vunpack.c.l.b16 %v26
    %v112 = vunpack.c.h.b16 %v26
    %v113 = vunpack.c.l.b16 %v27
    %v114 = vunpack.c.l.b16 %v28
    %v115 = vunpack.c.h.b16 %v28
    %v116 = vunpack.c.l.b16 %v29
    %v117 = vunpack.c.h.b16 %v29
    %v118 = vunpack.c.l.b16 %v30
    %v119 = vpack.c.b16 %v109, %v109
    %v120 = vpack.c.b16 %v110, %v110
    %v121 = vpack.c.b16 %v111, %v111
    %v122 = vpack.c.b16 %v112, %v112
    %v123 = vpack.c.b16 %v113, %v113
    %v124 = vpack.c.b16 %v114, %v114
    %v125 = vpack.c.b16 %v115, %v115
    %v126 = vpack.c.b16 %v116, %v116
    %v127 = vpack.c.b16 %v117, %v117
    %v128 = vpack.c.b16 %v118, %v118
    %v129 = vunpack.c.l.b16 %v119
    %v130 = vunpack.c.l.b16 %v120
    %v131 = vunpack.c.l.b16 %v121
    %v132 = vunpack.c.l.b16 %v122
    %v133 = vunpack.c.l.b16 %v123
    %v134 = vunpack.c.l.b16 %v124
    %v135 = vunpack.c.l.b16 %v125
    %v136 = vunpack.c.l.b16 %v126
    %v137 = vunpack.c.l.b16 %v127
    %v138 = vunpack.c.l.b16 %v128
    %v139 = vrot.slane %v134, 7
    %vm140 = vcmask 1041409
    %v141 = vsel %vm140, %v139, %v129
    %v142 = vrot.slane %v135, 7
    %v143 = vsel %vm140, %v142, %v130
    %v144 = vrot.slane %v136, 7
    %v145 = vsel %vm140, %v144, %v131
    %v146 = vrot.slane %v137, 7
    %v147 = vsel %vm140, %v146, %v132
    %v148 = vrot.slane %v138, 7
    %v149 = vsel %vm140, %v148, %v133
    %v150 = vpack.c.b16 %v141, %v141
    %v151 = vpack.c.b16 %v143, %v143
    %v152 = vpack.c.b16 %v145, %v145
    %v153 = vpack.c.b16 %v147, %v147
    %v154 = vpack.c.b16 %v149, %v149
    %v231 = vunpack.c.l.b16 %v31
    %v232 = vunpack.c.l.b16 %v32
    %v233 = vunpack.c.l.b16 %v33
    %v234 = vunpack.c.l.b16 %v34
    %v235 = vunpack.c.l.b16 %v35
    %v236 = vunpack.c.l.b16 %v36
    %v237 = vunpack.c.l.b16 %v37
    %v238 = vunpack.c.l.b16 %v38
    %v239 = vunpack.c.l.b16 %v39
    %v240 = vunpack.c.l.b16 %v40
    %v241 = vunpack.c.l.b16 %v41
    %v242 = vunpack.c.l.b16 %v42
    %v243 = vunpack.c.l.b16 %v43
    %v244 = vunpack.c.l.b16 %v44
    %v245 = vunpack.c.l.b16 %v45
    %v246 = vunpack.c.l.b16 %v46
    %v247 = vunpack.c.l.b16 %v47
    %v248 = vunpack.c.l.b16 %v48
    %v249 = vunpack.c.l.b16 %v49
    %v250 = vunpack.c.l.b16 %v50
    %v251 = vunpack.c.l.b16 %v51
    %v252 = vunpack.c.l.b16 %v52
    %v253 = vunpack.c.l.b16 %v53
    %v254 = vunpack.c.l.b16 %v54
    %v255 = vunpack.c.l.b16 %v55
    %v256 = vunpack.c.l.b16 %v56
    %v257 = vunpack.c.l.b16 %v57
    %v258 = vunpack.c.l.b16 %v58
    %v259 = vunpack.c.l.b16 %v59
    %v260 = vunpack.c.l.b16 %v60
    %v261 = vunpack.c.l.b16 %v61
    %v262 = vunpack.c.l.b16 %v62
    %v263 = vunpack.c.l.b16 %v63
    %v264 = vunpack.c.l.b16 %v64
    %v265 = vunpack.c.l.b16 %v65
    %v266 = vunpack.c.l.b16 %v66
    %v267 = vunpack.c.l.b16 %v67
    %v268 = vunpack.c.l.b16 %v68
    %v269 = vunpack.c.l.b16 %v69
    %v270 = vunpack.c.l.b16 %v70
    %v271 = vunpack.c.l.b16 %v71
    %v272 = vunpack.c.l.b16 %v72
    %v273 = vunpack.c.l.b16 %v73
    %v274 = vunpack.c.l.b16 %v74
    %v275 = vunpack.c.l.b16 %v75
    %v276 = vunpack.c.l.b16 %v76
    %v277 = vunpack.c.l.b16 %v77
    %v278 = vunpack.c.l.b16 %v78
    %v279 = vunpack.c.l.b16 %v79
    %v280 = vunpack.c.l.b16 %v80
    %v281 = vunpack.c.l.b16 %v81
    %v282 = vunpack.c.l.b16 %v82
    %v283 = vunpack.c.l.b16 %v83
    %v284 = vunpack.c.l.b16 %v84
    %v285 = vunpack.c.l.b16 %v85
    %v286 = vunpack.c.l.b16 %v86
    %v287 = vunpack.c.l.b16 %v87
    %v288 = vunpack.c.l.b16 %v88
    %v289 = vunpack.c.l.b16 %v89
    %v290 = vunpack.c.l.b16 %v90
    %v291 = vunpack.c.l.b16 %v91
    %v292 = vunpack.c.l.b16 %v92
    %v293 = vunpack.c.l.b16 %v93
    %v294 = vunpack.c.l.b16 %v94
    %v295 = vunpack.c.l.b16 %v95
    %v296 = vunpack.c.l.b16 %v96
    %v297 = vunpack.c.l.b16 %v97
    %v298 = vunpack.c.l.b16 %v98
    %v299 = vunpack.c.l.b16 %v99
    %v300 = vunpack.c.l.b16 %v100
    %v301 = vunpack.c.l.b16 %v101
    %v302 = vunpack.c.l.b16 %v102
    %v303 = vpack.c.b16 %v232, %v231
    %v304 = vpack.c.b16 %v234, %v233
    %v305 = vpack.c.b16 %v236, %v235
    %v306 = vpack.c.b16 %v238, %v237
    %v307 = vpack.c.b16 %v240, %v239
    %v308 = vpack.c.b16 %v242, %v241
    %v309 = vpack.c.b16 %v244, %v243
    %v310 = vpack.c.b16 %v246, %v245
    %v311 = vpack.c.b16 %v248, %v247
    %v312 = vpack.c.b16 %v250, %v249
    %v313 = vpack.c.b16 %v252, %v251
    %v314 = vpack.c.b16 %v254, %v253
    %v315 = vpack.c.b16 %v256, %v255
    %v316 = vpack.c.b16 %v258, %v257
    %v317 = vpack.c.b16 %v260, %v259
    %v318 = vpack.c.b16 %v262, %v261
    %v319 = vpack.c.b16 %v264, %v263
    %v320 = vpack.c.b16 %v266, %v265
    %v321 = vpack.c.b16 %v268, %v267
    %v322 = vpack.c.b16 %v270, %v269
    %v323 = vpack.c.b16 %v272, %v271
    %v324 = vpack.c.b16 %v274, %v273
    %v325 = vpack.c.b16 %v276, %v275
    %v326 = vpack.c.b16 %v278, %v277
    %v327 = vpack.c.b16 %v280, %v279
    %v328 = vpack.c.b16 %v282, %v281
    %v329 = vpack.c.b16 %v284, %v283
    %v330 = vpack.c.b16 %v286, %v285
    %v331 = vpack.c.b16 %v288, %v287
    %v332 = vpack.c.b16 %v290, %v289
    %v333 = vpack.c.b16 %v292, %v291
    %v334 = vpack.c.b16 %v294, %v293
    %v335 = vpack.c.b16 %v296, %v295
    %v336 = vpack.c.b16 %v298, %v297
    %v337 = vpack.c.b16 %v300, %v299
    %v338 = vpack.c.b16 %v302, %v301
    %vm375 = vcmask 523264
    %v377 = vsel %vm375, %v154, 0
    %379 = vmatprep.subr.bf16.mxu0 0
    %380 = vmatpush1.bf16.msra.mxu0 %v310
    %381 = vmatprep.subr.bf16.mxu0 0
    %382 = vmatpush1.bf16.msra.mxu0 %v309
    %383 = vmatprep.subr.bf16.mxu0 0
    %384 = vmatpush1.bf16.msra.mxu0 %v308
    %385 = vmatprep.subr.bf16.mxu0 0
    %386 = vmatpush1.bf16.msra.mxu0 %v307
    %387 = vmatprep.subr.bf16.mxu0 0
    %388 = vmatpush1.bf16.msra.mxu0 %v306
    %389 = vmatprep.subr.bf16.mxu0 0
    %390 = vmatpush1.bf16.msra.mxu0 %v305
    %391 = vmatprep.subr.bf16.mxu0 0
    %392 = vmatpush1.bf16.msra.mxu0 %v304
    %393 = vmatprep.subr.bf16.mxu0 0
    %394 = vmatpush1.bf16.msra.mxu0 %v303
    %395 = vmatprep.subr.bf16.mxu0 0
    %396 = vmatpush2.bf16.msra.mxu0 %v318
    %397 = vmatprep.subr.bf16.mxu0 0
    %398 = vmatpush2.bf16.msra.mxu0 %v317
    %399 = vmatprep.subr.bf16.mxu0 0
    %400 = vmatpush2.bf16.msra.mxu0 %v316
    %401 = vmatprep.subr.bf16.mxu0 0
    %402 = vmatpush2.bf16.msra.mxu0 %v315
    %403 = vmatprep.subr.bf16.mxu0 0
    %404 = vmatpush2.bf16.msra.mxu0 %v314
    %405 = vmatprep.subr.bf16.mxu0 0
    %406 = vmatpush2.bf16.msra.mxu0 %v313
    %407 = vmatprep.subr.bf16.mxu0 0
    %408 = vmatpush2.bf16.msra.mxu0 %v312
    %409 = vmatprep.subr.bf16.mxu0 0
    %410 = vmatpush2.bf16.msra.mxu0 %v311
    %411 = vmatprep.mubr.bf16.mxu0 %v151
    %412 = vmatmul.mubr.bf16.gmra.mxu0 %v150
    %v413 = vpop.f32.mrf.mxu0
    %v414 = vadd.f32 0.0, %v413
    %v415 = vpop.f32.mrf.mxu0
    %v416 = vpop.f32.mrf.mxu0
    %v417 = vpop.f32.mrf.mxu0
    %418 = vdwg.mxu0
    %419 = vmatprep.subr.bf16.mxu0 0
    %420 = vmatpush1.bf16.msra.mxu0 %v326
    %421 = vmatprep.subr.bf16.mxu0 0
    %422 = vmatpush1.bf16.msra.mxu0 %v325
    %423 = vmatprep.subr.bf16.mxu0 0
    %424 = vmatpush1.bf16.msra.mxu0 %v324
    %425 = vmatprep.subr.bf16.mxu0 0
    %426 = vmatpush1.bf16.msra.mxu0 %v323
    %427 = vmatprep.subr.bf16.mxu0 0
    %428 = vmatpush1.bf16.msra.mxu0 %v322
    %429 = vmatprep.subr.bf16.mxu0 0
    %430 = vmatpush1.bf16.msra.mxu0 %v321
    %431 = vmatprep.subr.bf16.mxu0 0
    %432 = vmatpush1.bf16.msra.mxu0 %v320
    %433 = vmatprep.subr.bf16.mxu0 0
    %434 = vmatpush1.bf16.msra.mxu0 %v319
    %435 = vmatprep.subr.bf16.mxu0 0
    %436 = vmatpush2.bf16.msra.mxu0 %v334
    %437 = vmatprep.subr.bf16.mxu0 0
    %438 = vmatpush2.bf16.msra.mxu0 %v333
    %439 = vmatprep.subr.bf16.mxu0 0
    %440 = vmatpush2.bf16.msra.mxu0 %v332
    %441 = vmatprep.subr.bf16.mxu0 0
    %442 = vmatpush2.bf16.msra.mxu0 %v331
    %443 = vmatprep.subr.bf16.mxu0 0
    %444 = vmatpush2.bf16.msra.mxu0 %v330
    %445 = vmatprep.subr.bf16.mxu0 0
    %446 = vmatpush2.bf16.msra.mxu0 %v329
    %447 = vmatprep.subr.bf16.mxu0 0
    %448 = vmatpush2.bf16.msra.mxu0 %v328
    %449 = vmatprep.subr.bf16.mxu0 0
    %450 = vmatpush2.bf16.msra.mxu0 %v327
    %451 = vmatprep.mubr.bf16.mxu0 %v153
    %452 = vmatmul.mubr.bf16.gmra.mxu0 %v152
    %v453 = vpop.f32.mrf.mxu0
    %v454 = vadd.f32 %v414, %v453
    %v455 = vpop.f32.mrf.mxu0
    %v456 = vpop.f32.mrf.mxu0
    %v457 = vpop.f32.mrf.mxu0
    %458 = vdwg.mxu0
    %459 = vmatprep.subr.bf16.mxu0 0
    %460 = vmatpush1.bf16.msra.mxu0 0
    %461 = vmatprep.subr.bf16.mxu0 0
    %462 = vmatpush1.bf16.msra.mxu0 0
    %463 = vmatprep.subr.bf16.mxu0 0
    %464 = vmatpush1.bf16.msra.mxu0 0
    %465 = vmatprep.subr.bf16.mxu0 0
    %466 = vmatpush1.bf16.msra.mxu0 0
    %467 = vmatprep.subr.bf16.mxu0 0
    %468 = vmatpush1.bf16.msra.mxu0 %v338
    %469 = vmatprep.subr.bf16.mxu0 0
    %470 = vmatpush1.bf16.msra.mxu0 %v337
    %471 = vmatprep.subr.bf16.mxu0 0
    %472 = vmatpush1.bf16.msra.mxu0 %v336
    %473 = vmatprep.subr.bf16.mxu0 0
    %474 = vmatpush1.bf16.msra.mxu0 %v335
    %475 = vmatprep.subr.bf16.mxu0 0
    %476 = vmatpush2.bf16.msra.mxu0 0
    %477 = vmatprep.subr.bf16.mxu0 0
    %478 = vmatpush2.bf16.msra.mxu0 0
    %479 = vmatprep.subr.bf16.mxu0 0
    %480 = vmatpush2.bf16.msra.mxu0 0
    %481 = vmatprep.subr.bf16.mxu0 0
    %482 = vmatpush2.bf16.msra.mxu0 0
    %483 = vmatprep.subr.bf16.mxu0 0
    %484 = vmatpush2.bf16.msra.mxu0 0
    %485 = vmatprep.subr.bf16.mxu0 0
    %486 = vmatpush2.bf16.msra.mxu0 0
    %487 = vmatprep.subr.bf16.mxu0 0
    %488 = vmatpush2.bf16.msra.mxu0 0
    %489 = vmatprep.subr.bf16.mxu0 0
    %490 = vmatpush2.bf16.msra.mxu0 0
    %491 = vmatprep.mubr.bf16.mxu0 0
    %492 = vmatmul.mubr.bf16.gmra.mxu0 %v377
    %v493 = vpop.f32.mrf.mxu0
    %v494 = vadd.f32 %v454, %v493
    %v495 = vpop.f32.mrf.mxu0
    %v496 = vpop.f32.mrf.mxu0
    %v497 = vpop.f32.mrf.mxu0
    %498 = vdwg.mxu0
    %v499 = vpack.c.bf16 %v494, %v494
    %v500 = vld [vmem:[%s2] sm:$0xff]
    %v501 = vld [vmem:[%s2 + $0x8] sm:$0xff]
    %v502 = vld [vmem:[%s2 + $0x10] sm:$0xff]
    %v503 = vld [vmem:[%s2 + $0x18] sm:$0xff]
    %v504 = vld [vmem:[%s2 + $0x20] sm:$0xff]
    %v505 = vld [vmem:[%s2 + $0x28] sm:$0xff]
    %v506 = vld [vmem:[%s2 + $0x30] sm:$0xff]
    %v507 = vld [vmem:[%s2 + $0x38] sm:$0xff]
    %v508 = vld [vmem:[%s2 + $0x40] sm:$0xff]
    %v509 = vld [vmem:[%s2 + $0x48] sm:$0xff]
    %v510 = vld [vmem:[%s2 + $0x50] sm:$0xff]
    %v511 = vld [vmem:[%s2 + $0x58] sm:$0xff]
    %v512 = vld [vmem:[%s2 + $0x60] sm:$0xff]
    %v513 = vld [vmem:[%s2 + $0x68] sm:$0xff]
    %v514 = vld [vmem:[%s2 + $0x70] sm:$0xff]
    %v515 = vld [vmem:[%s2 + $0x78] sm:$0xff]
    %v516 = vrot.slane %v129, 1
    %v517 = vsel %vm140, %v134, %v516
    %v518 = vrot.slane %v130, 1
    %v519 = vsel %vm140, %v135, %v518
    %v520 = vrot.slane %v131, 1
    %v521 = vsel %vm140, %v136, %v520
    %v522 = vrot.slane %v132, 1
    %v523 = vsel %vm140, %v137, %v522
    %v524 = vrot.slane %v133, 1
    %v525 = vsel %vm140, %v138, %v524
    %v526 = vpack.c.b16 %v517, %v517
    %v527 = vpack.c.b16 %v519, %v519
    %v528 = vpack.c.b16 %v521, %v521
    %v529 = vpack.c.b16 %v523, %v523
    %v530 = vpack.c.b16 %v525, %v525
    %v536 = vsel %vm375, %v530, 0
    %538 = vmatprep.subr.bf16.mxu0 0
    %539 = vmatpush1.bf16.msra.mxu0 %v310
    %540 = vmatprep.subr.bf16.mxu0 0
    %541 = vmatpush1.bf16.msra.mxu0 %v309
    %542 = vmatprep.subr.bf16.mxu0 0
    %543 = vmatpush1.bf16.msra.mxu0 %v308
    %544 = vmatprep.subr.bf16.mxu0 0
    %545 = vmatpush1.bf16.msra.mxu0 %v307
    %546 = vmatprep.subr.bf16.mxu0 0
    %547 = vmatpush1.bf16.msra.mxu0 %v306
    %548 = vmatprep.subr.bf16.mxu0 0
    %549 = vmatpush1.bf16.msra.mxu0 %v305
    %550 = vmatprep.subr.bf16.mxu0 0
    %551 = vmatpush1.bf16.msra.mxu0 %v304
    %552 = vmatprep.subr.bf16.mxu0 0
    %553 = vmatpush1.bf16.msra.mxu0 %v303
    %554 = vmatprep.subr.bf16.mxu0 0
    %555 = vmatpush2.bf16.msra.mxu0 %v318
    %556 = vmatprep.subr.bf16.mxu0 0
    %557 = vmatpush2.bf16.msra.mxu0 %v317
    %558 = vmatprep.subr.bf16.mxu0 0
    %559 = vmatpush2.bf16.msra.mxu0 %v316
    %560 = vmatprep.subr.bf16.mxu0 0
    %561 = vmatpush2.bf16.msra.mxu0 %v315
    %562 = vmatprep.subr.bf16.mxu0 0
    %563 = vmatpush2.bf16.msra.mxu0 %v314
    %564 = vmatprep.subr.bf16.mxu0 0
    %565 = vmatpush2.bf16.msra.mxu0 %v313
    %566 = vmatprep.subr.bf16.mxu0 0
    %567 = vmatpush2.bf16.msra.mxu0 %v312
    %568 = vmatprep.subr.bf16.mxu0 0
    %569 = vmatpush2.bf16.msra.mxu0 %v311
    %570 = vmatprep.mubr.bf16.mxu0 %v527
    %571 = vmatmul.mubr.bf16.gmra.mxu0 %v526
    %v572 = vpop.f32.mrf.mxu0
    %v573 = vadd.f32 0.0, %v572
    %v574 = vpop.f32.mrf.mxu0
    %v575 = vpop.f32.mrf.mxu0
    %v576 = vpop.f32.mrf.mxu0
    %577 = vdwg.mxu0
    %578 = vmatprep.subr.bf16.mxu0 0
    %579 = vmatpush1.bf16.msra.mxu0 %v326
    %580 = vmatprep.subr.bf16.mxu0 0
    %581 = vmatpush1.bf16.msra.mxu0 %v325
    %582 = vmatprep.subr.bf16.mxu0 0
    %583 = vmatpush1.bf16.msra.mxu0 %v324
    %584 = vmatprep.subr.bf16.mxu0 0
    %585 = vmatpush1.bf16.msra.mxu0 %v323
    %586 = vmatprep.subr.bf16.mxu0 0
    %587 = vmatpush1.bf16.msra.mxu0 %v322
    %588 = vmatprep.subr.bf16.mxu0 0
    %589 = vmatpush1.bf16.msra.mxu0 %v321
    %590 = vmatprep.subr.bf16.mxu0 0
    %591 = vmatpush1.bf16.msra.mxu0 %v320
    %592 = vmatprep.subr.bf16.mxu0 0
    %593 = vmatpush1.bf16.msra.mxu0 %v319
    %594 = vmatprep.subr.bf16.mxu0 0
    %595 = vmatpush2.bf16.msra.mxu0 %v334
    %596 = vmatprep.subr.bf16.mxu0 0
    %597 = vmatpush2.bf16.msra.mxu0 %v333
    %598 = vmatprep.subr.bf16.mxu0 0
    %599 = vmatpush2.bf16.msra.mxu0 %v332
    %600 = vmatprep.subr.bf16.mxu0 0
    %601 = vmatpush2.bf16.msra.mxu0 %v331
    %602 = vmatprep.subr.bf16.mxu0 0
    %603 = vmatpush2.bf16.msra.mxu0 %v330
    %604 = vmatprep.subr.bf16.mxu0 0
    %605 = vmatpush2.bf16.msra.mxu0 %v329
    %606 = vmatprep.subr.bf16.mxu0 0
    %607 = vmatpush2.bf16.msra.mxu0 %v328
    %608 = vmatprep.subr.bf16.mxu0 0
    %609 = vmatpush2.bf16.msra.mxu0 %v327
    %610 = vmatprep.mubr.bf16.mxu0 %v529
    %611 = vmatmul.mubr.bf16.gmra.mxu0 %v528
    %v612 = vpop.f32.mrf.mxu0
    %v613 = vadd.f32 %v573, %v612
    %v614 = vpop.f32.mrf.mxu0
    %v615 = vpop.f32.mrf.mxu0
    %v616 = vpop.f32.mrf.mxu0
    %617 = vdwg.mxu0
    %618 = vmatprep.subr.bf16.mxu0 0
    %619 = vmatpush1.bf16.msra.mxu0 0
    %620 = vmatprep.subr.bf16.mxu0 0
    %621 = vmatpush1.bf16.msra.mxu0 0
    %622 = vmatprep.subr.bf16.mxu0 0
    %623 = vmatpush1.bf16.msra.mxu0 0
    %624 = vmatprep.subr.bf16.mxu0 0
    %625 = vmatpush1.bf16.msra.mxu0 0
    %626 = vmatprep.subr.bf16.mxu0 0
    %627 = vmatpush1.bf16.msra.mxu0 %v338
    %628 = vmatprep.subr.bf16.mxu0 0
    %629 = vmatpush1.bf16.msra.mxu0 %v337
    %630 = vmatprep.subr.bf16.mxu0 0
    %631 = vmatpush1.bf16.msra.mxu0 %v336
    %632 = vmatprep.subr.bf16.mxu0 0
    %633 = vmatpush1.bf16.msra.mxu0 %v335
    %634 = vmatprep.subr.bf16.mxu0 0
    %635 = vmatpush2.bf16.msra.mxu0 0
    %636 = vmatprep.subr.bf16.mxu0 0
    %637 = vmatpush2.bf16.msra.mxu0 0
    %638 = vmatprep.subr.bf16.mxu0 0
    %639 = vmatpush2.bf16.msra.mxu0 0
    %640 = vmatprep.subr.bf16.mxu0 0
    %641 = vmatpush2.bf16.msra.mxu0 0
    %642 = vmatprep.subr.bf16.mxu0 0
    %643 = vmatpush2.bf16.msra.mxu0 0
    %644 = vmatprep.subr.bf16.mxu0 0
    %645 = vmatpush2.bf16.msra.mxu0 0
    %646 = vmatprep.subr.bf16.mxu0 0
    %647 = vmatpush2.bf16.msra.mxu0 0
    %648 = vmatprep.subr.bf16.mxu0 0
    %649 = vmatpush2.bf16.msra.mxu0 0
    %650 = vmatprep.mubr.bf16.mxu0 0
    %651 = vmatmul.mubr.bf16.gmra.mxu0 %v536
    %v652 = vpop.f32.mrf.mxu0
    %v653 = vadd.f32 %v613, %v652
    %v654 = vpop.f32.mrf.mxu0
    %v655 = vpop.f32.mrf.mxu0
    %v656 = vpop.f32.mrf.mxu0
    %657 = vdwg.mxu0
    %v658 = vpack.c.bf16 %v653, %v653
    %v659 = vld [vmem:[%s2 + $0x80] sm:$0xff]
    %v660 = vld [vmem:[%s2 + $0x88] sm:$0xff]
    %v661 = vld [vmem:[%s2 + $0x90] sm:$0xff]
    %v662 = vld [vmem:[%s2 + $0x98] sm:$0xff]
    %v663 = vld [vmem:[%s2 + $0xa0] sm:$0xff]
    %v664 = vld [vmem:[%s2 + $0xa8] sm:$0xff]
    %v665 = vld [vmem:[%s2 + $0xb0] sm:$0xff]
    %v666 = vld [vmem:[%s2 + $0xb8] sm:$0xff]
    %v667 = vld [vmem:[%s2 + $0xc0] sm:$0xff]
    %v668 = vld [vmem:[%s2 + $0xc8] sm:$0xff]
    %v669 = vld [vmem:[%s2 + $0xd0] sm:$0xff]
    %v670 = vld [vmem:[%s2 + $0xd8] sm:$0xff]
    %v671 = vld [vmem:[%s2 + $0xe0] sm:$0xff]
    %v672 = vld [vmem:[%s2 + $0xe8] sm:$0xff]
    %v673 = vld [vmem:[%s2 + $0xf0] sm:$0xff]
    %v674 = vld [vmem:[%s2 + $0xf8] sm:$0xff]
    %v691 = vunpack.c.l.b16 %v659
    %v692 = vunpack.c.h.b16 %v659
    %v693 = vunpack.c.l.b16 %v660
    %v694 = vunpack.c.h.b16 %v660
    %v695 = vunpack.c.l.b16 %v661
    %v696 = vunpack.c.h.b16 %v661
    %v697 = vunpack.c.l.b16 %v662
    %v698 = vunpack.c.h.b16 %v662
    %v699 = vunpack.c.l.b16 %v663
    %v700 = vunpack.c.h.b16 %v663
    %v701 = vunpack.c.l.b16 %v664
    %v702 = vunpack.c.h.b16 %v664
    %v703 = vunpack.c.l.b16 %v665
    %v704 = vunpack.c.h.b16 %v665
    %v705 = vunpack.c.l.b16 %v666
    %v706 = vunpack.c.h.b16 %v666
    %v707 = vunpack.c.l.b16 %v667
    %v708 = vunpack.c.h.b16 %v667
    %v709 = vunpack.c.l.b16 %v668
    %v710 = vunpack.c.h.b16 %v668
    %v711 = vunpack.c.l.b16 %v669
    %v712 = vunpack.c.h.b16 %v669
    %v713 = vunpack.c.l.b16 %v670
    %v714 = vunpack.c.h.b16 %v670
    %v715 = vunpack.c.l.b16 %v671
    %v716 = vunpack.c.h.b16 %v671
    %v717 = vunpack.c.l.b16 %v672
    %v718 = vunpack.c.h.b16 %v672
    %v719 = vunpack.c.l.b16 %v673
    %v720 = vunpack.c.h.b16 %v673
    %v721 = vunpack.c.l.b16 %v674
    %v722 = vunpack.c.h.b16 %v674
    %v723 = vpack.c.b16 %v695, %v691
    %v724 = vpack.c.b16 %v696, %v692
    %v725 = vpack.c.b16 %v697, %v693
    %v726 = vpack.c.b16 %v698, %v694
    %v727 = vpack.c.b16 %v703, %v699
    %v728 = vpack.c.b16 %v704, %v700
    %v729 = vpack.c.b16 %v705, %v701
    %v730 = vpack.c.b16 %v706, %v702
    %v731 = vpack.c.b16 %v711, %v707
    %v732 = vpack.c.b16 %v712, %v708
    %v733 = vpack.c.b16 %v713, %v709
    %v734 = vpack.c.b16 %v714, %v710
    %v735 = vpack.c.b16 %v719, %v715
    %v736 = vpack.c.b16 %v720, %v716
    %v737 = vpack.c.b16 %v721, %v717
    %v738 = vpack.c.b16 %v722, %v718
    %v756 = vsel %vm375, %v658, 0
    %758 = vmatprep.subr.bf16.mxu0 0
    %759 = vmatpush1.bf16.msra.mxu0 0
    %760 = vmatprep.subr.bf16.mxu0 0
    %761 = vmatpush1.bf16.msra.mxu0 0
    %762 = vmatprep.subr.bf16.mxu0 0
    %763 = vmatpush1.bf16.msra.mxu0 0
    %764 = vmatprep.subr.bf16.mxu0 0
    %765 = vmatpush1.bf16.msra.mxu0 0
    %766 = vmatprep.subr.bf16.mxu0 %v736
    %767 = vmatpush1.bf16.msra.mxu0 %v735
    %768 = vmatprep.subr.bf16.mxu0 %v732
    %769 = vmatpush1.bf16.msra.mxu0 %v731
    %770 = vmatprep.subr.bf16.mxu0 %v728
    %771 = vmatpush1.bf16.msra.mxu0 %v727
    %772 = vmatprep.subr.bf16.mxu0 %v724
    %773 = vmatpush1.bf16.msra.mxu0 %v723
    %774 = vmatprep.subr.bf16.mxu0 0
    %775 = vmatpush2.bf16.msra.mxu0 0
    %776 = vmatprep.subr.bf16.mxu0 0
    %777 = vmatpush2.bf16.msra.mxu0 0
    %778 = vmatprep.subr.bf16.mxu0 0
    %779 = vmatpush2.bf16.msra.mxu0 0
    %780 = vmatprep.subr.bf16.mxu0 0
    %781 = vmatpush2.bf16.msra.mxu0 0
    %782 = vmatprep.subr.bf16.mxu0 0
    %783 = vmatpush2.bf16.msra.mxu0 0
    %784 = vmatprep.subr.bf16.mxu0 0
    %785 = vmatpush2.bf16.msra.mxu0 0
    %786 = vmatprep.subr.bf16.mxu0 0
    %787 = vmatpush2.bf16.msra.mxu0 0
    %788 = vmatprep.subr.bf16.mxu0 0
    %789 = vmatpush2.bf16.msra.mxu0 0
    %790 = vmatprep.mubr.bf16.mxu0 0
    %791 = vmatmul.mubr.bf16.gmra.mxu0 %v756
    %v792 = vpop.f32.mrf.mxu0
    %v793 = vadd.f32 0.0, %v792
    %v794 = vpop.f32.mrf.mxu0
    %v795 = vadd.f32 0.0, %v794
    %v796 = vpop.f32.mrf.mxu0
    %v797 = vpop.f32.mrf.mxu0
    %798 = vdwg.mxu0
    %799 = vmatprep.subr.bf16.mxu0 0
    %800 = vmatpush1.bf16.msra.mxu0 0
    %801 = vmatprep.subr.bf16.mxu0 0
    %802 = vmatpush1.bf16.msra.mxu0 0
    %803 = vmatprep.subr.bf16.mxu0 0
    %804 = vmatpush1.bf16.msra.mxu0 0
    %805 = vmatprep.subr.bf16.mxu0 0
    %806 = vmatpush1.bf16.msra.mxu0 0
    %807 = vmatprep.subr.bf16.mxu0 %v738
    %808 = vmatpush1.bf16.msra.mxu0 %v737
    %809 = vmatprep.subr.bf16.mxu0 %v734
    %810 = vmatpush1.bf16.msra.mxu0 %v733
    %811 = vmatprep.subr.bf16.mxu0 %v730
    %812 = vmatpush1.bf16.msra.mxu0 %v729
    %813 = vmatprep.subr.bf16.mxu0 %v726
    %814 = vmatpush1.bf16.msra.mxu0 %v725
    %815 = vmatprep.subr.bf16.mxu0 0
    %816 = vmatpush2.bf16.msra.mxu0 0
    %817 = vmatprep.subr.bf16.mxu0 0
    %818 = vmatpush2.bf16.msra.mxu0 0
    %819 = vmatprep.subr.bf16.mxu0 0
    %820 = vmatpush2.bf16.msra.mxu0 0
    %821 = vmatprep.subr.bf16.mxu0 0
    %822 = vmatpush2.bf16.msra.mxu0 0
    %823 = vmatprep.subr.bf16.mxu0 0
    %824 = vmatpush2.bf16.msra.mxu0 0
    %825 = vmatprep.subr.bf16.mxu0 0
    %826 = vmatpush2.bf16.msra.mxu0 0
    %827 = vmatprep.subr.bf16.mxu0 0
    %828 = vmatpush2.bf16.msra.mxu0 0
    %829 = vmatprep.subr.bf16.mxu0 0
    %830 = vmatpush2.bf16.msra.mxu0 0
    %831 = vmatprep.mubr.bf16.mxu0 0
    %832 = vmatmul.mubr.bf16.gmra.mxu0 %v756
    %v833 = vpop.f32.mrf.mxu0
    %v834 = vadd.f32 0.0, %v833
    %v835 = vpop.f32.mrf.mxu0
    %v836 = vadd.f32 0.0, %v835
    %v837 = vpop.f32.mrf.mxu0
    %v838 = vpop.f32.mrf.mxu0
    %839 = vdwg.mxu0
    %v856 = vunpack.c.l.b16 %v500
    %v857 = vunpack.c.h.b16 %v500
    %v858 = vunpack.c.l.b16 %v501
    %v859 = vunpack.c.h.b16 %v501
    %v860 = vunpack.c.l.b16 %v502
    %v861 = vunpack.c.h.b16 %v502
    %v862 = vunpack.c.l.b16 %v503
    %v863 = vunpack.c.h.b16 %v503
    %v864 = vunpack.c.l.b16 %v504
    %v865 = vunpack.c.h.b16 %v504
    %v866 = vunpack.c.l.b16 %v505
    %v867 = vunpack.c.h.b16 %v505
    %v868 = vunpack.c.l.b16 %v506
    %v869 = vunpack.c.h.b16 %v506
    %v870 = vunpack.c.l.b16 %v507
    %v871 = vunpack.c.h.b16 %v507
    %v872 = vunpack.c.l.b16 %v508
    %v873 = vunpack.c.h.b16 %v508
    %v874 = vunpack.c.l.b16 %v509
    %v875 = vunpack.c.h.b16 %v509
    %v876 = vunpack.c.l.b16 %v510
    %v877 = vunpack.c.h.b16 %v510
    %v878 = vunpack.c.l.b16 %v511
    %v879 = vunpack.c.h.b16 %v511
    %v880 = vunpack.c.l.b16 %v512
    %v881 = vunpack.c.h.b16 %v512
    %v882 = vunpack.c.l.b16 %v513
    %v883 = vunpack.c.h.b16 %v513
    %v884 = vunpack.c.l.b16 %v514
    %v885 = vunpack.c.h.b16 %v514
    %v886 = vunpack.c.l.b16 %v515
    %v887 = vunpack.c.h.b16 %v515
    %v888 = vpack.c.b16 %v860, %v856
    %v889 = vpack.c.b16 %v861, %v857
    %v890 = vpack.c.b16 %v862, %v858
    %v891 = vpack.c.b16 %v863, %v859
    %v892 = vpack.c.b16 %v868, %v864
    %v893 = vpack.c.b16 %v869, %v865
    %v894 = vpack.c.b16 %v870, %v866
    %v895 = vpack.c.b16 %v871, %v867
    %v896 = vpack.c.b16 %v876, %v872
    %v897 = vpack.c.b16 %v877, %v873
    %v898 = vpack.c.b16 %v878, %v874
    %v899 = vpack.c.b16 %v879, %v875
    %v900 = vpack.c.b16 %v884, %v880
    %v901 = vpack.c.b16 %v885, %v881
    %v902 = vpack.c.b16 %v886, %v882
    %v903 = vpack.c.b16 %v887, %v883
    %v921 = vsel %vm375, %v499, 0
    %923 = vmatprep.subr.bf16.mxu0 0
    %924 = vmatpush1.bf16.msra.mxu0 0
    %925 = vmatprep.subr.bf16.mxu0 0
    %926 = vmatpush1.bf16.msra.mxu0 0
    %927 = vmatprep.subr.bf16.mxu0 0
    %928 = vmatpush1.bf16.msra.mxu0 0
    %929 = vmatprep.subr.bf16.mxu0 0
    %930 = vmatpush1.bf16.msra.mxu0 0
    %931 = vmatprep.subr.bf16.mxu0 %v901
    %932 = vmatpush1.bf16.msra.mxu0 %v900
    %933 = vmatprep.subr.bf16.mxu0 %v897
    %934 = vmatpush1.bf16.msra.mxu0 %v896
    %935 = vmatprep.subr.bf16.mxu0 %v893
    %936 = vmatpush1.bf16.msra.mxu0 %v892
    %937 = vmatprep.subr.bf16.mxu0 %v889
    %938 = vmatpush1.bf16.msra.mxu0 %v888
    %939 = vmatprep.subr.bf16.mxu0 0
    %940 = vmatpush2.bf16.msra.mxu0 0
    %941 = vmatprep.subr.bf16.mxu0 0
    %942 = vmatpush2.bf16.msra.mxu0 0
    %943 = vmatprep.subr.bf16.mxu0 0
    %944 = vmatpush2.bf16.msra.mxu0 0
    %945 = vmatprep.subr.bf16.mxu0 0
    %946 = vmatpush2.bf16.msra.mxu0 0
    %947 = vmatprep.subr.bf16.mxu0 0
    %948 = vmatpush2.bf16.msra.mxu0 0
    %949 = vmatprep.subr.bf16.mxu0 0
    %950 = vmatpush2.bf16.msra.mxu0 0
    %951 = vmatprep.subr.bf16.mxu0 0
    %952 = vmatpush2.bf16.msra.mxu0 0
    %953 = vmatprep.subr.bf16.mxu0 0
    %954 = vmatpush2.bf16.msra.mxu0 0
    %955 = vmatprep.mubr.bf16.mxu0 0
    %956 = vmatmul.mubr.bf16.gmra.mxu0 %v921
    %v957 = vpop.f32.mrf.mxu0
    %v958 = vadd.f32 %v793, %v957
    %v959 = vpop.f32.mrf.mxu0
    %v960 = vadd.f32 %v795, %v959
    %v961 = vpop.f32.mrf.mxu0
    %v962 = vpop.f32.mrf.mxu0
    %963 = vdwg.mxu0
    %964 = vmatprep.subr.bf16.mxu0 0
    %965 = vmatpush1.bf16.msra.mxu0 0
    %966 = vmatprep.subr.bf16.mxu0 0
    %967 = vmatpush1.bf16.msra.mxu0 0
    %968 = vmatprep.subr.bf16.mxu0 0
    %969 = vmatpush1.bf16.msra.mxu0 0
    %970 = vmatprep.subr.bf16.mxu0 0
    %971 = vmatpush1.bf16.msra.mxu0 0
    %972 = vmatprep.subr.bf16.mxu0 %v903
    %973 = vmatpush1.bf16.msra.mxu0 %v902
    %974 = vmatprep.subr.bf16.mxu0 %v899
    %975 = vmatpush1.bf16.msra.mxu0 %v898
    %976 = vmatprep.subr.bf16.mxu0 %v895
    %977 = vmatpush1.bf16.msra.mxu0 %v894
    %978 = vmatprep.subr.bf16.mxu0 %v891
    %979 = vmatpush1.bf16.msra.mxu0 %v890
    %980 = vmatprep.subr.bf16.mxu0 0
    %981 = vmatpush2.bf16.msra.mxu0 0
    %982 = vmatprep.subr.bf16.mxu0 0
    %983 = vmatpush2.bf16.msra.mxu0 0
    %984 = vmatprep.subr.bf16.mxu0 0
    %985 = vmatpush2.bf16.msra.mxu0 0
    %986 = vmatprep.subr.bf16.mxu0 0
    %987 = vmatpush2.bf16.msra.mxu0 0
    %988 = vmatprep.subr.bf16.mxu0 0
    %989 = vmatpush2.bf16.msra.mxu0 0
    %990 = vmatprep.subr.bf16.mxu0 0
    %991 = vmatpush2.bf16.msra.mxu0 0
    %992 = vmatprep.subr.bf16.mxu0 0
    %993 = vmatpush2.bf16.msra.mxu0 0
    %994 = vmatprep.subr.bf16.mxu0 0
    %995 = vmatpush2.bf16.msra.mxu0 0
    %996 = vmatprep.mubr.bf16.mxu0 0
    %997 = vmatmul.mubr.bf16.gmra.mxu0 %v921
    %v998 = vpop.f32.mrf.mxu0
    %v999 = vadd.f32 %v834, %v998
    %v1000 = vpop.f32.mrf.mxu0
    %v1001 = vadd.f32 %v836, %v1000
    %v1002 = vpop.f32.mrf.mxu0
    %v1003 = vpop.f32.mrf.mxu0
    %1004 = vdwg.mxu0
    %v1005 = vld [vmem:[%s0] sm:$0x22]
    %v1006 = vld [vmem:[%s0 + $0x8] sm:$0x22]
    %v1007 = vld [vmem:[%s0 + $0x10] sm:$0x2]
    %v1008 = vld [vmem:[%s0 + $0x28] sm:$0x22]
    %v1009 = vld [vmem:[%s0 + $0x30] sm:$0x22]
    %v1010 = vld [vmem:[%s0 + $0x38] sm:$0x2]
    %v1017 = vunpack.c.l.b16 %v1005
    %v1018 = vunpack.c.h.b16 %v1005
    %v1019 = vunpack.c.l.b16 %v1006
    %v1020 = vunpack.c.h.b16 %v1006
    %v1021 = vunpack.c.l.b16 %v1007
    %v1022 = vunpack.c.l.b16 %v1008
    %v1023 = vunpack.c.h.b16 %v1008
    %v1024 = vunpack.c.l.b16 %v1009
    %v1025 = vunpack.c.h.b16 %v1009
    %v1026 = vunpack.c.l.b16 %v1010
    %v1027 = vpack.c.b16 %v1017, %v1017
    %v1028 = vpack.c.b16 %v1018, %v1018
    %v1029 = vpack.c.b16 %v1019, %v1019
    %v1030 = vpack.c.b16 %v1020, %v1020
    %v1031 = vpack.c.b16 %v1021, %v1021
    %v1032 = vpack.c.b16 %v1022, %v1022
    %v1033 = vpack.c.b16 %v1023, %v1023
    %v1034 = vpack.c.b16 %v1024, %v1024
    %v1035 = vpack.c.b16 %v1025, %v1025
    %v1036 = vpack.c.b16 %v1026, %v1026
    %v1037 = vunpack.c.l.b16 %v1027
    %v1038 = vunpack.c.l.b16 %v1028
    %v1039 = vunpack.c.l.b16 %v1029
    %v1040 = vunpack.c.l.b16 %v1030
    %v1041 = vunpack.c.l.b16 %v1031
    %v1042 = vunpack.c.l.b16 %v1032
    %v1043 = vunpack.c.l.b16 %v1033
    %v1044 = vunpack.c.l.b16 %v1034
    %v1045 = vunpack.c.l.b16 %v1035
    %v1046 = vunpack.c.l.b16 %v1036
    %v1047 = vrot.slane %v1037, 2
    %v1048 = vrot.slane %v1042, 1
    %v1049 = vsel %vm140, %v1048, %v1047
    %v1050 = vrot.slane %v1038, 2
    %v1051 = vrot.slane %v1043, 1
    %v1052 = vsel %vm140, %v1051, %v1050
    %v1053 = vrot.slane %v1039, 2
    %v1054 = vrot.slane %v1044, 1
    %v1055 = vsel %vm140, %v1054, %v1053
    %v1056 = vrot.slane %v1040, 2
    %v1057 = vrot.slane %v1045, 1
    %v1058 = vsel %vm140, %v1057, %v1056
    %v1059 = vrot.slane %v1041, 2
    %v1060 = vrot.slane %v1046, 1
    %v1061 = vsel %vm140, %v1060, %v1059
    %v1062 = vpack.c.b16 %v1049, %v1049
    %v1063 = vpack.c.b16 %v1052, %v1052
    %v1064 = vpack.c.b16 %v1055, %v1055
    %v1065 = vpack.c.b16 %v1058, %v1058
    %v1066 = vpack.c.b16 %v1061, %v1061
    %v1072 = vsel %vm375, %v1066, 0
    %1074 = vmatprep.subr.bf16.mxu0 0
    %1075 = vmatpush1.bf16.msra.mxu0 %v310
    %1076 = vmatprep.subr.bf16.mxu0 0
    %1077 = vmatpush1.bf16.msra.mxu0 %v309
    %1078 = vmatprep.subr.bf16.mxu0 0
    %1079 = vmatpush1.bf16.msra.mxu0 %v308
    %1080 = vmatprep.subr.bf16.mxu0 0
    %1081 = vmatpush1.bf16.msra.mxu0 %v307
    %1082 = vmatprep.subr.bf16.mxu0 0
    %1083 = vmatpush1.bf16.msra.mxu0 %v306
    %1084 = vmatprep.subr.bf16.mxu0 0
    %1085 = vmatpush1.bf16.msra.mxu0 %v305
    %1086 = vmatprep.subr.bf16.mxu0 0
    %1087 = vmatpush1.bf16.msra.mxu0 %v304
    %1088 = vmatprep.subr.bf16.mxu0 0
    %1089 = vmatpush1.bf16.msra.mxu0 %v303
    %1090 = vmatprep.subr.bf16.mxu0 0
    %1091 = vmatpush2.bf16.msra.mxu0 %v318
    %1092 = vmatprep.subr.bf16.mxu0 0
    %1093 = vmatpush2.bf16.msra.mxu0 %v317
    %1094 = vmatprep.subr.bf16.mxu0 0
    %1095 = vmatpush2.bf16.msra.mxu0 %v316
    %1096 = vmatprep.subr.bf16.mxu0 0
    %1097 = vmatpush2.bf16.msra.mxu0 %v315
    %1098 = vmatprep.subr.bf16.mxu0 0
    %1099 = vmatpush2.bf16.msra.mxu0 %v314
    %1100 = vmatprep.subr.bf16.mxu0 0
    %1101 = vmatpush2.bf16.msra.mxu0 %v313
    %1102 = vmatprep.subr.bf16.mxu0 0
    %1103 = vmatpush2.bf16.msra.mxu0 %v312
    %1104 = vmatprep.subr.bf16.mxu0 0
    %1105 = vmatpush2.bf16.msra.mxu0 %v311
    %1106 = vmatprep.mubr.bf16.mxu0 %v1063
    %1107 = vmatmul.mubr.bf16.gmra.mxu0 %v1062
    %v1108 = vpop.f32.mrf.mxu0
    %v1109 = vadd.f32 0.0, %v1108
    %v1110 = vpop.f32.mrf.mxu0
    %v1111 = vpop.f32.mrf.mxu0
    %v1112 = vpop.f32.mrf.mxu0
    %1113 = vdwg.mxu0
    %1114 = vmatprep.subr.bf16.mxu0 0
    %1115 = vmatpush1.bf16.msra.mxu0 %v326
    %1116 = vmatprep.subr.bf16.mxu0 0
    %1117 = vmatpush1.bf16.msra.mxu0 %v325
    %1118 = vmatprep.subr.bf16.mxu0 0
    %1119 = vmatpush1.bf16.msra.mxu0 %v324
    %1120 = vmatprep.subr.bf16.mxu0 0
    %1121 = vmatpush1.bf16.msra.mxu0 %v323
    %1122 = vmatprep.subr.bf16.mxu0 0
    %1123 = vmatpush1.bf16.msra.mxu0 %v322
    %1124 = vmatprep.subr.bf16.mxu0 0
    %1125 = vmatpush1.bf16.msra.mxu0 %v321
    %1126 = vmatprep.subr.bf16.mxu0 0
    %1127 = vmatpush1.bf16.msra.mxu0 %v320
    %1128 = vmatprep.subr.bf16.mxu0 0
    %1129 = vmatpush1.bf16.msra.mxu0 %v319
    %1130 = vmatprep.subr.bf16.mxu0 0
    %1131 = vmatpush2.bf16.msra.mxu0 %v334
    %1132 = vmatprep.subr.bf16.mxu0 0
    %1133 = vmatpush2.bf16.msra.mxu0 %v333
    %1134 = vmatprep.subr.bf16.mxu0 0
    %1135 = vmatpush2.bf16.msra.mxu0 %v332
    %1136 = vmatprep.subr.bf16.mxu0 0
    %1137 = vmatpush2.bf16.msra.mxu0 %v331
    %1138 = vmatprep.subr.bf16.mxu0 0
    %1139 = vmatpush2.bf16.msra.mxu0 %v330
    %1140 = vmatprep.subr.bf16.mxu0 0
    %1141 = vmatpush2.bf16.msra.mxu0 %v329
    %1142 = vmatprep.subr.bf16.mxu0 0
    %1143 = vmatpush2.bf16.msra.mxu0 %v328
    %1144 = vmatprep.subr.bf16.mxu0 0
    %1145 = vmatpush2.bf16.msra.mxu0 %v327
    %1146 = vmatprep.mubr.bf16.mxu0 %v1065
    %1147 = vmatmul.mubr.bf16.gmra.mxu0 %v1064
    %v1148 = vpop.f32.mrf.mxu0
    %v1149 = vadd.f32 %v1109, %v1148
    %v1150 = vpop.f32.mrf.mxu0
    %v1151 = vpop.f32.mrf.mxu0
    %v1152 = vpop.f32.mrf.mxu0
    %1153 = vdwg.mxu0
    %1154 = vmatprep.subr.bf16.mxu0 0
    %1155 = vmatpush1.bf16.msra.mxu0 0
    %1156 = vmatprep.subr.bf16.mxu0 0
    %1157 = vmatpush1.bf16.msra.mxu0 0
    %1158 = vmatprep.subr.bf16.mxu0 0
    %1159 = vmatpush1.bf16.msra.mxu0 0
    %1160 = vmatprep.subr.bf16.mxu0 0
    %1161 = vmatpush1.bf16.msra.mxu0 0
    %1162 = vmatprep.subr.bf16.mxu0 0
    %1163 = vmatpush1.bf16.msra.mxu0 %v338
    %1164 = vmatprep.subr.bf16.mxu0 0
    %1165 = vmatpush1.bf16.msra.mxu0 %v337
    %1166 = vmatprep.subr.bf16.mxu0 0
    %1167 = vmatpush1.bf16.msra.mxu0 %v336
    %1168 = vmatprep.subr.bf16.mxu0 0
    %1169 = vmatpush1.bf16.msra.mxu0 %v335
    %1170 = vmatprep.subr.bf16.mxu0 0
    %1171 = vmatpush2.bf16.msra.mxu0 0
    %1172 = vmatprep.subr.bf16.mxu0 0
    %1173 = vmatpush2.bf16.msra.mxu0 0
    %1174 = vmatprep.subr.bf16.mxu0 0
    %1175 = vmatpush2.bf16.msra.mxu0 0
    %1176 = vmatprep.subr.bf16.mxu0 0
    %1177 = vmatpush2.bf16.msra.mxu0 0
    %1178 = vmatprep.subr.bf16.mxu0 0
    %1179 = vmatpush2.bf16.msra.mxu0 0
    %1180 = vmatprep.subr.bf16.mxu0 0
    %1181 = vmatpush2.bf16.msra.mxu0 0
    %1182 = vmatprep.subr.bf16.mxu0 0
    %1183 = vmatpush2.bf16.msra.mxu0 0
    %1184 = vmatprep.subr.bf16.mxu0 0
    %1185 = vmatpush2.bf16.msra.mxu0 0
    %1186 = vmatprep.mubr.bf16.mxu0 0
    %1187 = vmatmul.mubr.bf16.gmra.mxu0 %v1072
    %v1188 = vpop.f32.mrf.mxu0
    %v1189 = vadd.f32 %v1149, %v1188
    %v1190 = vpop.f32.mrf.mxu0
    %v1191 = vpop.f32.mrf.mxu0
    %v1192 = vpop.f32.mrf.mxu0
    %1193 = vdwg.mxu0
    %v1194 = vpack.c.bf16 %v1189, %v1189
    %v1195 = vld [vmem:[%s2 + $0x100] sm:$0xff]
    %v1196 = vld [vmem:[%s2 + $0x108] sm:$0xff]
    %v1197 = vld [vmem:[%s2 + $0x110] sm:$0xff]
    %v1198 = vld [vmem:[%s2 + $0x118] sm:$0xff]
    %v1199 = vld [vmem:[%s2 + $0x120] sm:$0xff]
    %v1200 = vld [vmem:[%s2 + $0x128] sm:$0xff]
    %v1201 = vld [vmem:[%s2 + $0x130] sm:$0xff]
    %v1202 = vld [vmem:[%s2 + $0x138] sm:$0xff]
    %v1203 = vld [vmem:[%s2 + $0x140] sm:$0xff]
    %v1204 = vld [vmem:[%s2 + $0x148] sm:$0xff]
    %v1205 = vld [vmem:[%s2 + $0x150] sm:$0xff]
    %v1206 = vld [vmem:[%s2 + $0x158] sm:$0xff]
    %v1207 = vld [vmem:[%s2 + $0x160] sm:$0xff]
    %v1208 = vld [vmem:[%s2 + $0x168] sm:$0xff]
    %v1209 = vld [vmem:[%s2 + $0x170] sm:$0xff]
    %v1210 = vld [vmem:[%s2 + $0x178] sm:$0xff]
    %v1227 = vunpack.c.l.b16 %v1195
    %v1228 = vunpack.c.h.b16 %v1195
    %v1229 = vunpack.c.l.b16 %v1196
    %v1230 = vunpack.c.h.b16 %v1196
    %v1231 = vunpack.c.l.b16 %v1197
    %v1232 = vunpack.c.h.b16 %v1197
    %v1233 = vunpack.c.l.b16 %v1198
    %v1234 = vunpack.c.h.b16 %v1198
    %v1235 = vunpack.c.l.b16 %v1199
    %v1236 = vunpack.c.h.b16 %v1199
    %v1237 = vunpack.c.l.b16 %v1200
    %v1238 = vunpack.c.h.b16 %v1200
    %v1239 = vunpack.c.l.b16 %v1201
    %v1240 = vunpack.c.h.b16 %v1201
    %v1241 = vunpack.c.l.b16 %v1202
    %v1242 = vunpack.c.h.b16 %v1202
    %v1243 = vunpack.c.l.b16 %v1203
    %v1244 = vunpack.c.h.b16 %v1203
    %v1245 = vunpack.c.l.b16 %v1204
    %v1246 = vunpack.c.h.b16 %v1204
    %v1247 = vunpack.c.l.b16 %v1205
    %v1248 = vunpack.c.h.b16 %v1205
    %v1249 = vunpack.c.l.b16 %v1206
    %v1250 = vunpack.c.h.b16 %v1206
    %v1251 = vunpack.c.l.b16 %v1207
    %v1252 = vunpack.c.h.b16 %v1207
    %v1253 = vunpack.c.l.b16 %v1208
    %v1254 = vunpack.c.h.b16 %v1208
    %v1255 = vunpack.c.l.b16 %v1209
    %v1256 = vunpack.c.h.b16 %v1209
    %v1257 = vunpack.c.l.b16 %v1210
    %v1258 = vunpack.c.h.b16 %v1210
    %v1259 = vpack.c.b16 %v1231, %v1227
    %v1260 = vpack.c.b16 %v1232, %v1228
    %v1261 = vpack.c.b16 %v1233, %v1229
    %v1262 = vpack.c.b16 %v1234, %v1230
    %v1263 = vpack.c.b16 %v1239, %v1235
    %v1264 = vpack.c.b16 %v1240, %v1236
    %v1265 = vpack.c.b16 %v1241, %v1237
    %v1266 = vpack.c.b16 %v1242, %v1238
    %v1267 = vpack.c.b16 %v1247, %v1243
    %v1268 = vpack.c.b16 %v1248, %v1244
    %v1269 = vpack.c.b16 %v1249, %v1245
    %v1270 = vpack.c.b16 %v1250, %v1246
    %v1271 = vpack.c.b16 %v1255, %v1251
    %v1272 = vpack.c.b16 %v1256, %v1252
    %v1273 = vpack.c.b16 %v1257, %v1253
    %v1274 = vpack.c.b16 %v1258, %v1254
    %v1292 = vsel %vm375, %v1194, 0
    %1294 = vmatprep.subr.bf16.mxu0 0
    %1295 = vmatpush1.bf16.msra.mxu0 0
    %1296 = vmatprep.subr.bf16.mxu0 0
    %1297 = vmatpush1.bf16.msra.mxu0 0
    %1298 = vmatprep.subr.bf16.mxu0 0
    %1299 = vmatpush1.bf16.msra.mxu0 0
    %1300 = vmatprep.subr.bf16.mxu0 0
    %1301 = vmatpush1.bf16.msra.mxu0 0
    %1302 = vmatprep.subr.bf16.mxu0 %v1272
    %1303 = vmatpush1.bf16.msra.mxu0 %v1271
    %1304 = vmatprep.subr.bf16.mxu0 %v1268
    %1305 = vmatpush1.bf16.msra.mxu0 %v1267
    %1306 = vmatprep.subr.bf16.mxu0 %v1264
    %1307 = vmatpush1.bf16.msra.mxu0 %v1263
    %1308 = vmatprep.subr.bf16.mxu0 %v1260
    %1309 = vmatpush1.bf16.msra.mxu0 %v1259
    %1310 = vmatprep.subr.bf16.mxu0 0
    %1311 = vmatpush2.bf16.msra.mxu0 0
    %1312 = vmatprep.subr.bf16.mxu0 0
    %1313 = vmatpush2.bf16.msra.mxu0 0
    %1314 = vmatprep.subr.bf16.mxu0 0
    %1315 = vmatpush2.bf16.msra.mxu0 0
    %1316 = vmatprep.subr.bf16.mxu0 0
    %1317 = vmatpush2.bf16.msra.mxu0 0
    %1318 = vmatprep.subr.bf16.mxu0 0
    %1319 = vmatpush2.bf16.msra.mxu0 0
    %1320 = vmatprep.subr.bf16.mxu0 0
    %1321 = vmatpush2.bf16.msra.mxu0 0
    %1322 = vmatprep.subr.bf16.mxu0 0
    %1323 = vmatpush2.bf16.msra.mxu0 0
    %1324 = vmatprep.subr.bf16.mxu0 0
    %1325 = vmatpush2.bf16.msra.mxu0 0
    %1326 = vmatprep.mubr.bf16.mxu0 0
    %1327 = vmatmul.mubr.bf16.gmra.mxu0 %v1292
    %v1328 = vpop.f32.mrf.mxu0
    %v1329 = vadd.f32 0.0, %v1328
    %v1330 = vpop.f32.mrf.mxu0
    %v1331 = vadd.f32 0.0, %v1330
    %v1332 = vpop.f32.mrf.mxu0
    %v1333 = vpop.f32.mrf.mxu0
    %1334 = vdwg.mxu0
    %1335 = vmatprep.subr.bf16.mxu0 0
    %1336 = vmatpush1.bf16.msra.mxu0 0
    %1337 = vmatprep.subr.bf16.mxu0 0
    %1338 = vmatpush1.bf16.msra.mxu0 0
    %1339 = vmatprep.subr.bf16.mxu0 0
    %1340 = vmatpush1.bf16.msra.mxu0 0
    %1341 = vmatprep.subr.bf16.mxu0 0
    %1342 = vmatpush1.bf16.msra.mxu0 0
    %1343 = vmatprep.subr.bf16.mxu0 %v1274
    %1344 = vmatpush1.bf16.msra.mxu0 %v1273
    %1345 = vmatprep.subr.bf16.mxu0 %v1270
    %1346 = vmatpush1.bf16.msra.mxu0 %v1269
    %1347 = vmatprep.subr.bf16.mxu0 %v1266
    %1348 = vmatpush1.bf16.msra.mxu0 %v1265
    %1349 = vmatprep.subr.bf16.mxu0 %v1262
    %1350 = vmatpush1.bf16.msra.mxu0 %v1261
    %1351 = vmatprep.subr.bf16.mxu0 0
    %1352 = vmatpush2.bf16.msra.mxu0 0
    %1353 = vmatprep.subr.bf16.mxu0 0
    %1354 = vmatpush2.bf16.msra.mxu0 0
    %1355 = vmatprep.subr.bf16.mxu0 0
    %1356 = vmatpush2.bf16.msra.mxu0 0
    %1357 = vmatprep.subr.bf16.mxu0 0
    %1358 = vmatpush2.bf16.msra.mxu0 0
    %1359 = vmatprep.subr.bf16.mxu0 0
    %1360 = vmatpush2.bf16.msra.mxu0 0
    %1361 = vmatprep.subr.bf16.mxu0 0
    %1362 = vmatpush2.bf16.msra.mxu0 0
    %1363 = vmatprep.subr.bf16.mxu0 0
    %1364 = vmatpush2.bf16.msra.mxu0 0
    %1365 = vmatprep.subr.bf16.mxu0 0
    %1366 = vmatpush2.bf16.msra.mxu0 0
    %1367 = vmatprep.mubr.bf16.mxu0 0
    %1368 = vmatmul.mubr.bf16.gmra.mxu0 %v1292
    %v1369 = vpop.f32.mrf.mxu0
    %v1370 = vadd.f32 0.0, %v1369
    %v1371 = vpop.f32.mrf.mxu0
    %v1372 = vadd.f32 0.0, %v1371
    %v1373 = vpop.f32.mrf.mxu0
    %v1374 = vpop.f32.mrf.mxu0
    %1375 = vdwg.mxu0
    %v1376 = vadd.f32 %v958, %v1329
    %v1377 = vadd.f32 %v960, %v1331
    %v1378 = vadd.f32 %v999, %v1370
    %v1379 = vadd.f32 %v1001, %v1372
    %v1380 = vrot.slane %v1037, 3
    %v1381 = vrot.slane %v1042, 2
    %v1382 = vsel %vm140, %v1381, %v1380
    %v1383 = vrot.slane %v1038, 3
    %v1384 = vrot.slane %v1043, 2
    %v1385 = vsel %vm140, %v1384, %v1383
    %v1386 = vrot.slane %v1039, 3
    %v1387 = vrot.slane %v1044, 2
    %v1388 = vsel %vm140, %v1387, %v1386
    %v1389 = vrot.slane %v1040, 3
    %v1390 = vrot.slane %v1045, 2
    %v1391 = vsel %vm140, %v1390, %v1389
    %v1392 = vrot.slane %v1041, 3
    %v1393 = vrot.slane %v1046, 2
    %v1394 = vsel %vm140, %v1393, %v1392
    %v1395 = vpack.c.b16 %v1382, %v1382
    %v1396 = vpack.c.b16 %v1385, %v1385
    %v1397 = vpack.c.b16 %v1388, %v1388
    %v1398 = vpack.c.b16 %v1391, %v1391
    %v1399 = vpack.c.b16 %v1394, %v1394
    %v1405 = vsel %vm375, %v1399, 0
    %1407 = vmatprep.subr.bf16.mxu0 0
    %1408 = vmatpush1.bf16.msra.mxu0 %v310
    %1409 = vmatprep.subr.bf16.mxu0 0
    %1410 = vmatpush1.bf16.msra.mxu0 %v309
    %1411 = vmatprep.subr.bf16.mxu0 0
    %1412 = vmatpush1.bf16.msra.mxu0 %v308
    %1413 = vmatprep.subr.bf16.mxu0 0
    %1414 = vmatpush1.bf16.msra.mxu0 %v307
    %1415 = vmatprep.subr.bf16.mxu0 0
    %1416 = vmatpush1.bf16.msra.mxu0 %v306
    %1417 = vmatprep.subr.bf16.mxu0 0
    %1418 = vmatpush1.bf16.msra.mxu0 %v305
    %1419 = vmatprep.subr.bf16.mxu0 0
    %1420 = vmatpush1.bf16.msra.mxu0 %v304
    %1421 = vmatprep.subr.bf16.mxu0 0
    %1422 = vmatpush1.bf16.msra.mxu0 %v303
    %1423 = vmatprep.subr.bf16.mxu0 0
    %1424 = vmatpush2.bf16.msra.mxu0 %v318
    %1425 = vmatprep.subr.bf16.mxu0 0
    %1426 = vmatpush2.bf16.msra.mxu0 %v317
    %1427 = vmatprep.subr.bf16.mxu0 0
    %1428 = vmatpush2.bf16.msra.mxu0 %v316
    %1429 = vmatprep.subr.bf16.mxu0 0
    %1430 = vmatpush2.bf16.msra.mxu0 %v315
    %1431 = vmatprep.subr.bf16.mxu0 0
    %1432 = vmatpush2.bf16.msra.mxu0 %v314
    %1433 = vmatprep.subr.bf16.mxu0 0
    %1434 = vmatpush2.bf16.msra.mxu0 %v313
    %1435 = vmatprep.subr.bf16.mxu0 0
    %1436 = vmatpush2.bf16.msra.mxu0 %v312
    %1437 = vmatprep.subr.bf16.mxu0 0
    %1438 = vmatpush2.bf16.msra.mxu0 %v311
    %1439 = vmatprep.mubr.bf16.mxu0 %v1396
    %1440 = vmatmul.mubr.bf16.gmra.mxu0 %v1395
    %v1441 = vpop.f32.mrf.mxu0
    %v1442 = vadd.f32 0.0, %v1441
    %v1443 = vpop.f32.mrf.mxu0
    %v1444 = vpop.f32.mrf.mxu0
    %v1445 = vpop.f32.mrf.mxu0
    %1446 = vdwg.mxu0
    %1447 = vmatprep.subr.bf16.mxu0 0
    %1448 = vmatpush1.bf16.msra.mxu0 %v326
    %1449 = vmatprep.subr.bf16.mxu0 0
    %1450 = vmatpush1.bf16.msra.mxu0 %v325
    %1451 = vmatprep.subr.bf16.mxu0 0
    %1452 = vmatpush1.bf16.msra.mxu0 %v324
    %1453 = vmatprep.subr.bf16.mxu0 0
    %1454 = vmatpush1.bf16.msra.mxu0 %v323
    %1455 = vmatprep.subr.bf16.mxu0 0
    %1456 = vmatpush1.bf16.msra.mxu0 %v322
    %1457 = vmatprep.subr.bf16.mxu0 0
    %1458 = vmatpush1.bf16.msra.mxu0 %v321
    %1459 = vmatprep.subr.bf16.mxu0 0
    %1460 = vmatpush1.bf16.msra.mxu0 %v320
    %1461 = vmatprep.subr.bf16.mxu0 0
    %1462 = vmatpush1.bf16.msra.mxu0 %v319
    %1463 = vmatprep.subr.bf16.mxu0 0
    %1464 = vmatpush2.bf16.msra.mxu0 %v334
    %1465 = vmatprep.subr.bf16.mxu0 0
    %1466 = vmatpush2.bf16.msra.mxu0 %v333
    %1467 = vmatprep.subr.bf16.mxu0 0
    %1468 = vmatpush2.bf16.msra.mxu0 %v332
    %1469 = vmatprep.subr.bf16.mxu0 0
    %1470 = vmatpush2.bf16.msra.mxu0 %v331
    %1471 = vmatprep.subr.bf16.mxu0 0
    %1472 = vmatpush2.bf16.msra.mxu0 %v330
    %1473 = vmatprep.subr.bf16.mxu0 0
    %1474 = vmatpush2.bf16.msra.mxu0 %v329
    %1475 = vmatprep.subr.bf16.mxu0 0
    %1476 = vmatpush2.bf16.msra.mxu0 %v328
    %1477 = vmatprep.subr.bf16.mxu0 0
    %1478 = vmatpush2.bf16.msra.mxu0 %v327
    %1479 = vmatprep.mubr.bf16.mxu0 %v1398
    %1480 = vmatmul.mubr.bf16.gmra.mxu0 %v1397
    %v1481 = vpop.f32.mrf.mxu0
    %v1482 = vadd.f32 %v1442, %v1481
    %v1483 = vpop.f32.mrf.mxu0
    %v1484 = vpop.f32.mrf.mxu0
    %v1485 = vpop.f32.mrf.mxu0
    %1486 = vdwg.mxu0
    %1487 = vmatprep.subr.bf16.mxu0 0
    %1488 = vmatpush1.bf16.msra.mxu0 0
    %1489 = vmatprep.subr.bf16.mxu0 0
    %1490 = vmatpush1.bf16.msra.mxu0 0
    %1491 = vmatprep.subr.bf16.mxu0 0
    %1492 = vmatpush1.bf16.msra.mxu0 0
    %1493 = vmatprep.subr.bf16.mxu0 0
    %1494 = vmatpush1.bf16.msra.mxu0 0
    %1495 = vmatprep.subr.bf16.mxu0 0
    %1496 = vmatpush1.bf16.msra.mxu0 %v338
    %1497 = vmatprep.subr.bf16.mxu0 0
    %1498 = vmatpush1.bf16.msra.mxu0 %v337
    %1499 = vmatprep.subr.bf16.mxu0 0
    %1500 = vmatpush1.bf16.msra.mxu0 %v336
    %1501 = vmatprep.subr.bf16.mxu0 0
    %1502 = vmatpush1.bf16.msra.mxu0 %v335
    %1503 = vmatprep.subr.bf16.mxu0 0
    %1504 = vmatpush2.bf16.msra.mxu0 0
    %1505 = vmatprep.subr.bf16.mxu0 0
    %1506 = vmatpush2.bf16.msra.mxu0 0
    %1507 = vmatprep.subr.bf16.mxu0 0
    %1508 = vmatpush2.bf16.msra.mxu0 0
    %1509 = vmatprep.subr.bf16.mxu0 0
    %1510 = vmatpush2.bf16.msra.mxu0 0
    %1511 = vmatprep.subr.bf16.mxu0 0
    %1512 = vmatpush2.bf16.msra.mxu0 0
    %1513 = vmatprep.subr.bf16.mxu0 0
    %1514 = vmatpush2.bf16.msra.mxu0 0
    %1515 = vmatprep.subr.bf16.mxu0 0
    %1516 = vmatpush2.bf16.msra.mxu0 0
    %1517 = vmatprep.subr.bf16.mxu0 0
    %1518 = vmatpush2.bf16.msra.mxu0 0
    %1519 = vmatprep.mubr.bf16.mxu0 0
    %1520 = vmatmul.mubr.bf16.gmra.mxu0 %v1405
    %v1521 = vpop.f32.mrf.mxu0
    %v1522 = vadd.f32 %v1482, %v1521
    %v1523 = vpop.f32.mrf.mxu0
    %v1524 = vpop.f32.mrf.mxu0
    %v1525 = vpop.f32.mrf.mxu0
    %1526 = vdwg.mxu0
    %v1527 = vpack.c.bf16 %v1522, %v1522
    %v1528 = vld [vmem:[%s2 + $0x180] sm:$0xff]
    %v1529 = vld [vmem:[%s2 + $0x188] sm:$0xff]
    %v1530 = vld [vmem:[%s2 + $0x190] sm:$0xff]
    %v1531 = vld [vmem:[%s2 + $0x198] sm:$0xff]
    %v1532 = vld [vmem:[%s2 + $0x1a0] sm:$0xff]
    %v1533 = vld [vmem:[%s2 + $0x1a8] sm:$0xff]
    %v1534 = vld [vmem:[%s2 + $0x1b0] sm:$0xff]
    %v1535 = vld [vmem:[%s2 + $0x1b8] sm:$0xff]
    %v1536 = vld [vmem:[%s2 + $0x1c0] sm:$0xff]
    %v1537 = vld [vmem:[%s2 + $0x1c8] sm:$0xff]
    %v1538 = vld [vmem:[%s2 + $0x1d0] sm:$0xff]
    %v1539 = vld [vmem:[%s2 + $0x1d8] sm:$0xff]
    %v1540 = vld [vmem:[%s2 + $0x1e0] sm:$0xff]
    %v1541 = vld [vmem:[%s2 + $0x1e8] sm:$0xff]
    %v1542 = vld [vmem:[%s2 + $0x1f0] sm:$0xff]
    %v1543 = vld [vmem:[%s2 + $0x1f8] sm:$0xff]
    %v1560 = vunpack.c.l.b16 %v1528
    %v1561 = vunpack.c.h.b16 %v1528
    %v1562 = vunpack.c.l.b16 %v1529
    %v1563 = vunpack.c.h.b16 %v1529
    %v1564 = vunpack.c.l.b16 %v1530
    %v1565 = vunpack.c.h.b16 %v1530
    %v1566 = vunpack.c.l.b16 %v1531
    %v1567 = vunpack.c.h.b16 %v1531
    %v1568 = vunpack.c.l.b16 %v1532
    %v1569 = vunpack.c.h.b16 %v1532
    %v1570 = vunpack.c.l.b16 %v1533
    %v1571 = vunpack.c.h.b16 %v1533
    %v1572 = vunpack.c.l.b16 %v1534
    %v1573 = vunpack.c.h.b16 %v1534
    %v1574 = vunpack.c.l.b16 %v1535
    %v1575 = vunpack.c.h.b16 %v1535
    %v1576 = vunpack.c.l.b16 %v1536
    %v1577 = vunpack.c.h.b16 %v1536
    %v1578 = vunpack.c.l.b16 %v1537
    %v1579 = vunpack.c.h.b16 %v1537
    %v1580 = vunpack.c.l.b16 %v1538
    %v1581 = vunpack.c.h.b16 %v1538
    %v1582 = vunpack.c.l.b16 %v1539
    %v1583 = vunpack.c.h.b16 %v1539
    %v1584 = vunpack.c.l.b16 %v1540
    %v1585 = vunpack.c.h.b16 %v1540
    %v1586 = vunpack.c.l.b16 %v1541
    %v1587 = vunpack.c.h.b16 %v1541
    %v1588 = vunpack.c.l.b16 %v1542
    %v1589 = vunpack.c.h.b16 %v1542
    %v1590 = vunpack.c.l.b16 %v1543
    %v1591 = vunpack.c.h.b16 %v1543
    %v1592 = vpack.c.b16 %v1564, %v1560
    %v1593 = vpack.c.b16 %v1565, %v1561
    %v1594 = vpack.c.b16 %v1566, %v1562
    %v1595 = vpack.c.b16 %v1567, %v1563
    %v1596 = vpack.c.b16 %v1572, %v1568
    %v1597 = vpack.c.b16 %v1573, %v1569
    %v1598 = vpack.c.b16 %v1574, %v1570
    %v1599 = vpack.c.b16 %v1575, %v1571
    %v1600 = vpack.c.b16 %v1580, %v1576
    %v1601 = vpack.c.b16 %v1581, %v1577
    %v1602 = vpack.c.b16 %v1582, %v1578
    %v1603 = vpack.c.b16 %v1583, %v1579
    %v1604 = vpack.c.b16 %v1588, %v1584
    %v1605 = vpack.c.b16 %v1589, %v1585
    %v1606 = vpack.c.b16 %v1590, %v1586
    %v1607 = vpack.c.b16 %v1591, %v1587
    %v1625 = vsel %vm375, %v1527, 0
    %1627 = vmatprep.subr.bf16.mxu0 0
    %1628 = vmatpush1.bf16.msra.mxu0 0
    %1629 = vmatprep.subr.bf16.mxu0 0
    %1630 = vmatpush1.bf16.msra.mxu0 0
    %1631 = vmatprep.subr.bf16.mxu0 0
    %1632 = vmatpush1.bf16.msra.mxu0 0
    %1633 = vmatprep.subr.bf16.mxu0 0
    %1634 = vmatpush1.bf16.msra.mxu0 0
    %1635 = vmatprep.subr.bf16.mxu0 %v1605
    %1636 = vmatpush1.bf16.msra.mxu0 %v1604
    %1637 = vmatprep.subr.bf16.mxu0 %v1601
    %1638 = vmatpush1.bf16.msra.mxu0 %v1600
    %1639 = vmatprep.subr.bf16.mxu0 %v1597
    %1640 = vmatpush1.bf16.msra.mxu0 %v1596
    %1641 = vmatprep.subr.bf16.mxu0 %v1593
    %1642 = vmatpush1.bf16.msra.mxu0 %v1592
    %1643 = vmatprep.subr.bf16.mxu0 0
    %1644 = vmatpush2.bf16.msra.mxu0 0
    %1645 = vmatprep.subr.bf16.mxu0 0
    %1646 = vmatpush2.bf16.msra.mxu0 0
    %1647 = vmatprep.subr.bf16.mxu0 0
    %1648 = vmatpush2.bf16.msra.mxu0 0
    %1649 = vmatprep.subr.bf16.mxu0 0
    %1650 = vmatpush2.bf16.msra.mxu0 0
    %1651 = vmatprep.subr.bf16.mxu0 0
    %1652 = vmatpush2.bf16.msra.mxu0 0
    %1653 = vmatprep.subr.bf16.mxu0 0
    %1654 = vmatpush2.bf16.msra.mxu0 0
    %1655 = vmatprep.subr.bf16.mxu0 0
    %1656 = vmatpush2.bf16.msra.mxu0 0
    %1657 = vmatprep.subr.bf16.mxu0 0
    %1658 = vmatpush2.bf16.msra.mxu0 0
    %1659 = vmatprep.mubr.bf16.mxu0 0
    %1660 = vmatmul.mubr.bf16.gmra.mxu0 %v1625
    %v1661 = vpop.f32.mrf.mxu0
    %v1662 = vadd.f32 0.0, %v1661
    %v1663 = vpop.f32.mrf.mxu0
    %v1664 = vadd.f32 0.0, %v1663
    %v1665 = vpop.f32.mrf.mxu0
    %v1666 = vpop.f32.mrf.mxu0
    %1667 = vdwg.mxu0
    %1668 = vmatprep.subr.bf16.mxu0 0
    %1669 = vmatpush1.bf16.msra.mxu0 0
    %1670 = vmatprep.subr.bf16.mxu0 0
    %1671 = vmatpush1.bf16.msra.mxu0 0
    %1672 = vmatprep.subr.bf16.mxu0 0
    %1673 = vmatpush1.bf16.msra.mxu0 0
    %1674 = vmatprep.subr.bf16.mxu0 0
    %1675 = vmatpush1.bf16.msra.mxu0 0
    %1676 = vmatprep.subr.bf16.mxu0 %v1607
    %1677 = vmatpush1.bf16.msra.mxu0 %v1606
    %1678 = vmatprep.subr.bf16.mxu0 %v1603
    %1679 = vmatpush1.bf16.msra.mxu0 %v1602
    %1680 = vmatprep.subr.bf16.mxu0 %v1599
    %1681 = vmatpush1.bf16.msra.mxu0 %v1598
    %1682 = vmatprep.subr.bf16.mxu0 %v1595
    %1683 = vmatpush1.bf16.msra.mxu0 %v1594
    %1684 = vmatprep.subr.bf16.mxu0 0
    %1685 = vmatpush2.bf16.msra.mxu0 0
    %1686 = vmatprep.subr.bf16.mxu0 0
    %1687 = vmatpush2.bf16.msra.mxu0 0
    %1688 = vmatprep.subr.bf16.mxu0 0
    %1689 = vmatpush2.bf16.msra.mxu0 0
    %1690 = vmatprep.subr.bf16.mxu0 0
    %1691 = vmatpush2.bf16.msra.mxu0 0
    %1692 = vmatprep.subr.bf16.mxu0 0
    %1693 = vmatpush2.bf16.msra.mxu0 0
    %1694 = vmatprep.subr.bf16.mxu0 0
    %1695 = vmatpush2.bf16.msra.mxu0 0
    %1696 = vmatprep.subr.bf16.mxu0 0
    %1697 = vmatpush2.bf16.msra.mxu0 0
    %1698 = vmatprep.subr.bf16.mxu0 0
    %1699 = vmatpush2.bf16.msra.mxu0 0
    %1700 = vmatprep.mubr.bf16.mxu0 0
    %1701 = vmatmul.mubr.bf16.gmra.mxu0 %v1625
    %v1702 = vpop.f32.mrf.mxu0
    %v1703 = vadd.f32 0.0, %v1702
    %v1704 = vpop.f32.mrf.mxu0
    %v1705 = vadd.f32 0.0, %v1704
    %v1706 = vpop.f32.mrf.mxu0
    %v1707 = vpop.f32.mrf.mxu0
    %1708 = vdwg.mxu0
    %v1709 = vadd.f32 %v1376, %v1662
    %v1710 = vadd.f32 %v1377, %v1664
    %v1711 = vadd.f32 %v1378, %v1703
    %v1712 = vadd.f32 %v1379, %v1705
    %v1713 = vld [vmem:[%s0] sm:$0x44]
    %v1714 = vld [vmem:[%s0 + $0x8] sm:$0x44]
    %v1715 = vld [vmem:[%s0 + $0x10] sm:$0x4]
    %v1716 = vld [vmem:[%s0 + $0x28] sm:$0x44]
    %v1717 = vld [vmem:[%s0 + $0x30] sm:$0x44]
    %v1718 = vld [vmem:[%s0 + $0x38] sm:$0x4]
    %v1725 = vunpack.c.l.b16 %v1713
    %v1726 = vunpack.c.h.b16 %v1713
    %v1727 = vunpack.c.l.b16 %v1714
    %v1728 = vunpack.c.h.b16 %v1714
    %v1729 = vunpack.c.l.b16 %v1715
    %v1730 = vunpack.c.l.b16 %v1716
    %v1731 = vunpack.c.h.b16 %v1716
    %v1732 = vunpack.c.l.b16 %v1717
    %v1733 = vunpack.c.h.b16 %v1717
    %v1734 = vunpack.c.l.b16 %v1718
    %v1735 = vpack.c.b16 %v1725, %v1725
    %v1736 = vpack.c.b16 %v1726, %v1726
    %v1737 = vpack.c.b16 %v1727, %v1727
    %v1738 = vpack.c.b16 %v1728, %v1728
    %v1739 = vpack.c.b16 %v1729, %v1729
    %v1740 = vpack.c.b16 %v1730, %v1730
    %v1741 = vpack.c.b16 %v1731, %v1731
    %v1742 = vpack.c.b16 %v1732, %v1732
    %v1743 = vpack.c.b16 %v1733, %v1733
    %v1744 = vpack.c.b16 %v1734, %v1734
    %v1745 = vunpack.c.l.b16 %v1735
    %v1746 = vunpack.c.l.b16 %v1736
    %v1747 = vunpack.c.l.b16 %v1737
    %v1748 = vunpack.c.l.b16 %v1738
    %v1749 = vunpack.c.l.b16 %v1739
    %v1750 = vunpack.c.l.b16 %v1740
    %v1751 = vunpack.c.l.b16 %v1741
    %v1752 = vunpack.c.l.b16 %v1742
    %v1753 = vunpack.c.l.b16 %v1743
    %v1754 = vunpack.c.l.b16 %v1744
    %v1755 = vrot.slane %v1745, 4
    %v1756 = vrot.slane %v1750, 3
    %v1757 = vsel %vm140, %v1756, %v1755
    %v1758 = vrot.slane %v1746, 4
    %v1759 = vrot.slane %v1751, 3
    %v1760 = vsel %vm140, %v1759, %v1758
    %v1761 = vrot.slane %v1747, 4
    %v1762 = vrot.slane %v1752, 3
    %v1763 = vsel %vm140, %v1762, %v1761
    %v1764 = vrot.slane %v1748, 4
    %v1765 = vrot.slane %v1753, 3
    %v1766 = vsel %vm140, %v1765, %v1764
    %v1767 = vrot.slane %v1749, 4
    %v1768 = vrot.slane %v1754, 3
    %v1769 = vsel %vm140, %v1768, %v1767
    %v1770 = vpack.c.b16 %v1757, %v1757
    %v1771 = vpack.c.b16 %v1760, %v1760
    %v1772 = vpack.c.b16 %v1763, %v1763
    %v1773 = vpack.c.b16 %v1766, %v1766
    %v1774 = vpack.c.b16 %v1769, %v1769
    %v1780 = vsel %vm375, %v1774, 0
    %1782 = vmatprep.subr.bf16.mxu0 0
    %1783 = vmatpush1.bf16.msra.mxu0 %v310
    %1784 = vmatprep.subr.bf16.mxu0 0
    %1785 = vmatpush1.bf16.msra.mxu0 %v309
    %1786 = vmatprep.subr.bf16.mxu0 0
    %1787 = vmatpush1.bf16.msra.mxu0 %v308
    %1788 = vmatprep.subr.bf16.mxu0 0
    %1789 = vmatpush1.bf16.msra.mxu0 %v307
    %1790 = vmatprep.subr.bf16.mxu0 0
    %1791 = vmatpush1.bf16.msra.mxu0 %v306
    %1792 = vmatprep.subr.bf16.mxu0 0
    %1793 = vmatpush1.bf16.msra.mxu0 %v305
    %1794 = vmatprep.subr.bf16.mxu0 0
    %1795 = vmatpush1.bf16.msra.mxu0 %v304
    %1796 = vmatprep.subr.bf16.mxu0 0
    %1797 = vmatpush1.bf16.msra.mxu0 %v303
    %1798 = vmatprep.subr.bf16.mxu0 0
    %1799 = vmatpush2.bf16.msra.mxu0 %v318
    %1800 = vmatprep.subr.bf16.mxu0 0
    %1801 = vmatpush2.bf16.msra.mxu0 %v317
    %1802 = vmatprep.subr.bf16.mxu0 0
    %1803 = vmatpush2.bf16.msra.mxu0 %v316
    %1804 = vmatprep.subr.bf16.mxu0 0
    %1805 = vmatpush2.bf16.msra.mxu0 %v315
    %1806 = vmatprep.subr.bf16.mxu0 0
    %1807 = vmatpush2.bf16.msra.mxu0 %v314
    %1808 = vmatprep.subr.bf16.mxu0 0
    %1809 = vmatpush2.bf16.msra.mxu0 %v313
    %1810 = vmatprep.subr.bf16.mxu0 0
    %1811 = vmatpush2.bf16.msra.mxu0 %v312
    %1812 = vmatprep.subr.bf16.mxu0 0
    %1813 = vmatpush2.bf16.msra.mxu0 %v311
    %1814 = vmatprep.mubr.bf16.mxu0 %v1771
    %1815 = vmatmul.mubr.bf16.gmra.mxu0 %v1770
    %v1816 = vpop.f32.mrf.mxu0
    %v1817 = vadd.f32 0.0, %v1816
    %v1818 = vpop.f32.mrf.mxu0
    %v1819 = vpop.f32.mrf.mxu0
    %v1820 = vpop.f32.mrf.mxu0
    %1821 = vdwg.mxu0
    %1822 = vmatprep.subr.bf16.mxu0 0
    %1823 = vmatpush1.bf16.msra.mxu0 %v326
    %1824 = vmatprep.subr.bf16.mxu0 0
    %1825 = vmatpush1.bf16.msra.mxu0 %v325
    %1826 = vmatprep.subr.bf16.mxu0 0
    %1827 = vmatpush1.bf16.msra.mxu0 %v324
    %1828 = vmatprep.subr.bf16.mxu0 0
    %1829 = vmatpush1.bf16.msra.mxu0 %v323
    %1830 = vmatprep.subr.bf16.mxu0 0
    %1831 = vmatpush1.bf16.msra.mxu0 %v322
    %1832 = vmatprep.subr.bf16.mxu0 0
    %1833 = vmatpush1.bf16.msra.mxu0 %v321
    %1834 = vmatprep.subr.bf16.mxu0 0
    %1835 = vmatpush1.bf16.msra.mxu0 %v320
    %1836 = vmatprep.subr.bf16.mxu0 0
    %1837 = vmatpush1.bf16.msra.mxu0 %v319
    %1838 = vmatprep.subr.bf16.mxu0 0
    %1839 = vmatpush2.bf16.msra.mxu0 %v334
    %1840 = vmatprep.subr.bf16.mxu0 0
    %1841 = vmatpush2.bf16.msra.mxu0 %v333
    %1842 = vmatprep.subr.bf16.mxu0 0
    %1843 = vmatpush2.bf16.msra.mxu0 %v332
    %1844 = vmatprep.subr.bf16.mxu0 0
    %1845 = vmatpush2.bf16.msra.mxu0 %v331
    %1846 = vmatprep.subr.bf16.mxu0 0
    %1847 = vmatpush2.bf16.msra.mxu0 %v330
    %1848 = vmatprep.subr.bf16.mxu0 0
    %1849 = vmatpush2.bf16.msra.mxu0 %v329
    %1850 = vmatprep.subr.bf16.mxu0 0
    %1851 = vmatpush2.bf16.msra.mxu0 %v328
    %1852 = vmatprep.subr.bf16.mxu0 0
    %1853 = vmatpush2.bf16.msra.mxu0 %v327
    %1854 = vmatprep.mubr.bf16.mxu0 %v1773
    %1855 = vmatmul.mubr.bf16.gmra.mxu0 %v1772
    %v1856 = vpop.f32.mrf.mxu0
    %v1857 = vadd.f32 %v1817, %v1856
    %v1858 = vpop.f32.mrf.mxu0
    %v1859 = vpop.f32.mrf.mxu0
    %v1860 = vpop.f32.mrf.mxu0
    %1861 = vdwg.mxu0
    %1862 = vmatprep.subr.bf16.mxu0 0
    %1863 = vmatpush1.bf16.msra.mxu0 0
    %1864 = vmatprep.subr.bf16.mxu0 0
    %1865 = vmatpush1.bf16.msra.mxu0 0
    %1866 = vmatprep.subr.bf16.mxu0 0
    %1867 = vmatpush1.bf16.msra.mxu0 0
    %1868 = vmatprep.subr.bf16.mxu0 0
    %1869 = vmatpush1.bf16.msra.mxu0 0
    %1870 = vmatprep.subr.bf16.mxu0 0
    %1871 = vmatpush1.bf16.msra.mxu0 %v338
    %1872 = vmatprep.subr.bf16.mxu0 0
    %1873 = vmatpush1.bf16.msra.mxu0 %v337
    %1874 = vmatprep.subr.bf16.mxu0 0
    %1875 = vmatpush1.bf16.msra.mxu0 %v336
    %1876 = vmatprep.subr.bf16.mxu0 0
    %1877 = vmatpush1.bf16.msra.mxu0 %v335
    %1878 = vmatprep.subr.bf16.mxu0 0
    %1879 = vmatpush2.bf16.msra.mxu0 0
    %1880 = vmatprep.subr.bf16.mxu0 0
    %1881 = vmatpush2.bf16.msra.mxu0 0
    %1882 = vmatprep.subr.bf16.mxu0 0
    %1883 = vmatpush2.bf16.msra.mxu0 0
    %1884 = vmatprep.subr.bf16.mxu0 0
    %1885 = vmatpush2.bf16.msra.mxu0 0
    %1886 = vmatprep.subr.bf16.mxu0 0
    %1887 = vmatpush2.bf16.msra.mxu0 0
    %1888 = vmatprep.subr.bf16.mxu0 0
    %1889 = vmatpush2.bf16.msra.mxu0 0
    %1890 = vmatprep.subr.bf16.mxu0 0
    %1891 = vmatpush2.bf16.msra.mxu0 0
    %1892 = vmatprep.subr.bf16.mxu0 0
    %1893 = vmatpush2.bf16.msra.mxu0 0
    %1894 = vmatprep.mubr.bf16.mxu0 0
    %1895 = vmatmul.mubr.bf16.gmra.mxu0 %v1780
    %v1896 = vpop.f32.mrf.mxu0
    %v1897 = vadd.f32 %v1857, %v1896
    %v1898 = vpop.f32.mrf.mxu0
    %v1899 = vpop.f32.mrf.mxu0
    %v1900 = vpop.f32.mrf.mxu0
    %1901 = vdwg.mxu0
    %v1902 = vpack.c.bf16 %v1897, %v1897
    %v1903 = vld [vmem:[%s2 + $0x200] sm:$0xff]
    %v1904 = vld [vmem:[%s2 + $0x208] sm:$0xff]
    %v1905 = vld [vmem:[%s2 + $0x210] sm:$0xff]
    %v1906 = vld [vmem:[%s2 + $0x218] sm:$0xff]
    %v1907 = vld [vmem:[%s2 + $0x220] sm:$0xff]
    %v1908 = vld [vmem:[%s2 + $0x228] sm:$0xff]
    %v1909 = vld [vmem:[%s2 + $0x230] sm:$0xff]
    %v1910 = vld [vmem:[%s2 + $0x238] sm:$0xff]
    %v1911 = vld [vmem:[%s2 + $0x240] sm:$0xff]
    %v1912 = vld [vmem:[%s2 + $0x248] sm:$0xff]
    %v1913 = vld [vmem:[%s2 + $0x250] sm:$0xff]
    %v1914 = vld [vmem:[%s2 + $0x258] sm:$0xff]
    %v1915 = vld [vmem:[%s2 + $0x260] sm:$0xff]
    %v1916 = vld [vmem:[%s2 + $0x268] sm:$0xff]
    %v1917 = vld [vmem:[%s2 + $0x270] sm:$0xff]
    %v1918 = vld [vmem:[%s2 + $0x278] sm:$0xff]
    %v1935 = vunpack.c.l.b16 %v1903
    %v1936 = vunpack.c.h.b16 %v1903
    %v1937 = vunpack.c.l.b16 %v1904
    %v1938 = vunpack.c.h.b16 %v1904
    %v1939 = vunpack.c.l.b16 %v1905
    %v1940 = vunpack.c.h.b16 %v1905
    %v1941 = vunpack.c.l.b16 %v1906
    %v1942 = vunpack.c.h.b16 %v1906
    %v1943 = vunpack.c.l.b16 %v1907
    %v1944 = vunpack.c.h.b16 %v1907
    %v1945 = vunpack.c.l.b16 %v1908
    %v1946 = vunpack.c.h.b16 %v1908
    %v1947 = vunpack.c.l.b16 %v1909
    %v1948 = vunpack.c.h.b16 %v1909
    %v1949 = vunpack.c.l.b16 %v1910
    %v1950 = vunpack.c.h.b16 %v1910
    %v1951 = vunpack.c.l.b16 %v1911
    %v1952 = vunpack.c.h.b16 %v1911
    %v1953 = vunpack.c.l.b16 %v1912
    %v1954 = vunpack.c.h.b16 %v1912
    %v1955 = vunpack.c.l.b16 %v1913
    %v1956 = vunpack.c.h.b16 %v1913
    %v1957 = vunpack.c.l.b16 %v1914
    %v1958 = vunpack.c.h.b16 %v1914
    %v1959 = vunpack.c.l.b16 %v1915
    %v1960 = vunpack.c.h.b16 %v1915
    %v1961 = vunpack.c.l.b16 %v1916
    %v1962 = vunpack.c.h.b16 %v1916
    %v1963 = vunpack.c.l.b16 %v1917
    %v1964 = vunpack.c.h.b16 %v1917
    %v1965 = vunpack.c.l.b16 %v1918
    %v1966 = vunpack.c.h.b16 %v1918
    %v1967 = vpack.c.b16 %v1939, %v1935
    %v1968 = vpack.c.b16 %v1940, %v1936
    %v1969 = vpack.c.b16 %v1941, %v1937
    %v1970 = vpack.c.b16 %v1942, %v1938
    %v1971 = vpack.c.b16 %v1947, %v1943
    %v1972 = vpack.c.b16 %v1948, %v1944
    %v1973 = vpack.c.b16 %v1949, %v1945
    %v1974 = vpack.c.b16 %v1950, %v1946
    %v1975 = vpack.c.b16 %v1955, %v1951
    %v1976 = vpack.c.b16 %v1956, %v1952
    %v1977 = vpack.c.b16 %v1957, %v1953
    %v1978 = vpack.c.b16 %v1958, %v1954
    %v1979 = vpack.c.b16 %v1963, %v1959
    %v1980 = vpack.c.b16 %v1964, %v1960
    %v1981 = vpack.c.b16 %v1965, %v1961
    %v1982 = vpack.c.b16 %v1966, %v1962
    %v2000 = vsel %vm375, %v1902, 0
    %2002 = vmatprep.subr.bf16.mxu0 0
    %2003 = vmatpush1.bf16.msra.mxu0 0
    %2004 = vmatprep.subr.bf16.mxu0 0
    %2005 = vmatpush1.bf16.msra.mxu0 0
    %2006 = vmatprep.subr.bf16.mxu0 0
    %2007 = vmatpush1.bf16.msra.mxu0 0
    %2008 = vmatprep.subr.bf16.mxu0 0
    %2009 = vmatpush1.bf16.msra.mxu0 0
    %2010 = vmatprep.subr.bf16.mxu0 %v1980
    %2011 = vmatpush1.bf16.msra.mxu0 %v1979
    %2012 = vmatprep.subr.bf16.mxu0 %v1976
    %2013 = vmatpush1.bf16.msra.mxu0 %v1975
    %2014 = vmatprep.subr.bf16.mxu0 %v1972
    %2015 = vmatpush1.bf16.msra.mxu0 %v1971
    %2016 = vmatprep.subr.bf16.mxu0 %v1968
    %2017 = vmatpush1.bf16.msra.mxu0 %v1967
    %2018 = vmatprep.subr.bf16.mxu0 0
    %2019 = vmatpush2.bf16.msra.mxu0 0
    %2020 = vmatprep.subr.bf16.mxu0 0
    %2021 = vmatpush2.bf16.msra.mxu0 0
    %2022 = vmatprep.subr.bf16.mxu0 0
    %2023 = vmatpush2.bf16.msra.mxu0 0
    %2024 = vmatprep.subr.bf16.mxu0 0
    %2025 = vmatpush2.bf16.msra.mxu0 0
    %2026 = vmatprep.subr.bf16.mxu0 0
    %2027 = vmatpush2.bf16.msra.mxu0 0
    %2028 = vmatprep.subr.bf16.mxu0 0
    %2029 = vmatpush2.bf16.msra.mxu0 0
    %2030 = vmatprep.subr.bf16.mxu0 0
    %2031 = vmatpush2.bf16.msra.mxu0 0
    %2032 = vmatprep.subr.bf16.mxu0 0
    %2033 = vmatpush2.bf16.msra.mxu0 0
    %2034 = vmatprep.mubr.bf16.mxu0 0
    %2035 = vmatmul.mubr.bf16.gmra.mxu0 %v2000
    %v2036 = vpop.f32.mrf.mxu0
    %v2037 = vadd.f32 0.0, %v2036
    %v2038 = vpop.f32.mrf.mxu0
    %v2039 = vadd.f32 0.0, %v2038
    %v2040 = vpop.f32.mrf.mxu0
    %v2041 = vpop.f32.mrf.mxu0
    %2042 = vdwg.mxu0
    %2043 = vmatprep.subr.bf16.mxu0 0
    %2044 = vmatpush1.bf16.msra.mxu0 0
    %2045 = vmatprep.subr.bf16.mxu0 0
    %2046 = vmatpush1.bf16.msra.mxu0 0
    %2047 = vmatprep.subr.bf16.mxu0 0
    %2048 = vmatpush1.bf16.msra.mxu0 0
    %2049 = vmatprep.subr.bf16.mxu0 0
    %2050 = vmatpush1.bf16.msra.mxu0 0
    %2051 = vmatprep.subr.bf16.mxu0 %v1982
    %2052 = vmatpush1.bf16.msra.mxu0 %v1981
    %2053 = vmatprep.subr.bf16.mxu0 %v1978
    %2054 = vmatpush1.bf16.msra.mxu0 %v1977
    %2055 = vmatprep.subr.bf16.mxu0 %v1974
    %2056 = vmatpush1.bf16.msra.mxu0 %v1973
    %2057 = vmatprep.subr.bf16.mxu0 %v1970
    %2058 = vmatpush1.bf16.msra.mxu0 %v1969
    %2059 = vmatprep.subr.bf16.mxu0 0
    %2060 = vmatpush2.bf16.msra.mxu0 0
    %2061 = vmatprep.subr.bf16.mxu0 0
    %2062 = vmatpush2.bf16.msra.mxu0 0
    %2063 = vmatprep.subr.bf16.mxu0 0
    %2064 = vmatpush2.bf16.msra.mxu0 0
    %2065 = vmatprep.subr.bf16.mxu0 0
    %2066 = vmatpush2.bf16.msra.mxu0 0
    %2067 = vmatprep.subr.bf16.mxu0 0
    %2068 = vmatpush2.bf16.msra.mxu0 0
    %2069 = vmatprep.subr.bf16.mxu0 0
    %2070 = vmatpush2.bf16.msra.mxu0 0
    %2071 = vmatprep.subr.bf16.mxu0 0
    %2072 = vmatpush2.bf16.msra.mxu0 0
    %2073 = vmatprep.subr.bf16.mxu0 0
    %2074 = vmatpush2.bf16.msra.mxu0 0
    %2075 = vmatprep.mubr.bf16.mxu0 0
    %2076 = vmatmul.mubr.bf16.gmra.mxu0 %v2000
    %v2077 = vpop.f32.mrf.mxu0
    %v2078 = vadd.f32 0.0, %v2077
    %v2079 = vpop.f32.mrf.mxu0
    %v2080 = vadd.f32 0.0, %v2079
    %v2081 = vpop.f32.mrf.mxu0
    %v2082 = vpop.f32.mrf.mxu0
    %2083 = vdwg.mxu0
    %v2084 = vadd.f32 %v1709, %v2037
    %v2085 = vadd.f32 %v1710, %v2039
    %v2086 = vadd.f32 %v1711, %v2078
    %v2087 = vadd.f32 %v1712, %v2080
    %v2088 = vrot.slane %v1745, 5
    %v2089 = vrot.slane %v1750, 4
    %v2090 = vsel %vm140, %v2089, %v2088
    %v2091 = vrot.slane %v1746, 5
    %v2092 = vrot.slane %v1751, 4
    %v2093 = vsel %vm140, %v2092, %v2091
    %v2094 = vrot.slane %v1747, 5
    %v2095 = vrot.slane %v1752, 4
    %v2096 = vsel %vm140, %v2095, %v2094
    %v2097 = vrot.slane %v1748, 5
    %v2098 = vrot.slane %v1753, 4
    %v2099 = vsel %vm140, %v2098, %v2097
    %v2100 = vrot.slane %v1749, 5
    %v2101 = vrot.slane %v1754, 4
    %v2102 = vsel %vm140, %v2101, %v2100
    %v2103 = vpack.c.b16 %v2090, %v2090
    %v2104 = vpack.c.b16 %v2093, %v2093
    %v2105 = vpack.c.b16 %v2096, %v2096
    %v2106 = vpack.c.b16 %v2099, %v2099
    %v2107 = vpack.c.b16 %v2102, %v2102
    %v2113 = vsel %vm375, %v2107, 0
    %2115 = vmatprep.subr.bf16.mxu0 0
    %2116 = vmatpush1.bf16.msra.mxu0 %v310
    %2117 = vmatprep.subr.bf16.mxu0 0
    %2118 = vmatpush1.bf16.msra.mxu0 %v309
    %2119 = vmatprep.subr.bf16.mxu0 0
    %2120 = vmatpush1.bf16.msra.mxu0 %v308
    %2121 = vmatprep.subr.bf16.mxu0 0
    %2122 = vmatpush1.bf16.msra.mxu0 %v307
    %2123 = vmatprep.subr.bf16.mxu0 0
    %2124 = vmatpush1.bf16.msra.mxu0 %v306
    %2125 = vmatprep.subr.bf16.mxu0 0
    %2126 = vmatpush1.bf16.msra.mxu0 %v305
    %2127 = vmatprep.subr.bf16.mxu0 0
    %2128 = vmatpush1.bf16.msra.mxu0 %v304
    %2129 = vmatprep.subr.bf16.mxu0 0
    %2130 = vmatpush1.bf16.msra.mxu0 %v303
    %2131 = vmatprep.subr.bf16.mxu0 0
    %2132 = vmatpush2.bf16.msra.mxu0 %v318
    %2133 = vmatprep.subr.bf16.mxu0 0
    %2134 = vmatpush2.bf16.msra.mxu0 %v317
    %2135 = vmatprep.subr.bf16.mxu0 0
    %2136 = vmatpush2.bf16.msra.mxu0 %v316
    %2137 = vmatprep.subr.bf16.mxu0 0
    %2138 = vmatpush2.bf16.msra.mxu0 %v315
    %2139 = vmatprep.subr.bf16.mxu0 0
    %2140 = vmatpush2.bf16.msra.mxu0 %v314
    %2141 = vmatprep.subr.bf16.mxu0 0
    %2142 = vmatpush2.bf16.msra.mxu0 %v313
    %2143 = vmatprep.subr.bf16.mxu0 0
    %2144 = vmatpush2.bf16.msra.mxu0 %v312
    %2145 = vmatprep.subr.bf16.mxu0 0
    %2146 = vmatpush2.bf16.msra.mxu0 %v311
    %2147 = vmatprep.mubr.bf16.mxu0 %v2104
    %2148 = vmatmul.mubr.bf16.gmra.mxu0 %v2103
    %v2149 = vpop.f32.mrf.mxu0
    %v2150 = vadd.f32 0.0, %v2149
    %v2151 = vpop.f32.mrf.mxu0
    %v2152 = vpop.f32.mrf.mxu0
    %v2153 = vpop.f32.mrf.mxu0
    %2154 = vdwg.mxu0
    %2155 = vmatprep.subr.bf16.mxu0 0
    %2156 = vmatpush1.bf16.msra.mxu0 %v326
    %2157 = vmatprep.subr.bf16.mxu0 0
    %2158 = vmatpush1.bf16.msra.mxu0 %v325
    %2159 = vmatprep.subr.bf16.mxu0 0
    %2160 = vmatpush1.bf16.msra.mxu0 %v324
    %2161 = vmatprep.subr.bf16.mxu0 0
    %2162 = vmatpush1.bf16.msra.mxu0 %v323
    %2163 = vmatprep.subr.bf16.mxu0 0
    %2164 = vmatpush1.bf16.msra.mxu0 %v322
    %2165 = vmatprep.subr.bf16.mxu0 0
    %2166 = vmatpush1.bf16.msra.mxu0 %v321
    %2167 = vmatprep.subr.bf16.mxu0 0
    %2168 = vmatpush1.bf16.msra.mxu0 %v320
    %2169 = vmatprep.subr.bf16.mxu0 0
    %2170 = vmatpush1.bf16.msra.mxu0 %v319
    %2171 = vmatprep.subr.bf16.mxu0 0
    %2172 = vmatpush2.bf16.msra.mxu0 %v334
    %2173 = vmatprep.subr.bf16.mxu0 0
    %2174 = vmatpush2.bf16.msra.mxu0 %v333
    %2175 = vmatprep.subr.bf16.mxu0 0
    %2176 = vmatpush2.bf16.msra.mxu0 %v332
    %2177 = vmatprep.subr.bf16.mxu0 0
    %2178 = vmatpush2.bf16.msra.mxu0 %v331
    %2179 = vmatprep.subr.bf16.mxu0 0
    %2180 = vmatpush2.bf16.msra.mxu0 %v330
    %2181 = vmatprep.subr.bf16.mxu0 0
    %2182 = vmatpush2.bf16.msra.mxu0 %v329
    %2183 = vmatprep.subr.bf16.mxu0 0
    %2184 = vmatpush2.bf16.msra.mxu0 %v328
    %2185 = vmatprep.subr.bf16.mxu0 0
    %2186 = vmatpush2.bf16.msra.mxu0 %v327
    %2187 = vmatprep.mubr.bf16.mxu0 %v2106
    %2188 = vmatmul.mubr.bf16.gmra.mxu0 %v2105
    %v2189 = vpop.f32.mrf.mxu0
    %v2190 = vadd.f32 %v2150, %v2189
    %v2191 = vpop.f32.mrf.mxu0
    %v2192 = vpop.f32.mrf.mxu0
    %v2193 = vpop.f32.mrf.mxu0
    %2194 = vdwg.mxu0
    %2195 = vmatprep.subr.bf16.mxu0 0
    %2196 = vmatpush1.bf16.msra.mxu0 0
    %2197 = vmatprep.subr.bf16.mxu0 0
    %2198 = vmatpush1.bf16.msra.mxu0 0
    %2199 = vmatprep.subr.bf16.mxu0 0
    %2200 = vmatpush1.bf16.msra.mxu0 0
    %2201 = vmatprep.subr.bf16.mxu0 0
    %2202 = vmatpush1.bf16.msra.mxu0 0
    %2203 = vmatprep.subr.bf16.mxu0 0
    %2204 = vmatpush1.bf16.msra.mxu0 %v338
    %2205 = vmatprep.subr.bf16.mxu0 0
    %2206 = vmatpush1.bf16.msra.mxu0 %v337
    %2207 = vmatprep.subr.bf16.mxu0 0
    %2208 = vmatpush1.bf16.msra.mxu0 %v336
    %2209 = vmatprep.subr.bf16.mxu0 0
    %2210 = vmatpush1.bf16.msra.mxu0 %v335
    %2211 = vmatprep.subr.bf16.mxu0 0
    %2212 = vmatpush2.bf16.msra.mxu0 0
    %2213 = vmatprep.subr.bf16.mxu0 0
    %2214 = vmatpush2.bf16.msra.mxu0 0
    %2215 = vmatprep.subr.bf16.mxu0 0
    %2216 = vmatpush2.bf16.msra.mxu0 0
    %2217 = vmatprep.subr.bf16.mxu0 0
    %2218 = vmatpush2.bf16.msra.mxu0 0
    %2219 = vmatprep.subr.bf16.mxu0 0
    %2220 = vmatpush2.bf16.msra.mxu0 0
    %2221 = vmatprep.subr.bf16.mxu0 0
    %2222 = vmatpush2.bf16.msra.mxu0 0
    %2223 = vmatprep.subr.bf16.mxu0 0
    %2224 = vmatpush2.bf16.msra.mxu0 0
    %2225 = vmatprep.subr.bf16.mxu0 0
    %2226 = vmatpush2.bf16.msra.mxu0 0
    %2227 = vmatprep.mubr.bf16.mxu0 0
    %2228 = vmatmul.mubr.bf16.gmra.mxu0 %v2113
    %v2229 = vpop.f32.mrf.mxu0
    %v2230 = vadd.f32 %v2190, %v2229
    %v2231 = vpop.f32.mrf.mxu0
    %v2232 = vpop.f32.mrf.mxu0
    %v2233 = vpop.f32.mrf.mxu0
    %2234 = vdwg.mxu0
    %v2235 = vpack.c.bf16 %v2230, %v2230
    %v2236 = vld [vmem:[%s2 + $0x280] sm:$0xff]
    %v2237 = vld [vmem:[%s2 + $0x288] sm:$0xff]
    %v2238 = vld [vmem:[%s2 + $0x290] sm:$0xff]
    %v2239 = vld [vmem:[%s2 + $0x298] sm:$0xff]
    %v2240 = vld [vmem:[%s2 + $0x2a0] sm:$0xff]
    %v2241 = vld [vmem:[%s2 + $0x2a8] sm:$0xff]
    %v2242 = vld [vmem:[%s2 + $0x2b0] sm:$0xff]
    %v2243 = vld [vmem:[%s2 + $0x2b8] sm:$0xff]
    %v2244 = vld [vmem:[%s2 + $0x2c0] sm:$0xff]
    %v2245 = vld [vmem:[%s2 + $0x2c8] sm:$0xff]
    %v2246 = vld [vmem:[%s2 + $0x2d0] sm:$0xff]
    %v2247 = vld [vmem:[%s2 + $0x2d8] sm:$0xff]
    %v2248 = vld [vmem:[%s2 + $0x2e0] sm:$0xff]
    %v2249 = vld [vmem:[%s2 + $0x2e8] sm:$0xff]
    %v2250 = vld [vmem:[%s2 + $0x2f0] sm:$0xff]
    %v2251 = vld [vmem:[%s2 + $0x2f8] sm:$0xff]
    %v2268 = vunpack.c.l.b16 %v2236
    %v2269 = vunpack.c.h.b16 %v2236
    %v2270 = vunpack.c.l.b16 %v2237
    %v2271 = vunpack.c.h.b16 %v2237
    %v2272 = vunpack.c.l.b16 %v2238
    %v2273 = vunpack.c.h.b16 %v2238
    %v2274 = vunpack.c.l.b16 %v2239
    %v2275 = vunpack.c.h.b16 %v2239
    %v2276 = vunpack.c.l.b16 %v2240
    %v2277 = vunpack.c.h.b16 %v2240
    %v2278 = vunpack.c.l.b16 %v2241
    %v2279 = vunpack.c.h.b16 %v2241
    %v2280 = vunpack.c.l.b16 %v2242
    %v2281 = vunpack.c.h.b16 %v2242
    %v2282 = vunpack.c.l.b16 %v2243
    %v2283 = vunpack.c.h.b16 %v2243
    %v2284 = vunpack.c.l.b16 %v2244
    %v2285 = vunpack.c.h.b16 %v2244
    %v2286 = vunpack.c.l.b16 %v2245
    %v2287 = vunpack.c.h.b16 %v2245
    %v2288 = vunpack.c.l.b16 %v2246
    %v2289 = vunpack.c.h.b16 %v2246
    %v2290 = vunpack.c.l.b16 %v2247
    %v2291 = vunpack.c.h.b16 %v2247
    %v2292 = vunpack.c.l.b16 %v2248
    %v2293 = vunpack.c.h.b16 %v2248
    %v2294 = vunpack.c.l.b16 %v2249
    %v2295 = vunpack.c.h.b16 %v2249
    %v2296 = vunpack.c.l.b16 %v2250
    %v2297 = vunpack.c.h.b16 %v2250
    %v2298 = vunpack.c.l.b16 %v2251
    %v2299 = vunpack.c.h.b16 %v2251
    %v2300 = vpack.c.b16 %v2272, %v2268
    %v2301 = vpack.c.b16 %v2273, %v2269
    %v2302 = vpack.c.b16 %v2274, %v2270
    %v2303 = vpack.c.b16 %v2275, %v2271
    %v2304 = vpack.c.b16 %v2280, %v2276
    %v2305 = vpack.c.b16 %v2281, %v2277
    %v2306 = vpack.c.b16 %v2282, %v2278
    %v2307 = vpack.c.b16 %v2283, %v2279
    %v2308 = vpack.c.b16 %v2288, %v2284
    %v2309 = vpack.c.b16 %v2289, %v2285
    %v2310 = vpack.c.b16 %v2290, %v2286
    %v2311 = vpack.c.b16 %v2291, %v2287
    %v2312 = vpack.c.b16 %v2296, %v2292
    %v2313 = vpack.c.b16 %v2297, %v2293
    %v2314 = vpack.c.b16 %v2298, %v2294
    %v2315 = vpack.c.b16 %v2299, %v2295
    %v2333 = vsel %vm375, %v2235, 0
    %2335 = vmatprep.subr.bf16.mxu0 0
    %2336 = vmatpush1.bf16.msra.mxu0 0
    %2337 = vmatprep.subr.bf16.mxu0 0
    %2338 = vmatpush1.bf16.msra.mxu0 0
    %2339 = vmatprep.subr.bf16.mxu0 0
    %2340 = vmatpush1.bf16.msra.mxu0 0
    %2341 = vmatprep.subr.bf16.mxu0 0
    %2342 = vmatpush1.bf16.msra.mxu0 0
    %2343 = vmatprep.subr.bf16.mxu0 %v2313
    %2344 = vmatpush1.bf16.msra.mxu0 %v2312
    %2345 = vmatprep.subr.bf16.mxu0 %v2309
    %2346 = vmatpush1.bf16.msra.mxu0 %v2308
    %2347 = vmatprep.subr.bf16.mxu0 %v2305
    %2348 = vmatpush1.bf16.msra.mxu0 %v2304
    %2349 = vmatprep.subr.bf16.mxu0 %v2301
    %2350 = vmatpush1.bf16.msra.mxu0 %v2300
    %2351 = vmatprep.subr.bf16.mxu0 0
    %2352 = vmatpush2.bf16.msra.mxu0 0
    %2353 = vmatprep.subr.bf16.mxu0 0
    %2354 = vmatpush2.bf16.msra.mxu0 0
    %2355 = vmatprep.subr.bf16.mxu0 0
    %2356 = vmatpush2.bf16.msra.mxu0 0
    %2357 = vmatprep.subr.bf16.mxu0 0
    %2358 = vmatpush2.bf16.msra.mxu0 0
    %2359 = vmatprep.subr.bf16.mxu0 0
    %2360 = vmatpush2.bf16.msra.mxu0 0
    %2361 = vmatprep.subr.bf16.mxu0 0
    %2362 = vmatpush2.bf16.msra.mxu0 0
    %2363 = vmatprep.subr.bf16.mxu0 0
    %2364 = vmatpush2.bf16.msra.mxu0 0
    %2365 = vmatprep.subr.bf16.mxu0 0
    %2366 = vmatpush2.bf16.msra.mxu0 0
    %2367 = vmatprep.mubr.bf16.mxu0 0
    %2368 = vmatmul.mubr.bf16.gmra.mxu0 %v2333
    %v2369 = vpop.f32.mrf.mxu0
    %v2370 = vadd.f32 0.0, %v2369
    %v2371 = vpop.f32.mrf.mxu0
    %v2372 = vadd.f32 0.0, %v2371
    %v2373 = vpop.f32.mrf.mxu0
    %v2374 = vpop.f32.mrf.mxu0
    %2375 = vdwg.mxu0
    %2376 = vmatprep.subr.bf16.mxu0 0
    %2377 = vmatpush1.bf16.msra.mxu0 0
    %2378 = vmatprep.subr.bf16.mxu0 0
    %2379 = vmatpush1.bf16.msra.mxu0 0
    %2380 = vmatprep.subr.bf16.mxu0 0
    %2381 = vmatpush1.bf16.msra.mxu0 0
    %2382 = vmatprep.subr.bf16.mxu0 0
    %2383 = vmatpush1.bf16.msra.mxu0 0
    %2384 = vmatprep.subr.bf16.mxu0 %v2315
    %2385 = vmatpush1.bf16.msra.mxu0 %v2314
    %2386 = vmatprep.subr.bf16.mxu0 %v2311
    %2387 = vmatpush1.bf16.msra.mxu0 %v2310
    %2388 = vmatprep.subr.bf16.mxu0 %v2307
    %2389 = vmatpush1.bf16.msra.mxu0 %v2306
    %2390 = vmatprep.subr.bf16.mxu0 %v2303
    %2391 = vmatpush1.bf16.msra.mxu0 %v2302
    %2392 = vmatprep.subr.bf16.mxu0 0
    %2393 = vmatpush2.bf16.msra.mxu0 0
    %2394 = vmatprep.subr.bf16.mxu0 0
    %2395 = vmatpush2.bf16.msra.mxu0 0
    %2396 = vmatprep.subr.bf16.mxu0 0
    %2397 = vmatpush2.bf16.msra.mxu0 0
    %2398 = vmatprep.subr.bf16.mxu0 0
    %2399 = vmatpush2.bf16.msra.mxu0 0
    %2400 = vmatprep.subr.bf16.mxu0 0
    %2401 = vmatpush2.bf16.msra.mxu0 0
    %2402 = vmatprep.subr.bf16.mxu0 0
    %2403 = vmatpush2.bf16.msra.mxu0 0
    %2404 = vmatprep.subr.bf16.mxu0 0
    %2405 = vmatpush2.bf16.msra.mxu0 0
    %2406 = vmatprep.subr.bf16.mxu0 0
    %2407 = vmatpush2.bf16.msra.mxu0 0
    %2408 = vmatprep.mubr.bf16.mxu0 0
    %2409 = vmatmul.mubr.bf16.gmra.mxu0 %v2333
    %v2410 = vpop.f32.mrf.mxu0
    %v2411 = vadd.f32 0.0, %v2410
    %v2412 = vpop.f32.mrf.mxu0
    %v2413 = vadd.f32 0.0, %v2412
    %v2414 = vpop.f32.mrf.mxu0
    %v2415 = vpop.f32.mrf.mxu0
    %2416 = vdwg.mxu0
    %v2417 = vadd.f32 %v2084, %v2370
    %v2418 = vadd.f32 %v2085, %v2372
    %v2419 = vadd.f32 %v2086, %v2411
    %v2420 = vadd.f32 %v2087, %v2413
    %v2421 = vld [vmem:[%s0] sm:$0x88]
    %v2422 = vld [vmem:[%s0 + $0x8] sm:$0x88]
    %v2423 = vld [vmem:[%s0 + $0x10] sm:$0x8]
    %v2424 = vld [vmem:[%s0 + $0x28] sm:$0x88]
    %v2425 = vld [vmem:[%s0 + $0x30] sm:$0x88]
    %v2426 = vld [vmem:[%s0 + $0x38] sm:$0x8]
    %v2433 = vunpack.c.l.b16 %v2421
    %v2434 = vunpack.c.h.b16 %v2421
    %v2435 = vunpack.c.l.b16 %v2422
    %v2436 = vunpack.c.h.b16 %v2422
    %v2437 = vunpack.c.l.b16 %v2423
    %v2438 = vunpack.c.l.b16 %v2424
    %v2439 = vunpack.c.h.b16 %v2424
    %v2440 = vunpack.c.l.b16 %v2425
    %v2441 = vunpack.c.h.b16 %v2425
    %v2442 = vunpack.c.l.b16 %v2426
    %v2443 = vpack.c.b16 %v2433, %v2433
    %v2444 = vpack.c.b16 %v2434, %v2434
    %v2445 = vpack.c.b16 %v2435, %v2435
    %v2446 = vpack.c.b16 %v2436, %v2436
    %v2447 = vpack.c.b16 %v2437, %v2437
    %v2448 = vpack.c.b16 %v2438, %v2438
    %v2449 = vpack.c.b16 %v2439, %v2439
    %v2450 = vpack.c.b16 %v2440, %v2440
    %v2451 = vpack.c.b16 %v2441, %v2441
    %v2452 = vpack.c.b16 %v2442, %v2442
    %v2453 = vunpack.c.l.b16 %v2443
    %v2454 = vunpack.c.l.b16 %v2444
    %v2455 = vunpack.c.l.b16 %v2445
    %v2456 = vunpack.c.l.b16 %v2446
    %v2457 = vunpack.c.l.b16 %v2447
    %v2458 = vunpack.c.l.b16 %v2448
    %v2459 = vunpack.c.l.b16 %v2449
    %v2460 = vunpack.c.l.b16 %v2450
    %v2461 = vunpack.c.l.b16 %v2451
    %v2462 = vunpack.c.l.b16 %v2452
    %v2463 = vrot.slane %v2453, 6
    %v2464 = vrot.slane %v2458, 5
    %v2465 = vsel %vm140, %v2464, %v2463
    %v2466 = vrot.slane %v2454, 6
    %v2467 = vrot.slane %v2459, 5
    %v2468 = vsel %vm140, %v2467, %v2466
    %v2469 = vrot.slane %v2455, 6
    %v2470 = vrot.slane %v2460, 5
    %v2471 = vsel %vm140, %v2470, %v2469
    %v2472 = vrot.slane %v2456, 6
    %v2473 = vrot.slane %v2461, 5
    %v2474 = vsel %vm140, %v2473, %v2472
    %v2475 = vrot.slane %v2457, 6
    %v2476 = vrot.slane %v2462, 5
    %v2477 = vsel %vm140, %v2476, %v2475
    %v2478 = vpack.c.b16 %v2465, %v2465
    %v2479 = vpack.c.b16 %v2468, %v2468
    %v2480 = vpack.c.b16 %v2471, %v2471
    %v2481 = vpack.c.b16 %v2474, %v2474
    %v2482 = vpack.c.b16 %v2477, %v2477
    %v2488 = vsel %vm375, %v2482, 0
    %2490 = vmatprep.subr.bf16.mxu0 0
    %2491 = vmatpush1.bf16.msra.mxu0 %v310
    %2492 = vmatprep.subr.bf16.mxu0 0
    %2493 = vmatpush1.bf16.msra.mxu0 %v309
    %2494 = vmatprep.subr.bf16.mxu0 0
    %2495 = vmatpush1.bf16.msra.mxu0 %v308
    %2496 = vmatprep.subr.bf16.mxu0 0
    %2497 = vmatpush1.bf16.msra.mxu0 %v307
    %2498 = vmatprep.subr.bf16.mxu0 0
    %2499 = vmatpush1.bf16.msra.mxu0 %v306
    %2500 = vmatprep.subr.bf16.mxu0 0
    %2501 = vmatpush1.bf16.msra.mxu0 %v305
    %2502 = vmatprep.subr.bf16.mxu0 0
    %2503 = vmatpush1.bf16.msra.mxu0 %v304
    %2504 = vmatprep.subr.bf16.mxu0 0
    %2505 = vmatpush1.bf16.msra.mxu0 %v303
    %2506 = vmatprep.subr.bf16.mxu0 0
    %2507 = vmatpush2.bf16.msra.mxu0 %v318
    %2508 = vmatprep.subr.bf16.mxu0 0
    %2509 = vmatpush2.bf16.msra.mxu0 %v317
    %2510 = vmatprep.subr.bf16.mxu0 0
    %2511 = vmatpush2.bf16.msra.mxu0 %v316
    %2512 = vmatprep.subr.bf16.mxu0 0
    %2513 = vmatpush2.bf16.msra.mxu0 %v315
    %2514 = vmatprep.subr.bf16.mxu0 0
    %2515 = vmatpush2.bf16.msra.mxu0 %v314
    %2516 = vmatprep.subr.bf16.mxu0 0
    %2517 = vmatpush2.bf16.msra.mxu0 %v313
    %2518 = vmatprep.subr.bf16.mxu0 0
    %2519 = vmatpush2.bf16.msra.mxu0 %v312
    %2520 = vmatprep.subr.bf16.mxu0 0
    %2521 = vmatpush2.bf16.msra.mxu0 %v311
    %2522 = vmatprep.mubr.bf16.mxu0 %v2479
    %2523 = vmatmul.mubr.bf16.gmra.mxu0 %v2478
    %v2524 = vpop.f32.mrf.mxu0
    %v2525 = vadd.f32 0.0, %v2524
    %v2526 = vpop.f32.mrf.mxu0
    %v2527 = vpop.f32.mrf.mxu0
    %v2528 = vpop.f32.mrf.mxu0
    %2529 = vdwg.mxu0
    %2530 = vmatprep.subr.bf16.mxu0 0
    %2531 = vmatpush1.bf16.msra.mxu0 %v326
    %2532 = vmatprep.subr.bf16.mxu0 0
    %2533 = vmatpush1.bf16.msra.mxu0 %v325
    %2534 = vmatprep.subr.bf16.mxu0 0
    %2535 = vmatpush1.bf16.msra.mxu0 %v324
    %2536 = vmatprep.subr.bf16.mxu0 0
    %2537 = vmatpush1.bf16.msra.mxu0 %v323
    %2538 = vmatprep.subr.bf16.mxu0 0
    %2539 = vmatpush1.bf16.msra.mxu0 %v322
    %2540 = vmatprep.subr.bf16.mxu0 0
    %2541 = vmatpush1.bf16.msra.mxu0 %v321
    %2542 = vmatprep.subr.bf16.mxu0 0
    %2543 = vmatpush1.bf16.msra.mxu0 %v320
    %2544 = vmatprep.subr.bf16.mxu0 0
    %2545 = vmatpush1.bf16.msra.mxu0 %v319
    %2546 = vmatprep.subr.bf16.mxu0 0
    %2547 = vmatpush2.bf16.msra.mxu0 %v334
    %2548 = vmatprep.subr.bf16.mxu0 0
    %2549 = vmatpush2.bf16.msra.mxu0 %v333
    %2550 = vmatprep.subr.bf16.mxu0 0
    %2551 = vmatpush2.bf16.msra.mxu0 %v332
    %2552 = vmatprep.subr.bf16.mxu0 0
    %2553 = vmatpush2.bf16.msra.mxu0 %v331
    %2554 = vmatprep.subr.bf16.mxu0 0
    %2555 = vmatpush2.bf16.msra.mxu0 %v330
    %2556 = vmatprep.subr.bf16.mxu0 0
    %2557 = vmatpush2.bf16.msra.mxu0 %v329
    %2558 = vmatprep.subr.bf16.mxu0 0
    %2559 = vmatpush2.bf16.msra.mxu0 %v328
    %2560 = vmatprep.subr.bf16.mxu0 0
    %2561 = vmatpush2.bf16.msra.mxu0 %v327
    %2562 = vmatprep.mubr.bf16.mxu0 %v2481
    %2563 = vmatmul.mubr.bf16.gmra.mxu0 %v2480
    %v2564 = vpop.f32.mrf.mxu0
    %v2565 = vadd.f32 %v2525, %v2564
    %v2566 = vpop.f32.mrf.mxu0
    %v2567 = vpop.f32.mrf.mxu0
    %v2568 = vpop.f32.mrf.mxu0
    %2569 = vdwg.mxu0
    %2570 = vmatprep.subr.bf16.mxu0 0
    %2571 = vmatpush1.bf16.msra.mxu0 0
    %2572 = vmatprep.subr.bf16.mxu0 0
    %2573 = vmatpush1.bf16.msra.mxu0 0
    %2574 = vmatprep.subr.bf16.mxu0 0
    %2575 = vmatpush1.bf16.msra.mxu0 0
    %2576 = vmatprep.subr.bf16.mxu0 0
    %2577 = vmatpush1.bf16.msra.mxu0 0
    %2578 = vmatprep.subr.bf16.mxu0 0
    %2579 = vmatpush1.bf16.msra.mxu0 %v338
    %2580 = vmatprep.subr.bf16.mxu0 0
    %2581 = vmatpush1.bf16.msra.mxu0 %v337
    %2582 = vmatprep.subr.bf16.mxu0 0
    %2583 = vmatpush1.bf16.msra.mxu0 %v336
    %2584 = vmatprep.subr.bf16.mxu0 0
    %2585 = vmatpush1.bf16.msra.mxu0 %v335
    %2586 = vmatprep.subr.bf16.mxu0 0
    %2587 = vmatpush2.bf16.msra.mxu0 0
    %2588 = vmatprep.subr.bf16.mxu0 0
    %2589 = vmatpush2.bf16.msra.mxu0 0
    %2590 = vmatprep.subr.bf16.mxu0 0
    %2591 = vmatpush2.bf16.msra.mxu0 0
    %2592 = vmatprep.subr.bf16.mxu0 0
    %2593 = vmatpush2.bf16.msra.mxu0 0
    %2594 = vmatprep.subr.bf16.mxu0 0
    %2595 = vmatpush2.bf16.msra.mxu0 0
    %2596 = vmatprep.subr.bf16.mxu0 0
    %2597 = vmatpush2.bf16.msra.mxu0 0
    %2598 = vmatprep.subr.bf16.mxu0 0
    %2599 = vmatpush2.bf16.msra.mxu0 0
    %2600 = vmatprep.subr.bf16.mxu0 0
    %2601 = vmatpush2.bf16.msra.mxu0 0
    %2602 = vmatprep.mubr.bf16.mxu0 0
    %2603 = vmatmul.mubr.bf16.gmra.mxu0 %v2488
    %v2604 = vpop.f32.mrf.mxu0
    %v2605 = vadd.f32 %v2565, %v2604
    %v2606 = vpop.f32.mrf.mxu0
    %v2607 = vpop.f32.mrf.mxu0
    %v2608 = vpop.f32.mrf.mxu0
    %2609 = vdwg.mxu0
    %v2610 = vpack.c.bf16 %v2605, %v2605
    %v2611 = vld [vmem:[%s2 + $0x300] sm:$0xff]
    %v2612 = vld [vmem:[%s2 + $0x308] sm:$0xff]
    %v2613 = vld [vmem:[%s2 + $0x310] sm:$0xff]
    %v2614 = vld [vmem:[%s2 + $0x318] sm:$0xff]
    %v2615 = vld [vmem:[%s2 + $0x320] sm:$0xff]
    %v2616 = vld [vmem:[%s2 + $0x328] sm:$0xff]
    %v2617 = vld [vmem:[%s2 + $0x330] sm:$0xff]
    %v2618 = vld [vmem:[%s2 + $0x338] sm:$0xff]
    %v2619 = vld [vmem:[%s2 + $0x340] sm:$0xff]
    %v2620 = vld [vmem:[%s2 + $0x348] sm:$0xff]
    %v2621 = vld [vmem:[%s2 + $0x350] sm:$0xff]
    %v2622 = vld [vmem:[%s2 + $0x358] sm:$0xff]
    %v2623 = vld [vmem:[%s2 + $0x360] sm:$0xff]
    %v2624 = vld [vmem:[%s2 + $0x368] sm:$0xff]
    %v2625 = vld [vmem:[%s2 + $0x370] sm:$0xff]
    %v2626 = vld [vmem:[%s2 + $0x378] sm:$0xff]
    %v2643 = vunpack.c.l.b16 %v2611
    %v2644 = vunpack.c.h.b16 %v2611
    %v2645 = vunpack.c.l.b16 %v2612
    %v2646 = vunpack.c.h.b16 %v2612
    %v2647 = vunpack.c.l.b16 %v2613
    %v2648 = vunpack.c.h.b16 %v2613
    %v2649 = vunpack.c.l.b16 %v2614
    %v2650 = vunpack.c.h.b16 %v2614
    %v2651 = vunpack.c.l.b16 %v2615
    %v2652 = vunpack.c.h.b16 %v2615
    %v2653 = vunpack.c.l.b16 %v2616
    %v2654 = vunpack.c.h.b16 %v2616
    %v2655 = vunpack.c.l.b16 %v2617
    %v2656 = vunpack.c.h.b16 %v2617
    %v2657 = vunpack.c.l.b16 %v2618
    %v2658 = vunpack.c.h.b16 %v2618
    %v2659 = vunpack.c.l.b16 %v2619
    %v2660 = vunpack.c.h.b16 %v2619
    %v2661 = vunpack.c.l.b16 %v2620
    %v2662 = vunpack.c.h.b16 %v2620
    %v2663 = vunpack.c.l.b16 %v2621
    %v2664 = vunpack.c.h.b16 %v2621
    %v2665 = vunpack.c.l.b16 %v2622
    %v2666 = vunpack.c.h.b16 %v2622
    %v2667 = vunpack.c.l.b16 %v2623
    %v2668 = vunpack.c.h.b16 %v2623
    %v2669 = vunpack.c.l.b16 %v2624
    %v2670 = vunpack.c.h.b16 %v2624
    %v2671 = vunpack.c.l.b16 %v2625
    %v2672 = vunpack.c.h.b16 %v2625
    %v2673 = vunpack.c.l.b16 %v2626
    %v2674 = vunpack.c.h.b16 %v2626
    %v2675 = vpack.c.b16 %v2647, %v2643
    %v2676 = vpack.c.b16 %v2648, %v2644
    %v2677 = vpack.c.b16 %v2649, %v2645
    %v2678 = vpack.c.b16 %v2650, %v2646
    %v2679 = vpack.c.b16 %v2655, %v2651
    %v2680 = vpack.c.b16 %v2656, %v2652
    %v2681 = vpack.c.b16 %v2657, %v2653
    %v2682 = vpack.c.b16 %v2658, %v2654
    %v2683 = vpack.c.b16 %v2663, %v2659
    %v2684 = vpack.c.b16 %v2664, %v2660
    %v2685 = vpack.c.b16 %v2665, %v2661
    %v2686 = vpack.c.b16 %v2666, %v2662
    %v2687 = vpack.c.b16 %v2671, %v2667
    %v2688 = vpack.c.b16 %v2672, %v2668
    %v2689 = vpack.c.b16 %v2673, %v2669
    %v2690 = vpack.c.b16 %v2674, %v2670
    %v2708 = vsel %vm375, %v2610, 0
    %2710 = vmatprep.subr.bf16.mxu0 0
    %2711 = vmatpush1.bf16.msra.mxu0 0
    %2712 = vmatprep.subr.bf16.mxu0 0
    %2713 = vmatpush1.bf16.msra.mxu0 0
    %2714 = vmatprep.subr.bf16.mxu0 0
    %2715 = vmatpush1.bf16.msra.mxu0 0
    %2716 = vmatprep.subr.bf16.mxu0 0
    %2717 = vmatpush1.bf16.msra.mxu0 0
    %2718 = vmatprep.subr.bf16.mxu0 %v2688
    %2719 = vmatpush1.bf16.msra.mxu0 %v2687
    %2720 = vmatprep.subr.bf16.mxu0 %v2684
    %2721 = vmatpush1.bf16.msra.mxu0 %v2683
    %2722 = vmatprep.subr.bf16.mxu0 %v2680
    %2723 = vmatpush1.bf16.msra.mxu0 %v2679
    %2724 = vmatprep.subr.bf16.mxu0 %v2676
    %2725 = vmatpush1.bf16.msra.mxu0 %v2675
    %2726 = vmatprep.subr.bf16.mxu0 0
    %2727 = vmatpush2.bf16.msra.mxu0 0
    %2728 = vmatprep.subr.bf16.mxu0 0
    %2729 = vmatpush2.bf16.msra.mxu0 0
    %2730 = vmatprep.subr.bf16.mxu0 0
    %2731 = vmatpush2.bf16.msra.mxu0 0
    %2732 = vmatprep.subr.bf16.mxu0 0
    %2733 = vmatpush2.bf16.msra.mxu0 0
    %2734 = vmatprep.subr.bf16.mxu0 0
    %2735 = vmatpush2.bf16.msra.mxu0 0
    %2736 = vmatprep.subr.bf16.mxu0 0
    %2737 = vmatpush2.bf16.msra.mxu0 0
    %2738 = vmatprep.subr.bf16.mxu0 0
    %2739 = vmatpush2.bf16.msra.mxu0 0
    %2740 = vmatprep.subr.bf16.mxu0 0
    %2741 = vmatpush2.bf16.msra.mxu0 0
    %2742 = vmatprep.mubr.bf16.mxu0 0
    %2743 = vmatmul.mubr.bf16.gmra.mxu0 %v2708
    %v2744 = vpop.f32.mrf.mxu0
    %v2745 = vadd.f32 0.0, %v2744
    %v2746 = vpop.f32.mrf.mxu0
    %v2747 = vadd.f32 0.0, %v2746
    %v2748 = vpop.f32.mrf.mxu0
    %v2749 = vpop.f32.mrf.mxu0
    %2750 = vdwg.mxu0
    %2751 = vmatprep.subr.bf16.mxu0 0
    %2752 = vmatpush1.bf16.msra.mxu0 0
    %2753 = vmatprep.subr.bf16.mxu0 0
    %2754 = vmatpush1.bf16.msra.mxu0 0
    %2755 = vmatprep.subr.bf16.mxu0 0
    %2756 = vmatpush1.bf16.msra.mxu0 0
    %2757 = vmatprep.subr.bf16.mxu0 0
    %2758 = vmatpush1.bf16.msra.mxu0 0
    %2759 = vmatprep.subr.bf16.mxu0 %v2690
    %2760 = vmatpush1.bf16.msra.mxu0 %v2689
    %2761 = vmatprep.subr.bf16.mxu0 %v2686
    %2762 = vmatpush1.bf16.msra.mxu0 %v2685
    %2763 = vmatprep.subr.bf16.mxu0 %v2682
    %2764 = vmatpush1.bf16.msra.mxu0 %v2681
    %2765 = vmatprep.subr.bf16.mxu0 %v2678
    %2766 = vmatpush1.bf16.msra.mxu0 %v2677
    %2767 = vmatprep.subr.bf16.mxu0 0
    %2768 = vmatpush2.bf16.msra.mxu0 0
    %2769 = vmatprep.subr.bf16.mxu0 0
    %2770 = vmatpush2.bf16.msra.mxu0 0
    %2771 = vmatprep.subr.bf16.mxu0 0
    %2772 = vmatpush2.bf16.msra.mxu0 0
    %2773 = vmatprep.subr.bf16.mxu0 0
    %2774 = vmatpush2.bf16.msra.mxu0 0
    %2775 = vmatprep.subr.bf16.mxu0 0
    %2776 = vmatpush2.bf16.msra.mxu0 0
    %2777 = vmatprep.subr.bf16.mxu0 0
    %2778 = vmatpush2.bf16.msra.mxu0 0
    %2779 = vmatprep.subr.bf16.mxu0 0
    %2780 = vmatpush2.bf16.msra.mxu0 0
    %2781 = vmatprep.subr.bf16.mxu0 0
    %2782 = vmatpush2.bf16.msra.mxu0 0
    %2783 = vmatprep.mubr.bf16.mxu0 0
    %2784 = vmatmul.mubr.bf16.gmra.mxu0 %v2708
    %v2785 = vpop.f32.mrf.mxu0
    %v2786 = vadd.f32 0.0, %v2785
    %v2787 = vpop.f32.mrf.mxu0
    %v2788 = vadd.f32 0.0, %v2787
    %v2789 = vpop.f32.mrf.mxu0
    %v2790 = vpop.f32.mrf.mxu0
    %2791 = vdwg.mxu0
    %v2792 = vadd.f32 %v2417, %v2745
    %v2793 = vadd.f32 %v2418, %v2747
    %v2794 = vadd.f32 %v2419, %v2786
    %v2795 = vadd.f32 %v2420, %v2788
    %v2796 = vrot.slane %v2453, 7
    %v2797 = vrot.slane %v2458, 6
    %v2798 = vsel %vm140, %v2797, %v2796
    %v2799 = vrot.slane %v2454, 7
    %v2800 = vrot.slane %v2459, 6
    %v2801 = vsel %vm140, %v2800, %v2799
    %v2802 = vrot.slane %v2455, 7
    %v2803 = vrot.slane %v2460, 6
    %v2804 = vsel %vm140, %v2803, %v2802
    %v2805 = vrot.slane %v2456, 7
    %v2806 = vrot.slane %v2461, 6
    %v2807 = vsel %vm140, %v2806, %v2805
    %v2808 = vrot.slane %v2457, 7
    %v2809 = vrot.slane %v2462, 6
    %v2810 = vsel %vm140, %v2809, %v2808
    %v2811 = vpack.c.b16 %v2798, %v2798
    %v2812 = vpack.c.b16 %v2801, %v2801
    %v2813 = vpack.c.b16 %v2804, %v2804
    %v2814 = vpack.c.b16 %v2807, %v2807
    %v2815 = vpack.c.b16 %v2810, %v2810
    %v2821 = vsel %vm375, %v2815, 0
    %2823 = vmatprep.subr.bf16.mxu0 0
    %2824 = vmatpush1.bf16.msra.mxu0 %v310
    %2825 = vmatprep.subr.bf16.mxu0 0
    %2826 = vmatpush1.bf16.msra.mxu0 %v309
    %2827 = vmatprep.subr.bf16.mxu0 0
    %2828 = vmatpush1.bf16.msra.mxu0 %v308
    %2829 = vmatprep.subr.bf16.mxu0 0
    %2830 = vmatpush1.bf16.msra.mxu0 %v307
    %2831 = vmatprep.subr.bf16.mxu0 0
    %2832 = vmatpush1.bf16.msra.mxu0 %v306
    %2833 = vmatprep.subr.bf16.mxu0 0
    %2834 = vmatpush1.bf16.msra.mxu0 %v305
    %2835 = vmatprep.subr.bf16.mxu0 0
    %2836 = vmatpush1.bf16.msra.mxu0 %v304
    %2837 = vmatprep.subr.bf16.mxu0 0
    %2838 = vmatpush1.bf16.msra.mxu0 %v303
    %2839 = vmatprep.subr.bf16.mxu0 0
    %2840 = vmatpush2.bf16.msra.mxu0 %v318
    %2841 = vmatprep.subr.bf16.mxu0 0
    %2842 = vmatpush2.bf16.msra.mxu0 %v317
    %2843 = vmatprep.subr.bf16.mxu0 0
    %2844 = vmatpush2.bf16.msra.mxu0 %v316
    %2845 = vmatprep.subr.bf16.mxu0 0
    %2846 = vmatpush2.bf16.msra.mxu0 %v315
    %2847 = vmatprep.subr.bf16.mxu0 0
    %2848 = vmatpush2.bf16.msra.mxu0 %v314
    %2849 = vmatprep.subr.bf16.mxu0 0
    %2850 = vmatpush2.bf16.msra.mxu0 %v313
    %2851 = vmatprep.subr.bf16.mxu0 0
    %2852 = vmatpush2.bf16.msra.mxu0 %v312
    %2853 = vmatprep.subr.bf16.mxu0 0
    %2854 = vmatpush2.bf16.msra.mxu0 %v311
    %2855 = vmatprep.mubr.bf16.mxu0 %v2812
    %2856 = vmatmul.mubr.bf16.gmra.mxu0 %v2811
    %v2857 = vpop.f32.mrf.mxu0
    %v2858 = vadd.f32 0.0, %v2857
    %v2859 = vpop.f32.mrf.mxu0
    %v2860 = vpop.f32.mrf.mxu0
    %v2861 = vpop.f32.mrf.mxu0
    %2862 = vdwg.mxu0
    %2863 = vmatprep.subr.bf16.mxu0 0
    %2864 = vmatpush1.bf16.msra.mxu0 %v326
    %2865 = vmatprep.subr.bf16.mxu0 0
    %2866 = vmatpush1.bf16.msra.mxu0 %v325
    %2867 = vmatprep.subr.bf16.mxu0 0
    %2868 = vmatpush1.bf16.msra.mxu0 %v324
    %2869 = vmatprep.subr.bf16.mxu0 0
    %2870 = vmatpush1.bf16.msra.mxu0 %v323
    %2871 = vmatprep.subr.bf16.mxu0 0
    %2872 = vmatpush1.bf16.msra.mxu0 %v322
    %2873 = vmatprep.subr.bf16.mxu0 0
    %2874 = vmatpush1.bf16.msra.mxu0 %v321
    %2875 = vmatprep.subr.bf16.mxu0 0
    %2876 = vmatpush1.bf16.msra.mxu0 %v320
    %2877 = vmatprep.subr.bf16.mxu0 0
    %2878 = vmatpush1.bf16.msra.mxu0 %v319
    %2879 = vmatprep.subr.bf16.mxu0 0
    %2880 = vmatpush2.bf16.msra.mxu0 %v334
    %2881 = vmatprep.subr.bf16.mxu0 0
    %2882 = vmatpush2.bf16.msra.mxu0 %v333
    %2883 = vmatprep.subr.bf16.mxu0 0
    %2884 = vmatpush2.bf16.msra.mxu0 %v332
    %2885 = vmatprep.subr.bf16.mxu0 0
    %2886 = vmatpush2.bf16.msra.mxu0 %v331
    %2887 = vmatprep.subr.bf16.mxu0 0
    %2888 = vmatpush2.bf16.msra.mxu0 %v330
    %2889 = vmatprep.subr.bf16.mxu0 0
    %2890 = vmatpush2.bf16.msra.mxu0 %v329
    %2891 = vmatprep.subr.bf16.mxu0 0
    %2892 = vmatpush2.bf16.msra.mxu0 %v328
    %2893 = vmatprep.subr.bf16.mxu0 0
    %2894 = vmatpush2.bf16.msra.mxu0 %v327
    %2895 = vmatprep.mubr.bf16.mxu0 %v2814
    %2896 = vmatmul.mubr.bf16.gmra.mxu0 %v2813
    %v2897 = vpop.f32.mrf.mxu0
    %v2898 = vadd.f32 %v2858, %v2897
    %v2899 = vpop.f32.mrf.mxu0
    %v2900 = vpop.f32.mrf.mxu0
    %v2901 = vpop.f32.mrf.mxu0
    %2902 = vdwg.mxu0
    %2903 = vmatprep.subr.bf16.mxu0 0
    %2904 = vmatpush1.bf16.msra.mxu0 0
    %2905 = vmatprep.subr.bf16.mxu0 0
    %2906 = vmatpush1.bf16.msra.mxu0 0
    %2907 = vmatprep.subr.bf16.mxu0 0
    %2908 = vmatpush1.bf16.msra.mxu0 0
    %2909 = vmatprep.subr.bf16.mxu0 0
    %2910 = vmatpush1.bf16.msra.mxu0 0
    %2911 = vmatprep.subr.bf16.mxu0 0
    %2912 = vmatpush1.bf16.msra.mxu0 %v338
    %2913 = vmatprep.subr.bf16.mxu0 0
    %2914 = vmatpush1.bf16.msra.mxu0 %v337
    %2915 = vmatprep.subr.bf16.mxu0 0
    %2916 = vmatpush1.bf16.msra.mxu0 %v336
    %2917 = vmatprep.subr.bf16.mxu0 0
    %2918 = vmatpush1.bf16.msra.mxu0 %v335
    %2919 = vmatprep.subr.bf16.mxu0 0
    %2920 = vmatpush2.bf16.msra.mxu0 0
    %2921 = vmatprep.subr.bf16.mxu0 0
    %2922 = vmatpush2.bf16.msra.mxu0 0
    %2923 = vmatprep.subr.bf16.mxu0 0
    %2924 = vmatpush2.bf16.msra.mxu0 0
    %2925 = vmatprep.subr.bf16.mxu0 0
    %2926 = vmatpush2.bf16.msra.mxu0 0
    %2927 = vmatprep.subr.bf16.mxu0 0
    %2928 = vmatpush2.bf16.msra.mxu0 0
    %2929 = vmatprep.subr.bf16.mxu0 0
    %2930 = vmatpush2.bf16.msra.mxu0 0
    %2931 = vmatprep.subr.bf16.mxu0 0
    %2932 = vmatpush2.bf16.msra.mxu0 0
    %2933 = vmatprep.subr.bf16.mxu0 0
    %2934 = vmatpush2.bf16.msra.mxu0 0
    %2935 = vmatprep.mubr.bf16.mxu0 0
    %2936 = vmatmul.mubr.bf16.gmra.mxu0 %v2821
    %v2937 = vpop.f32.mrf.mxu0
    %v2938 = vadd.f32 %v2898, %v2937
    %v2939 = vpop.f32.mrf.mxu0
    %v2940 = vpop.f32.mrf.mxu0
    %v2941 = vpop.f32.mrf.mxu0
    %2942 = vdwg.mxu0
    %v2943 = vpack.c.bf16 %v2938, %v2938
    %v2944 = vld [vmem:[%s2 + $0x380] sm:$0xff]
    %v2945 = vld [vmem:[%s2 + $0x388] sm:$0xff]
    %v2946 = vld [vmem:[%s2 + $0x390] sm:$0xff]
    %v2947 = vld [vmem:[%s2 + $0x398] sm:$0xff]
    %v2948 = vld [vmem:[%s2 + $0x3a0] sm:$0xff]
    %v2949 = vld [vmem:[%s2 + $0x3a8] sm:$0xff]
    %v2950 = vld [vmem:[%s2 + $0x3b0] sm:$0xff]
    %v2951 = vld [vmem:[%s2 + $0x3b8] sm:$0xff]
    %v2952 = vld [vmem:[%s2 + $0x3c0] sm:$0xff]
    %v2953 = vld [vmem:[%s2 + $0x3c8] sm:$0xff]
    %v2954 = vld [vmem:[%s2 + $0x3d0] sm:$0xff]
    %v2955 = vld [vmem:[%s2 + $0x3d8] sm:$0xff]
    %v2956 = vld [vmem:[%s2 + $0x3e0] sm:$0xff]
    %v2957 = vld [vmem:[%s2 + $0x3e8] sm:$0xff]
    %v2958 = vld [vmem:[%s2 + $0x3f0] sm:$0xff]
    %v2959 = vld [vmem:[%s2 + $0x3f8] sm:$0xff]
    %v2976 = vunpack.c.l.b16 %v2944
    %v2977 = vunpack.c.h.b16 %v2944
    %v2978 = vunpack.c.l.b16 %v2945
    %v2979 = vunpack.c.h.b16 %v2945
    %v2980 = vunpack.c.l.b16 %v2946
    %v2981 = vunpack.c.h.b16 %v2946
    %v2982 = vunpack.c.l.b16 %v2947
    %v2983 = vunpack.c.h.b16 %v2947
    %v2984 = vunpack.c.l.b16 %v2948
    %v2985 = vunpack.c.h.b16 %v2948
    %v2986 = vunpack.c.l.b16 %v2949
    %v2987 = vunpack.c.h.b16 %v2949
    %v2988 = vunpack.c.l.b16 %v2950
    %v2989 = vunpack.c.h.b16 %v2950
    %v2990 = vunpack.c.l.b16 %v2951
    %v2991 = vunpack.c.h.b16 %v2951
    %v2992 = vunpack.c.l.b16 %v2952
    %v2993 = vunpack.c.h.b16 %v2952
    %v2994 = vunpack.c.l.b16 %v2953
    %v2995 = vunpack.c.h.b16 %v2953
    %v2996 = vunpack.c.l.b16 %v2954
    %v2997 = vunpack.c.h.b16 %v2954
    %v2998 = vunpack.c.l.b16 %v2955
    %v2999 = vunpack.c.h.b16 %v2955
    %v3000 = vunpack.c.l.b16 %v2956
    %v3001 = vunpack.c.h.b16 %v2956
    %v3002 = vunpack.c.l.b16 %v2957
    %v3003 = vunpack.c.h.b16 %v2957
    %v3004 = vunpack.c.l.b16 %v2958
    %v3005 = vunpack.c.h.b16 %v2958
    %v3006 = vunpack.c.l.b16 %v2959
    %v3007 = vunpack.c.h.b16 %v2959
    %v3008 = vpack.c.b16 %v2980, %v2976
    %v3009 = vpack.c.b16 %v2981, %v2977
    %v3010 = vpack.c.b16 %v2982, %v2978
    %v3011 = vpack.c.b16 %v2983, %v2979
    %v3012 = vpack.c.b16 %v2988, %v2984
    %v3013 = vpack.c.b16 %v2989, %v2985
    %v3014 = vpack.c.b16 %v2990, %v2986
    %v3015 = vpack.c.b16 %v2991, %v2987
    %v3016 = vpack.c.b16 %v2996, %v2992
    %v3017 = vpack.c.b16 %v2997, %v2993
    %v3018 = vpack.c.b16 %v2998, %v2994
    %v3019 = vpack.c.b16 %v2999, %v2995
    %v3020 = vpack.c.b16 %v3004, %v3000
    %v3021 = vpack.c.b16 %v3005, %v3001
    %v3022 = vpack.c.b16 %v3006, %v3002
    %v3023 = vpack.c.b16 %v3007, %v3003
    %v3041 = vsel %vm375, %v2943, 0
    %3043 = vmatprep.subr.bf16.mxu0 0
    %3044 = vmatpush1.bf16.msra.mxu0 0
    %3045 = vmatprep.subr.bf16.mxu0 0
    %3046 = vmatpush1.bf16.msra.mxu0 0
    %3047 = vmatprep.subr.bf16.mxu0 0
    %3048 = vmatpush1.bf16.msra.mxu0 0
    %3049 = vmatprep.subr.bf16.mxu0 0
    %3050 = vmatpush1.bf16.msra.mxu0 0
    %3051 = vmatprep.subr.bf16.mxu0 %v3021
    %3052 = vmatpush1.bf16.msra.mxu0 %v3020
    %3053 = vmatprep.subr.bf16.mxu0 %v3017
    %3054 = vmatpush1.bf16.msra.mxu0 %v3016
    %3055 = vmatprep.subr.bf16.mxu0 %v3013
    %3056 = vmatpush1.bf16.msra.mxu0 %v3012
    %3057 = vmatprep.subr.bf16.mxu0 %v3009
    %3058 = vmatpush1.bf16.msra.mxu0 %v3008
    %3059 = vmatprep.subr.bf16.mxu0 0
    %3060 = vmatpush2.bf16.msra.mxu0 0
    %3061 = vmatprep.subr.bf16.mxu0 0
    %3062 = vmatpush2.bf16.msra.mxu0 0
    %3063 = vmatprep.subr.bf16.mxu0 0
    %3064 = vmatpush2.bf16.msra.mxu0 0
    %3065 = vmatprep.subr.bf16.mxu0 0
    %3066 = vmatpush2.bf16.msra.mxu0 0
    %3067 = vmatprep.subr.bf16.mxu0 0
    %3068 = vmatpush2.bf16.msra.mxu0 0
    %3069 = vmatprep.subr.bf16.mxu0 0
    %3070 = vmatpush2.bf16.msra.mxu0 0
    %3071 = vmatprep.subr.bf16.mxu0 0
    %3072 = vmatpush2.bf16.msra.mxu0 0
    %3073 = vmatprep.subr.bf16.mxu0 0
    %3074 = vmatpush2.bf16.msra.mxu0 0
    %3075 = vmatprep.mubr.bf16.mxu0 0
    %3076 = vmatmul.mubr.bf16.gmra.mxu0 %v3041
    %v3077 = vpop.f32.mrf.mxu0
    %v3078 = vadd.f32 0.0, %v3077
    %v3079 = vpop.f32.mrf.mxu0
    %v3080 = vadd.f32 0.0, %v3079
    %v3081 = vpop.f32.mrf.mxu0
    %v3082 = vpop.f32.mrf.mxu0
    %3083 = vdwg.mxu0
    %3084 = vmatprep.subr.bf16.mxu0 0
    %3085 = vmatpush1.bf16.msra.mxu0 0
    %3086 = vmatprep.subr.bf16.mxu0 0
    %3087 = vmatpush1.bf16.msra.mxu0 0
    %3088 = vmatprep.subr.bf16.mxu0 0
    %3089 = vmatpush1.bf16.msra.mxu0 0
    %3090 = vmatprep.subr.bf16.mxu0 0
    %3091 = vmatpush1.bf16.msra.mxu0 0
    %3092 = vmatprep.subr.bf16.mxu0 %v3023
    %3093 = vmatpush1.bf16.msra.mxu0 %v3022
    %3094 = vmatprep.subr.bf16.mxu0 %v3019
    %3095 = vmatpush1.bf16.msra.mxu0 %v3018
    %3096 = vmatprep.subr.bf16.mxu0 %v3015
    %3097 = vmatpush1.bf16.msra.mxu0 %v3014
    %3098 = vmatprep.subr.bf16.mxu0 %v3011
    %3099 = vmatpush1.bf16.msra.mxu0 %v3010
    %3100 = vmatprep.subr.bf16.mxu0 0
    %3101 = vmatpush2.bf16.msra.mxu0 0
    %3102 = vmatprep.subr.bf16.mxu0 0
    %3103 = vmatpush2.bf16.msra.mxu0 0
    %3104 = vmatprep.subr.bf16.mxu0 0
    %3105 = vmatpush2.bf16.msra.mxu0 0
    %3106 = vmatprep.subr.bf16.mxu0 0
    %3107 = vmatpush2.bf16.msra.mxu0 0
    %3108 = vmatprep.subr.bf16.mxu0 0
    %3109 = vmatpush2.bf16.msra.mxu0 0
    %3110 = vmatprep.subr.bf16.mxu0 0
    %3111 = vmatpush2.bf16.msra.mxu0 0
    %3112 = vmatprep.subr.bf16.mxu0 0
    %3113 = vmatpush2.bf16.msra.mxu0 0
    %3114 = vmatprep.subr.bf16.mxu0 0
    %3115 = vmatpush2.bf16.msra.mxu0 0
    %3116 = vmatprep.mubr.bf16.mxu0 0
    %3117 = vmatmul.mubr.bf16.gmra.mxu0 %v3041
    %v3118 = vpop.f32.mrf.mxu0
    %v3119 = vadd.f32 0.0, %v3118
    %v3120 = vpop.f32.mrf.mxu0
    %v3121 = vadd.f32 0.0, %v3120
    %v3122 = vpop.f32.mrf.mxu0
    %v3123 = vpop.f32.mrf.mxu0
    %3124 = vdwg.mxu0
    %v3125 = vadd.f32 %v2792, %v3078
    %v3126 = vadd.f32 %v2793, %v3080
    %v3127 = vadd.f32 %v2794, %v3119
    %v3128 = vadd.f32 %v2795, %v3121
    %v3129 = vld [vmem:[%s0 + $0x14] sm:$0x11]
    %v3130 = vld [vmem:[%s0 + $0x1c] sm:$0x11]
    %v3131 = vld [vmem:[%s0 + $0x24] sm:$0x1]
    %v3132 = vld [vmem:[%s0 + $0x3c] sm:$0x11]
    %v3133 = vld [vmem:[%s0 + $0x44] sm:$0x11]
    %v3134 = vld [vmem:[%s0 + $0x4c] sm:$0x1]
    %v3141 = vunpack.c.l.b16 %v3129
    %v3142 = vunpack.c.h.b16 %v3129
    %v3143 = vunpack.c.l.b16 %v3130
    %v3144 = vunpack.c.h.b16 %v3130
    %v3145 = vunpack.c.l.b16 %v3131
    %v3146 = vunpack.c.l.b16 %v3132
    %v3147 = vunpack.c.h.b16 %v3132
    %v3148 = vunpack.c.l.b16 %v3133
    %v3149 = vunpack.c.h.b16 %v3133
    %v3150 = vunpack.c.l.b16 %v3134
    %v3151 = vpack.c.b16 %v3141, %v3141
    %v3152 = vpack.c.b16 %v3142, %v3142
    %v3153 = vpack.c.b16 %v3143, %v3143
    %v3154 = vpack.c.b16 %v3144, %v3144
    %v3155 = vpack.c.b16 %v3145, %v3145
    %v3156 = vpack.c.b16 %v3146, %v3146
    %v3157 = vpack.c.b16 %v3147, %v3147
    %v3158 = vpack.c.b16 %v3148, %v3148
    %v3159 = vpack.c.b16 %v3149, %v3149
    %v3160 = vpack.c.b16 %v3150, %v3150
    %v3161 = vunpack.c.l.b16 %v3151
    %v3162 = vunpack.c.l.b16 %v3152
    %v3163 = vunpack.c.l.b16 %v3153
    %v3164 = vunpack.c.l.b16 %v3154
    %v3165 = vunpack.c.l.b16 %v3155
    %v3166 = vunpack.c.l.b16 %v3156
    %v3167 = vunpack.c.l.b16 %v3157
    %v3168 = vunpack.c.l.b16 %v3158
    %v3169 = vunpack.c.l.b16 %v3159
    %v3170 = vunpack.c.l.b16 %v3160
    %v3171 = vrot.slane %v3166, 7
    %v3172 = vsel %vm140, %v3171, %v3161
    %v3173 = vrot.slane %v3167, 7
    %v3174 = vsel %vm140, %v3173, %v3162
    %v3175 = vrot.slane %v3168, 7
    %v3176 = vsel %vm140, %v3175, %v3163
    %v3177 = vrot.slane %v3169, 7
    %v3178 = vsel %vm140, %v3177, %v3164
    %v3179 = vrot.slane %v3170, 7
    %v3180 = vsel %vm140, %v3179, %v3165
    %v3181 = vpack.c.b16 %v3172, %v3172
    %v3182 = vpack.c.b16 %v3174, %v3174
    %v3183 = vpack.c.b16 %v3176, %v3176
    %v3184 = vpack.c.b16 %v3178, %v3178
    %v3185 = vpack.c.b16 %v3180, %v3180
    %v3191 = vsel %vm375, %v3185, 0
    %3193 = vmatprep.subr.bf16.mxu0 0
    %3194 = vmatpush1.bf16.msra.mxu0 %v310
    %3195 = vmatprep.subr.bf16.mxu0 0
    %3196 = vmatpush1.bf16.msra.mxu0 %v309
    %3197 = vmatprep.subr.bf16.mxu0 0
    %3198 = vmatpush1.bf16.msra.mxu0 %v308
    %3199 = vmatprep.subr.bf16.mxu0 0
    %3200 = vmatpush1.bf16.msra.mxu0 %v307
    %3201 = vmatprep.subr.bf16.mxu0 0
    %3202 = vmatpush1.bf16.msra.mxu0 %v306
    %3203 = vmatprep.subr.bf16.mxu0 0
    %3204 = vmatpush1.bf16.msra.mxu0 %v305
    %3205 = vmatprep.subr.bf16.mxu0 0
    %3206 = vmatpush1.bf16.msra.mxu0 %v304
    %3207 = vmatprep.subr.bf16.mxu0 0
    %3208 = vmatpush1.bf16.msra.mxu0 %v303
    %3209 = vmatprep.subr.bf16.mxu0 0
    %3210 = vmatpush2.bf16.msra.mxu0 %v318
    %3211 = vmatprep.subr.bf16.mxu0 0
    %3212 = vmatpush2.bf16.msra.mxu0 %v317
    %3213 = vmatprep.subr.bf16.mxu0 0
    %3214 = vmatpush2.bf16.msra.mxu0 %v316
    %3215 = vmatprep.subr.bf16.mxu0 0
    %3216 = vmatpush2.bf16.msra.mxu0 %v315
    %3217 = vmatprep.subr.bf16.mxu0 0
    %3218 = vmatpush2.bf16.msra.mxu0 %v314
    %3219 = vmatprep.subr.bf16.mxu0 0
    %3220 = vmatpush2.bf16.msra.mxu0 %v313
    %3221 = vmatprep.subr.bf16.mxu0 0
    %3222 = vmatpush2.bf16.msra.mxu0 %v312
    %3223 = vmatprep.subr.bf16.mxu0 0
    %3224 = vmatpush2.bf16.msra.mxu0 %v311
    %3225 = vmatprep.mubr.bf16.mxu0 %v3182
    %3226 = vmatmul.mubr.bf16.gmra.mxu0 %v3181
    %v3227 = vpop.f32.mrf.mxu0
    %v3228 = vadd.f32 0.0, %v3227
    %v3229 = vpop.f32.mrf.mxu0
    %v3230 = vpop.f32.mrf.mxu0
    %v3231 = vpop.f32.mrf.mxu0
    %3232 = vdwg.mxu0
    %3233 = vmatprep.subr.bf16.mxu0 0
    %3234 = vmatpush1.bf16.msra.mxu0 %v326
    %3235 = vmatprep.subr.bf16.mxu0 0
    %3236 = vmatpush1.bf16.msra.mxu0 %v325
    %3237 = vmatprep.subr.bf16.mxu0 0
    %3238 = vmatpush1.bf16.msra.mxu0 %v324
    %3239 = vmatprep.subr.bf16.mxu0 0
    %3240 = vmatpush1.bf16.msra.mxu0 %v323
    %3241 = vmatprep.subr.bf16.mxu0 0
    %3242 = vmatpush1.bf16.msra.mxu0 %v322
    %3243 = vmatprep.subr.bf16.mxu0 0
    %3244 = vmatpush1.bf16.msra.mxu0 %v321
    %3245 = vmatprep.subr.bf16.mxu0 0
    %3246 = vmatpush1.bf16.msra.mxu0 %v320
    %3247 = vmatprep.subr.bf16.mxu0 0
    %3248 = vmatpush1.bf16.msra.mxu0 %v319
    %3249 = vmatprep.subr.bf16.mxu0 0
    %3250 = vmatpush2.bf16.msra.mxu0 %v334
    %3251 = vmatprep.subr.bf16.mxu0 0
    %3252 = vmatpush2.bf16.msra.mxu0 %v333
    %3253 = vmatprep.subr.bf16.mxu0 0
    %3254 = vmatpush2.bf16.msra.mxu0 %v332
    %3255 = vmatprep.subr.bf16.mxu0 0
    %3256 = vmatpush2.bf16.msra.mxu0 %v331
    %3257 = vmatprep.subr.bf16.mxu0 0
    %3258 = vmatpush2.bf16.msra.mxu0 %v330
    %3259 = vmatprep.subr.bf16.mxu0 0
    %3260 = vmatpush2.bf16.msra.mxu0 %v329
    %3261 = vmatprep.subr.bf16.mxu0 0
    %3262 = vmatpush2.bf16.msra.mxu0 %v328
    %3263 = vmatprep.subr.bf16.mxu0 0
    %3264 = vmatpush2.bf16.msra.mxu0 %v327
    %3265 = vmatprep.mubr.bf16.mxu0 %v3184
    %3266 = vmatmul.mubr.bf16.gmra.mxu0 %v3183
    %v3267 = vpop.f32.mrf.mxu0
    %v3268 = vadd.f32 %v3228, %v3267
    %v3269 = vpop.f32.mrf.mxu0
    %v3270 = vpop.f32.mrf.mxu0
    %v3271 = vpop.f32.mrf.mxu0
    %3272 = vdwg.mxu0
    %3273 = vmatprep.subr.bf16.mxu0 0
    %3274 = vmatpush1.bf16.msra.mxu0 0
    %3275 = vmatprep.subr.bf16.mxu0 0
    %3276 = vmatpush1.bf16.msra.mxu0 0
    %3277 = vmatprep.subr.bf16.mxu0 0
    %3278 = vmatpush1.bf16.msra.mxu0 0
    %3279 = vmatprep.subr.bf16.mxu0 0
    %3280 = vmatpush1.bf16.msra.mxu0 0
    %3281 = vmatprep.subr.bf16.mxu0 0
    %3282 = vmatpush1.bf16.msra.mxu0 %v338
    %3283 = vmatprep.subr.bf16.mxu0 0
    %3284 = vmatpush1.bf16.msra.mxu0 %v337
    %3285 = vmatprep.subr.bf16.mxu0 0
    %3286 = vmatpush1.bf16.msra.mxu0 %v336
    %3287 = vmatprep.subr.bf16.mxu0 0
    %3288 = vmatpush1.bf16.msra.mxu0 %v335
    %3289 = vmatprep.subr.bf16.mxu0 0
    %3290 = vmatpush2.bf16.msra.mxu0 0
    %3291 = vmatprep.subr.bf16.mxu0 0
    %3292 = vmatpush2.bf16.msra.mxu0 0
    %3293 = vmatprep.subr.bf16.mxu0 0
    %3294 = vmatpush2.bf16.msra.mxu0 0
    %3295 = vmatprep.subr.bf16.mxu0 0
    %3296 = vmatpush2.bf16.msra.mxu0 0
    %3297 = vmatprep.subr.bf16.mxu0 0
    %3298 = vmatpush2.bf16.msra.mxu0 0
    %3299 = vmatprep.subr.bf16.mxu0 0
    %3300 = vmatpush2.bf16.msra.mxu0 0
    %3301 = vmatprep.subr.bf16.mxu0 0
    %3302 = vmatpush2.bf16.msra.mxu0 0
    %3303 = vmatprep.subr.bf16.mxu0 0
    %3304 = vmatpush2.bf16.msra.mxu0 0
    %3305 = vmatprep.mubr.bf16.mxu0 0
    %3306 = vmatmul.mubr.bf16.gmra.mxu0 %v3191
    %v3307 = vpop.f32.mrf.mxu0
    %v3308 = vadd.f32 %v3268, %v3307
    %v3309 = vpop.f32.mrf.mxu0
    %v3310 = vpop.f32.mrf.mxu0
    %v3311 = vpop.f32.mrf.mxu0
    %3312 = vdwg.mxu0
    %v3313 = vpack.c.bf16 %v3308, %v3308
    %v3314 = vld [vmem:[%s2 + $0x400] sm:$0xff]
    %v3315 = vld [vmem:[%s2 + $0x408] sm:$0xff]
    %v3316 = vld [vmem:[%s2 + $0x410] sm:$0xff]
    %v3317 = vld [vmem:[%s2 + $0x418] sm:$0xff]
    %v3318 = vld [vmem:[%s2 + $0x420] sm:$0xff]
    %v3319 = vld [vmem:[%s2 + $0x428] sm:$0xff]
    %v3320 = vld [vmem:[%s2 + $0x430] sm:$0xff]
    %v3321 = vld [vmem:[%s2 + $0x438] sm:$0xff]
    %v3322 = vld [vmem:[%s2 + $0x440] sm:$0xff]
    %v3323 = vld [vmem:[%s2 + $0x448] sm:$0xff]
    %v3324 = vld [vmem:[%s2 + $0x450] sm:$0xff]
    %v3325 = vld [vmem:[%s2 + $0x458] sm:$0xff]
    %v3326 = vld [vmem:[%s2 + $0x460] sm:$0xff]
    %v3327 = vld [vmem:[%s2 + $0x468] sm:$0xff]
    %v3328 = vld [vmem:[%s2 + $0x470] sm:$0xff]
    %v3329 = vld [vmem:[%s2 + $0x478] sm:$0xff]
    %v3346 = vunpack.c.l.b16 %v3314
    %v3347 = vunpack.c.h.b16 %v3314
    %v3348 = vunpack.c.l.b16 %v3315
    %v3349 = vunpack.c.h.b16 %v3315
    %v3350 = vunpack.c.l.b16 %v3316
    %v3351 = vunpack.c.h.b16 %v3316
    %v3352 = vunpack.c.l.b16 %v3317
    %v3353 = vunpack.c.h.b16 %v3317
    %v3354 = vunpack.c.l.b16 %v3318
    %v3355 = vunpack.c.h.b16 %v3318
    %v3356 = vunpack.c.l.b16 %v3319
    %v3357 = vunpack.c.h.b16 %v3319
    %v3358 = vunpack.c.l.b16 %v3320
    %v3359 = vunpack.c.h.b16 %v3320
    %v3360 = vunpack.c.l.b16 %v3321
    %v3361 = vunpack.c.h.b16 %v3321
    %v3362 = vunpack.c.l.b16 %v3322
    %v3363 = vunpack.c.h.b16 %v3322
    %v3364 = vunpack.c.l.b16 %v3323
    %v3365 = vunpack.c.h.b16 %v3323
    %v3366 = vunpack.c.l.b16 %v3324
    %v3367 = vunpack.c.h.b16 %v3324
    %v3368 = vunpack.c.l.b16 %v3325
    %v3369 = vunpack.c.h.b16 %v3325
    %v3370 = vunpack.c.l.b16 %v3326
    %v3371 = vunpack.c.h.b16 %v3326
    %v3372 = vunpack.c.l.b16 %v3327
    %v3373 = vunpack.c.h.b16 %v3327
    %v3374 = vunpack.c.l.b16 %v3328
    %v3375 = vunpack.c.h.b16 %v3328
    %v3376 = vunpack.c.l.b16 %v3329
    %v3377 = vunpack.c.h.b16 %v3329
    %v3378 = vpack.c.b16 %v3350, %v3346
    %v3379 = vpack.c.b16 %v3351, %v3347
    %v3380 = vpack.c.b16 %v3352, %v3348
    %v3381 = vpack.c.b16 %v3353, %v3349
    %v3382 = vpack.c.b16 %v3358, %v3354
    %v3383 = vpack.c.b16 %v3359, %v3355
    %v3384 = vpack.c.b16 %v3360, %v3356
    %v3385 = vpack.c.b16 %v3361, %v3357
    %v3386 = vpack.c.b16 %v3366, %v3362
    %v3387 = vpack.c.b16 %v3367, %v3363
    %v3388 = vpack.c.b16 %v3368, %v3364
    %v3389 = vpack.c.b16 %v3369, %v3365
    %v3390 = vpack.c.b16 %v3374, %v3370
    %v3391 = vpack.c.b16 %v3375, %v3371
    %v3392 = vpack.c.b16 %v3376, %v3372
    %v3393 = vpack.c.b16 %v3377, %v3373
    %v3411 = vsel %vm375, %v3313, 0
    %3413 = vmatprep.subr.bf16.mxu0 0
    %3414 = vmatpush1.bf16.msra.mxu0 0
    %3415 = vmatprep.subr.bf16.mxu0 0
    %3416 = vmatpush1.bf16.msra.mxu0 0
    %3417 = vmatprep.subr.bf16.mxu0 0
    %3418 = vmatpush1.bf16.msra.mxu0 0
    %3419 = vmatprep.subr.bf16.mxu0 0
    %3420 = vmatpush1.bf16.msra.mxu0 0
    %3421 = vmatprep.subr.bf16.mxu0 %v3391
    %3422 = vmatpush1.bf16.msra.mxu0 %v3390
    %3423 = vmatprep.subr.bf16.mxu0 %v3387
    %3424 = vmatpush1.bf16.msra.mxu0 %v3386
    %3425 = vmatprep.subr.bf16.mxu0 %v3383
    %3426 = vmatpush1.bf16.msra.mxu0 %v3382
    %3427 = vmatprep.subr.bf16.mxu0 %v3379
    %3428 = vmatpush1.bf16.msra.mxu0 %v3378
    %3429 = vmatprep.subr.bf16.mxu0 0
    %3430 = vmatpush2.bf16.msra.mxu0 0
    %3431 = vmatprep.subr.bf16.mxu0 0
    %3432 = vmatpush2.bf16.msra.mxu0 0
    %3433 = vmatprep.subr.bf16.mxu0 0
    %3434 = vmatpush2.bf16.msra.mxu0 0
    %3435 = vmatprep.subr.bf16.mxu0 0
    %3436 = vmatpush2.bf16.msra.mxu0 0
    %3437 = vmatprep.subr.bf16.mxu0 0
    %3438 = vmatpush2.bf16.msra.mxu0 0
    %3439 = vmatprep.subr.bf16.mxu0 0
    %3440 = vmatpush2.bf16.msra.mxu0 0
    %3441 = vmatprep.subr.bf16.mxu0 0
    %3442 = vmatpush2.bf16.msra.mxu0 0
    %3443 = vmatprep.subr.bf16.mxu0 0
    %3444 = vmatpush2.bf16.msra.mxu0 0
    %3445 = vmatprep.mubr.bf16.mxu0 0
    %3446 = vmatmul.mubr.bf16.gmra.mxu0 %v3411
    %v3447 = vpop.f32.mrf.mxu0
    %v3448 = vadd.f32 0.0, %v3447
    %v3449 = vpop.f32.mrf.mxu0
    %v3450 = vadd.f32 0.0, %v3449
    %v3451 = vpop.f32.mrf.mxu0
    %v3452 = vpop.f32.mrf.mxu0
    %3453 = vdwg.mxu0
    %3454 = vmatprep.subr.bf16.mxu0 0
    %3455 = vmatpush1.bf16.msra.mxu0 0
    %3456 = vmatprep.subr.bf16.mxu0 0
    %3457 = vmatpush1.bf16.msra.mxu0 0
    %3458 = vmatprep.subr.bf16.mxu0 0
    %3459 = vmatpush1.bf16.msra.mxu0 0
    %3460 = vmatprep.subr.bf16.mxu0 0
    %3461 = vmatpush1.bf16.msra.mxu0 0
    %3462 = vmatprep.subr.bf16.mxu0 %v3393
    %3463 = vmatpush1.bf16.msra.mxu0 %v3392
    %3464 = vmatprep.subr.bf16.mxu0 %v3389
    %3465 = vmatpush1.bf16.msra.mxu0 %v3388
    %3466 = vmatprep.subr.bf16.mxu0 %v3385
    %3467 = vmatpush1.bf16.msra.mxu0 %v3384
    %3468 = vmatprep.subr.bf16.mxu0 %v3381
    %3469 = vmatpush1.bf16.msra.mxu0 %v3380
    %3470 = vmatprep.subr.bf16.mxu0 0
    %3471 = vmatpush2.bf16.msra.mxu0 0
    %3472 = vmatprep.subr.bf16.mxu0 0
    %3473 = vmatpush2.bf16.msra.mxu0 0
    %3474 = vmatprep.subr.bf16.mxu0 0
    %3475 = vmatpush2.bf16.msra.mxu0 0
    %3476 = vmatprep.subr.bf16.mxu0 0
    %3477 = vmatpush2.bf16.msra.mxu0 0
    %3478 = vmatprep.subr.bf16.mxu0 0
    %3479 = vmatpush2.bf16.msra.mxu0 0
    %3480 = vmatprep.subr.bf16.mxu0 0
    %3481 = vmatpush2.bf16.msra.mxu0 0
    %3482 = vmatprep.subr.bf16.mxu0 0
    %3483 = vmatpush2.bf16.msra.mxu0 0
    %3484 = vmatprep.subr.bf16.mxu0 0
    %3485 = vmatpush2.bf16.msra.mxu0 0
    %3486 = vmatprep.mubr.bf16.mxu0 0
    %3487 = vmatmul.mubr.bf16.gmra.mxu0 %v3411
    %v3488 = vpop.f32.mrf.mxu0
    %v3489 = vadd.f32 0.0, %v3488
    %v3490 = vpop.f32.mrf.mxu0
    %v3491 = vadd.f32 0.0, %v3490
    %v3492 = vpop.f32.mrf.mxu0
    %v3493 = vpop.f32.mrf.mxu0
    %3494 = vdwg.mxu0
    %v3495 = vadd.f32 %v3125, %v3448
    %v3496 = vadd.f32 %v3126, %v3450
    %v3497 = vadd.f32 %v3127, %v3489
    %v3498 = vadd.f32 %v3128, %v3491
    %v3499 = vrot.slane %v3161, 1
    %v3500 = vsel %vm140, %v3166, %v3499
    %v3501 = vrot.slane %v3162, 1
    %v3502 = vsel %vm140, %v3167, %v3501
    %v3503 = vrot.slane %v3163, 1
    %v3504 = vsel %vm140, %v3168, %v3503
    %v3505 = vrot.slane %v3164, 1
    %v3506 = vsel %vm140, %v3169, %v3505
    %v3507 = vrot.slane %v3165, 1
    %v3508 = vsel %vm140, %v3170, %v3507
    %v3509 = vpack.c.b16 %v3500, %v3500
    %v3510 = vpack.c.b16 %v3502, %v3502
    %v3511 = vpack.c.b16 %v3504, %v3504
    %v3512 = vpack.c.b16 %v3506, %v3506
    %v3513 = vpack.c.b16 %v3508, %v3508
    %v3519 = vsel %vm375, %v3513, 0
    %3521 = vmatprep.subr.bf16.mxu0 0
    %3522 = vmatpush1.bf16.msra.mxu0 %v310
    %3523 = vmatprep.subr.bf16.mxu0 0
    %3524 = vmatpush1.bf16.msra.mxu0 %v309
    %3525 = vmatprep.subr.bf16.mxu0 0
    %3526 = vmatpush1.bf16.msra.mxu0 %v308
    %3527 = vmatprep.subr.bf16.mxu0 0
    %3528 = vmatpush1.bf16.msra.mxu0 %v307
    %3529 = vmatprep.subr.bf16.mxu0 0
    %3530 = vmatpush1.bf16.msra.mxu0 %v306
    %3531 = vmatprep.subr.bf16.mxu0 0
    %3532 = vmatpush1.bf16.msra.mxu0 %v305
    %3533 = vmatprep.subr.bf16.mxu0 0
    %3534 = vmatpush1.bf16.msra.mxu0 %v304
    %3535 = vmatprep.subr.bf16.mxu0 0
    %3536 = vmatpush1.bf16.msra.mxu0 %v303
    %3537 = vmatprep.subr.bf16.mxu0 0
    %3538 = vmatpush2.bf16.msra.mxu0 %v318
    %3539 = vmatprep.subr.bf16.mxu0 0
    %3540 = vmatpush2.bf16.msra.mxu0 %v317
    %3541 = vmatprep.subr.bf16.mxu0 0
    %3542 = vmatpush2.bf16.msra.mxu0 %v316
    %3543 = vmatprep.subr.bf16.mxu0 0
    %3544 = vmatpush2.bf16.msra.mxu0 %v315
    %3545 = vmatprep.subr.bf16.mxu0 0
    %3546 = vmatpush2.bf16.msra.mxu0 %v314
    %3547 = vmatprep.subr.bf16.mxu0 0
    %3548 = vmatpush2.bf16.msra.mxu0 %v313
    %3549 = vmatprep.subr.bf16.mxu0 0
    %3550 = vmatpush2.bf16.msra.mxu0 %v312
    %3551 = vmatprep.subr.bf16.mxu0 0
    %3552 = vmatpush2.bf16.msra.mxu0 %v311
    %3553 = vmatprep.mubr.bf16.mxu0 %v3510
    %3554 = vmatmul.mubr.bf16.gmra.mxu0 %v3509
    %v3555 = vpop.f32.mrf.mxu0
    %v3556 = vadd.f32 0.0, %v3555
    %v3557 = vpop.f32.mrf.mxu0
    %v3558 = vpop.f32.mrf.mxu0
    %v3559 = vpop.f32.mrf.mxu0
    %3560 = vdwg.mxu0
    %3561 = vmatprep.subr.bf16.mxu0 0
    %3562 = vmatpush1.bf16.msra.mxu0 %v326
    %3563 = vmatprep.subr.bf16.mxu0 0
    %3564 = vmatpush1.bf16.msra.mxu0 %v325
    %3565 = vmatprep.subr.bf16.mxu0 0
    %3566 = vmatpush1.bf16.msra.mxu0 %v324
    %3567 = vmatprep.subr.bf16.mxu0 0
    %3568 = vmatpush1.bf16.msra.mxu0 %v323
    %3569 = vmatprep.subr.bf16.mxu0 0
    %3570 = vmatpush1.bf16.msra.mxu0 %v322
    %3571 = vmatprep.subr.bf16.mxu0 0
    %3572 = vmatpush1.bf16.msra.mxu0 %v321
    %3573 = vmatprep.subr.bf16.mxu0 0
    %3574 = vmatpush1.bf16.msra.mxu0 %v320
    %3575 = vmatprep.subr.bf16.mxu0 0
    %3576 = vmatpush1.bf16.msra.mxu0 %v319
    %3577 = vmatprep.subr.bf16.mxu0 0
    %3578 = vmatpush2.bf16.msra.mxu0 %v334
    %3579 = vmatprep.subr.bf16.mxu0 0
    %3580 = vmatpush2.bf16.msra.mxu0 %v333
    %3581 = vmatprep.subr.bf16.mxu0 0
    %3582 = vmatpush2.bf16.msra.mxu0 %v332
    %3583 = vmatprep.subr.bf16.mxu0 0
    %3584 = vmatpush2.bf16.msra.mxu0 %v331
    %3585 = vmatprep.subr.bf16.mxu0 0
    %3586 = vmatpush2.bf16.msra.mxu0 %v330
    %3587 = vmatprep.subr.bf16.mxu0 0
    %3588 = vmatpush2.bf16.msra.mxu0 %v329
    %3589 = vmatprep.subr.bf16.mxu0 0
    %3590 = vmatpush2.bf16.msra.mxu0 %v328
    %3591 = vmatprep.subr.bf16.mxu0 0
    %3592 = vmatpush2.bf16.msra.mxu0 %v327
    %3593 = vmatprep.mubr.bf16.mxu0 %v3512
    %3594 = vmatmul.mubr.bf16.gmra.mxu0 %v3511
    %v3595 = vpop.f32.mrf.mxu0
    %v3596 = vadd.f32 %v3556, %v3595
    %v3597 = vpop.f32.mrf.mxu0
    %v3598 = vpop.f32.mrf.mxu0
    %v3599 = vpop.f32.mrf.mxu0
    %3600 = vdwg.mxu0
    %3601 = vmatprep.subr.bf16.mxu0 0
    %3602 = vmatpush1.bf16.msra.mxu0 0
    %3603 = vmatprep.subr.bf16.mxu0 0
    %3604 = vmatpush1.bf16.msra.mxu0 0
    %3605 = vmatprep.subr.bf16.mxu0 0
    %3606 = vmatpush1.bf16.msra.mxu0 0
    %3607 = vmatprep.subr.bf16.mxu0 0
    %3608 = vmatpush1.bf16.msra.mxu0 0
    %3609 = vmatprep.subr.bf16.mxu0 0
    %3610 = vmatpush1.bf16.msra.mxu0 %v338
    %3611 = vmatprep.subr.bf16.mxu0 0
    %3612 = vmatpush1.bf16.msra.mxu0 %v337
    %3613 = vmatprep.subr.bf16.mxu0 0
    %3614 = vmatpush1.bf16.msra.mxu0 %v336
    %3615 = vmatprep.subr.bf16.mxu0 0
    %3616 = vmatpush1.bf16.msra.mxu0 %v335
    %3617 = vmatprep.subr.bf16.mxu0 0
    %3618 = vmatpush2.bf16.msra.mxu0 0
    %3619 = vmatprep.subr.bf16.mxu0 0
    %3620 = vmatpush2.bf16.msra.mxu0 0
    %3621 = vmatprep.subr.bf16.mxu0 0
    %3622 = vmatpush2.bf16.msra.mxu0 0
    %3623 = vmatprep.subr.bf16.mxu0 0
    %3624 = vmatpush2.bf16.msra.mxu0 0
    %3625 = vmatprep.subr.bf16.mxu0 0
    %3626 = vmatpush2.bf16.msra.mxu0 0
    %3627 = vmatprep.subr.bf16.mxu0 0
    %3628 = vmatpush2.bf16.msra.mxu0 0
    %3629 = vmatprep.subr.bf16.mxu0 0
    %3630 = vmatpush2.bf16.msra.mxu0 0
    %3631 = vmatprep.subr.bf16.mxu0 0
    %3632 = vmatpush2.bf16.msra.mxu0 0
    %3633 = vmatprep.mubr.bf16.mxu0 0
    %3634 = vmatmul.mubr.bf16.gmra.mxu0 %v3519
    %v3635 = vpop.f32.mrf.mxu0
    %v3636 = vadd.f32 %v3596, %v3635
    %v3637 = vpop.f32.mrf.mxu0
    %v3638 = vpop.f32.mrf.mxu0
    %v3639 = vpop.f32.mrf.mxu0
    %3640 = vdwg.mxu0
    %v3641 = vpack.c.bf16 %v3636, %v3636
    %v3642 = vld [vmem:[%s2 + $0x480] sm:$0xff]
    %v3643 = vld [vmem:[%s2 + $0x488] sm:$0xff]
    %v3644 = vld [vmem:[%s2 + $0x490] sm:$0xff]
    %v3645 = vld [vmem:[%s2 + $0x498] sm:$0xff]
    %v3646 = vld [vmem:[%s2 + $0x4a0] sm:$0xff]
    %v3647 = vld [vmem:[%s2 + $0x4a8] sm:$0xff]
    %v3648 = vld [vmem:[%s2 + $0x4b0] sm:$0xff]
    %v3649 = vld [vmem:[%s2 + $0x4b8] sm:$0xff]
    %v3650 = vld [vmem:[%s2 + $0x4c0] sm:$0xff]
    %v3651 = vld [vmem:[%s2 + $0x4c8] sm:$0xff]
    %v3652 = vld [vmem:[%s2 + $0x4d0] sm:$0xff]
    %v3653 = vld [vmem:[%s2 + $0x4d8] sm:$0xff]
    %v3654 = vld [vmem:[%s2 + $0x4e0] sm:$0xff]
    %v3655 = vld [vmem:[%s2 + $0x4e8] sm:$0xff]
    %v3656 = vld [vmem:[%s2 + $0x4f0] sm:$0xff]
    %v3657 = vld [vmem:[%s2 + $0x4f8] sm:$0xff]
    %v3674 = vunpack.c.l.b16 %v3642
    %v3675 = vunpack.c.h.b16 %v3642
    %v3676 = vunpack.c.l.b16 %v3643
    %v3677 = vunpack.c.h.b16 %v3643
    %v3678 = vunpack.c.l.b16 %v3644
    %v3679 = vunpack.c.h.b16 %v3644
    %v3680 = vunpack.c.l.b16 %v3645
    %v3681 = vunpack.c.h.b16 %v3645
    %v3682 = vunpack.c.l.b16 %v3646
    %v3683 = vunpack.c.h.b16 %v3646
    %v3684 = vunpack.c.l.b16 %v3647
    %v3685 = vunpack.c.h.b16 %v3647
    %v3686 = vunpack.c.l.b16 %v3648
    %v3687 = vunpack.c.h.b16 %v3648
    %v3688 = vunpack.c.l.b16 %v3649
    %v3689 = vunpack.c.h.b16 %v3649
    %v3690 = vunpack.c.l.b16 %v3650
    %v3691 = vunpack.c.h.b16 %v3650
    %v3692 = vunpack.c.l.b16 %v3651
    %v3693 = vunpack.c.h.b16 %v3651
    %v3694 = vunpack.c.l.b16 %v3652
    %v3695 = vunpack.c.h.b16 %v3652
    %v3696 = vunpack.c.l.b16 %v3653
    %v3697 = vunpack.c.h.b16 %v3653
    %v3698 = vunpack.c.l.b16 %v3654
    %v3699 = vunpack.c.h.b16 %v3654
    %v3700 = vunpack.c.l.b16 %v3655
    %v3701 = vunpack.c.h.b16 %v3655
    %v3702 = vunpack.c.l.b16 %v3656
    %v3703 = vunpack.c.h.b16 %v3656
    %v3704 = vunpack.c.l.b16 %v3657
    %v3705 = vunpack.c.h.b16 %v3657
    %v3706 = vpack.c.b16 %v3678, %v3674
    %v3707 = vpack.c.b16 %v3679, %v3675
    %v3708 = vpack.c.b16 %v3680, %v3676
    %v3709 = vpack.c.b16 %v3681, %v3677
    %v3710 = vpack.c.b16 %v3686, %v3682
    %v3711 = vpack.c.b16 %v3687, %v3683
    %v3712 = vpack.c.b16 %v3688, %v3684
    %v3713 = vpack.c.b16 %v3689, %v3685
    %v3714 = vpack.c.b16 %v3694, %v3690
    %v3715 = vpack.c.b16 %v3695, %v3691
    %v3716 = vpack.c.b16 %v3696, %v3692
    %v3717 = vpack.c.b16 %v3697, %v3693
    %v3718 = vpack.c.b16 %v3702, %v3698
    %v3719 = vpack.c.b16 %v3703, %v3699
    %v3720 = vpack.c.b16 %v3704, %v3700
    %v3721 = vpack.c.b16 %v3705, %v3701
    %v3739 = vsel %vm375, %v3641, 0
    %3741 = vmatprep.subr.bf16.mxu0 0
    %3742 = vmatpush1.bf16.msra.mxu0 0
    %3743 = vmatprep.subr.bf16.mxu0 0
    %3744 = vmatpush1.bf16.msra.mxu0 0
    %3745 = vmatprep.subr.bf16.mxu0 0
    %3746 = vmatpush1.bf16.msra.mxu0 0
    %3747 = vmatprep.subr.bf16.mxu0 0
    %3748 = vmatpush1.bf16.msra.mxu0 0
    %3749 = vmatprep.subr.bf16.mxu0 %v3719
    %3750 = vmatpush1.bf16.msra.mxu0 %v3718
    %3751 = vmatprep.subr.bf16.mxu0 %v3715
    %3752 = vmatpush1.bf16.msra.mxu0 %v3714
    %3753 = vmatprep.subr.bf16.mxu0 %v3711
    %3754 = vmatpush1.bf16.msra.mxu0 %v3710
    %3755 = vmatprep.subr.bf16.mxu0 %v3707
    %3756 = vmatpush1.bf16.msra.mxu0 %v3706
    %3757 = vmatprep.subr.bf16.mxu0 0
    %3758 = vmatpush2.bf16.msra.mxu0 0
    %3759 = vmatprep.subr.bf16.mxu0 0
    %3760 = vmatpush2.bf16.msra.mxu0 0
    %3761 = vmatprep.subr.bf16.mxu0 0
    %3762 = vmatpush2.bf16.msra.mxu0 0
    %3763 = vmatprep.subr.bf16.mxu0 0
    %3764 = vmatpush2.bf16.msra.mxu0 0
    %3765 = vmatprep.subr.bf16.mxu0 0
    %3766 = vmatpush2.bf16.msra.mxu0 0
    %3767 = vmatprep.subr.bf16.mxu0 0
    %3768 = vmatpush2.bf16.msra.mxu0 0
    %3769 = vmatprep.subr.bf16.mxu0 0
    %3770 = vmatpush2.bf16.msra.mxu0 0
    %3771 = vmatprep.subr.bf16.mxu0 0
    %3772 = vmatpush2.bf16.msra.mxu0 0
    %3773 = vmatprep.mubr.bf16.mxu0 0
    %3774 = vmatmul.mubr.bf16.gmra.mxu0 %v3739
    %v3775 = vpop.f32.mrf.mxu0
    %v3776 = vadd.f32 0.0, %v3775
    %v3777 = vpop.f32.mrf.mxu0
    %v3778 = vadd.f32 0.0, %v3777
    %v3779 = vpop.f32.mrf.mxu0
    %v3780 = vpop.f32.mrf.mxu0
    %3781 = vdwg.mxu0
    %3782 = vmatprep.subr.bf16.mxu0 0
    %3783 = vmatpush1.bf16.msra.mxu0 0
    %3784 = vmatprep.subr.bf16.mxu0 0
    %3785 = vmatpush1.bf16.msra.mxu0 0
    %3786 = vmatprep.subr.bf16.mxu0 0
    %3787 = vmatpush1.bf16.msra.mxu0 0
    %3788 = vmatprep.subr.bf16.mxu0 0
    %3789 = vmatpush1.bf16.msra.mxu0 0
    %3790 = vmatprep.subr.bf16.mxu0 %v3721
    %3791 = vmatpush1.bf16.msra.mxu0 %v3720
    %3792 = vmatprep.subr.bf16.mxu0 %v3717
    %3793 = vmatpush1.bf16.msra.mxu0 %v3716
    %3794 = vmatprep.subr.bf16.mxu0 %v3713
    %3795 = vmatpush1.bf16.msra.mxu0 %v3712
    %3796 = vmatprep.subr.bf16.mxu0 %v3709
    %3797 = vmatpush1.bf16.msra.mxu0 %v3708
    %3798 = vmatprep.subr.bf16.mxu0 0
    %3799 = vmatpush2.bf16.msra.mxu0 0
    %3800 = vmatprep.subr.bf16.mxu0 0
    %3801 = vmatpush2.bf16.msra.mxu0 0
    %3802 = vmatprep.subr.bf16.mxu0 0
    %3803 = vmatpush2.bf16.msra.mxu0 0
    %3804 = vmatprep.subr.bf16.mxu0 0
    %3805 = vmatpush2.bf16.msra.mxu0 0
    %3806 = vmatprep.subr.bf16.mxu0 0
    %3807 = vmatpush2.bf16.msra.mxu0 0
    %3808 = vmatprep.subr.bf16.mxu0 0
    %3809 = vmatpush2.bf16.msra.mxu0 0
    %3810 = vmatprep.subr.bf16.mxu0 0
    %3811 = vmatpush2.bf16.msra.mxu0 0
    %3812 = vmatprep.subr.bf16.mxu0 0
    %3813 = vmatpush2.bf16.msra.mxu0 0
    %3814 = vmatprep.mubr.bf16.mxu0 0
    %3815 = vmatmul.mubr.bf16.gmra.mxu0 %v3739
    %v3816 = vpop.f32.mrf.mxu0
    %v3817 = vadd.f32 0.0, %v3816
    %v3818 = vpop.f32.mrf.mxu0
    %v3819 = vadd.f32 0.0, %v3818
    %v3820 = vpop.f32.mrf.mxu0
    %v3821 = vpop.f32.mrf.mxu0
    %3822 = vdwg.mxu0
    %v3823 = vadd.f32 %v3495, %v3776
    %v3824 = vadd.f32 %v3496, %v3778
    %v3825 = vadd.f32 %v3497, %v3817
    %v3826 = vadd.f32 %v3498, %v3819
    %v3827 = vld [vmem:[%s0 + $0x14] sm:$0x22]
    %v3828 = vld [vmem:[%s0 + $0x1c] sm:$0x22]
    %v3829 = vld [vmem:[%s0 + $0x24] sm:$0x2]
    %v3830 = vld [vmem:[%s0 + $0x3c] sm:$0x22]
    %v3831 = vld [vmem:[%s0 + $0x44] sm:$0x22]
    %v3832 = vld [vmem:[%s0 + $0x4c] sm:$0x2]
    %v3839 = vunpack.c.l.b16 %v3827
    %v3840 = vunpack.c.h.b16 %v3827
    %v3841 = vunpack.c.l.b16 %v3828
    %v3842 = vunpack.c.h.b16 %v3828
    %v3843 = vunpack.c.l.b16 %v3829
    %v3844 = vunpack.c.l.b16 %v3830
    %v3845 = vunpack.c.h.b16 %v3830
    %v3846 = vunpack.c.l.b16 %v3831
    %v3847 = vunpack.c.h.b16 %v3831
    %v3848 = vunpack.c.l.b16 %v3832
    %v3849 = vpack.c.b16 %v3839, %v3839
    %v3850 = vpack.c.b16 %v3840, %v3840
    %v3851 = vpack.c.b16 %v3841, %v3841
    %v3852 = vpack.c.b16 %v3842, %v3842
    %v3853 = vpack.c.b16 %v3843, %v3843
    %v3854 = vpack.c.b16 %v3844, %v3844
    %v3855 = vpack.c.b16 %v3845, %v3845
    %v3856 = vpack.c.b16 %v3846, %v3846
    %v3857 = vpack.c.b16 %v3847, %v3847
    %v3858 = vpack.c.b16 %v3848, %v3848
    %v3859 = vunpack.c.l.b16 %v3849
    %v3860 = vunpack.c.l.b16 %v3850
    %v3861 = vunpack.c.l.b16 %v3851
    %v3862 = vunpack.c.l.b16 %v3852
    %v3863 = vunpack.c.l.b16 %v3853
    %v3864 = vunpack.c.l.b16 %v3854
    %v3865 = vunpack.c.l.b16 %v3855
    %v3866 = vunpack.c.l.b16 %v3856
    %v3867 = vunpack.c.l.b16 %v3857
    %v3868 = vunpack.c.l.b16 %v3858
    %v3869 = vrot.slane %v3859, 2
    %v3870 = vrot.slane %v3864, 1
    %v3871 = vsel %vm140, %v3870, %v3869
    %v3872 = vrot.slane %v3860, 2
    %v3873 = vrot.slane %v3865, 1
    %v3874 = vsel %vm140, %v3873, %v3872
    %v3875 = vrot.slane %v3861, 2
    %v3876 = vrot.slane %v3866, 1
    %v3877 = vsel %vm140, %v3876, %v3875
    %v3878 = vrot.slane %v3862, 2
    %v3879 = vrot.slane %v3867, 1
    %v3880 = vsel %vm140, %v3879, %v3878
    %v3881 = vrot.slane %v3863, 2
    %v3882 = vrot.slane %v3868, 1
    %v3883 = vsel %vm140, %v3882, %v3881
    %v3884 = vpack.c.b16 %v3871, %v3871
    %v3885 = vpack.c.b16 %v3874, %v3874
    %v3886 = vpack.c.b16 %v3877, %v3877
    %v3887 = vpack.c.b16 %v3880, %v3880
    %v3888 = vpack.c.b16 %v3883, %v3883
    %v3894 = vsel %vm375, %v3888, 0
    %3896 = vmatprep.subr.bf16.mxu0 0
    %3897 = vmatpush1.bf16.msra.mxu0 %v310
    %3898 = vmatprep.subr.bf16.mxu0 0
    %3899 = vmatpush1.bf16.msra.mxu0 %v309
    %3900 = vmatprep.subr.bf16.mxu0 0
    %3901 = vmatpush1.bf16.msra.mxu0 %v308
    %3902 = vmatprep.subr.bf16.mxu0 0
    %3903 = vmatpush1.bf16.msra.mxu0 %v307
    %3904 = vmatprep.subr.bf16.mxu0 0
    %3905 = vmatpush1.bf16.msra.mxu0 %v306
    %3906 = vmatprep.subr.bf16.mxu0 0
    %3907 = vmatpush1.bf16.msra.mxu0 %v305
    %3908 = vmatprep.subr.bf16.mxu0 0
    %3909 = vmatpush1.bf16.msra.mxu0 %v304
    %3910 = vmatprep.subr.bf16.mxu0 0
    %3911 = vmatpush1.bf16.msra.mxu0 %v303
    %3912 = vmatprep.subr.bf16.mxu0 0
    %3913 = vmatpush2.bf16.msra.mxu0 %v318
    %3914 = vmatprep.subr.bf16.mxu0 0
    %3915 = vmatpush2.bf16.msra.mxu0 %v317
    %3916 = vmatprep.subr.bf16.mxu0 0
    %3917 = vmatpush2.bf16.msra.mxu0 %v316
    %3918 = vmatprep.subr.bf16.mxu0 0
    %3919 = vmatpush2.bf16.msra.mxu0 %v315
    %3920 = vmatprep.subr.bf16.mxu0 0
    %3921 = vmatpush2.bf16.msra.mxu0 %v314
    %3922 = vmatprep.subr.bf16.mxu0 0
    %3923 = vmatpush2.bf16.msra.mxu0 %v313
    %3924 = vmatprep.subr.bf16.mxu0 0
    %3925 = vmatpush2.bf16.msra.mxu0 %v312
    %3926 = vmatprep.subr.bf16.mxu0 0
    %3927 = vmatpush2.bf16.msra.mxu0 %v311
    %3928 = vmatprep.mubr.bf16.mxu0 %v3885
    %3929 = vmatmul.mubr.bf16.gmra.mxu0 %v3884
    %v3930 = vpop.f32.mrf.mxu0
    %v3931 = vadd.f32 0.0, %v3930
    %v3932 = vpop.f32.mrf.mxu0
    %v3933 = vpop.f32.mrf.mxu0
    %v3934 = vpop.f32.mrf.mxu0
    %3935 = vdwg.mxu0
    %3936 = vmatprep.subr.bf16.mxu0 0
    %3937 = vmatpush1.bf16.msra.mxu0 %v326
    %3938 = vmatprep.subr.bf16.mxu0 0
    %3939 = vmatpush1.bf16.msra.mxu0 %v325
    %3940 = vmatprep.subr.bf16.mxu0 0
    %3941 = vmatpush1.bf16.msra.mxu0 %v324
    %3942 = vmatprep.subr.bf16.mxu0 0
    %3943 = vmatpush1.bf16.msra.mxu0 %v323
    %3944 = vmatprep.subr.bf16.mxu0 0
    %3945 = vmatpush1.bf16.msra.mxu0 %v322
    %3946 = vmatprep.subr.bf16.mxu0 0
    %3947 = vmatpush1.bf16.msra.mxu0 %v321
    %3948 = vmatprep.subr.bf16.mxu0 0
    %3949 = vmatpush1.bf16.msra.mxu0 %v320
    %3950 = vmatprep.subr.bf16.mxu0 0
    %3951 = vmatpush1.bf16.msra.mxu0 %v319
    %3952 = vmatprep.subr.bf16.mxu0 0
    %3953 = vmatpush2.bf16.msra.mxu0 %v334
    %3954 = vmatprep.subr.bf16.mxu0 0
    %3955 = vmatpush2.bf16.msra.mxu0 %v333
    %3956 = vmatprep.subr.bf16.mxu0 0
    %3957 = vmatpush2.bf16.msra.mxu0 %v332
    %3958 = vmatprep.subr.bf16.mxu0 0
    %3959 = vmatpush2.bf16.msra.mxu0 %v331
    %3960 = vmatprep.subr.bf16.mxu0 0
    %3961 = vmatpush2.bf16.msra.mxu0 %v330
    %3962 = vmatprep.subr.bf16.mxu0 0
    %3963 = vmatpush2.bf16.msra.mxu0 %v329
    %3964 = vmatprep.subr.bf16.mxu0 0
    %3965 = vmatpush2.bf16.msra.mxu0 %v328
    %3966 = vmatprep.subr.bf16.mxu0 0
    %3967 = vmatpush2.bf16.msra.mxu0 %v327
    %3968 = vmatprep.mubr.bf16.mxu0 %v3887
    %3969 = vmatmul.mubr.bf16.gmra.mxu0 %v3886
    %v3970 = vpop.f32.mrf.mxu0
    %v3971 = vadd.f32 %v3931, %v3970
    %v3972 = vpop.f32.mrf.mxu0
    %v3973 = vpop.f32.mrf.mxu0
    %v3974 = vpop.f32.mrf.mxu0
    %3975 = vdwg.mxu0
    %3976 = vmatprep.subr.bf16.mxu0 0
    %3977 = vmatpush1.bf16.msra.mxu0 0
    %3978 = vmatprep.subr.bf16.mxu0 0
    %3979 = vmatpush1.bf16.msra.mxu0 0
    %3980 = vmatprep.subr.bf16.mxu0 0
    %3981 = vmatpush1.bf16.msra.mxu0 0
    %3982 = vmatprep.subr.bf16.mxu0 0
    %3983 = vmatpush1.bf16.msra.mxu0 0
    %3984 = vmatprep.subr.bf16.mxu0 0
    %3985 = vmatpush1.bf16.msra.mxu0 %v338
    %3986 = vmatprep.subr.bf16.mxu0 0
    %3987 = vmatpush1.bf16.msra.mxu0 %v337
    %3988 = vmatprep.subr.bf16.mxu0 0
    %3989 = vmatpush1.bf16.msra.mxu0 %v336
    %3990 = vmatprep.subr.bf16.mxu0 0
    %3991 = vmatpush1.bf16.msra.mxu0 %v335
    %3992 = vmatprep.subr.bf16.mxu0 0
    %3993 = vmatpush2.bf16.msra.mxu0 0
    %3994 = vmatprep.subr.bf16.mxu0 0
    %3995 = vmatpush2.bf16.msra.mxu0 0
    %3996 = vmatprep.subr.bf16.mxu0 0
    %3997 = vmatpush2.bf16.msra.mxu0 0
    %3998 = vmatprep.subr.bf16.mxu0 0
    %3999 = vmatpush2.bf16.msra.mxu0 0
    %4000 = vmatprep.subr.bf16.mxu0 0
    %4001 = vmatpush2.bf16.msra.mxu0 0
    %4002 = vmatprep.subr.bf16.mxu0 0
    %4003 = vmatpush2.bf16.msra.mxu0 0
    %4004 = vmatprep.subr.bf16.mxu0 0
    %4005 = vmatpush2.bf16.msra.mxu0 0
    %4006 = vmatprep.subr.bf16.mxu0 0
    %4007 = vmatpush2.bf16.msra.mxu0 0
    %4008 = vmatprep.mubr.bf16.mxu0 0
    %4009 = vmatmul.mubr.bf16.gmra.mxu0 %v3894
    %v4010 = vpop.f32.mrf.mxu0
    %v4011 = vadd.f32 %v3971, %v4010
    %v4012 = vpop.f32.mrf.mxu0
    %v4013 = vpop.f32.mrf.mxu0
    %v4014 = vpop.f32.mrf.mxu0
    %4015 = vdwg.mxu0
    %v4016 = vpack.c.bf16 %v4011, %v4011
    %v4017 = vld [vmem:[%s2 + $0x500] sm:$0xff]
    %v4018 = vld [vmem:[%s2 + $0x508] sm:$0xff]
    %v4019 = vld [vmem:[%s2 + $0x510] sm:$0xff]
    %v4020 = vld [vmem:[%s2 + $0x518] sm:$0xff]
    %v4021 = vld [vmem:[%s2 + $0x520] sm:$0xff]
    %v4022 = vld [vmem:[%s2 + $0x528] sm:$0xff]
    %v4023 = vld [vmem:[%s2 + $0x530] sm:$0xff]
    %v4024 = vld [vmem:[%s2 + $0x538] sm:$0xff]
    %v4025 = vld [vmem:[%s2 + $0x540] sm:$0xff]
    %v4026 = vld [vmem:[%s2 + $0x548] sm:$0xff]
    %v4027 = vld [vmem:[%s2 + $0x550] sm:$0xff]
    %v4028 = vld [vmem:[%s2 + $0x558] sm:$0xff]
    %v4029 = vld [vmem:[%s2 + $0x560] sm:$0xff]
    %v4030 = vld [vmem:[%s2 + $0x568] sm:$0xff]
    %v4031 = vld [vmem:[%s2 + $0x570] sm:$0xff]
    %v4032 = vld [vmem:[%s2 + $0x578] sm:$0xff]
    %v4049 = vunpack.c.l.b16 %v4017
    %v4050 = vunpack.c.h.b16 %v4017
    %v4051 = vunpack.c.l.b16 %v4018
    %v4052 = vunpack.c.h.b16 %v4018
    %v4053 = vunpack.c.l.b16 %v4019
    %v4054 = vunpack.c.h.b16 %v4019
    %v4055 = vunpack.c.l.b16 %v4020
    %v4056 = vunpack.c.h.b16 %v4020
    %v4057 = vunpack.c.l.b16 %v4021
    %v4058 = vunpack.c.h.b16 %v4021
    %v4059 = vunpack.c.l.b16 %v4022
    %v4060 = vunpack.c.h.b16 %v4022
    %v4061 = vunpack.c.l.b16 %v4023
    %v4062 = vunpack.c.h.b16 %v4023
    %v4063 = vunpack.c.l.b16 %v4024
    %v4064 = vunpack.c.h.b16 %v4024
    %v4065 = vunpack.c.l.b16 %v4025
    %v4066 = vunpack.c.h.b16 %v4025
    %v4067 = vunpack.c.l.b16 %v4026
    %v4068 = vunpack.c.h.b16 %v4026
    %v4069 = vunpack.c.l.b16 %v4027
    %v4070 = vunpack.c.h.b16 %v4027
    %v4071 = vunpack.c.l.b16 %v4028
    %v4072 = vunpack.c.h.b16 %v4028
    %v4073 = vunpack.c.l.b16 %v4029
    %v4074 = vunpack.c.h.b16 %v4029
    %v4075 = vunpack.c.l.b16 %v4030
    %v4076 = vunpack.c.h.b16 %v4030
    %v4077 = vunpack.c.l.b16 %v4031
    %v4078 = vunpack.c.h.b16 %v4031
    %v4079 = vunpack.c.l.b16 %v4032
    %v4080 = vunpack.c.h.b16 %v4032
    %v4081 = vpack.c.b16 %v4053, %v4049
    %v4082 = vpack.c.b16 %v4054, %v4050
    %v4083 = vpack.c.b16 %v4055, %v4051
    %v4084 = vpack.c.b16 %v4056, %v4052
    %v4085 = vpack.c.b16 %v4061, %v4057
    %v4086 = vpack.c.b16 %v4062, %v4058
    %v4087 = vpack.c.b16 %v4063, %v4059
    %v4088 = vpack.c.b16 %v4064, %v4060
    %v4089 = vpack.c.b16 %v4069, %v4065
    %v4090 = vpack.c.b16 %v4070, %v4066
    %v4091 = vpack.c.b16 %v4071, %v4067
    %v4092 = vpack.c.b16 %v4072, %v4068
    %v4093 = vpack.c.b16 %v4077, %v4073
    %v4094 = vpack.c.b16 %v4078, %v4074
    %v4095 = vpack.c.b16 %v4079, %v4075
    %v4096 = vpack.c.b16 %v4080, %v4076
    %v4114 = vsel %vm375, %v4016, 0
    %4116 = vmatprep.subr.bf16.mxu0 0
    %4117 = vmatpush1.bf16.msra.mxu0 0
    %4118 = vmatprep.subr.bf16.mxu0 0
    %4119 = vmatpush1.bf16.msra.mxu0 0
    %4120 = vmatprep.subr.bf16.mxu0 0
    %4121 = vmatpush1.bf16.msra.mxu0 0
    %4122 = vmatprep.subr.bf16.mxu0 0
    %4123 = vmatpush1.bf16.msra.mxu0 0
    %4124 = vmatprep.subr.bf16.mxu0 %v4094
    %4125 = vmatpush1.bf16.msra.mxu0 %v4093
    %4126 = vmatprep.subr.bf16.mxu0 %v4090
    %4127 = vmatpush1.bf16.msra.mxu0 %v4089
    %4128 = vmatprep.subr.bf16.mxu0 %v4086
    %4129 = vmatpush1.bf16.msra.mxu0 %v4085
    %4130 = vmatprep.subr.bf16.mxu0 %v4082
    %4131 = vmatpush1.bf16.msra.mxu0 %v4081
    %4132 = vmatprep.subr.bf16.mxu0 0
    %4133 = vmatpush2.bf16.msra.mxu0 0
    %4134 = vmatprep.subr.bf16.mxu0 0
    %4135 = vmatpush2.bf16.msra.mxu0 0
    %4136 = vmatprep.subr.bf16.mxu0 0
    %4137 = vmatpush2.bf16.msra.mxu0 0
    %4138 = vmatprep.subr.bf16.mxu0 0
    %4139 = vmatpush2.bf16.msra.mxu0 0
    %4140 = vmatprep.subr.bf16.mxu0 0
    %4141 = vmatpush2.bf16.msra.mxu0 0
    %4142 = vmatprep.subr.bf16.mxu0 0
    %4143 = vmatpush2.bf16.msra.mxu0 0
    %4144 = vmatprep.subr.bf16.mxu0 0
    %4145 = vmatpush2.bf16.msra.mxu0 0
    %4146 = vmatprep.subr.bf16.mxu0 0
    %4147 = vmatpush2.bf16.msra.mxu0 0
    %4148 = vmatprep.mubr.bf16.mxu0 0
    %4149 = vmatmul.mubr.bf16.gmra.mxu0 %v4114
    %v4150 = vpop.f32.mrf.mxu0
    %v4151 = vadd.f32 0.0, %v4150
    %v4152 = vpop.f32.mrf.mxu0
    %v4153 = vadd.f32 0.0, %v4152
    %v4154 = vpop.f32.mrf.mxu0
    %v4155 = vpop.f32.mrf.mxu0
    %4156 = vdwg.mxu0
    %4157 = vmatprep.subr.bf16.mxu0 0
    %4158 = vmatpush1.bf16.msra.mxu0 0
    %4159 = vmatprep.subr.bf16.mxu0 0
    %4160 = vmatpush1.bf16.msra.mxu0 0
    %4161 = vmatprep.subr.bf16.mxu0 0
    %4162 = vmatpush1.bf16.msra.mxu0 0
    %4163 = vmatprep.subr.bf16.mxu0 0
    %4164 = vmatpush1.bf16.msra.mxu0 0
    %4165 = vmatprep.subr.bf16.mxu0 %v4096
    %4166 = vmatpush1.bf16.msra.mxu0 %v4095
    %4167 = vmatprep.subr.bf16.mxu0 %v4092
    %4168 = vmatpush1.bf16.msra.mxu0 %v4091
    %4169 = vmatprep.subr.bf16.mxu0 %v4088
    %4170 = vmatpush1.bf16.msra.mxu0 %v4087
    %4171 = vmatprep.subr.bf16.mxu0 %v4084
    %4172 = vmatpush1.bf16.msra.mxu0 %v4083
    %4173 = vmatprep.subr.bf16.mxu0 0
    %4174 = vmatpush2.bf16.msra.mxu0 0
    %4175 = vmatprep.subr.bf16.mxu0 0
    %4176 = vmatpush2.bf16.msra.mxu0 0
    %4177 = vmatprep.subr.bf16.mxu0 0
    %4178 = vmatpush2.bf16.msra.mxu0 0
    %4179 = vmatprep.subr.bf16.mxu0 0
    %4180 = vmatpush2.bf16.msra.mxu0 0
    %4181 = vmatprep.subr.bf16.mxu0 0
    %4182 = vmatpush2.bf16.msra.mxu0 0
    %4183 = vmatprep.subr.bf16.mxu0 0
    %4184 = vmatpush2.bf16.msra.mxu0 0
    %4185 = vmatprep.subr.bf16.mxu0 0
    %4186 = vmatpush2.bf16.msra.mxu0 0
    %4187 = vmatprep.subr.bf16.mxu0 0
    %4188 = vmatpush2.bf16.msra.mxu0 0
    %4189 = vmatprep.mubr.bf16.mxu0 0
    %4190 = vmatmul.mubr.bf16.gmra.mxu0 %v4114
    %v4191 = vpop.f32.mrf.mxu0
    %v4192 = vadd.f32 0.0, %v4191
    %v4193 = vpop.f32.mrf.mxu0
    %v4194 = vadd.f32 0.0, %v4193
    %v4195 = vpop.f32.mrf.mxu0
    %v4196 = vpop.f32.mrf.mxu0
    %4197 = vdwg.mxu0
    %v4198 = vadd.f32 %v3823, %v4151
    %v4199 = vadd.f32 %v3824, %v4153
    %v4200 = vadd.f32 %v3825, %v4192
    %v4201 = vadd.f32 %v3826, %v4194
    %v4202 = vrot.slane %v3859, 3
    %v4203 = vrot.slane %v3864, 2
    %v4204 = vsel %vm140, %v4203, %v4202
    %v4205 = vrot.slane %v3860, 3
    %v4206 = vrot.slane %v3865, 2
    %v4207 = vsel %vm140, %v4206, %v4205
    %v4208 = vrot.slane %v3861, 3
    %v4209 = vrot.slane %v3866, 2
    %v4210 = vsel %vm140, %v4209, %v4208
    %v4211 = vrot.slane %v3862, 3
    %v4212 = vrot.slane %v3867, 2
    %v4213 = vsel %vm140, %v4212, %v4211
    %v4214 = vrot.slane %v3863, 3
    %v4215 = vrot.slane %v3868, 2
    %v4216 = vsel %vm140, %v4215, %v4214
    %v4217 = vpack.c.b16 %v4204, %v4204
    %v4218 = vpack.c.b16 %v4207, %v4207
    %v4219 = vpack.c.b16 %v4210, %v4210
    %v4220 = vpack.c.b16 %v4213, %v4213
    %v4221 = vpack.c.b16 %v4216, %v4216
    %v4227 = vsel %vm375, %v4221, 0
    %4229 = vmatprep.subr.bf16.mxu0 0
    %4230 = vmatpush1.bf16.msra.mxu0 %v310
    %4231 = vmatprep.subr.bf16.mxu0 0
    %4232 = vmatpush1.bf16.msra.mxu0 %v309
    %4233 = vmatprep.subr.bf16.mxu0 0
    %4234 = vmatpush1.bf16.msra.mxu0 %v308
    %4235 = vmatprep.subr.bf16.mxu0 0
    %4236 = vmatpush1.bf16.msra.mxu0 %v307
    %4237 = vmatprep.subr.bf16.mxu0 0
    %4238 = vmatpush1.bf16.msra.mxu0 %v306
    %4239 = vmatprep.subr.bf16.mxu0 0
    %4240 = vmatpush1.bf16.msra.mxu0 %v305
    %4241 = vmatprep.subr.bf16.mxu0 0
    %4242 = vmatpush1.bf16.msra.mxu0 %v304
    %4243 = vmatprep.subr.bf16.mxu0 0
    %4244 = vmatpush1.bf16.msra.mxu0 %v303
    %4245 = vmatprep.subr.bf16.mxu0 0
    %4246 = vmatpush2.bf16.msra.mxu0 %v318
    %4247 = vmatprep.subr.bf16.mxu0 0
    %4248 = vmatpush2.bf16.msra.mxu0 %v317
    %4249 = vmatprep.subr.bf16.mxu0 0
    %4250 = vmatpush2.bf16.msra.mxu0 %v316
    %4251 = vmatprep.subr.bf16.mxu0 0
    %4252 = vmatpush2.bf16.msra.mxu0 %v315
    %4253 = vmatprep.subr.bf16.mxu0 0
    %4254 = vmatpush2.bf16.msra.mxu0 %v314
    %4255 = vmatprep.subr.bf16.mxu0 0
    %4256 = vmatpush2.bf16.msra.mxu0 %v313
    %4257 = vmatprep.subr.bf16.mxu0 0
    %4258 = vmatpush2.bf16.msra.mxu0 %v312
    %4259 = vmatprep.subr.bf16.mxu0 0
    %4260 = vmatpush2.bf16.msra.mxu0 %v311
    %4261 = vmatprep.mubr.bf16.mxu0 %v4218
    %4262 = vmatmul.mubr.bf16.gmra.mxu0 %v4217
    %v4263 = vpop.f32.mrf.mxu0
    %v4264 = vadd.f32 0.0, %v4263
    %v4265 = vpop.f32.mrf.mxu0
    %v4266 = vpop.f32.mrf.mxu0
    %v4267 = vpop.f32.mrf.mxu0
    %4268 = vdwg.mxu0
    %4269 = vmatprep.subr.bf16.mxu0 0
    %4270 = vmatpush1.bf16.msra.mxu0 %v326
    %4271 = vmatprep.subr.bf16.mxu0 0
    %4272 = vmatpush1.bf16.msra.mxu0 %v325
    %4273 = vmatprep.subr.bf16.mxu0 0
    %4274 = vmatpush1.bf16.msra.mxu0 %v324
    %4275 = vmatprep.subr.bf16.mxu0 0
    %4276 = vmatpush1.bf16.msra.mxu0 %v323
    %4277 = vmatprep.subr.bf16.mxu0 0
    %4278 = vmatpush1.bf16.msra.mxu0 %v322
    %4279 = vmatprep.subr.bf16.mxu0 0
    %4280 = vmatpush1.bf16.msra.mxu0 %v321
    %4281 = vmatprep.subr.bf16.mxu0 0
    %4282 = vmatpush1.bf16.msra.mxu0 %v320
    %4283 = vmatprep.subr.bf16.mxu0 0
    %4284 = vmatpush1.bf16.msra.mxu0 %v319
    %4285 = vmatprep.subr.bf16.mxu0 0
    %4286 = vmatpush2.bf16.msra.mxu0 %v334
    %4287 = vmatprep.subr.bf16.mxu0 0
    %4288 = vmatpush2.bf16.msra.mxu0 %v333
    %4289 = vmatprep.subr.bf16.mxu0 0
    %4290 = vmatpush2.bf16.msra.mxu0 %v332
    %4291 = vmatprep.subr.bf16.mxu0 0
    %4292 = vmatpush2.bf16.msra.mxu0 %v331
    %4293 = vmatprep.subr.bf16.mxu0 0
    %4294 = vmatpush2.bf16.msra.mxu0 %v330
    %4295 = vmatprep.subr.bf16.mxu0 0
    %4296 = vmatpush2.bf16.msra.mxu0 %v329
    %4297 = vmatprep.subr.bf16.mxu0 0
    %4298 = vmatpush2.bf16.msra.mxu0 %v328
    %4299 = vmatprep.subr.bf16.mxu0 0
    %4300 = vmatpush2.bf16.msra.mxu0 %v327
    %4301 = vmatprep.mubr.bf16.mxu0 %v4220
    %4302 = vmatmul.mubr.bf16.gmra.mxu0 %v4219
    %v4303 = vpop.f32.mrf.mxu0
    %v4304 = vadd.f32 %v4264, %v4303
    %v4305 = vpop.f32.mrf.mxu0
    %v4306 = vpop.f32.mrf.mxu0
    %v4307 = vpop.f32.mrf.mxu0
    %4308 = vdwg.mxu0
    %4309 = vmatprep.subr.bf16.mxu0 0
    %4310 = vmatpush1.bf16.msra.mxu0 0
    %4311 = vmatprep.subr.bf16.mxu0 0
    %4312 = vmatpush1.bf16.msra.mxu0 0
    %4313 = vmatprep.subr.bf16.mxu0 0
    %4314 = vmatpush1.bf16.msra.mxu0 0
    %4315 = vmatprep.subr.bf16.mxu0 0
    %4316 = vmatpush1.bf16.msra.mxu0 0
    %4317 = vmatprep.subr.bf16.mxu0 0
    %4318 = vmatpush1.bf16.msra.mxu0 %v338
    %4319 = vmatprep.subr.bf16.mxu0 0
    %4320 = vmatpush1.bf16.msra.mxu0 %v337
    %4321 = vmatprep.subr.bf16.mxu0 0
    %4322 = vmatpush1.bf16.msra.mxu0 %v336
    %4323 = vmatprep.subr.bf16.mxu0 0
    %4324 = vmatpush1.bf16.msra.mxu0 %v335
    %4325 = vmatprep.subr.bf16.mxu0 0
    %4326 = vmatpush2.bf16.msra.mxu0 0
    %4327 = vmatprep.subr.bf16.mxu0 0
    %4328 = vmatpush2.bf16.msra.mxu0 0
    %4329 = vmatprep.subr.bf16.mxu0 0
    %4330 = vmatpush2.bf16.msra.mxu0 0
    %4331 = vmatprep.subr.bf16.mxu0 0
    %4332 = vmatpush2.bf16.msra.mxu0 0
    %4333 = vmatprep.subr.bf16.mxu0 0
    %4334 = vmatpush2.bf16.msra.mxu0 0
    %4335 = vmatprep.subr.bf16.mxu0 0
    %4336 = vmatpush2.bf16.msra.mxu0 0
    %4337 = vmatprep.subr.bf16.mxu0 0
    %4338 = vmatpush2.bf16.msra.mxu0 0
    %4339 = vmatprep.subr.bf16.mxu0 0
    %4340 = vmatpush2.bf16.msra.mxu0 0
    %4341 = vmatprep.mubr.bf16.mxu0 0
    %4342 = vmatmul.mubr.bf16.gmra.mxu0 %v4227
    %v4343 = vpop.f32.mrf.mxu0
    %v4344 = vadd.f32 %v4304, %v4343
    %v4345 = vpop.f32.mrf.mxu0
    %v4346 = vpop.f32.mrf.mxu0
    %v4347 = vpop.f32.mrf.mxu0
    %4348 = vdwg.mxu0
    %v4349 = vpack.c.bf16 %v4344, %v4344
    %v4350 = vld [vmem:[%s2 + $0x580] sm:$0xff]
    %v4351 = vld [vmem:[%s2 + $0x588] sm:$0xff]
    %v4352 = vld [vmem:[%s2 + $0x590] sm:$0xff]
    %v4353 = vld [vmem:[%s2 + $0x598] sm:$0xff]
    %v4354 = vld [vmem:[%s2 + $0x5a0] sm:$0xff]
    %v4355 = vld [vmem:[%s2 + $0x5a8] sm:$0xff]
    %v4356 = vld [vmem:[%s2 + $0x5b0] sm:$0xff]
    %v4357 = vld [vmem:[%s2 + $0x5b8] sm:$0xff]
    %v4358 = vld [vmem:[%s2 + $0x5c0] sm:$0xff]
    %v4359 = vld [vmem:[%s2 + $0x5c8] sm:$0xff]
    %v4360 = vld [vmem:[%s2 + $0x5d0] sm:$0xff]
    %v4361 = vld [vmem:[%s2 + $0x5d8] sm:$0xff]
    %v4362 = vld [vmem:[%s2 + $0x5e0] sm:$0xff]
    %v4363 = vld [vmem:[%s2 + $0x5e8] sm:$0xff]
    %v4364 = vld [vmem:[%s2 + $0x5f0] sm:$0xff]
    %v4365 = vld [vmem:[%s2 + $0x5f8] sm:$0xff]
    %v4382 = vunpack.c.l.b16 %v4350
    %v4383 = vunpack.c.h.b16 %v4350
    %v4384 = vunpack.c.l.b16 %v4351
    %v4385 = vunpack.c.h.b16 %v4351
    %v4386 = vunpack.c.l.b16 %v4352
    %v4387 = vunpack.c.h.b16 %v4352
    %v4388 = vunpack.c.l.b16 %v4353
    %v4389 = vunpack.c.h.b16 %v4353
    %v4390 = vunpack.c.l.b16 %v4354
    %v4391 = vunpack.c.h.b16 %v4354
    %v4392 = vunpack.c.l.b16 %v4355
    %v4393 = vunpack.c.h.b16 %v4355
    %v4394 = vunpack.c.l.b16 %v4356
    %v4395 = vunpack.c.h.b16 %v4356
    %v4396 = vunpack.c.l.b16 %v4357
    %v4397 = vunpack.c.h.b16 %v4357
    %v4398 = vunpack.c.l.b16 %v4358
    %v4399 = vunpack.c.h.b16 %v4358
    %v4400 = vunpack.c.l.b16 %v4359
    %v4401 = vunpack.c.h.b16 %v4359
    %v4402 = vunpack.c.l.b16 %v4360
    %v4403 = vunpack.c.h.b16 %v4360
    %v4404 = vunpack.c.l.b16 %v4361
    %v4405 = vunpack.c.h.b16 %v4361
    %v4406 = vunpack.c.l.b16 %v4362
    %v4407 = vunpack.c.h.b16 %v4362
    %v4408 = vunpack.c.l.b16 %v4363
    %v4409 = vunpack.c.h.b16 %v4363
    %v4410 = vunpack.c.l.b16 %v4364
    %v4411 = vunpack.c.h.b16 %v4364
    %v4412 = vunpack.c.l.b16 %v4365
    %v4413 = vunpack.c.h.b16 %v4365
    %v4414 = vpack.c.b16 %v4386, %v4382
    %v4415 = vpack.c.b16 %v4387, %v4383
    %v4416 = vpack.c.b16 %v4388, %v4384
    %v4417 = vpack.c.b16 %v4389, %v4385
    %v4418 = vpack.c.b16 %v4394, %v4390
    %v4419 = vpack.c.b16 %v4395, %v4391
    %v4420 = vpack.c.b16 %v4396, %v4392
    %v4421 = vpack.c.b16 %v4397, %v4393
    %v4422 = vpack.c.b16 %v4402, %v4398
    %v4423 = vpack.c.b16 %v4403, %v4399
    %v4424 = vpack.c.b16 %v4404, %v4400
    %v4425 = vpack.c.b16 %v4405, %v4401
    %v4426 = vpack.c.b16 %v4410, %v4406
    %v4427 = vpack.c.b16 %v4411, %v4407
    %v4428 = vpack.c.b16 %v4412, %v4408
    %v4429 = vpack.c.b16 %v4413, %v4409
    %v4447 = vsel %vm375, %v4349, 0
    %4449 = vmatprep.subr.bf16.mxu0 0
    %4450 = vmatpush1.bf16.msra.mxu0 0
    %4451 = vmatprep.subr.bf16.mxu0 0
    %4452 = vmatpush1.bf16.msra.mxu0 0
    %4453 = vmatprep.subr.bf16.mxu0 0
    %4454 = vmatpush1.bf16.msra.mxu0 0
    %4455 = vmatprep.subr.bf16.mxu0 0
    %4456 = vmatpush1.bf16.msra.mxu0 0
    %4457 = vmatprep.subr.bf16.mxu0 %v4427
    %4458 = vmatpush1.bf16.msra.mxu0 %v4426
    %4459 = vmatprep.subr.bf16.mxu0 %v4423
    %4460 = vmatpush1.bf16.msra.mxu0 %v4422
    %4461 = vmatprep.subr.bf16.mxu0 %v4419
    %4462 = vmatpush1.bf16.msra.mxu0 %v4418
    %4463 = vmatprep.subr.bf16.mxu0 %v4415
    %4464 = vmatpush1.bf16.msra.mxu0 %v4414
    %4465 = vmatprep.subr.bf16.mxu0 0
    %4466 = vmatpush2.bf16.msra.mxu0 0
    %4467 = vmatprep.subr.bf16.mxu0 0
    %4468 = vmatpush2.bf16.msra.mxu0 0
    %4469 = vmatprep.subr.bf16.mxu0 0
    %4470 = vmatpush2.bf16.msra.mxu0 0
    %4471 = vmatprep.subr.bf16.mxu0 0
    %4472 = vmatpush2.bf16.msra.mxu0 0
    %4473 = vmatprep.subr.bf16.mxu0 0
    %4474 = vmatpush2.bf16.msra.mxu0 0
    %4475 = vmatprep.subr.bf16.mxu0 0
    %4476 = vmatpush2.bf16.msra.mxu0 0
    %4477 = vmatprep.subr.bf16.mxu0 0
    %4478 = vmatpush2.bf16.msra.mxu0 0
    %4479 = vmatprep.subr.bf16.mxu0 0
    %4480 = vmatpush2.bf16.msra.mxu0 0
    %4481 = vmatprep.mubr.bf16.mxu0 0
    %4482 = vmatmul.mubr.bf16.gmra.mxu0 %v4447
    %v4483 = vpop.f32.mrf.mxu0
    %v4484 = vadd.f32 0.0, %v4483
    %v4485 = vpop.f32.mrf.mxu0
    %v4486 = vadd.f32 0.0, %v4485
    %v4487 = vpop.f32.mrf.mxu0
    %v4488 = vpop.f32.mrf.mxu0
    %4489 = vdwg.mxu0
    %4490 = vmatprep.subr.bf16.mxu0 0
    %4491 = vmatpush1.bf16.msra.mxu0 0
    %4492 = vmatprep.subr.bf16.mxu0 0
    %4493 = vmatpush1.bf16.msra.mxu0 0
    %4494 = vmatprep.subr.bf16.mxu0 0
    %4495 = vmatpush1.bf16.msra.mxu0 0
    %4496 = vmatprep.subr.bf16.mxu0 0
    %4497 = vmatpush1.bf16.msra.mxu0 0
    %4498 = vmatprep.subr.bf16.mxu0 %v4429
    %4499 = vmatpush1.bf16.msra.mxu0 %v4428
    %4500 = vmatprep.subr.bf16.mxu0 %v4425
    %4501 = vmatpush1.bf16.msra.mxu0 %v4424
    %4502 = vmatprep.subr.bf16.mxu0 %v4421
    %4503 = vmatpush1.bf16.msra.mxu0 %v4420
    %4504 = vmatprep.subr.bf16.mxu0 %v4417
    %4505 = vmatpush1.bf16.msra.mxu0 %v4416
    %4506 = vmatprep.subr.bf16.mxu0 0
    %4507 = vmatpush2.bf16.msra.mxu0 0
    %4508 = vmatprep.subr.bf16.mxu0 0
    %4509 = vmatpush2.bf16.msra.mxu0 0
    %4510 = vmatprep.subr.bf16.mxu0 0
    %4511 = vmatpush2.bf16.msra.mxu0 0
    %4512 = vmatprep.subr.bf16.mxu0 0
    %4513 = vmatpush2.bf16.msra.mxu0 0
    %4514 = vmatprep.subr.bf16.mxu0 0
    %4515 = vmatpush2.bf16.msra.mxu0 0
    %4516 = vmatprep.subr.bf16.mxu0 0
    %4517 = vmatpush2.bf16.msra.mxu0 0
    %4518 = vmatprep.subr.bf16.mxu0 0
    %4519 = vmatpush2.bf16.msra.mxu0 0
    %4520 = vmatprep.subr.bf16.mxu0 0
    %4521 = vmatpush2.bf16.msra.mxu0 0
    %4522 = vmatprep.mubr.bf16.mxu0 0
    %4523 = vmatmul.mubr.bf16.gmra.mxu0 %v4447
    %v4524 = vpop.f32.mrf.mxu0
    %v4525 = vadd.f32 0.0, %v4524
    %v4526 = vpop.f32.mrf.mxu0
    %v4527 = vadd.f32 0.0, %v4526
    %v4528 = vpop.f32.mrf.mxu0
    %v4529 = vpop.f32.mrf.mxu0
    %4530 = vdwg.mxu0
    %v4531 = vadd.f32 %v4198, %v4484
    %v4532 = vadd.f32 %v4199, %v4486
    %v4533 = vadd.f32 %v4200, %v4525
    %v4534 = vadd.f32 %v4201, %v4527
    %v4535 = vld [vmem:[%s0 + $0x14] sm:$0x44]
    %v4536 = vld [vmem:[%s0 + $0x1c] sm:$0x44]
    %v4537 = vld [vmem:[%s0 + $0x24] sm:$0x4]
    %v4538 = vld [vmem:[%s0 + $0x3c] sm:$0x44]
    %v4539 = vld [vmem:[%s0 + $0x44] sm:$0x44]
    %v4540 = vld [vmem:[%s0 + $0x4c] sm:$0x4]
    %v4547 = vunpack.c.l.b16 %v4535
    %v4548 = vunpack.c.h.b16 %v4535
    %v4549 = vunpack.c.l.b16 %v4536
    %v4550 = vunpack.c.h.b16 %v4536
    %v4551 = vunpack.c.l.b16 %v4537
    %v4552 = vunpack.c.l.b16 %v4538
    %v4553 = vunpack.c.h.b16 %v4538
    %v4554 = vunpack.c.l.b16 %v4539
    %v4555 = vunpack.c.h.b16 %v4539
    %v4556 = vunpack.c.l.b16 %v4540
    %v4557 = vpack.c.b16 %v4547, %v4547
    %v4558 = vpack.c.b16 %v4548, %v4548
    %v4559 = vpack.c.b16 %v4549, %v4549
    %v4560 = vpack.c.b16 %v4550, %v4550
    %v4561 = vpack.c.b16 %v4551, %v4551
    %v4562 = vpack.c.b16 %v4552, %v4552
    %v4563 = vpack.c.b16 %v4553, %v4553
    %v4564 = vpack.c.b16 %v4554, %v4554
    %v4565 = vpack.c.b16 %v4555, %v4555
    %v4566 = vpack.c.b16 %v4556, %v4556
    %v4567 = vunpack.c.l.b16 %v4557
    %v4568 = vunpack.c.l.b16 %v4558
    %v4569 = vunpack.c.l.b16 %v4559
    %v4570 = vunpack.c.l.b16 %v4560
    %v4571 = vunpack.c.l.b16 %v4561
    %v4572 = vunpack.c.l.b16 %v4562
    %v4573 = vunpack.c.l.b16 %v4563
    %v4574 = vunpack.c.l.b16 %v4564
    %v4575 = vunpack.c.l.b16 %v4565
    %v4576 = vunpack.c.l.b16 %v4566
    %v4577 = vrot.slane %v4567, 4
    %v4578 = vrot.slane %v4572, 3
    %v4579 = vsel %vm140, %v4578, %v4577
    %v4580 = vrot.slane %v4568, 4
    %v4581 = vrot.slane %v4573, 3
    %v4582 = vsel %vm140, %v4581, %v4580
    %v4583 = vrot.slane %v4569, 4
    %v4584 = vrot.slane %v4574, 3
    %v4585 = vsel %vm140, %v4584, %v4583
    %v4586 = vrot.slane %v4570, 4
    %v4587 = vrot.slane %v4575, 3
    %v4588 = vsel %vm140, %v4587, %v4586
    %v4589 = vrot.slane %v4571, 4
    %v4590 = vrot.slane %v4576, 3
    %v4591 = vsel %vm140, %v4590, %v4589
    %v4592 = vpack.c.b16 %v4579, %v4579
    %v4593 = vpack.c.b16 %v4582, %v4582
    %v4594 = vpack.c.b16 %v4585, %v4585
    %v4595 = vpack.c.b16 %v4588, %v4588
    %v4596 = vpack.c.b16 %v4591, %v4591
    %v4602 = vsel %vm375, %v4596, 0
    %4604 = vmatprep.subr.bf16.mxu0 0
    %4605 = vmatpush1.bf16.msra.mxu0 %v310
    %4606 = vmatprep.subr.bf16.mxu0 0
    %4607 = vmatpush1.bf16.msra.mxu0 %v309
    %4608 = vmatprep.subr.bf16.mxu0 0
    %4609 = vmatpush1.bf16.msra.mxu0 %v308
    %4610 = vmatprep.subr.bf16.mxu0 0
    %4611 = vmatpush1.bf16.msra.mxu0 %v307
    %4612 = vmatprep.subr.bf16.mxu0 0
    %4613 = vmatpush1.bf16.msra.mxu0 %v306
    %4614 = vmatprep.subr.bf16.mxu0 0
    %4615 = vmatpush1.bf16.msra.mxu0 %v305
    %4616 = vmatprep.subr.bf16.mxu0 0
    %4617 = vmatpush1.bf16.msra.mxu0 %v304
    %4618 = vmatprep.subr.bf16.mxu0 0
    %4619 = vmatpush1.bf16.msra.mxu0 %v303
    %4620 = vmatprep.subr.bf16.mxu0 0
    %4621 = vmatpush2.bf16.msra.mxu0 %v318
    %4622 = vmatprep.subr.bf16.mxu0 0
    %4623 = vmatpush2.bf16.msra.mxu0 %v317
    %4624 = vmatprep.subr.bf16.mxu0 0
    %4625 = vmatpush2.bf16.msra.mxu0 %v316
    %4626 = vmatprep.subr.bf16.mxu0 0
    %4627 = vmatpush2.bf16.msra.mxu0 %v315
    %4628 = vmatprep.subr.bf16.mxu0 0
    %4629 = vmatpush2.bf16.msra.mxu0 %v314
    %4630 = vmatprep.subr.bf16.mxu0 0
    %4631 = vmatpush2.bf16.msra.mxu0 %v313
    %4632 = vmatprep.subr.bf16.mxu0 0
    %4633 = vmatpush2.bf16.msra.mxu0 %v312
    %4634 = vmatprep.subr.bf16.mxu0 0
    %4635 = vmatpush2.bf16.msra.mxu0 %v311
    %4636 = vmatprep.mubr.bf16.mxu0 %v4593
    %4637 = vmatmul.mubr.bf16.gmra.mxu0 %v4592
    %v4638 = vpop.f32.mrf.mxu0
    %v4639 = vadd.f32 0.0, %v4638
    %v4640 = vpop.f32.mrf.mxu0
    %v4641 = vpop.f32.mrf.mxu0
    %v4642 = vpop.f32.mrf.mxu0
    %4643 = vdwg.mxu0
    %4644 = vmatprep.subr.bf16.mxu0 0
    %4645 = vmatpush1.bf16.msra.mxu0 %v326
    %4646 = vmatprep.subr.bf16.mxu0 0
    %4647 = vmatpush1.bf16.msra.mxu0 %v325
    %4648 = vmatprep.subr.bf16.mxu0 0
    %4649 = vmatpush1.bf16.msra.mxu0 %v324
    %4650 = vmatprep.subr.bf16.mxu0 0
    %4651 = vmatpush1.bf16.msra.mxu0 %v323
    %4652 = vmatprep.subr.bf16.mxu0 0
    %4653 = vmatpush1.bf16.msra.mxu0 %v322
    %4654 = vmatprep.subr.bf16.mxu0 0
    %4655 = vmatpush1.bf16.msra.mxu0 %v321
    %4656 = vmatprep.subr.bf16.mxu0 0
    %4657 = vmatpush1.bf16.msra.mxu0 %v320
    %4658 = vmatprep.subr.bf16.mxu0 0
    %4659 = vmatpush1.bf16.msra.mxu0 %v319
    %4660 = vmatprep.subr.bf16.mxu0 0
    %4661 = vmatpush2.bf16.msra.mxu0 %v334
    %4662 = vmatprep.subr.bf16.mxu0 0
    %4663 = vmatpush2.bf16.msra.mxu0 %v333
    %4664 = vmatprep.subr.bf16.mxu0 0
    %4665 = vmatpush2.bf16.msra.mxu0 %v332
    %4666 = vmatprep.subr.bf16.mxu0 0
    %4667 = vmatpush2.bf16.msra.mxu0 %v331
    %4668 = vmatprep.subr.bf16.mxu0 0
    %4669 = vmatpush2.bf16.msra.mxu0 %v330
    %4670 = vmatprep.subr.bf16.mxu0 0
    %4671 = vmatpush2.bf16.msra.mxu0 %v329
    %4672 = vmatprep.subr.bf16.mxu0 0
    %4673 = vmatpush2.bf16.msra.mxu0 %v328
    %4674 = vmatprep.subr.bf16.mxu0 0
    %4675 = vmatpush2.bf16.msra.mxu0 %v327
    %4676 = vmatprep.mubr.bf16.mxu0 %v4595
    %4677 = vmatmul.mubr.bf16.gmra.mxu0 %v4594
    %v4678 = vpop.f32.mrf.mxu0
    %v4679 = vadd.f32 %v4639, %v4678
    %v4680 = vpop.f32.mrf.mxu0
    %v4681 = vpop.f32.mrf.mxu0
    %v4682 = vpop.f32.mrf.mxu0
    %4683 = vdwg.mxu0
    %4684 = vmatprep.subr.bf16.mxu0 0
    %4685 = vmatpush1.bf16.msra.mxu0 0
    %4686 = vmatprep.subr.bf16.mxu0 0
    %4687 = vmatpush1.bf16.msra.mxu0 0
    %4688 = vmatprep.subr.bf16.mxu0 0
    %4689 = vmatpush1.bf16.msra.mxu0 0
    %4690 = vmatprep.subr.bf16.mxu0 0
    %4691 = vmatpush1.bf16.msra.mxu0 0
    %4692 = vmatprep.subr.bf16.mxu0 0
    %4693 = vmatpush1.bf16.msra.mxu0 %v338
    %4694 = vmatprep.subr.bf16.mxu0 0
    %4695 = vmatpush1.bf16.msra.mxu0 %v337
    %4696 = vmatprep.subr.bf16.mxu0 0
    %4697 = vmatpush1.bf16.msra.mxu0 %v336
    %4698 = vmatprep.subr.bf16.mxu0 0
    %4699 = vmatpush1.bf16.msra.mxu0 %v335
    %4700 = vmatprep.subr.bf16.mxu0 0
    %4701 = vmatpush2.bf16.msra.mxu0 0
    %4702 = vmatprep.subr.bf16.mxu0 0
    %4703 = vmatpush2.bf16.msra.mxu0 0
    %4704 = vmatprep.subr.bf16.mxu0 0
    %4705 = vmatpush2.bf16.msra.mxu0 0
    %4706 = vmatprep.subr.bf16.mxu0 0
    %4707 = vmatpush2.bf16.msra.mxu0 0
    %4708 = vmatprep.subr.bf16.mxu0 0
    %4709 = vmatpush2.bf16.msra.mxu0 0
    %4710 = vmatprep.subr.bf16.mxu0 0
    %4711 = vmatpush2.bf16.msra.mxu0 0
    %4712 = vmatprep.subr.bf16.mxu0 0
    %4713 = vmatpush2.bf16.msra.mxu0 0
    %4714 = vmatprep.subr.bf16.mxu0 0
    %4715 = vmatpush2.bf16.msra.mxu0 0
    %4716 = vmatprep.mubr.bf16.mxu0 0
    %4717 = vmatmul.mubr.bf16.gmra.mxu0 %v4602
    %v4718 = vpop.f32.mrf.mxu0
    %v4719 = vadd.f32 %v4679, %v4718
    %v4720 = vpop.f32.mrf.mxu0
    %v4721 = vpop.f32.mrf.mxu0
    %v4722 = vpop.f32.mrf.mxu0
    %4723 = vdwg.mxu0
    %v4724 = vpack.c.bf16 %v4719, %v4719
    %v4725 = vld [vmem:[%s2 + $0x600] sm:$0xff]
    %v4726 = vld [vmem:[%s2 + $0x608] sm:$0xff]
    %v4727 = vld [vmem:[%s2 + $0x610] sm:$0xff]
    %v4728 = vld [vmem:[%s2 + $0x618] sm:$0xff]
    %v4729 = vld [vmem:[%s2 + $0x620] sm:$0xff]
    %v4730 = vld [vmem:[%s2 + $0x628] sm:$0xff]
    %v4731 = vld [vmem:[%s2 + $0x630] sm:$0xff]
    %v4732 = vld [vmem:[%s2 + $0x638] sm:$0xff]
    %v4733 = vld [vmem:[%s2 + $0x640] sm:$0xff]
    %v4734 = vld [vmem:[%s2 + $0x648] sm:$0xff]
    %v4735 = vld [vmem:[%s2 + $0x650] sm:$0xff]
    %v4736 = vld [vmem:[%s2 + $0x658] sm:$0xff]
    %v4737 = vld [vmem:[%s2 + $0x660] sm:$0xff]
    %v4738 = vld [vmem:[%s2 + $0x668] sm:$0xff]
    %v4739 = vld [vmem:[%s2 + $0x670] sm:$0xff]
    %v4740 = vld [vmem:[%s2 + $0x678] sm:$0xff]
    %v4757 = vunpack.c.l.b16 %v4725
    %v4758 = vunpack.c.h.b16 %v4725
    %v4759 = vunpack.c.l.b16 %v4726
    %v4760 = vunpack.c.h.b16 %v4726
    %v4761 = vunpack.c.l.b16 %v4727
    %v4762 = vunpack.c.h.b16 %v4727
    %v4763 = vunpack.c.l.b16 %v4728
    %v4764 = vunpack.c.h.b16 %v4728
    %v4765 = vunpack.c.l.b16 %v4729
    %v4766 = vunpack.c.h.b16 %v4729
    %v4767 = vunpack.c.l.b16 %v4730
    %v4768 = vunpack.c.h.b16 %v4730
    %v4769 = vunpack.c.l.b16 %v4731
    %v4770 = vunpack.c.h.b16 %v4731
    %v4771 = vunpack.c.l.b16 %v4732
    %v4772 = vunpack.c.h.b16 %v4732
    %v4773 = vunpack.c.l.b16 %v4733
    %v4774 = vunpack.c.h.b16 %v4733
    %v4775 = vunpack.c.l.b16 %v4734
    %v4776 = vunpack.c.h.b16 %v4734
    %v4777 = vunpack.c.l.b16 %v4735
    %v4778 = vunpack.c.h.b16 %v4735
    %v4779 = vunpack.c.l.b16 %v4736
    %v4780 = vunpack.c.h.b16 %v4736
    %v4781 = vunpack.c.l.b16 %v4737
    %v4782 = vunpack.c.h.b16 %v4737
    %v4783 = vunpack.c.l.b16 %v4738
    %v4784 = vunpack.c.h.b16 %v4738
    %v4785 = vunpack.c.l.b16 %v4739
    %v4786 = vunpack.c.h.b16 %v4739
    %v4787 = vunpack.c.l.b16 %v4740
    %v4788 = vunpack.c.h.b16 %v4740
    %v4789 = vpack.c.b16 %v4761, %v4757
    %v4790 = vpack.c.b16 %v4762, %v4758
    %v4791 = vpack.c.b16 %v4763, %v4759
    %v4792 = vpack.c.b16 %v4764, %v4760
    %v4793 = vpack.c.b16 %v4769, %v4765
    %v4794 = vpack.c.b16 %v4770, %v4766
    %v4795 = vpack.c.b16 %v4771, %v4767
    %v4796 = vpack.c.b16 %v4772, %v4768
    %v4797 = vpack.c.b16 %v4777, %v4773
    %v4798 = vpack.c.b16 %v4778, %v4774
    %v4799 = vpack.c.b16 %v4779, %v4775
    %v4800 = vpack.c.b16 %v4780, %v4776
    %v4801 = vpack.c.b16 %v4785, %v4781
    %v4802 = vpack.c.b16 %v4786, %v4782
    %v4803 = vpack.c.b16 %v4787, %v4783
    %v4804 = vpack.c.b16 %v4788, %v4784
    %v4822 = vsel %vm375, %v4724, 0
    %4824 = vmatprep.subr.bf16.mxu0 0
    %4825 = vmatpush1.bf16.msra.mxu0 0
    %4826 = vmatprep.subr.bf16.mxu0 0
    %4827 = vmatpush1.bf16.msra.mxu0 0
    %4828 = vmatprep.subr.bf16.mxu0 0
    %4829 = vmatpush1.bf16.msra.mxu0 0
    %4830 = vmatprep.subr.bf16.mxu0 0
    %4831 = vmatpush1.bf16.msra.mxu0 0
    %4832 = vmatprep.subr.bf16.mxu0 %v4802
    %4833 = vmatpush1.bf16.msra.mxu0 %v4801
    %4834 = vmatprep.subr.bf16.mxu0 %v4798
    %4835 = vmatpush1.bf16.msra.mxu0 %v4797
    %4836 = vmatprep.subr.bf16.mxu0 %v4794
    %4837 = vmatpush1.bf16.msra.mxu0 %v4793
    %4838 = vmatprep.subr.bf16.mxu0 %v4790
    %4839 = vmatpush1.bf16.msra.mxu0 %v4789
    %4840 = vmatprep.subr.bf16.mxu0 0
    %4841 = vmatpush2.bf16.msra.mxu0 0
    %4842 = vmatprep.subr.bf16.mxu0 0
    %4843 = vmatpush2.bf16.msra.mxu0 0
    %4844 = vmatprep.subr.bf16.mxu0 0
    %4845 = vmatpush2.bf16.msra.mxu0 0
    %4846 = vmatprep.subr.bf16.mxu0 0
    %4847 = vmatpush2.bf16.msra.mxu0 0
    %4848 = vmatprep.subr.bf16.mxu0 0
    %4849 = vmatpush2.bf16.msra.mxu0 0
    %4850 = vmatprep.subr.bf16.mxu0 0
    %4851 = vmatpush2.bf16.msra.mxu0 0
    %4852 = vmatprep.subr.bf16.mxu0 0
    %4853 = vmatpush2.bf16.msra.mxu0 0
    %4854 = vmatprep.subr.bf16.mxu0 0
    %4855 = vmatpush2.bf16.msra.mxu0 0
    %4856 = vmatprep.mubr.bf16.mxu0 0
    %4857 = vmatmul.mubr.bf16.gmra.mxu0 %v4822
    %v4858 = vpop.f32.mrf.mxu0
    %v4859 = vadd.f32 0.0, %v4858
    %v4860 = vpop.f32.mrf.mxu0
    %v4861 = vadd.f32 0.0, %v4860
    %v4862 = vpop.f32.mrf.mxu0
    %v4863 = vpop.f32.mrf.mxu0
    %4864 = vdwg.mxu0
    %4865 = vmatprep.subr.bf16.mxu0 0
    %4866 = vmatpush1.bf16.msra.mxu0 0
    %4867 = vmatprep.subr.bf16.mxu0 0
    %4868 = vmatpush1.bf16.msra.mxu0 0
    %4869 = vmatprep.subr.bf16.mxu0 0
    %4870 = vmatpush1.bf16.msra.mxu0 0
    %4871 = vmatprep.subr.bf16.mxu0 0
    %4872 = vmatpush1.bf16.msra.mxu0 0
    %4873 = vmatprep.subr.bf16.mxu0 %v4804
    %4874 = vmatpush1.bf16.msra.mxu0 %v4803
    %4875 = vmatprep.subr.bf16.mxu0 %v4800
    %4876 = vmatpush1.bf16.msra.mxu0 %v4799
    %4877 = vmatprep.subr.bf16.mxu0 %v4796
    %4878 = vmatpush1.bf16.msra.mxu0 %v4795
    %4879 = vmatprep.subr.bf16.mxu0 %v4792
    %4880 = vmatpush1.bf16.msra.mxu0 %v4791
    %4881 = vmatprep.subr.bf16.mxu0 0
    %4882 = vmatpush2.bf16.msra.mxu0 0
    %4883 = vmatprep.subr.bf16.mxu0 0
    %4884 = vmatpush2.bf16.msra.mxu0 0
    %4885 = vmatprep.subr.bf16.mxu0 0
    %4886 = vmatpush2.bf16.msra.mxu0 0
    %4887 = vmatprep.subr.bf16.mxu0 0
    %4888 = vmatpush2.bf16.msra.mxu0 0
    %4889 = vmatprep.subr.bf16.mxu0 0
    %4890 = vmatpush2.bf16.msra.mxu0 0
    %4891 = vmatprep.subr.bf16.mxu0 0
    %4892 = vmatpush2.bf16.msra.mxu0 0
    %4893 = vmatprep.subr.bf16.mxu0 0
    %4894 = vmatpush2.bf16.msra.mxu0 0
    %4895 = vmatprep.subr.bf16.mxu0 0
    %4896 = vmatpush2.bf16.msra.mxu0 0
    %4897 = vmatprep.mubr.bf16.mxu0 0
    %4898 = vmatmul.mubr.bf16.gmra.mxu0 %v4822
    %v4899 = vpop.f32.mrf.mxu0
    %v4900 = vadd.f32 0.0, %v4899
    %v4901 = vpop.f32.mrf.mxu0
    %v4902 = vadd.f32 0.0, %v4901
    %v4903 = vpop.f32.mrf.mxu0
    %v4904 = vpop.f32.mrf.mxu0
    %4905 = vdwg.mxu0
    %v4906 = vadd.f32 %v4531, %v4859
    %v4907 = vadd.f32 %v4532, %v4861
    %v4908 = vadd.f32 %v4533, %v4900
    %v4909 = vadd.f32 %v4534, %v4902
    %v4910 = vrot.slane %v4567, 5
    %v4911 = vrot.slane %v4572, 4
    %v4912 = vsel %vm140, %v4911, %v4910
    %v4913 = vrot.slane %v4568, 5
    %v4914 = vrot.slane %v4573, 4
    %v4915 = vsel %vm140, %v4914, %v4913
    %v4916 = vrot.slane %v4569, 5
    %v4917 = vrot.slane %v4574, 4
    %v4918 = vsel %vm140, %v4917, %v4916
    %v4919 = vrot.slane %v4570, 5
    %v4920 = vrot.slane %v4575, 4
    %v4921 = vsel %vm140, %v4920, %v4919
    %v4922 = vrot.slane %v4571, 5
    %v4923 = vrot.slane %v4576, 4
    %v4924 = vsel %vm140, %v4923, %v4922
    %v4925 = vpack.c.b16 %v4912, %v4912
    %v4926 = vpack.c.b16 %v4915, %v4915
    %v4927 = vpack.c.b16 %v4918, %v4918
    %v4928 = vpack.c.b16 %v4921, %v4921
    %v4929 = vpack.c.b16 %v4924, %v4924
    %v4935 = vsel %vm375, %v4929, 0
    %4937 = vmatprep.subr.bf16.mxu0 0
    %4938 = vmatpush1.bf16.msra.mxu0 %v310
    %4939 = vmatprep.subr.bf16.mxu0 0
    %4940 = vmatpush1.bf16.msra.mxu0 %v309
    %4941 = vmatprep.subr.bf16.mxu0 0
    %4942 = vmatpush1.bf16.msra.mxu0 %v308
    %4943 = vmatprep.subr.bf16.mxu0 0
    %4944 = vmatpush1.bf16.msra.mxu0 %v307
    %4945 = vmatprep.subr.bf16.mxu0 0
    %4946 = vmatpush1.bf16.msra.mxu0 %v306
    %4947 = vmatprep.subr.bf16.mxu0 0
    %4948 = vmatpush1.bf16.msra.mxu0 %v305
    %4949 = vmatprep.subr.bf16.mxu0 0
    %4950 = vmatpush1.bf16.msra.mxu0 %v304
    %4951 = vmatprep.subr.bf16.mxu0 0
    %4952 = vmatpush1.bf16.msra.mxu0 %v303
    %4953 = vmatprep.subr.bf16.mxu0 0
    %4954 = vmatpush2.bf16.msra.mxu0 %v318
    %4955 = vmatprep.subr.bf16.mxu0 0
    %4956 = vmatpush2.bf16.msra.mxu0 %v317
    %4957 = vmatprep.subr.bf16.mxu0 0
    %4958 = vmatpush2.bf16.msra.mxu0 %v316
    %4959 = vmatprep.subr.bf16.mxu0 0
    %4960 = vmatpush2.bf16.msra.mxu0 %v315
    %4961 = vmatprep.subr.bf16.mxu0 0
    %4962 = vmatpush2.bf16.msra.mxu0 %v314
    %4963 = vmatprep.subr.bf16.mxu0 0
    %4964 = vmatpush2.bf16.msra.mxu0 %v313
    %4965 = vmatprep.subr.bf16.mxu0 0
    %4966 = vmatpush2.bf16.msra.mxu0 %v312
    %4967 = vmatprep.subr.bf16.mxu0 0
    %4968 = vmatpush2.bf16.msra.mxu0 %v311
    %4969 = vmatprep.mubr.bf16.mxu0 %v4926
    %4970 = vmatmul.mubr.bf16.gmra.mxu0 %v4925
    %v4971 = vpop.f32.mrf.mxu0
    %v4972 = vadd.f32 0.0, %v4971
    %v4973 = vpop.f32.mrf.mxu0
    %v4974 = vpop.f32.mrf.mxu0
    %v4975 = vpop.f32.mrf.mxu0
    %4976 = vdwg.mxu0
    %4977 = vmatprep.subr.bf16.mxu0 0
    %4978 = vmatpush1.bf16.msra.mxu0 %v326
    %4979 = vmatprep.subr.bf16.mxu0 0
    %4980 = vmatpush1.bf16.msra.mxu0 %v325
    %4981 = vmatprep.subr.bf16.mxu0 0
    %4982 = vmatpush1.bf16.msra.mxu0 %v324
    %4983 = vmatprep.subr.bf16.mxu0 0
    %4984 = vmatpush1.bf16.msra.mxu0 %v323
    %4985 = vmatprep.subr.bf16.mxu0 0
    %4986 = vmatpush1.bf16.msra.mxu0 %v322
    %4987 = vmatprep.subr.bf16.mxu0 0
    %4988 = vmatpush1.bf16.msra.mxu0 %v321
    %4989 = vmatprep.subr.bf16.mxu0 0
    %4990 = vmatpush1.bf16.msra.mxu0 %v320
    %4991 = vmatprep.subr.bf16.mxu0 0
    %4992 = vmatpush1.bf16.msra.mxu0 %v319
    %4993 = vmatprep.subr.bf16.mxu0 0
    %4994 = vmatpush2.bf16.msra.mxu0 %v334
    %4995 = vmatprep.subr.bf16.mxu0 0
    %4996 = vmatpush2.bf16.msra.mxu0 %v333
    %4997 = vmatprep.subr.bf16.mxu0 0
    %4998 = vmatpush2.bf16.msra.mxu0 %v332
    %4999 = vmatprep.subr.bf16.mxu0 0
    %5000 = vmatpush2.bf16.msra.mxu0 %v331
    %5001 = vmatprep.subr.bf16.mxu0 0
    %5002 = vmatpush2.bf16.msra.mxu0 %v330
    %5003 = vmatprep.subr.bf16.mxu0 0
    %5004 = vmatpush2.bf16.msra.mxu0 %v329
    %5005 = vmatprep.subr.bf16.mxu0 0
    %5006 = vmatpush2.bf16.msra.mxu0 %v328
    %5007 = vmatprep.subr.bf16.mxu0 0
    %5008 = vmatpush2.bf16.msra.mxu0 %v327
    %5009 = vmatprep.mubr.bf16.mxu0 %v4928
    %5010 = vmatmul.mubr.bf16.gmra.mxu0 %v4927
    %v5011 = vpop.f32.mrf.mxu0
    %v5012 = vadd.f32 %v4972, %v5011
    %v5013 = vpop.f32.mrf.mxu0
    %v5014 = vpop.f32.mrf.mxu0
    %v5015 = vpop.f32.mrf.mxu0
    %5016 = vdwg.mxu0
    %5017 = vmatprep.subr.bf16.mxu0 0
    %5018 = vmatpush1.bf16.msra.mxu0 0
    %5019 = vmatprep.subr.bf16.mxu0 0
    %5020 = vmatpush1.bf16.msra.mxu0 0
    %5021 = vmatprep.subr.bf16.mxu0 0
    %5022 = vmatpush1.bf16.msra.mxu0 0
    %5023 = vmatprep.subr.bf16.mxu0 0
    %5024 = vmatpush1.bf16.msra.mxu0 0
    %5025 = vmatprep.subr.bf16.mxu0 0
    %5026 = vmatpush1.bf16.msra.mxu0 %v338
    %5027 = vmatprep.subr.bf16.mxu0 0
    %5028 = vmatpush1.bf16.msra.mxu0 %v337
    %5029 = vmatprep.subr.bf16.mxu0 0
    %5030 = vmatpush1.bf16.msra.mxu0 %v336
    %5031 = vmatprep.subr.bf16.mxu0 0
    %5032 = vmatpush1.bf16.msra.mxu0 %v335
    %5033 = vmatprep.subr.bf16.mxu0 0
    %5034 = vmatpush2.bf16.msra.mxu0 0
    %5035 = vmatprep.subr.bf16.mxu0 0
    %5036 = vmatpush2.bf16.msra.mxu0 0
    %5037 = vmatprep.subr.bf16.mxu0 0
    %5038 = vmatpush2.bf16.msra.mxu0 0
    %5039 = vmatprep.subr.bf16.mxu0 0
    %5040 = vmatpush2.bf16.msra.mxu0 0
    %5041 = vmatprep.subr.bf16.mxu0 0
    %5042 = vmatpush2.bf16.msra.mxu0 0
    %5043 = vmatprep.subr.bf16.mxu0 0
    %5044 = vmatpush2.bf16.msra.mxu0 0
    %5045 = vmatprep.subr.bf16.mxu0 0
    %5046 = vmatpush2.bf16.msra.mxu0 0
    %5047 = vmatprep.subr.bf16.mxu0 0
    %5048 = vmatpush2.bf16.msra.mxu0 0
    %5049 = vmatprep.mubr.bf16.mxu0 0
    %5050 = vmatmul.mubr.bf16.gmra.mxu0 %v4935
    %v5051 = vpop.f32.mrf.mxu0
    %v5052 = vadd.f32 %v5012, %v5051
    %v5053 = vpop.f32.mrf.mxu0
    %v5054 = vpop.f32.mrf.mxu0
    %v5055 = vpop.f32.mrf.mxu0
    %5056 = vdwg.mxu0
    %v5057 = vpack.c.bf16 %v5052, %v5052
    %v5058 = vld [vmem:[%s2 + $0x680] sm:$0xff]
    %v5059 = vld [vmem:[%s2 + $0x688] sm:$0xff]
    %v5060 = vld [vmem:[%s2 + $0x690] sm:$0xff]
    %v5061 = vld [vmem:[%s2 + $0x698] sm:$0xff]
    %v5062 = vld [vmem:[%s2 + $0x6a0] sm:$0xff]
    %v5063 = vld [vmem:[%s2 + $0x6a8] sm:$0xff]
    %v5064 = vld [vmem:[%s2 + $0x6b0] sm:$0xff]
    %v5065 = vld [vmem:[%s2 + $0x6b8] sm:$0xff]
    %v5066 = vld [vmem:[%s2 + $0x6c0] sm:$0xff]
    %v5067 = vld [vmem:[%s2 + $0x6c8] sm:$0xff]
    %v5068 = vld [vmem:[%s2 + $0x6d0] sm:$0xff]
    %v5069 = vld [vmem:[%s2 + $0x6d8] sm:$0xff]
    %v5070 = vld [vmem:[%s2 + $0x6e0] sm:$0xff]
    %v5071 = vld [vmem:[%s2 + $0x6e8] sm:$0xff]
    %v5072 = vld [vmem:[%s2 + $0x6f0] sm:$0xff]
    %v5073 = vld [vmem:[%s2 + $0x6f8] sm:$0xff]
    %v5090 = vunpack.c.l.b16 %v5058
    %v5091 = vunpack.c.h.b16 %v5058
    %v5092 = vunpack.c.l.b16 %v5059
    %v5093 = vunpack.c.h.b16 %v5059
    %v5094 = vunpack.c.l.b16 %v5060
    %v5095 = vunpack.c.h.b16 %v5060
    %v5096 = vunpack.c.l.b16 %v5061
    %v5097 = vunpack.c.h.b16 %v5061
    %v5098 = vunpack.c.l.b16 %v5062
    %v5099 = vunpack.c.h.b16 %v5062
    %v5100 = vunpack.c.l.b16 %v5063
    %v5101 = vunpack.c.h.b16 %v5063
    %v5102 = vunpack.c.l.b16 %v5064
    %v5103 = vunpack.c.h.b16 %v5064
    %v5104 = vunpack.c.l.b16 %v5065
    %v5105 = vunpack.c.h.b16 %v5065
    %v5106 = vunpack.c.l.b16 %v5066
    %v5107 = vunpack.c.h.b16 %v5066
    %v5108 = vunpack.c.l.b16 %v5067
    %v5109 = vunpack.c.h.b16 %v5067
    %v5110 = vunpack.c.l.b16 %v5068
    %v5111 = vunpack.c.h.b16 %v5068
    %v5112 = vunpack.c.l.b16 %v5069
    %v5113 = vunpack.c.h.b16 %v5069
    %v5114 = vunpack.c.l.b16 %v5070
    %v5115 = vunpack.c.h.b16 %v5070
    %v5116 = vunpack.c.l.b16 %v5071
    %v5117 = vunpack.c.h.b16 %v5071
    %v5118 = vunpack.c.l.b16 %v5072
    %v5119 = vunpack.c.h.b16 %v5072
    %v5120 = vunpack.c.l.b16 %v5073
    %v5121 = vunpack.c.h.b16 %v5073
    %v5122 = vpack.c.b16 %v5094, %v5090
    %v5123 = vpack.c.b16 %v5095, %v5091
    %v5124 = vpack.c.b16 %v5096, %v5092
    %v5125 = vpack.c.b16 %v5097, %v5093
    %v5126 = vpack.c.b16 %v5102, %v5098
    %v5127 = vpack.c.b16 %v5103, %v5099
    %v5128 = vpack.c.b16 %v5104, %v5100
    %v5129 = vpack.c.b16 %v5105, %v5101
    %v5130 = vpack.c.b16 %v5110, %v5106
    %v5131 = vpack.c.b16 %v5111, %v5107
    %v5132 = vpack.c.b16 %v5112, %v5108
    %v5133 = vpack.c.b16 %v5113, %v5109
    %v5134 = vpack.c.b16 %v5118, %v5114
    %v5135 = vpack.c.b16 %v5119, %v5115
    %v5136 = vpack.c.b16 %v5120, %v5116
    %v5137 = vpack.c.b16 %v5121, %v5117
    %v5155 = vsel %vm375, %v5057, 0
    %5157 = vmatprep.subr.bf16.mxu0 0
    %5158 = vmatpush1.bf16.msra.mxu0 0
    %5159 = vmatprep.subr.bf16.mxu0 0
    %5160 = vmatpush1.bf16.msra.mxu0 0
    %5161 = vmatprep.subr.bf16.mxu0 0
    %5162 = vmatpush1.bf16.msra.mxu0 0
    %5163 = vmatprep.subr.bf16.mxu0 0
    %5164 = vmatpush1.bf16.msra.mxu0 0
    %5165 = vmatprep.subr.bf16.mxu0 %v5135
    %5166 = vmatpush1.bf16.msra.mxu0 %v5134
    %5167 = vmatprep.subr.bf16.mxu0 %v5131
    %5168 = vmatpush1.bf16.msra.mxu0 %v5130
    %5169 = vmatprep.subr.bf16.mxu0 %v5127
    %5170 = vmatpush1.bf16.msra.mxu0 %v5126
    %5171 = vmatprep.subr.bf16.mxu0 %v5123
    %5172 = vmatpush1.bf16.msra.mxu0 %v5122
    %5173 = vmatprep.subr.bf16.mxu0 0
    %5174 = vmatpush2.bf16.msra.mxu0 0
    %5175 = vmatprep.subr.bf16.mxu0 0
    %5176 = vmatpush2.bf16.msra.mxu0 0
    %5177 = vmatprep.subr.bf16.mxu0 0
    %5178 = vmatpush2.bf16.msra.mxu0 0
    %5179 = vmatprep.subr.bf16.mxu0 0
    %5180 = vmatpush2.bf16.msra.mxu0 0
    %5181 = vmatprep.subr.bf16.mxu0 0
    %5182 = vmatpush2.bf16.msra.mxu0 0
    %5183 = vmatprep.subr.bf16.mxu0 0
    %5184 = vmatpush2.bf16.msra.mxu0 0
    %5185 = vmatprep.subr.bf16.mxu0 0
    %5186 = vmatpush2.bf16.msra.mxu0 0
    %5187 = vmatprep.subr.bf16.mxu0 0
    %5188 = vmatpush2.bf16.msra.mxu0 0
    %5189 = vmatprep.mubr.bf16.mxu0 0
    %5190 = vmatmul.mubr.bf16.gmra.mxu0 %v5155
    %v5191 = vpop.f32.mrf.mxu0
    %v5192 = vadd.f32 0.0, %v5191
    %v5193 = vpop.f32.mrf.mxu0
    %v5194 = vadd.f32 0.0, %v5193
    %v5195 = vpop.f32.mrf.mxu0
    %v5196 = vpop.f32.mrf.mxu0
    %5197 = vdwg.mxu0
    %5198 = vmatprep.subr.bf16.mxu0 0
    %5199 = vmatpush1.bf16.msra.mxu0 0
    %5200 = vmatprep.subr.bf16.mxu0 0
    %5201 = vmatpush1.bf16.msra.mxu0 0
    %5202 = vmatprep.subr.bf16.mxu0 0
    %5203 = vmatpush1.bf16.msra.mxu0 0
    %5204 = vmatprep.subr.bf16.mxu0 0
    %5205 = vmatpush1.bf16.msra.mxu0 0
    %5206 = vmatprep.subr.bf16.mxu0 %v5137
    %5207 = vmatpush1.bf16.msra.mxu0 %v5136
    %5208 = vmatprep.subr.bf16.mxu0 %v5133
    %5209 = vmatpush1.bf16.msra.mxu0 %v5132
    %5210 = vmatprep.subr.bf16.mxu0 %v5129
    %5211 = vmatpush1.bf16.msra.mxu0 %v5128
    %5212 = vmatprep.subr.bf16.mxu0 %v5125
    %5213 = vmatpush1.bf16.msra.mxu0 %v5124
    %5214 = vmatprep.subr.bf16.mxu0 0
    %5215 = vmatpush2.bf16.msra.mxu0 0
    %5216 = vmatprep.subr.bf16.mxu0 0
    %5217 = vmatpush2.bf16.msra.mxu0 0
    %5218 = vmatprep.subr.bf16.mxu0 0
    %5219 = vmatpush2.bf16.msra.mxu0 0
    %5220 = vmatprep.subr.bf16.mxu0 0
    %5221 = vmatpush2.bf16.msra.mxu0 0
    %5222 = vmatprep.subr.bf16.mxu0 0
    %5223 = vmatpush2.bf16.msra.mxu0 0
    %5224 = vmatprep.subr.bf16.mxu0 0
    %5225 = vmatpush2.bf16.msra.mxu0 0
    %5226 = vmatprep.subr.bf16.mxu0 0
    %5227 = vmatpush2.bf16.msra.mxu0 0
    %5228 = vmatprep.subr.bf16.mxu0 0
    %5229 = vmatpush2.bf16.msra.mxu0 0
    %5230 = vmatprep.mubr.bf16.mxu0 0
    %5231 = vmatmul.mubr.bf16.gmra.mxu0 %v5155
    %v5232 = vpop.f32.mrf.mxu0
    %v5233 = vadd.f32 0.0, %v5232
    %v5234 = vpop.f32.mrf.mxu0
    %v5235 = vadd.f32 0.0, %v5234
    %v5236 = vpop.f32.mrf.mxu0
    %v5237 = vpop.f32.mrf.mxu0
    %5238 = vdwg.mxu0
    %v5239 = vadd.f32 %v4906, %v5192
    %v5240 = vadd.f32 %v4907, %v5194
    %v5241 = vadd.f32 %v4908, %v5233
    %v5242 = vadd.f32 %v4909, %v5235
    %v5243 = vld [vmem:[%s0 + $0x14] sm:$0x88]
    %v5244 = vld [vmem:[%s0 + $0x1c] sm:$0x88]
    %v5245 = vld [vmem:[%s0 + $0x24] sm:$0x8]
    %v5246 = vld [vmem:[%s0 + $0x3c] sm:$0x88]
    %v5247 = vld [vmem:[%s0 + $0x44] sm:$0x88]
    %v5248 = vld [vmem:[%s0 + $0x4c] sm:$0x8]
    %v5255 = vunpack.c.l.b16 %v5243
    %v5256 = vunpack.c.h.b16 %v5243
    %v5257 = vunpack.c.l.b16 %v5244
    %v5258 = vunpack.c.h.b16 %v5244
    %v5259 = vunpack.c.l.b16 %v5245
    %v5260 = vunpack.c.l.b16 %v5246
    %v5261 = vunpack.c.h.b16 %v5246
    %v5262 = vunpack.c.l.b16 %v5247
    %v5263 = vunpack.c.h.b16 %v5247
    %v5264 = vunpack.c.l.b16 %v5248
    %v5265 = vpack.c.b16 %v5255, %v5255
    %v5266 = vpack.c.b16 %v5256, %v5256
    %v5267 = vpack.c.b16 %v5257, %v5257
    %v5268 = vpack.c.b16 %v5258, %v5258
    %v5269 = vpack.c.b16 %v5259, %v5259
    %v5270 = vpack.c.b16 %v5260, %v5260
    %v5271 = vpack.c.b16 %v5261, %v5261
    %v5272 = vpack.c.b16 %v5262, %v5262
    %v5273 = vpack.c.b16 %v5263, %v5263
    %v5274 = vpack.c.b16 %v5264, %v5264
    %v5275 = vunpack.c.l.b16 %v5265
    %v5276 = vunpack.c.l.b16 %v5266
    %v5277 = vunpack.c.l.b16 %v5267
    %v5278 = vunpack.c.l.b16 %v5268
    %v5279 = vunpack.c.l.b16 %v5269
    %v5280 = vunpack.c.l.b16 %v5270
    %v5281 = vunpack.c.l.b16 %v5271
    %v5282 = vunpack.c.l.b16 %v5272
    %v5283 = vunpack.c.l.b16 %v5273
    %v5284 = vunpack.c.l.b16 %v5274
    %v5285 = vrot.slane %v5275, 6
    %v5286 = vrot.slane %v5280, 5
    %v5287 = vsel %vm140, %v5286, %v5285
    %v5288 = vrot.slane %v5276, 6
    %v5289 = vrot.slane %v5281, 5
    %v5290 = vsel %vm140, %v5289, %v5288
    %v5291 = vrot.slane %v5277, 6
    %v5292 = vrot.slane %v5282, 5
    %v5293 = vsel %vm140, %v5292, %v5291
    %v5294 = vrot.slane %v5278, 6
    %v5295 = vrot.slane %v5283, 5
    %v5296 = vsel %vm140, %v5295, %v5294
    %v5297 = vrot.slane %v5279, 6
    %v5298 = vrot.slane %v5284, 5
    %v5299 = vsel %vm140, %v5298, %v5297
    %v5300 = vpack.c.b16 %v5287, %v5287
    %v5301 = vpack.c.b16 %v5290, %v5290
    %v5302 = vpack.c.b16 %v5293, %v5293
    %v5303 = vpack.c.b16 %v5296, %v5296
    %v5304 = vpack.c.b16 %v5299, %v5299
    %v5310 = vsel %vm375, %v5304, 0
    %5312 = vmatprep.subr.bf16.mxu0 0
    %5313 = vmatpush1.bf16.msra.mxu0 %v310
    %5314 = vmatprep.subr.bf16.mxu0 0
    %5315 = vmatpush1.bf16.msra.mxu0 %v309
    %5316 = vmatprep.subr.bf16.mxu0 0
    %5317 = vmatpush1.bf16.msra.mxu0 %v308
    %5318 = vmatprep.subr.bf16.mxu0 0
    %5319 = vmatpush1.bf16.msra.mxu0 %v307
    %5320 = vmatprep.subr.bf16.mxu0 0
    %5321 = vmatpush1.bf16.msra.mxu0 %v306
    %5322 = vmatprep.subr.bf16.mxu0 0
    %5323 = vmatpush1.bf16.msra.mxu0 %v305
    %5324 = vmatprep.subr.bf16.mxu0 0
    %5325 = vmatpush1.bf16.msra.mxu0 %v304
    %5326 = vmatprep.subr.bf16.mxu0 0
    %5327 = vmatpush1.bf16.msra.mxu0 %v303
    %5328 = vmatprep.subr.bf16.mxu0 0
    %5329 = vmatpush2.bf16.msra.mxu0 %v318
    %5330 = vmatprep.subr.bf16.mxu0 0
    %5331 = vmatpush2.bf16.msra.mxu0 %v317
    %5332 = vmatprep.subr.bf16.mxu0 0
    %5333 = vmatpush2.bf16.msra.mxu0 %v316
    %5334 = vmatprep.subr.bf16.mxu0 0
    %5335 = vmatpush2.bf16.msra.mxu0 %v315
    %5336 = vmatprep.subr.bf16.mxu0 0
    %5337 = vmatpush2.bf16.msra.mxu0 %v314
    %5338 = vmatprep.subr.bf16.mxu0 0
    %5339 = vmatpush2.bf16.msra.mxu0 %v313
    %5340 = vmatprep.subr.bf16.mxu0 0
    %5341 = vmatpush2.bf16.msra.mxu0 %v312
    %5342 = vmatprep.subr.bf16.mxu0 0
    %5343 = vmatpush2.bf16.msra.mxu0 %v311
    %5344 = vmatprep.mubr.bf16.mxu0 %v5301
    %5345 = vmatmul.mubr.bf16.gmra.mxu0 %v5300
    %v5346 = vpop.f32.mrf.mxu0
    %v5347 = vadd.f32 0.0, %v5346
    %v5348 = vpop.f32.mrf.mxu0
    %v5349 = vpop.f32.mrf.mxu0
    %v5350 = vpop.f32.mrf.mxu0
    %5351 = vdwg.mxu0
    %5352 = vmatprep.subr.bf16.mxu0 0
    %5353 = vmatpush1.bf16.msra.mxu0 %v326
    %5354 = vmatprep.subr.bf16.mxu0 0
    %5355 = vmatpush1.bf16.msra.mxu0 %v325
    %5356 = vmatprep.subr.bf16.mxu0 0
    %5357 = vmatpush1.bf16.msra.mxu0 %v324
    %5358 = vmatprep.subr.bf16.mxu0 0
    %5359 = vmatpush1.bf16.msra.mxu0 %v323
    %5360 = vmatprep.subr.bf16.mxu0 0
    %5361 = vmatpush1.bf16.msra.mxu0 %v322
    %5362 = vmatprep.subr.bf16.mxu0 0
    %5363 = vmatpush1.bf16.msra.mxu0 %v321
    %5364 = vmatprep.subr.bf16.mxu0 0
    %5365 = vmatpush1.bf16.msra.mxu0 %v320
    %5366 = vmatprep.subr.bf16.mxu0 0
    %5367 = vmatpush1.bf16.msra.mxu0 %v319
    %5368 = vmatprep.subr.bf16.mxu0 0
    %5369 = vmatpush2.bf16.msra.mxu0 %v334
    %5370 = vmatprep.subr.bf16.mxu0 0
    %5371 = vmatpush2.bf16.msra.mxu0 %v333
    %5372 = vmatprep.subr.bf16.mxu0 0
    %5373 = vmatpush2.bf16.msra.mxu0 %v332
    %5374 = vmatprep.subr.bf16.mxu0 0
    %5375 = vmatpush2.bf16.msra.mxu0 %v331
    %5376 = vmatprep.subr.bf16.mxu0 0
    %5377 = vmatpush2.bf16.msra.mxu0 %v330
    %5378 = vmatprep.subr.bf16.mxu0 0
    %5379 = vmatpush2.bf16.msra.mxu0 %v329
    %5380 = vmatprep.subr.bf16.mxu0 0
    %5381 = vmatpush2.bf16.msra.mxu0 %v328
    %5382 = vmatprep.subr.bf16.mxu0 0
    %5383 = vmatpush2.bf16.msra.mxu0 %v327
    %5384 = vmatprep.mubr.bf16.mxu0 %v5303
    %5385 = vmatmul.mubr.bf16.gmra.mxu0 %v5302
    %v5386 = vpop.f32.mrf.mxu0
    %v5387 = vadd.f32 %v5347, %v5386
    %v5388 = vpop.f32.mrf.mxu0
    %v5389 = vpop.f32.mrf.mxu0
    %v5390 = vpop.f32.mrf.mxu0
    %5391 = vdwg.mxu0
    %5392 = vmatprep.subr.bf16.mxu0 0
    %5393 = vmatpush1.bf16.msra.mxu0 0
    %5394 = vmatprep.subr.bf16.mxu0 0
    %5395 = vmatpush1.bf16.msra.mxu0 0
    %5396 = vmatprep.subr.bf16.mxu0 0
    %5397 = vmatpush1.bf16.msra.mxu0 0
    %5398 = vmatprep.subr.bf16.mxu0 0
    %5399 = vmatpush1.bf16.msra.mxu0 0
    %5400 = vmatprep.subr.bf16.mxu0 0
    %5401 = vmatpush1.bf16.msra.mxu0 %v338
    %5402 = vmatprep.subr.bf16.mxu0 0
    %5403 = vmatpush1.bf16.msra.mxu0 %v337
    %5404 = vmatprep.subr.bf16.mxu0 0
    %5405 = vmatpush1.bf16.msra.mxu0 %v336
    %5406 = vmatprep.subr.bf16.mxu0 0
    %5407 = vmatpush1.bf16.msra.mxu0 %v335
    %5408 = vmatprep.subr.bf16.mxu0 0
    %5409 = vmatpush2.bf16.msra.mxu0 0
    %5410 = vmatprep.subr.bf16.mxu0 0
    %5411 = vmatpush2.bf16.msra.mxu0 0
    %5412 = vmatprep.subr.bf16.mxu0 0
    %5413 = vmatpush2.bf16.msra.mxu0 0
    %5414 = vmatprep.subr.bf16.mxu0 0
    %5415 = vmatpush2.bf16.msra.mxu0 0
    %5416 = vmatprep.subr.bf16.mxu0 0
    %5417 = vmatpush2.bf16.msra.mxu0 0
    %5418 = vmatprep.subr.bf16.mxu0 0
    %5419 = vmatpush2.bf16.msra.mxu0 0
    %5420 = vmatprep.subr.bf16.mxu0 0
    %5421 = vmatpush2.bf16.msra.mxu0 0
    %5422 = vmatprep.subr.bf16.mxu0 0
    %5423 = vmatpush2.bf16.msra.mxu0 0
    %5424 = vmatprep.mubr.bf16.mxu0 0
    %5425 = vmatmul.mubr.bf16.gmra.mxu0 %v5310
    %v5426 = vpop.f32.mrf.mxu0
    %v5427 = vadd.f32 %v5387, %v5426
    %v5428 = vpop.f32.mrf.mxu0
    %v5429 = vpop.f32.mrf.mxu0
    %v5430 = vpop.f32.mrf.mxu0
    %5431 = vdwg.mxu0
    %v5432 = vpack.c.bf16 %v5427, %v5427
    %v5433 = vld [vmem:[%s2 + $0x700] sm:$0xff]
    %v5434 = vld [vmem:[%s2 + $0x708] sm:$0xff]
    %v5435 = vld [vmem:[%s2 + $0x710] sm:$0xff]
    %v5436 = vld [vmem:[%s2 + $0x718] sm:$0xff]
    %v5437 = vld [vmem:[%s2 + $0x720] sm:$0xff]
    %v5438 = vld [vmem:[%s2 + $0x728] sm:$0xff]
    %v5439 = vld [vmem:[%s2 + $0x730] sm:$0xff]
    %v5440 = vld [vmem:[%s2 + $0x738] sm:$0xff]
    %v5441 = vld [vmem:[%s2 + $0x740] sm:$0xff]
    %v5442 = vld [vmem:[%s2 + $0x748] sm:$0xff]
    %v5443 = vld [vmem:[%s2 + $0x750] sm:$0xff]
    %v5444 = vld [vmem:[%s2 + $0x758] sm:$0xff]
    %v5445 = vld [vmem:[%s2 + $0x760] sm:$0xff]
    %v5446 = vld [vmem:[%s2 + $0x768] sm:$0xff]
    %v5447 = vld [vmem:[%s2 + $0x770] sm:$0xff]
    %v5448 = vld [vmem:[%s2 + $0x778] sm:$0xff]
    %v5465 = vunpack.c.l.b16 %v5433
    %v5466 = vunpack.c.h.b16 %v5433
    %v5467 = vunpack.c.l.b16 %v5434
    %v5468 = vunpack.c.h.b16 %v5434
    %v5469 = vunpack.c.l.b16 %v5435
    %v5470 = vunpack.c.h.b16 %v5435
    %v5471 = vunpack.c.l.b16 %v5436
    %v5472 = vunpack.c.h.b16 %v5436
    %v5473 = vunpack.c.l.b16 %v5437
    %v5474 = vunpack.c.h.b16 %v5437
    %v5475 = vunpack.c.l.b16 %v5438
    %v5476 = vunpack.c.h.b16 %v5438
    %v5477 = vunpack.c.l.b16 %v5439
    %v5478 = vunpack.c.h.b16 %v5439
    %v5479 = vunpack.c.l.b16 %v5440
    %v5480 = vunpack.c.h.b16 %v5440
    %v5481 = vunpack.c.l.b16 %v5441
    %v5482 = vunpack.c.h.b16 %v5441
    %v5483 = vunpack.c.l.b16 %v5442
    %v5484 = vunpack.c.h.b16 %v5442
    %v5485 = vunpack.c.l.b16 %v5443
    %v5486 = vunpack.c.h.b16 %v5443
    %v5487 = vunpack.c.l.b16 %v5444
    %v5488 = vunpack.c.h.b16 %v5444
    %v5489 = vunpack.c.l.b16 %v5445
    %v5490 = vunpack.c.h.b16 %v5445
    %v5491 = vunpack.c.l.b16 %v5446
    %v5492 = vunpack.c.h.b16 %v5446
    %v5493 = vunpack.c.l.b16 %v5447
    %v5494 = vunpack.c.h.b16 %v5447
    %v5495 = vunpack.c.l.b16 %v5448
    %v5496 = vunpack.c.h.b16 %v5448
    %v5497 = vpack.c.b16 %v5469, %v5465
    %v5498 = vpack.c.b16 %v5470, %v5466
    %v5499 = vpack.c.b16 %v5471, %v5467
    %v5500 = vpack.c.b16 %v5472, %v5468
    %v5501 = vpack.c.b16 %v5477, %v5473
    %v5502 = vpack.c.b16 %v5478, %v5474
    %v5503 = vpack.c.b16 %v5479, %v5475
    %v5504 = vpack.c.b16 %v5480, %v5476
    %v5505 = vpack.c.b16 %v5485, %v5481
    %v5506 = vpack.c.b16 %v5486, %v5482
    %v5507 = vpack.c.b16 %v5487, %v5483
    %v5508 = vpack.c.b16 %v5488, %v5484
    %v5509 = vpack.c.b16 %v5493, %v5489
    %v5510 = vpack.c.b16 %v5494, %v5490
    %v5511 = vpack.c.b16 %v5495, %v5491
    %v5512 = vpack.c.b16 %v5496, %v5492
    %v5530 = vsel %vm375, %v5432, 0
    %5532 = vmatprep.subr.bf16.mxu0 0
    %5533 = vmatpush1.bf16.msra.mxu0 0
    %5534 = vmatprep.subr.bf16.mxu0 0
    %5535 = vmatpush1.bf16.msra.mxu0 0
    %5536 = vmatprep.subr.bf16.mxu0 0
    %5537 = vmatpush1.bf16.msra.mxu0 0
    %5538 = vmatprep.subr.bf16.mxu0 0
    %5539 = vmatpush1.bf16.msra.mxu0 0
    %5540 = vmatprep.subr.bf16.mxu0 %v5510
    %5541 = vmatpush1.bf16.msra.mxu0 %v5509
    %5542 = vmatprep.subr.bf16.mxu0 %v5506
    %5543 = vmatpush1.bf16.msra.mxu0 %v5505
    %5544 = vmatprep.subr.bf16.mxu0 %v5502
    %5545 = vmatpush1.bf16.msra.mxu0 %v5501
    %5546 = vmatprep.subr.bf16.mxu0 %v5498
    %5547 = vmatpush1.bf16.msra.mxu0 %v5497
    %5548 = vmatprep.subr.bf16.mxu0 0
    %5549 = vmatpush2.bf16.msra.mxu0 0
    %5550 = vmatprep.subr.bf16.mxu0 0
    %5551 = vmatpush2.bf16.msra.mxu0 0
    %5552 = vmatprep.subr.bf16.mxu0 0
    %5553 = vmatpush2.bf16.msra.mxu0 0
    %5554 = vmatprep.subr.bf16.mxu0 0
    %5555 = vmatpush2.bf16.msra.mxu0 0
    %5556 = vmatprep.subr.bf16.mxu0 0
    %5557 = vmatpush2.bf16.msra.mxu0 0
    %5558 = vmatprep.subr.bf16.mxu0 0
    %5559 = vmatpush2.bf16.msra.mxu0 0
    %5560 = vmatprep.subr.bf16.mxu0 0
    %5561 = vmatpush2.bf16.msra.mxu0 0
    %5562 = vmatprep.subr.bf16.mxu0 0
    %5563 = vmatpush2.bf16.msra.mxu0 0
    %5564 = vmatprep.mubr.bf16.mxu0 0
    %5565 = vmatmul.mubr.bf16.gmra.mxu0 %v5530
    %v5566 = vpop.f32.mrf.mxu0
    %v5567 = vadd.f32 0.0, %v5566
    %v5568 = vpop.f32.mrf.mxu0
    %v5569 = vadd.f32 0.0, %v5568
    %v5570 = vpop.f32.mrf.mxu0
    %v5571 = vpop.f32.mrf.mxu0
    %5572 = vdwg.mxu0
    %5573 = vmatprep.subr.bf16.mxu0 0
    %5574 = vmatpush1.bf16.msra.mxu0 0
    %5575 = vmatprep.subr.bf16.mxu0 0
    %5576 = vmatpush1.bf16.msra.mxu0 0
    %5577 = vmatprep.subr.bf16.mxu0 0
    %5578 = vmatpush1.bf16.msra.mxu0 0
    %5579 = vmatprep.subr.bf16.mxu0 0
    %5580 = vmatpush1.bf16.msra.mxu0 0
    %5581 = vmatprep.subr.bf16.mxu0 %v5512
    %5582 = vmatpush1.bf16.msra.mxu0 %v5511
    %5583 = vmatprep.subr.bf16.mxu0 %v5508
    %5584 = vmatpush1.bf16.msra.mxu0 %v5507
    %5585 = vmatprep.subr.bf16.mxu0 %v5504
    %5586 = vmatpush1.bf16.msra.mxu0 %v5503
    %5587 = vmatprep.subr.bf16.mxu0 %v5500
    %5588 = vmatpush1.bf16.msra.mxu0 %v5499
    %5589 = vmatprep.subr.bf16.mxu0 0
    %5590 = vmatpush2.bf16.msra.mxu0 0
    %5591 = vmatprep.subr.bf16.mxu0 0
    %5592 = vmatpush2.bf16.msra.mxu0 0
    %5593 = vmatprep.subr.bf16.mxu0 0
    %5594 = vmatpush2.bf16.msra.mxu0 0
    %5595 = vmatprep.subr.bf16.mxu0 0
    %5596 = vmatpush2.bf16.msra.mxu0 0
    %5597 = vmatprep.subr.bf16.mxu0 0
    %5598 = vmatpush2.bf16.msra.mxu0 0
    %5599 = vmatprep.subr.bf16.mxu0 0
    %5600 = vmatpush2.bf16.msra.mxu0 0
    %5601 = vmatprep.subr.bf16.mxu0 0
    %5602 = vmatpush2.bf16.msra.mxu0 0
    %5603 = vmatprep.subr.bf16.mxu0 0
    %5604 = vmatpush2.bf16.msra.mxu0 0
    %5605 = vmatprep.mubr.bf16.mxu0 0
    %5606 = vmatmul.mubr.bf16.gmra.mxu0 %v5530
    %v5607 = vpop.f32.mrf.mxu0
    %v5608 = vadd.f32 0.0, %v5607
    %v5609 = vpop.f32.mrf.mxu0
    %v5610 = vadd.f32 0.0, %v5609
    %v5611 = vpop.f32.mrf.mxu0
    %v5612 = vpop.f32.mrf.mxu0
    %5613 = vdwg.mxu0
    %v5614 = vadd.f32 %v5239, %v5567
    %v5615 = vadd.f32 %v5240, %v5569
    %v5616 = vadd.f32 %v5241, %v5608
    %v5617 = vadd.f32 %v5242, %v5610
    %v5618 = vrot.slane %v5275, 7
    %v5619 = vrot.slane %v5280, 6
    %v5620 = vsel %vm140, %v5619, %v5618
    %v5621 = vrot.slane %v5276, 7
    %v5622 = vrot.slane %v5281, 6
    %v5623 = vsel %vm140, %v5622, %v5621
    %v5624 = vrot.slane %v5277, 7
    %v5625 = vrot.slane %v5282, 6
    %v5626 = vsel %vm140, %v5625, %v5624
    %v5627 = vrot.slane %v5278, 7
    %v5628 = vrot.slane %v5283, 6
    %v5629 = vsel %vm140, %v5628, %v5627
    %v5630 = vrot.slane %v5279, 7
    %v5631 = vrot.slane %v5284, 6
    %v5632 = vsel %vm140, %v5631, %v5630
    %v5633 = vpack.c.b16 %v5620, %v5620
    %v5634 = vpack.c.b16 %v5623, %v5623
    %v5635 = vpack.c.b16 %v5626, %v5626
    %v5636 = vpack.c.b16 %v5629, %v5629
    %v5637 = vpack.c.b16 %v5632, %v5632
    %v5643 = vsel %vm375, %v5637, 0
    %5645 = vmatprep.subr.bf16.mxu0 0
    %5646 = vmatpush1.bf16.msra.mxu0 %v310
    %5647 = vmatprep.subr.bf16.mxu0 0
    %5648 = vmatpush1.bf16.msra.mxu0 %v309
    %5649 = vmatprep.subr.bf16.mxu0 0
    %5650 = vmatpush1.bf16.msra.mxu0 %v308
    %5651 = vmatprep.subr.bf16.mxu0 0
    %5652 = vmatpush1.bf16.msra.mxu0 %v307
    %5653 = vmatprep.subr.bf16.mxu0 0
    %5654 = vmatpush1.bf16.msra.mxu0 %v306
    %5655 = vmatprep.subr.bf16.mxu0 0
    %5656 = vmatpush1.bf16.msra.mxu0 %v305
    %5657 = vmatprep.subr.bf16.mxu0 0
    %5658 = vmatpush1.bf16.msra.mxu0 %v304
    %5659 = vmatprep.subr.bf16.mxu0 0
    %5660 = vmatpush1.bf16.msra.mxu0 %v303
    %5661 = vmatprep.subr.bf16.mxu0 0
    %5662 = vmatpush2.bf16.msra.mxu0 %v318
    %5663 = vmatprep.subr.bf16.mxu0 0
    %5664 = vmatpush2.bf16.msra.mxu0 %v317
    %5665 = vmatprep.subr.bf16.mxu0 0
    %5666 = vmatpush2.bf16.msra.mxu0 %v316
    %5667 = vmatprep.subr.bf16.mxu0 0
    %5668 = vmatpush2.bf16.msra.mxu0 %v315
    %5669 = vmatprep.subr.bf16.mxu0 0
    %5670 = vmatpush2.bf16.msra.mxu0 %v314
    %5671 = vmatprep.subr.bf16.mxu0 0
    %5672 = vmatpush2.bf16.msra.mxu0 %v313
    %5673 = vmatprep.subr.bf16.mxu0 0
    %5674 = vmatpush2.bf16.msra.mxu0 %v312
    %5675 = vmatprep.subr.bf16.mxu0 0
    %5676 = vmatpush2.bf16.msra.mxu0 %v311
    %5677 = vmatprep.mubr.bf16.mxu0 %v5634
    %5678 = vmatmul.mubr.bf16.gmra.mxu0 %v5633
    %v5679 = vpop.f32.mrf.mxu0
    %v5680 = vadd.f32 0.0, %v5679
    %v5681 = vpop.f32.mrf.mxu0
    %v5682 = vpop.f32.mrf.mxu0
    %v5683 = vpop.f32.mrf.mxu0
    %5684 = vdwg.mxu0
    %5685 = vmatprep.subr.bf16.mxu0 0
    %5686 = vmatpush1.bf16.msra.mxu0 %v326
    %5687 = vmatprep.subr.bf16.mxu0 0
    %5688 = vmatpush1.bf16.msra.mxu0 %v325
    %5689 = vmatprep.subr.bf16.mxu0 0
    %5690 = vmatpush1.bf16.msra.mxu0 %v324
    %5691 = vmatprep.subr.bf16.mxu0 0
    %5692 = vmatpush1.bf16.msra.mxu0 %v323
    %5693 = vmatprep.subr.bf16.mxu0 0
    %5694 = vmatpush1.bf16.msra.mxu0 %v322
    %5695 = vmatprep.subr.bf16.mxu0 0
    %5696 = vmatpush1.bf16.msra.mxu0 %v321
    %5697 = vmatprep.subr.bf16.mxu0 0
    %5698 = vmatpush1.bf16.msra.mxu0 %v320
    %5699 = vmatprep.subr.bf16.mxu0 0
    %5700 = vmatpush1.bf16.msra.mxu0 %v319
    %5701 = vmatprep.subr.bf16.mxu0 0
    %5702 = vmatpush2.bf16.msra.mxu0 %v334
    %5703 = vmatprep.subr.bf16.mxu0 0
    %5704 = vmatpush2.bf16.msra.mxu0 %v333
    %5705 = vmatprep.subr.bf16.mxu0 0
    %5706 = vmatpush2.bf16.msra.mxu0 %v332
    %5707 = vmatprep.subr.bf16.mxu0 0
    %5708 = vmatpush2.bf16.msra.mxu0 %v331
    %5709 = vmatprep.subr.bf16.mxu0 0
    %5710 = vmatpush2.bf16.msra.mxu0 %v330
    %5711 = vmatprep.subr.bf16.mxu0 0
    %5712 = vmatpush2.bf16.msra.mxu0 %v329
    %5713 = vmatprep.subr.bf16.mxu0 0
    %5714 = vmatpush2.bf16.msra.mxu0 %v328
    %5715 = vmatprep.subr.bf16.mxu0 0
    %5716 = vmatpush2.bf16.msra.mxu0 %v327
    %5717 = vmatprep.mubr.bf16.mxu0 %v5636
    %5718 = vmatmul.mubr.bf16.gmra.mxu0 %v5635
    %v5719 = vpop.f32.mrf.mxu0
    %v5720 = vadd.f32 %v5680, %v5719
    %v5721 = vpop.f32.mrf.mxu0
    %v5722 = vpop.f32.mrf.mxu0
    %v5723 = vpop.f32.mrf.mxu0
    %5724 = vdwg.mxu0
    %5725 = vmatprep.subr.bf16.mxu0 0
    %5726 = vmatpush1.bf16.msra.mxu0 0
    %5727 = vmatprep.subr.bf16.mxu0 0
    %5728 = vmatpush1.bf16.msra.mxu0 0
    %5729 = vmatprep.subr.bf16.mxu0 0
    %5730 = vmatpush1.bf16.msra.mxu0 0
    %5731 = vmatprep.subr.bf16.mxu0 0
    %5732 = vmatpush1.bf16.msra.mxu0 0
    %5733 = vmatprep.subr.bf16.mxu0 0
    %5734 = vmatpush1.bf16.msra.mxu0 %v338
    %5735 = vmatprep.subr.bf16.mxu0 0
    %5736 = vmatpush1.bf16.msra.mxu0 %v337
    %5737 = vmatprep.subr.bf16.mxu0 0
    %5738 = vmatpush1.bf16.msra.mxu0 %v336
    %5739 = vmatprep.subr.bf16.mxu0 0
    %5740 = vmatpush1.bf16.msra.mxu0 %v335
    %5741 = vmatprep.subr.bf16.mxu0 0
    %5742 = vmatpush2.bf16.msra.mxu0 0
    %5743 = vmatprep.subr.bf16.mxu0 0
    %5744 = vmatpush2.bf16.msra.mxu0 0
    %5745 = vmatprep.subr.bf16.mxu0 0
    %5746 = vmatpush2.bf16.msra.mxu0 0
    %5747 = vmatprep.subr.bf16.mxu0 0
    %5748 = vmatpush2.bf16.msra.mxu0 0
    %5749 = vmatprep.subr.bf16.mxu0 0
    %5750 = vmatpush2.bf16.msra.mxu0 0
    %5751 = vmatprep.subr.bf16.mxu0 0
    %5752 = vmatpush2.bf16.msra.mxu0 0
    %5753 = vmatprep.subr.bf16.mxu0 0
    %5754 = vmatpush2.bf16.msra.mxu0 0
    %5755 = vmatprep.subr.bf16.mxu0 0
    %5756 = vmatpush2.bf16.msra.mxu0 0
    %5757 = vmatprep.mubr.bf16.mxu0 0
    %5758 = vmatmul.mubr.bf16.gmra.mxu0 %v5643
    %v5759 = vpop.f32.mrf.mxu0
    %v5760 = vadd.f32 %v5720, %v5759
    %v5761 = vpop.f32.mrf.mxu0
    %v5762 = vpop.f32.mrf.mxu0
    %v5763 = vpop.f32.mrf.mxu0
    %5764 = vdwg.mxu0
    %v5765 = vpack.c.bf16 %v5760, %v5760
    %v5766 = vld [vmem:[%s2 + $0x780] sm:$0xff]
    %v5767 = vld [vmem:[%s2 + $0x788] sm:$0xff]
    %v5768 = vld [vmem:[%s2 + $0x790] sm:$0xff]
    %v5769 = vld [vmem:[%s2 + $0x798] sm:$0xff]
    %v5770 = vld [vmem:[%s2 + $0x7a0] sm:$0xff]
    %v5771 = vld [vmem:[%s2 + $0x7a8] sm:$0xff]
    %v5772 = vld [vmem:[%s2 + $0x7b0] sm:$0xff]
    %v5773 = vld [vmem:[%s2 + $0x7b8] sm:$0xff]
    %v5774 = vld [vmem:[%s2 + $0x7c0] sm:$0xff]
    %v5775 = vld [vmem:[%s2 + $0x7c8] sm:$0xff]
    %v5776 = vld [vmem:[%s2 + $0x7d0] sm:$0xff]
    %v5777 = vld [vmem:[%s2 + $0x7d8] sm:$0xff]
    %v5778 = vld [vmem:[%s2 + $0x7e0] sm:$0xff]
    %v5779 = vld [vmem:[%s2 + $0x7e8] sm:$0xff]
    %v5780 = vld [vmem:[%s2 + $0x7f0] sm:$0xff]
    %v5781 = vld [vmem:[%s2 + $0x7f8] sm:$0xff]
    %v5798 = vunpack.c.l.b16 %v5766
    %v5799 = vunpack.c.h.b16 %v5766
    %v5800 = vunpack.c.l.b16 %v5767
    %v5801 = vunpack.c.h.b16 %v5767
    %v5802 = vunpack.c.l.b16 %v5768
    %v5803 = vunpack.c.h.b16 %v5768
    %v5804 = vunpack.c.l.b16 %v5769
    %v5805 = vunpack.c.h.b16 %v5769
    %v5806 = vunpack.c.l.b16 %v5770
    %v5807 = vunpack.c.h.b16 %v5770
    %v5808 = vunpack.c.l.b16 %v5771
    %v5809 = vunpack.c.h.b16 %v5771
    %v5810 = vunpack.c.l.b16 %v5772
    %v5811 = vunpack.c.h.b16 %v5772
    %v5812 = vunpack.c.l.b16 %v5773
    %v5813 = vunpack.c.h.b16 %v5773
    %v5814 = vunpack.c.l.b16 %v5774
    %v5815 = vunpack.c.h.b16 %v5774
    %v5816 = vunpack.c.l.b16 %v5775
    %v5817 = vunpack.c.h.b16 %v5775
    %v5818 = vunpack.c.l.b16 %v5776
    %v5819 = vunpack.c.h.b16 %v5776
    %v5820 = vunpack.c.l.b16 %v5777
    %v5821 = vunpack.c.h.b16 %v5777
    %v5822 = vunpack.c.l.b16 %v5778
    %v5823 = vunpack.c.h.b16 %v5778
    %v5824 = vunpack.c.l.b16 %v5779
    %v5825 = vunpack.c.h.b16 %v5779
    %v5826 = vunpack.c.l.b16 %v5780
    %v5827 = vunpack.c.h.b16 %v5780
    %v5828 = vunpack.c.l.b16 %v5781
    %v5829 = vunpack.c.h.b16 %v5781
    %v5830 = vpack.c.b16 %v5802, %v5798
    %v5831 = vpack.c.b16 %v5803, %v5799
    %v5832 = vpack.c.b16 %v5804, %v5800
    %v5833 = vpack.c.b16 %v5805, %v5801
    %v5834 = vpack.c.b16 %v5810, %v5806
    %v5835 = vpack.c.b16 %v5811, %v5807
    %v5836 = vpack.c.b16 %v5812, %v5808
    %v5837 = vpack.c.b16 %v5813, %v5809
    %v5838 = vpack.c.b16 %v5818, %v5814
    %v5839 = vpack.c.b16 %v5819, %v5815
    %v5840 = vpack.c.b16 %v5820, %v5816
    %v5841 = vpack.c.b16 %v5821, %v5817
    %v5842 = vpack.c.b16 %v5826, %v5822
    %v5843 = vpack.c.b16 %v5827, %v5823
    %v5844 = vpack.c.b16 %v5828, %v5824
    %v5845 = vpack.c.b16 %v5829, %v5825
    %v5863 = vsel %vm375, %v5765, 0
    %5865 = vmatprep.subr.bf16.mxu0 0
    %5866 = vmatpush1.bf16.msra.mxu0 0
    %5867 = vmatprep.subr.bf16.mxu0 0
    %5868 = vmatpush1.bf16.msra.mxu0 0
    %5869 = vmatprep.subr.bf16.mxu0 0
    %5870 = vmatpush1.bf16.msra.mxu0 0
    %5871 = vmatprep.subr.bf16.mxu0 0
    %5872 = vmatpush1.bf16.msra.mxu0 0
    %5873 = vmatprep.subr.bf16.mxu0 %v5843
    %5874 = vmatpush1.bf16.msra.mxu0 %v5842
    %5875 = vmatprep.subr.bf16.mxu0 %v5839
    %5876 = vmatpush1.bf16.msra.mxu0 %v5838
    %5877 = vmatprep.subr.bf16.mxu0 %v5835
    %5878 = vmatpush1.bf16.msra.mxu0 %v5834
    %5879 = vmatprep.subr.bf16.mxu0 %v5831
    %5880 = vmatpush1.bf16.msra.mxu0 %v5830
    %5881 = vmatprep.subr.bf16.mxu0 0
    %5882 = vmatpush2.bf16.msra.mxu0 0
    %5883 = vmatprep.subr.bf16.mxu0 0
    %5884 = vmatpush2.bf16.msra.mxu0 0
    %5885 = vmatprep.subr.bf16.mxu0 0
    %5886 = vmatpush2.bf16.msra.mxu0 0
    %5887 = vmatprep.subr.bf16.mxu0 0
    %5888 = vmatpush2.bf16.msra.mxu0 0
    %5889 = vmatprep.subr.bf16.mxu0 0
    %5890 = vmatpush2.bf16.msra.mxu0 0
    %5891 = vmatprep.subr.bf16.mxu0 0
    %5892 = vmatpush2.bf16.msra.mxu0 0
    %5893 = vmatprep.subr.bf16.mxu0 0
    %5894 = vmatpush2.bf16.msra.mxu0 0
    %5895 = vmatprep.subr.bf16.mxu0 0
    %5896 = vmatpush2.bf16.msra.mxu0 0
    %5897 = vmatprep.mubr.bf16.mxu0 0
    %5898 = vmatmul.mubr.bf16.gmra.mxu0 %v5863
    %v5899 = vpop.f32.mrf.mxu0
    %v5900 = vadd.f32 0.0, %v5899
    %v5901 = vpop.f32.mrf.mxu0
    %v5902 = vadd.f32 0.0, %v5901
    %v5903 = vpop.f32.mrf.mxu0
    %v5904 = vpop.f32.mrf.mxu0
    %5905 = vdwg.mxu0
    %5906 = vmatprep.subr.bf16.mxu0 0
    %5907 = vmatpush1.bf16.msra.mxu0 0
    %5908 = vmatprep.subr.bf16.mxu0 0
    %5909 = vmatpush1.bf16.msra.mxu0 0
    %5910 = vmatprep.subr.bf16.mxu0 0
    %5911 = vmatpush1.bf16.msra.mxu0 0
    %5912 = vmatprep.subr.bf16.mxu0 0
    %5913 = vmatpush1.bf16.msra.mxu0 0
    %5914 = vmatprep.subr.bf16.mxu0 %v5845
    %5915 = vmatpush1.bf16.msra.mxu0 %v5844
    %5916 = vmatprep.subr.bf16.mxu0 %v5841
    %5917 = vmatpush1.bf16.msra.mxu0 %v5840
    %5918 = vmatprep.subr.bf16.mxu0 %v5837
    %5919 = vmatpush1.bf16.msra.mxu0 %v5836
    %5920 = vmatprep.subr.bf16.mxu0 %v5833
    %5921 = vmatpush1.bf16.msra.mxu0 %v5832
    %5922 = vmatprep.subr.bf16.mxu0 0
    %5923 = vmatpush2.bf16.msra.mxu0 0
    %5924 = vmatprep.subr.bf16.mxu0 0
    %5925 = vmatpush2.bf16.msra.mxu0 0
    %5926 = vmatprep.subr.bf16.mxu0 0
    %5927 = vmatpush2.bf16.msra.mxu0 0
    %5928 = vmatprep.subr.bf16.mxu0 0
    %5929 = vmatpush2.bf16.msra.mxu0 0
    %5930 = vmatprep.subr.bf16.mxu0 0
    %5931 = vmatpush2.bf16.msra.mxu0 0
    %5932 = vmatprep.subr.bf16.mxu0 0
    %5933 = vmatpush2.bf16.msra.mxu0 0
    %5934 = vmatprep.subr.bf16.mxu0 0
    %5935 = vmatpush2.bf16.msra.mxu0 0
    %5936 = vmatprep.subr.bf16.mxu0 0
    %5937 = vmatpush2.bf16.msra.mxu0 0
    %5938 = vmatprep.mubr.bf16.mxu0 0
    %5939 = vmatmul.mubr.bf16.gmra.mxu0 %v5863
    %v5940 = vpop.f32.mrf.mxu0
    %v5941 = vadd.f32 0.0, %v5940
    %v5942 = vpop.f32.mrf.mxu0
    %v5943 = vadd.f32 0.0, %v5942
    %v5944 = vpop.f32.mrf.mxu0
    %v5945 = vpop.f32.mrf.mxu0
    %5946 = vdwg.mxu0
    %v5947 = vadd.f32 %v5614, %v5900
    %v5948 = vadd.f32 %v5615, %v5902
    %v5949 = vadd.f32 %v5616, %v5941
    %v5950 = vadd.f32 %v5617, %v5943
    %v5951 = vld [vmem:[%s3] sm:$0xf]
    %v5953 = vlaneseq
    %v5954 = vshrl.u32 %v5953, 7
    %v5955 = vsub.s32 0, %v5954
    %v5956 = vrot.slane %v5951, %v5955
    %v5957 = vlaneseq
    %v5958 = vshrl.u32 %v5957, 7
    %v5959 = vsub.s32 1, %v5958
    %v5960 = vrot.slane %v5951, %v5959
    %v5961 = vlaneseq
    %v5962 = vshrl.u32 %v5961, 7
    %v5963 = vsub.s32 2, %v5962
    %v5964 = vrot.slane %v5951, %v5963
    %v5965 = vlaneseq
    %v5966 = vshrl.u32 %v5965, 7
    %v5967 = vsub.s32 3, %v5966
    %v5968 = vrot.slane %v5951, %v5967
    %v5973 = vadd.f32 %v5947, %v5956
    %v5974 = vadd.f32 %v5948, %v5960
    %v5975 = vadd.f32 %v5949, %v5964
    %v5976 = vadd.f32 %v5950, %v5968
    %v5977 = vmax.f32 %v5973, 0.0
    %v5978 = vmax.f32 %v5974, 0.0
    %v5979 = vmax.f32 %v5975, 0.0
    %v5980 = vmax.f32 %v5976, 0.0
    %v5981 = vpack.c.bf16 %v5977, %v5977
    %v5982 = vpack.c.bf16 %v5978, %v5978
    %v5983 = vpack.c.bf16 %v5979, %v5979
    %v5984 = vpack.c.bf16 %v5980, %v5980
    %v5985 = vld [vmem:[%s4] sm:$0xf]
    %v5986 = vld [vmem:[%s4 + $0x4] sm:$0xf]
    %v5987 = vld [vmem:[%s4 + $0x8] sm:$0xf]
    %v5988 = vld [vmem:[%s4 + $0xc] sm:$0xf]
    %v5989 = vld [vmem:[%s4 + $0x10] sm:$0xf]
    %v5990 = vld [vmem:[%s4 + $0x14] sm:$0xf]
    %v5991 = vld [vmem:[%s4 + $0x18] sm:$0xf]
    %v5992 = vld [vmem:[%s4 + $0x1c] sm:$0xf]
    %v5993 = vld [vmem:[%s4 + $0x20] sm:$0xf]
    %v5994 = vld [vmem:[%s4 + $0x24] sm:$0xf]
    %v5995 = vld [vmem:[%s4 + $0x28] sm:$0xf]
    %v5996 = vld [vmem:[%s4 + $0x2c] sm:$0xf]
    %v5997 = vld [vmem:[%s4 + $0x30] sm:$0xf]
    %v5998 = vld [vmem:[%s4 + $0x34] sm:$0xf]
    %v5999 = vld [vmem:[%s4 + $0x38] sm:$0xf]
    %v6000 = vld [vmem:[%s4 + $0x3c] sm:$0xf]
    %v6001 = vld [vmem:[%s4 + $0x40] sm:$0xf]
    %v6002 = vld [vmem:[%s4 + $0x44] sm:$0xf]
    %v6003 = vld [vmem:[%s4 + $0x48] sm:$0xf]
    %v6004 = vld [vmem:[%s4 + $0x4c] sm:$0xf]
    %v6005 = vld [vmem:[%s4 + $0x50] sm:$0xf]
    %v6006 = vld [vmem:[%s4 + $0x54] sm:$0xf]
    %v6007 = vld [vmem:[%s4 + $0x58] sm:$0xf]
    %v6008 = vld [vmem:[%s4 + $0x5c] sm:$0xf]
    %v6009 = vld [vmem:[%s4 + $0x60] sm:$0xf]
    %v6010 = vld [vmem:[%s4 + $0x64] sm:$0xf]
    %v6011 = vld [vmem:[%s4 + $0x68] sm:$0xf]
    %v6012 = vld [vmem:[%s4 + $0x6c] sm:$0xf]
    %v6013 = vld [vmem:[%s4 + $0x70] sm:$0xf]
    %v6014 = vld [vmem:[%s4 + $0x74] sm:$0xf]
    %v6015 = vld [vmem:[%s4 + $0x78] sm:$0xf]
    %v6016 = vld [vmem:[%s4 + $0x7c] sm:$0xf]
    %v6017 = vld [vmem:[%s4 + $0x80] sm:$0xf]
    %v6018 = vld [vmem:[%s4 + $0x84] sm:$0xf]
    %v6019 = vld [vmem:[%s4 + $0x88] sm:$0xf]
    %v6020 = vld [vmem:[%s4 + $0x8c] sm:$0xf]
    %v6021 = vld [vmem:[%s4 + $0x90] sm:$0xf]
    %v6022 = vld [vmem:[%s4 + $0x94] sm:$0xf]
    %v6023 = vld [vmem:[%s4 + $0x98] sm:$0xf]
    %v6024 = vld [vmem:[%s4 + $0x9c] sm:$0xf]
    %v6025 = vld [vmem:[%s4 + $0xa0] sm:$0xf]
    %v6026 = vld [vmem:[%s4 + $0xa4] sm:$0xf]
    %v6027 = vld [vmem:[%s4 + $0xa8] sm:$0xf]
    %v6028 = vld [vmem:[%s4 + $0xac] sm:$0xf]
    %v6029 = vld [vmem:[%s4 + $0xb0] sm:$0xf]
    %v6030 = vld [vmem:[%s4 + $0xb4] sm:$0xf]
    %v6031 = vld [vmem:[%s4 + $0xb8] sm:$0xf]
    %v6032 = vld [vmem:[%s4 + $0xbc] sm:$0xf]
    %v6033 = vld [vmem:[%s4 + $0xc0] sm:$0xf]
    %v6034 = vld [vmem:[%s4 + $0xc4] sm:$0xf]
    %v6035 = vld [vmem:[%s4 + $0xc8] sm:$0xf]
    %v6036 = vld [vmem:[%s4 + $0xcc] sm:$0xf]
    %v6037 = vld [vmem:[%s4 + $0xd0] sm:$0xf]
    %v6038 = vld [vmem:[%s4 + $0xd4] sm:$0xf]
    %v6039 = vld [vmem:[%s4 + $0xd8] sm:$0xf]
    %v6040 = vld [vmem:[%s4 + $0xdc] sm:$0xf]
    %v6041 = vld [vmem:[%s4 + $0xe0] sm:$0xf]
    %v6042 = vld [vmem:[%s4 + $0xe4] sm:$0xf]
    %v6043 = vld [vmem:[%s4 + $0xe8] sm:$0xf]
    %v6044 = vld [vmem:[%s4 + $0xec] sm:$0xf]
    %v6045 = vld [vmem:[%s4 + $0xf0] sm:$0xf]
    %v6046 = vld [vmem:[%s4 + $0xf4] sm:$0xf]
    %v6047 = vld [vmem:[%s4 + $0xf8] sm:$0xf]
    %v6048 = vld [vmem:[%s4 + $0xfc] sm:$0xf]
    %v6049 = vld [vmem:[%s5] sm:$0x1]
    %v6051 = vlaneseq
    %v6052 = vshrl.u32 %v6051, 7
    %v6053 = vsub.s32 0, %v6052
    %v6054 = vrot.slane %v6049, %v6053
    %v6120 = vunpack.c.l.b16 %v5985
    %v6121 = vunpack.c.l.b16 %v5986
    %v6122 = vunpack.c.l.b16 %v5987
    %v6123 = vunpack.c.l.b16 %v5988
    %v6124 = vunpack.c.l.b16 %v5989
    %v6125 = vunpack.c.l.b16 %v5990
    %v6126 = vunpack.c.l.b16 %v5991
    %v6127 = vunpack.c.l.b16 %v5992
    %v6128 = vunpack.c.l.b16 %v5993
    %v6129 = vunpack.c.l.b16 %v5994
    %v6130 = vunpack.c.l.b16 %v5995
    %v6131 = vunpack.c.l.b16 %v5996
    %v6132 = vunpack.c.l.b16 %v5997
    %v6133 = vunpack.c.l.b16 %v5998
    %v6134 = vunpack.c.l.b16 %v5999
    %v6135 = vunpack.c.l.b16 %v6000
    %v6136 = vunpack.c.l.b16 %v6001
    %v6137 = vunpack.c.l.b16 %v6002
    %v6138 = vunpack.c.l.b16 %v6003
    %v6139 = vunpack.c.l.b16 %v6004
    %v6140 = vunpack.c.l.b16 %v6005
    %v6141 = vunpack.c.l.b16 %v6006
    %v6142 = vunpack.c.l.b16 %v6007
    %v6143 = vunpack.c.l.b16 %v6008
    %v6144 = vunpack.c.l.b16 %v6009
    %v6145 = vunpack.c.l.b16 %v6010
    %v6146 = vunpack.c.l.b16 %v6011
    %v6147 = vunpack.c.l.b16 %v6012
    %v6148 = vunpack.c.l.b16 %v6013
    %v6149 = vunpack.c.l.b16 %v6014
    %v6150 = vunpack.c.l.b16 %v6015
    %v6151 = vunpack.c.l.b16 %v6016
    %v6152 = vunpack.c.l.b16 %v6017
    %v6153 = vunpack.c.l.b16 %v6018
    %v6154 = vunpack.c.l.b16 %v6019
    %v6155 = vunpack.c.l.b16 %v6020
    %v6156 = vunpack.c.l.b16 %v6021
    %v6157 = vunpack.c.l.b16 %v6022
    %v6158 = vunpack.c.l.b16 %v6023
    %v6159 = vunpack.c.l.b16 %v6024
    %v6160 = vunpack.c.l.b16 %v6025
    %v6161 = vunpack.c.l.b16 %v6026
    %v6162 = vunpack.c.l.b16 %v6027
    %v6163 = vunpack.c.l.b16 %v6028
    %v6164 = vunpack.c.l.b16 %v6029
    %v6165 = vunpack.c.l.b16 %v6030
    %v6166 = vunpack.c.l.b16 %v6031
    %v6167 = vunpack.c.l.b16 %v6032
    %v6168 = vunpack.c.l.b16 %v6033
    %v6169 = vunpack.c.l.b16 %v6034
    %v6170 = vunpack.c.l.b16 %v6035
    %v6171 = vunpack.c.l.b16 %v6036
    %v6172 = vunpack.c.l.b16 %v6037
    %v6173 = vunpack.c.l.b16 %v6038
    %v6174 = vunpack.c.l.b16 %v6039
    %v6175 = vunpack.c.l.b16 %v6040
    %v6176 = vunpack.c.l.b16 %v6041
    %v6177 = vunpack.c.l.b16 %v6042
    %v6178 = vunpack.c.l.b16 %v6043
    %v6179 = vunpack.c.l.b16 %v6044
    %v6180 = vunpack.c.l.b16 %v6045
    %v6181 = vunpack.c.l.b16 %v6046
    %v6182 = vunpack.c.l.b16 %v6047
    %v6183 = vunpack.c.l.b16 %v6048
    %v6184 = vpack.c.b16 %v6121, %v6120
    %v6185 = vpack.c.b16 %v6123, %v6122
    %v6186 = vpack.c.b16 %v6125, %v6124
    %v6187 = vpack.c.b16 %v6127, %v6126
    %v6188 = vpack.c.b16 %v6129, %v6128
    %v6189 = vpack.c.b16 %v6131, %v6130
    %v6190 = vpack.c.b16 %v6133, %v6132
    %v6191 = vpack.c.b16 %v6135, %v6134
    %v6192 = vpack.c.b16 %v6137, %v6136
    %v6193 = vpack.c.b16 %v6139, %v6138
    %v6194 = vpack.c.b16 %v6141, %v6140
    %v6195 = vpack.c.b16 %v6143, %v6142
    %v6196 = vpack.c.b16 %v6145, %v6144
    %v6197 = vpack.c.b16 %v6147, %v6146
    %v6198 = vpack.c.b16 %v6149, %v6148
    %v6199 = vpack.c.b16 %v6151, %v6150
    %v6200 = vpack.c.b16 %v6153, %v6152
    %v6201 = vpack.c.b16 %v6155, %v6154
    %v6202 = vpack.c.b16 %v6157, %v6156
    %v6203 = vpack.c.b16 %v6159, %v6158
    %v6204 = vpack.c.b16 %v6161, %v6160
    %v6205 = vpack.c.b16 %v6163, %v6162
    %v6206 = vpack.c.b16 %v6165, %v6164
    %v6207 = vpack.c.b16 %v6167, %v6166
    %v6208 = vpack.c.b16 %v6169, %v6168
    %v6209 = vpack.c.b16 %v6171, %v6170
    %v6210 = vpack.c.b16 %v6173, %v6172
    %v6211 = vpack.c.b16 %v6175, %v6174
    %v6212 = vpack.c.b16 %v6177, %v6176
    %v6213 = vpack.c.b16 %v6179, %v6178
    %v6214 = vpack.c.b16 %v6181, %v6180
    %v6215 = vpack.c.b16 %v6183, %v6182
    %6248 = vmatprep.subr.bf16.mxu0 0
    %6249 = vmatpush1.bf16.msra.mxu0 %v6191
    %6250 = vmatprep.subr.bf16.mxu0 0
    %6251 = vmatpush1.bf16.msra.mxu0 %v6190
    %6252 = vmatprep.subr.bf16.mxu0 0
    %6253 = vmatpush1.bf16.msra.mxu0 %v6189
    %6254 = vmatprep.subr.bf16.mxu0 0
    %6255 = vmatpush1.bf16.msra.mxu0 %v6188
    %6256 = vmatprep.subr.bf16.mxu0 0
    %6257 = vmatpush1.bf16.msra.mxu0 %v6187
    %6258 = vmatprep.subr.bf16.mxu0 0
    %6259 = vmatpush1.bf16.msra.mxu0 %v6186
    %6260 = vmatprep.subr.bf16.mxu0 0
    %6261 = vmatpush1.bf16.msra.mxu0 %v6185
    %6262 = vmatprep.subr.bf16.mxu0 0
    %6263 = vmatpush1.bf16.msra.mxu0 %v6184
    %6264 = vmatprep.subr.bf16.mxu0 0
    %6265 = vmatpush2.bf16.msra.mxu0 %v6199
    %6266 = vmatprep.subr.bf16.mxu0 0
    %6267 = vmatpush2.bf16.msra.mxu0 %v6198
    %6268 = vmatprep.subr.bf16.mxu0 0
    %6269 = vmatpush2.bf16.msra.mxu0 %v6197
    %6270 = vmatprep.subr.bf16.mxu0 0
    %6271 = vmatpush2.bf16.msra.mxu0 %v6196
    %6272 = vmatprep.subr.bf16.mxu0 0
    %6273 = vmatpush2.bf16.msra.mxu0 %v6195
    %6274 = vmatprep.subr.bf16.mxu0 0
    %6275 = vmatpush2.bf16.msra.mxu0 %v6194
    %6276 = vmatprep.subr.bf16.mxu0 0
    %6277 = vmatpush2.bf16.msra.mxu0 %v6193
    %6278 = vmatprep.subr.bf16.mxu0 0
    %6279 = vmatpush2.bf16.msra.mxu0 %v6192
    %6280 = vmatprep.mubr.bf16.mxu0 %v5982
    %6281 = vmatmul.mubr.bf16.gmra.mxu0 %v5981
    %v6282 = vpop.f32.mrf.mxu0
    %v6283 = vadd.f32 %v6054, %v6282
    %v6284 = vpop.f32.mrf.mxu0
    %v6285 = vpop.f32.mrf.mxu0
    %v6286 = vpop.f32.mrf.mxu0
    %6287 = vdwg.mxu0
    %6288 = vmatprep.subr.bf16.mxu0 0
    %6289 = vmatpush1.bf16.msra.mxu0 %v6207
    %6290 = vmatprep.subr.bf16.mxu0 0
    %6291 = vmatpush1.bf16.msra.mxu0 %v6206
    %6292 = vmatprep.subr.bf16.mxu0 0
    %6293 = vmatpush1.bf16.msra.mxu0 %v6205
    %6294 = vmatprep.subr.bf16.mxu0 0
    %6295 = vmatpush1.bf16.msra.mxu0 %v6204
    %6296 = vmatprep.subr.bf16.mxu0 0
    %6297 = vmatpush1.bf16.msra.mxu0 %v6203
    %6298 = vmatprep.subr.bf16.mxu0 0
    %6299 = vmatpush1.bf16.msra.mxu0 %v6202
    %6300 = vmatprep.subr.bf16.mxu0 0
    %6301 = vmatpush1.bf16.msra.mxu0 %v6201
    %6302 = vmatprep.subr.bf16.mxu0 0
    %6303 = vmatpush1.bf16.msra.mxu0 %v6200
    %6304 = vmatprep.subr.bf16.mxu0 0
    %6305 = vmatpush2.bf16.msra.mxu0 %v6215
    %6306 = vmatprep.subr.bf16.mxu0 0
    %6307 = vmatpush2.bf16.msra.mxu0 %v6214
    %6308 = vmatprep.subr.bf16.mxu0 0
    %6309 = vmatpush2.bf16.msra.mxu0 %v6213
    %6310 = vmatprep.subr.bf16.mxu0 0
    %6311 = vmatpush2.bf16.msra.mxu0 %v6212
    %6312 = vmatprep.subr.bf16.mxu0 0
    %6313 = vmatpush2.bf16.msra.mxu0 %v6211
    %6314 = vmatprep.subr.bf16.mxu0 0
    %6315 = vmatpush2.bf16.msra.mxu0 %v6210
    %6316 = vmatprep.subr.bf16.mxu0 0
    %6317 = vmatpush2.bf16.msra.mxu0 %v6209
    %6318 = vmatprep.subr.bf16.mxu0 0
    %6319 = vmatpush2.bf16.msra.mxu0 %v6208
    %6320 = vmatprep.mubr.bf16.mxu0 %v5984
    %6321 = vmatmul.mubr.bf16.gmra.mxu0 %v5983
    %v6322 = vpop.f32.mrf.mxu0
    %v6323 = vadd.f32 %v6283, %v6322
    %v6324 = vpop.f32.mrf.mxu0
    %v6325 = vpop.f32.mrf.mxu0
    %v6326 = vpop.f32.mrf.mxu0
    %6327 = vdwg.mxu0
    %6328 = vst [vmem:[#allocation2] sm:$0x3] %v6323
    // Predicated region
    $region26: #{netc_mnist_forward.5} parent=1 // pred_check
      _
    $region27: #{netc_mnist_forward.5} parent=1 // pred_check_branch
      %6330 = sbr.rel (0) target = $region29
    $region28: #{netc_mnist_forward.5} parent=1 // pred_region
      %s6332 = ssub.s32 32, 32
      %6333 = vsyncadd [#allocation3], %s6332
      %s6335 = sshll.u32 [#allocation2], 4
      %s6336 = int_to_ptr.vmem [resolvable:$true] %s6335
      %6338 = dma.vmem_to_hbm [thread:$0]  %s6336, 32, %s6, [#allocation3]
    $region29: #{netc_mnist_forward.5} parent=1 // pred_fallthru
      _
    // Predicated region
    $region30: #{netc_mnist_forward.5} parent=1 // pred_check
      _
    $region31: #{netc_mnist_forward.5} parent=1 // pred_check_branch
      %6340 = sbr.rel (0) target = $region33
    $region32: #{netc_mnist_forward.5} parent=1 // pred_region
      %6341 = dma.done [#allocation3], 32
    $region33: #{netc_mnist_forward.5} parent=1 // pred_fallthru
      _
    %6342 = vsyncpa [#allocation3], 1

</llo_original>
